<compile_context>
chip_gen: v7x
topology: tpu7x:2x2x1
jax: 0.10.0
libtpu: 0.0.40
codegen_flags: <defaults>
</compile_context>

<pallas_src>
import jax
import jax.numpy as jnp
from jax.experimental import pallas as pl
from jax.experimental.pallas import tpu as pltpu

IN_FEATURES = 256 * 256   # 65536
H1 = 256
H2 = 128
OUT = 1
NEG_SLOPE = 0.01          # F.leaky_relu default negative_slope


def _leaky_relu(x):
    return jnp.where(x >= 0, x, NEG_SLOPE * x)


# --------------------------------------------------------------------------- #
# Kernel 1: fc1 partial matmul  (the hot, HBM-bound part)
#   grid = (nsplit, steps) ; "parallel" split axis x "arbitrary" reduction axis
#   Each split s accumulates its contiguous K-slice of  x @ w1  into a VMEM
#   scratch and writes a partial (B, H1) f32 result on its last reduction step.
# --------------------------------------------------------------------------- #
def fc1_partial_kernel(x_ref, w1_ref, part_ref, acc_ref):
    k = pl.program_id(1)

    @pl.when(k == 0)
    def _():
        acc_ref[...] = jnp.zeros_like(acc_ref)

    # bf16 x bf16 -> f32 accumulate on the MXU.
    acc_ref[...] += jnp.dot(x_ref[...], w1_ref[...],
                            preferred_element_type=jnp.float32)

    @pl.when(k == pl.num_programs(1) - 1)
    def _():
        part_ref[...] = acc_ref[...]


# --------------------------------------------------------------------------- #
# Kernel 2: reduce the nsplit partials + bias + tail MLP + sigmoid (tiny).
# --------------------------------------------------------------------------- #
def tail_kernel(part_ref, b1_ref, w2_ref, b2_ref, w3_ref, b3_ref, o_ref):
    h1 = _leaky_relu(jnp.sum(part_ref[...], axis=0) + b1_ref[...])   # fc1
    # drop1: identity (eval mode)
    h2 = _leaky_relu(jnp.dot(h1, w2_ref[...],
                             preferred_element_type=jnp.float32)
                     + b2_ref[...])                                  # fc2
    # drop2: identity (eval mode)
    h3 = jnp.dot(h2, w3_ref[...],
                 preferred_element_type=jnp.float32) + b3_ref[...]   # fc3
    o_ref[...] = jax.nn.sigmoid(h3).astype(o_ref.dtype)


def discriminator_forward(x, params, *, tk=8192, nsplit=2,
                          compute_dtype=jnp.bfloat16):
    B, K = x.shape
    assert K == IN_FEATURES
    assert K % (nsplit * tk) == 0, (K, nsplit, tk)
    w1, b1, w2, b2, w3, b3 = params

    # Stream the dominant fc1 operands in bf16 (f32 accumulation preserved).
    x_c = x.astype(compute_dtype)
    w1_c = w1.astype(compute_dtype)
    itemsize = jnp.dtype(compute_dtype).itemsize

    steps = K // (nsplit * tk)   # reduction steps per split

    # ---- stage 1: partial fc1 ------------------------------------------------
    partials = pl.pallas_call(
        fc1_partial_kernel,
        out_shape=jax.ShapeDtypeStruct((nsplit, B, H1), jnp.float32),
        grid_spec=pltpu.PrefetchScalarGridSpec(
            num_scalar_prefetch=0,
            grid=(nsplit, steps),
            in_specs=[
                # x: (B, 65536) bf16 — contiguous K slices per split
                pl.BlockSpec((B, tk), lambda s, k: (0, s * steps + k)),
                # w1: (65536, 256) bf16 — contiguous row slices per split
                pl.BlockSpec((tk, H1), lambda s, k: (s * steps + k, 0)),
            ],
            # squeezed leading dim -> kernel sees a (B, H1) partial per split
            out_specs=pl.BlockSpec((None, B, H1), lambda s, k: (s, 0, 0)),
            scratch_shapes=[pltpu.VMEM((B, H1), jnp.float32)],
        ),
        compiler_params=pltpu.CompilerParams(
            dimension_semantics=("parallel", "arbitrary"),
            vmem_limit_bytes=32 << 20),
        cost_estimate=pl.CostEstimate(
            flops=2 * B * K * H1,
            bytes_accessed=(K * H1 + B * K) * itemsize + nsplit * B * H1 * 4,
            transcendentals=0),
    )(x_c, w1_c)

    # ---- stage 2: reduce partials + fused tail MLP ---------------------------
    out = pl.pallas_call(
        tail_kernel,
        out_shape=jax.ShapeDtypeStruct((B, OUT), x.dtype),
        grid_spec=pltpu.PrefetchScalarGridSpec(
            num_scalar_prefetch=0,
            grid=(1,),
            in_specs=[
                pl.BlockSpec((nsplit, B, H1), lambda i: (0, 0, 0)),  # partials
                pl.BlockSpec((1, H1), lambda i: (0, 0)),             # b1
                pl.BlockSpec((H1, H2), lambda i: (0, 0)),            # w2
                pl.BlockSpec((1, H2), lambda i: (0, 0)),             # b2
                pl.BlockSpec((H2, OUT), lambda i: (0, 0)),           # w3
                pl.BlockSpec((1, OUT), lambda i: (0, 0)),            # b3
            ],
            out_specs=pl.BlockSpec((B, OUT), lambda i: (0, 0)),
        ),
        compiler_params=pltpu.CompilerParams(
            dimension_semantics=("arbitrary",)),
        cost_estimate=pl.CostEstimate(
            flops=2 * B * (H1 * H2 + H2 * OUT) + nsplit * B * H1,
            bytes_accessed=(nsplit * B * H1 + H1 * H2 + H2 * OUT) * 4,
            transcendentals=B * OUT),
    )(partials, b1, w2, b2, w3, b3)
    return out


def init_params(key):
    """Deterministic init mimicking PyTorch nn.Linear defaults
    (uniform(-1/sqrt(fan_in), 1/sqrt(fan_in)))."""
    ks = jax.random.split(key, 6)

    def linear(kw, kb, fan_in, fan_out):
        bound = 1.0 / (fan_in ** 0.5)
        w = jax.random.uniform(kw, (fan_in, fan_out), jnp.float32, -bound, bound)
        b = jax.random.uniform(kb, (1, fan_out), jnp.float32, -bound, bound)
        return w, b

    w1, b1 = linear(ks[0], ks[1], IN_FEATURES, H1)
    w2, b2 = linear(ks[2], ks[3], H1, H2)
    w3, b3 = linear(ks[4], ks[5], H2, OUT)
    return (w1, b1, w2, b2, w3, b3)


def reference_forward(x, params, compute_dtype=jnp.bfloat16):
    """Pure-JAX reference using the same bf16 precision policy for fc1."""
    w1, b1, w2, b2, w3, b3 = params
    xc = x.astype(compute_dtype).astype(jnp.float32)
    w1c = w1.astype(compute_dtype).astype(jnp.float32)
    h = _leaky_relu(xc @ w1c + b1)
    h = _leaky_relu(h @ w2 + b2)
    return jax.nn.sigmoid(h @ w3 + b3)


if __name__ == "__main__":
    key = jax.random.PRNGKey(0)
    k_params, k_x = jax.random.split(key)
    params = init_params(k_params)

    B = 2
    x = jax.random.normal(k_x, (B, IN_FEATURES), jnp.float32)

    out = discriminator_forward(x, params)
    out = jax.block_until_ready(out)

    ref = reference_forward(x, params)
    assert out.shape == (B, OUT), out.shape
    assert jnp.allclose(out, ref, atol=1e-3, rtol=1e-3), (out, ref)

    print("KERNEL_OK")
</pallas_src>

<mosaic_0001>
module attributes {stable_mosaic.version = 11 : i64} {
  func.func @fc1_partial_kernel(%arg0: i32, %arg1: i32, %arg2: memref<2x8192xbf16, #tpu.memory_space<vmem>>, %arg3: memref<8192x256xbf16, #tpu.memory_space<vmem>>, %arg4: memref<1x2x256xf32, #tpu.memory_space<vmem>>, %arg5: memref<2x256xf32, #tpu.memory_space<vmem>>) attributes {dimension_semantics = [#tpu.dimension_semantics<parallel>, #tpu.dimension_semantics<arbitrary>], iteration_bounds = array<i64: 2, 4>, scalar_prefetch = 0 : i64, scratch_operands = 1 : i64, tpu.core_type = #tpu.core_type<tc>, window_params = [{transform_indices = @transform_0, window_bounds = array<i64: 2, 8192>}, {transform_indices = @transform_1, window_bounds = array<i64: 8192, 256>}, {transform_indices = @transform_2, window_bounds = array<i64: 1, 2, 256>}]} {
    %c0_i32 = arith.constant 0 : i32
    %0 = arith.cmpi eq, %arg1, %c0_i32 : i32
    %1 = arith.extui %0 : i1 to i32
    %c0_i32_0 = arith.constant 0 : i32
    %2 = arith.cmpi ne, %1, %c0_i32_0 : i32
    scf.if %2 {
      %cst_9 = arith.constant 0.000000e+00 : f32
      %12 = vector.broadcast %cst_9 : f32 to vector<2x256xf32>
      %c0_10 = arith.constant 0 : index
      %c0_11 = arith.constant 0 : index
      %13 = vector.load %arg5[%c0_10, %c0_11] : memref<2x256xf32, #tpu.memory_space<vmem>>, vector<2x256xf32>
      tpu.vector_store %arg5[%c0_10, %c0_11], %12 {strides = array<i32>} : memref<2x256xf32, #tpu.memory_space<vmem>>, vector<2x256xf32>,
    } else {
    }
    %c0 = arith.constant 0 : index
    %c0_1 = arith.constant 0 : index
    %3 = vector.load %arg5[%c0, %c0_1] : memref<2x256xf32, #tpu.memory_space<vmem>>, vector<2x256xf32>
    %c0_2 = arith.constant 0 : index
    %c0_3 = arith.constant 0 : index
    %4 = vector.load %arg2[%c0_2, %c0_3] : memref<2x8192xbf16, #tpu.memory_space<vmem>>, vector<2x8192xbf16>
    %c0_4 = arith.constant 0 : index
    %c0_5 = arith.constant 0 : index
    %5 = vector.load %arg3[%c0_4, %c0_5] : memref<8192x256xbf16, #tpu.memory_space<vmem>>, vector<8192x256xbf16>
    %cst = arith.constant dense<0.000000e+00> : vector<2x256xf32>
    %6 = tpu.matmul %4, %5, %cst {dimension_numbers = #tpu.dot_dimension_numbers<[1], [0], [0], [1], [0, 0, 1, 1], [], []>} : vector<2x8192xbf16>, vector<8192x256xbf16>, vector<2x256xf32> -> vector<2x256xf32>
    %7 = arith.addf %3, %6 : vector<2x256xf32>
    %c0_6 = arith.constant 0 : index
    %c0_7 = arith.constant 0 : index
    %8 = vector.load %arg5[%c0_6, %c0_7] : memref<2x256xf32, #tpu.memory_space<vmem>>, vector<2x256xf32>
    tpu.vector_store %arg5[%c0_6, %c0_7], %7 {strides = array<i32>} : memref<2x256xf32, #tpu.memory_space<vmem>>, vector<2x256xf32>,
    %c3_i32 = arith.constant 3 : i32
    %9 = arith.cmpi eq, %arg1, %c3_i32 : i32
    %10 = arith.extui %9 : i1 to i32
    %c0_i32_8 = arith.constant 0 : i32
    %11 = arith.cmpi ne, %10, %c0_i32_8 : i32
    scf.if %11 {
      %c0_9 = arith.constant 0 : index
      %c0_10 = arith.constant 0 : index
      %12 = vector.load %arg5[%c0_9, %c0_10] : memref<2x256xf32, #tpu.memory_space<vmem>>, vector<2x256xf32>
      %c0_11 = arith.constant 0 : index
      %c0_12 = arith.constant 0 : index
      %c0_13 = arith.constant 0 : index
      %13 = vector.load %arg4[%c0_11, %c0_12, %c0_13] : memref<1x2x256xf32, #tpu.memory_space<vmem>>, vector<1x2x256xf32>
      %14 = vector.shape_cast %13 : vector<1x2x256xf32> to vector<2x256xf32>
      %15 = vector.shape_cast %12 : vector<2x256xf32> to vector<1x2x256xf32>
      tpu.vector_store %arg4[%c0_11, %c0_12, %c0_13], %15 {strides = array<i32>} : memref<1x2x256xf32, #tpu.memory_space<vmem>>, vector<1x2x256xf32>,
    } else {
    }
    return
  }
  func.func @transform_0(%arg0: i32, %arg1: i32) -> (i32, i32) {
    %c4_i32 = arith.constant 4 : i32
    %0 = arith.muli %arg0, %c4_i32 : i32
    %1 = arith.addi %0, %arg1 : i32
    %c0_i32 = arith.constant 0 : i32
    %c0_i32_0 = arith.constant 0 : i32
    return %c0_i32, %1 : i32, i32
  }
  func.func @transform_1(%arg0: i32, %arg1: i32) -> (i32, i32) {
    %c4_i32 = arith.constant 4 : i32
    %0 = arith.muli %arg0, %c4_i32 : i32
    %1 = arith.addi %0, %arg1 : i32
    %c0_i32 = arith.constant 0 : i32
    %c0_i32_0 = arith.constant 0 : i32
    return %1, %c0_i32 : i32, i32
  }
  func.func @transform_2(%arg0: i32, %arg1: i32) -> (i32, i32, i32) {
    %c0_i32 = arith.constant 0 : i32
    %c0_i32_0 = arith.constant 0 : i32
    %c0_i32_1 = arith.constant 0 : i32
    return %arg0, %c0_i32, %c0_i32_0 : i32, i32, i32
  }
}

</mosaic_0001>

<llo_original>
// kernel: tpu_custom_call.1
$region0: #{tpu_custom_call.1}
  #allocation0 [shape = 'u32[]', space=smem, size = 0x4, offset = 0x4, fixed_abs, tag = 'smem constant byte address 0x4 - core index']
  #allocation1 [shape = 'u32[144,128]{1,0:T(1,128)}', space=vmem, size = 0x12000, scoped, tag = 'internal scratch']
  #allocation2 [shape = 'f32[2,256]{1,0:T(2,128)}', space=vmem, size = 0x800, scoped, tag = 'scratch operand']
  %s0 = inlined_call_operand.hbm [shape: bf16[2,65536], index: 0, kind: input, shape index: {}]
  %s1 = inlined_call_operand.hbm [shape: bf16[65536,256], index: 1, kind: input, shape index: {}]
  %s2 = inlined_call_operand.hbm [shape: f32[2,2,256], index: 2, kind: output, shape index: {}]
  %s3 = sld [smem:[#allocation0]]
  $region57: #{tpu_custom_call.1} parent=0
    _
  %s5 = ssub.s32 1, %s3
  %s6 = scalar_select 0, %s5, %s3
  $region1: #{tpu_custom_call.1} parent=0
    #allocation3 [shape = 'u8[65536]{0}', space=vmem, size = 0x10000, scoped, tag = 'input window, operand 0']
    #allocation4 [shape = 's32[2]{0}', space=sflag, size = 0x8, scoped, tag = 'scoped memory for tpu_custom_call.1']
    #allocation5 [shape = 's32[2]{0}', space=sflag, size = 0x8, scoped, tag = 'scoped memory for tpu_custom_call.1']
    #allocation6 [shape = 'u8[8388608]{0}', space=vmem, size = 0x800000, scoped, tag = 'input window, operand 1']
    #allocation7 [shape = 's32[2]{0}', space=sflag, size = 0x8, scoped, tag = 'scoped memory for tpu_custom_call.1']
    #allocation8 [shape = 'u8[4096]{0}', space=vmem, size = 0x1000, scoped, tag = 'output window, operand 0']
    %7 = vsyncpa [#allocation4], 0
    %s8 = scalar_lea.sflag [#allocation4], 1
    %9 = vsyncpa %s8, 0
    %10 = vsyncpa [#allocation7], 0
    %s11 = scalar_lea.sflag [#allocation7], 1
    %12 = vsyncpa %s11, 0
    %13 = vsyncpa [#allocation5], 0
    %s14 = scalar_lea.sflag [#allocation5], 1
    %15 = vsyncpa %s14, 0
    loop: start=0, step=1, limit=10
    $region2: #{tpu_custom_call.1} parent=1 // loop_pre_header
      _
    $region3: #{tpu_custom_call.1} parent=1 // loop_header
      %s17 = sphi 0, %s21
      %p18 = scmp.ge.s32.totalorder %s17, 10
      %s24 = sphi 0, %s36
      %s25 = sphi 0, %s32
      %s26 = sphi 0, %s24
      %s27 = sphi 0, %s25
      %s28 = sphi 0, %s26
      %s29 = sphi 0, %s27
      %s43 = sphi 0, %s45
      %s46 = sphi 0, %s43
      %s47 = sphi 0, %s46
      %s63 = sphi 0, %s47
      %s73 = sphi 0, %s75
      %s76 = sphi 0, %s73
      %s77 = sphi 0, %s76
      %s93 = sphi 0, %s77
      %s99 = sphi 0, %s101
      %s102 = sphi 0, %s99
      %s103 = sphi 0, %s102
      %s119 = sphi 0, %s103
    $region4: #{tpu_custom_call.1} parent=1 // loop_header_branch
      %20 = sbr.rel (%p18) target = $region8
    $region5: #{tpu_custom_call.1} parent=1 // loop_body
      %s22 = ssub.s32 %s17, 1
      %s23 = ssub.s32 %s17, 2
      %s30 = sadd.s32 1, %s25
      %p31 = scmp.ge.s32.totalorder %s30, 4
      %s32 = scalar_select %p31, 0, %s30
      %s33 = sadd.s32 1, %s24
      %s34 = scalar_select %p31, %s33, %s24
      %p35 = scmp.ge.s32.totalorder %s34, 2
      %s36 = scalar_select %p35, 0, %s34
      %s37 = smul.u32 %s24, 4
      %s38 = sadd.s32 %s37, %s25
      %s39 = smul.u32 %s36, 4
      %s40 = sadd.s32 %s39, %s32
      %s41 = ssub.s32 %s38, %s40
      %p42 = scmp.eq.s32.totalorder %s41, 0
      %s44 = sadd.s32 %s43, 1
      %s45 = scalar_select %p42, %s43, %s44
      %p48 = pneg %p42
      %p49 = scmp.eq.s32.totalorder %s17, 7
      %p50 = por %p48, %p49
      %p51 = scmp.ne.s32.totalorder %s43, %s46
      %p52 = scmp.eq.s32.totalorder %s17, 0
      %p53 = por %p51, %p52
      %p54 = scmp.ne.s32.totalorder %s43, %s46
      %p55 = scmp.eq.s32.totalorder %s22, 7
      %p56 = por %p54, %p55
      %p57 = scmp.ne.s32.totalorder %s46, %s47
      %p58 = scmp.eq.s32.totalorder %s22, 0
      %p59 = por %p57, %p58
      %p60 = scmp.ne.s32.totalorder %s46, %s47
      %p61 = scmp.eq.s32.totalorder %s23, 7
      %p62 = por %p60, %p61
      %p64 = scmp.ne.s32.totalorder %s47, %s63
      %p65 = scmp.eq.s32.totalorder %s23, 0
      %p66 = por %p64, %p65
      %s67 = smul.u32 %s24, 4
      %s68 = sadd.s32 %s67, %s25
      %s69 = smul.u32 %s36, 4
      %s70 = sadd.s32 %s69, %s32
      %s71 = ssub.s32 %s68, %s70
      %p72 = scmp.eq.s32.totalorder %s71, 0
      %s74 = sadd.s32 %s73, 1
      %s75 = scalar_select %p72, %s73, %s74
      %p78 = pneg %p72
      %p79 = scmp.eq.s32.totalorder %s17, 7
      %p80 = por %p78, %p79
      %p81 = scmp.ne.s32.totalorder %s73, %s76
      %p82 = scmp.eq.s32.totalorder %s17, 0
      %p83 = por %p81, %p82
      %p84 = scmp.ne.s32.totalorder %s73, %s76
      %p85 = scmp.eq.s32.totalorder %s22, 7
      %p86 = por %p84, %p85
      %p87 = scmp.ne.s32.totalorder %s76, %s77
      %p88 = scmp.eq.s32.totalorder %s22, 0
      %p89 = por %p87, %p88
      %p90 = scmp.ne.s32.totalorder %s76, %s77
      %p91 = scmp.eq.s32.totalorder %s23, 7
      %p92 = por %p90, %p91
      %p94 = scmp.ne.s32.totalorder %s77, %s93
      %p95 = scmp.eq.s32.totalorder %s23, 0
      %p96 = por %p94, %p95
      %s97 = ssub.s32 %s24, %s36
      %p98 = scmp.eq.s32.totalorder %s97, 0
      %s100 = sadd.s32 %s99, 1
      %s101 = scalar_select %p98, %s99, %s100
      %p104 = pneg %p98
      %p105 = scmp.eq.s32.totalorder %s17, 7
      %p106 = por %p104, %p105
      %p107 = scmp.ne.s32.totalorder %s99, %s102
      %p108 = scmp.eq.s32.totalorder %s17, 0
      %p109 = por %p107, %p108
      %p110 = scmp.ne.s32.totalorder %s99, %s102
      %p111 = scmp.eq.s32.totalorder %s22, 7
      %p112 = por %p110, %p111
      %p113 = scmp.ne.s32.totalorder %s102, %s103
      %p114 = scmp.eq.s32.totalorder %s22, 0
      %p115 = por %p113, %p114
      %p116 = scmp.ne.s32.totalorder %s102, %s103
      %p117 = scmp.eq.s32.totalorder %s23, 7
      %p118 = por %p116, %p117
      %p120 = scmp.ne.s32.totalorder %s103, %s119
      %p121 = scmp.eq.s32.totalorder %s23, 0
      %p122 = por %p120, %p121
      %p123 = scmp.le.s32.totalorder 1, %s17
      %p124 = scmp.lt.s32.totalorder %s17, 9
      %p125 = pnand %p123, %p124
      %p126 = pneg %p125
      // Predicated region
      $region9: #{tpu_custom_call.1} parent=5 // pred_check
        _
      $region10: #{tpu_custom_call.1} parent=5 // pred_check_branch
        %128 = sbr.rel (%p125) target = $region12
      $region11: #{tpu_custom_call.1} parent=5 // pred_region
        %s129 = ssub.s32 %s17, 1
      $region12: #{tpu_custom_call.1} parent=5 // pred_fallthru
        _
      %p130 = scmp.lt.s32.totalorder %s17, 8
      // Predicated region
      $region13: #{tpu_custom_call.1} parent=5 // pred_check
        %p131 = pneg %p130
      $region14: #{tpu_custom_call.1} parent=5 // pred_check_branch
        %133 = sbr.rel (%p131) target = $region16
      $region15: #{tpu_custom_call.1} parent=5 // pred_region
        // Predicated region
        $region17: #{tpu_custom_call.1} parent=15 // pred_check
          %p134 = pneg %p53
        $region18: #{tpu_custom_call.1} parent=15 // pred_check_branch
          %136 = sbr.rel (%p134) target = $region20
        $region19: #{tpu_custom_call.1} parent=15 // pred_region
          %s137 = sand.u32 %s43, 1
          %s138 = scalar_lea.sflag [#allocation4], %s137
          %s139 = sand.u32 %s43, 1
          %s140 = smul.addr %s139, 64
          %s141 = scalar_lea.vmem [#allocation3], %s140
          %s142 = smul.u32 %s24, 4
          %s143 = sadd.s32 %s142, %s25
          %s144 = smul.u32 64, %s143
          %s146 = ssub.s32 1024, 1024
          %147 = vsyncadd %s138, %s146
          %s148 = smul.addr %s144, 16
          %s149 = scalar_lea.hbm %s0, %s148
          %s151 = sshll.u32 %s141, 4
          %s152 = int_to_ptr.vmem [resolvable:$true] %s151
          %154 = dma.hbm_to_vmem [thread:$0]  %s149, 1024, %s152, %s138
        $region20: #{tpu_custom_call.1} parent=15 // pred_fallthru
          _
        // Predicated region
        $region21: #{tpu_custom_call.1} parent=15 // pred_check
          %p155 = pneg %p83
        $region22: #{tpu_custom_call.1} parent=15 // pred_check_branch
          %157 = sbr.rel (%p155) target = $region24
        $region23: #{tpu_custom_call.1} parent=15 // pred_region
          %s158 = sand.u32 %s73, 1
          %s159 = scalar_lea.sflag [#allocation7], %s158
          %s160 = sand.u32 %s73, 1
          %s161 = smul.addr %s160, 8192
          %s162 = scalar_lea.vmem [#allocation6], %s161
          %s163 = smul.u32 %s24, 4
          %s164 = sadd.s32 %s163, %s25
          %s165 = smul.u32 1024, %s164
          %s167 = ssub.s32 131072, 131072
          %168 = vsyncadd %s159, %s167
          %s169 = smul.addr %s165, 2
          %s170 = smul.addr %s169, 64
          %s171 = scalar_lea.hbm %s1, %s170
          %s172 = sshll.u32 %s162, 4
          %s173 = int_to_ptr.vmem [resolvable:$true] %s172
          %178 = dma.hbm_to_vmem [thread:$0]  %s171, 131072, %s173, %s159, 128, 128, 8
        $region24: #{tpu_custom_call.1} parent=15 // pred_fallthru
          _
      $region16: #{tpu_custom_call.1} parent=5 // pred_fallthru
        _
      %p179 = scmp.le.s32.totalorder 1, %s17
      %p180 = scmp.lt.s32.totalorder %s17, 9
      %p181 = pnand %p179, %p180
      %p182 = pneg %p181
      // Predicated region
      $region25: #{tpu_custom_call.1} parent=5 // pred_check
        _
      $region26: #{tpu_custom_call.1} parent=5 // pred_check_branch
        %184 = sbr.rel (%p181) target = $region28
      $region27: #{tpu_custom_call.1} parent=5 // pred_region
        %s185 = ssub.s32 %s17, 1
        %s186 = sand.u32 %s46, 1
        %s187 = scalar_lea.sflag [#allocation4], %s186
        %s188 = sand.u32 %s46, 1
        %s189 = smul.addr %s188, 64
        %s190 = scalar_lea.vmem [#allocation3], %s189
        // Predicated region
        $region29: #{tpu_custom_call.1} parent=27 // pred_check
          %p191 = pneg %p59
        $region30: #{tpu_custom_call.1} parent=27 // pred_check_branch
          %193 = sbr.rel (%p191) target = $region32
        $region31: #{tpu_custom_call.1} parent=27 // pred_region
          %194 = dma.done %s187, 1024
        $region32: #{tpu_custom_call.1} parent=27 // pred_fallthru
          _
        %s195 = sand.u32 %s76, 1
        %s196 = scalar_lea.sflag [#allocation7], %s195
        %s197 = sand.u32 %s76, 1
        %s198 = smul.addr %s197, 8192
        %s199 = scalar_lea.vmem [#allocation6], %s198
        // Predicated region
        $region33: #{tpu_custom_call.1} parent=27 // pred_check
          %p200 = pneg %p89
        $region34: #{tpu_custom_call.1} parent=27 // pred_check_branch
          %202 = sbr.rel (%p200) target = $region36
        $region35: #{tpu_custom_call.1} parent=27 // pred_region
          %203 = dma.done %s196, 131072
        $region36: #{tpu_custom_call.1} parent=27 // pred_fallthru
          _
        %s204 = sand.u32 %s46, 1
        %s205 = scalar_lea.sflag [#allocation4], %s204
        %s206 = sand.u32 %s46, 1
        %s207 = smul.addr %s206, 64
        %s208 = scalar_lea.vmem [#allocation3], %s207
        %p209 = pneg %p59
        %p210 = pneg %p56
        %s211 = sand.u32 %s76, 1
        %s212 = scalar_lea.sflag [#allocation7], %s211
        %s213 = sand.u32 %s76, 1
        %s214 = smul.addr %s213, 8192
        %s215 = scalar_lea.vmem [#allocation6], %s214
        %p216 = pneg %p89
        %p217 = pneg %p86
        %p218 = pneg %p115
        %p219 = pneg %p112
        %s220 = sand.u32 %s102, 1
        %s221 = scalar_lea.sflag [#allocation5], %s220
        %s222 = sand.u32 %s102, 1
        %s223 = smul.addr %s222, 4
        %s224 = scalar_lea.vmem [#allocation8], %s223
        %s225 = smul.u32 %s26, 4
        %s226 = sadd.s32 %s225, %s27
        %s227 = smul.u32 64, %s226
        %s228 = smul.u32 %s26, 4
        %s229 = sadd.s32 %s228, %s27
        %s230 = smul.u32 1024, %s229
        %p231 = scmp.eq.s32.totalorder %s27, 0
        // Predicated region
        $region37: #{tpu_custom_call.1} parent=27 // pred_check
          %p232 = pneg %p231
        $region38: #{tpu_custom_call.1} parent=27 // pred_check_branch
          %234 = sbr.rel (%p232) target = $region40
        $region39: #{tpu_custom_call.1} parent=27 // pred_region
          %235 = vst [vmem:[#allocation2] sm:$0xf] 0.0
        $region40: #{tpu_custom_call.1} parent=27 // pred_fallthru
          _
        %v236 = vld [vmem:[#allocation2] sm:$0xf]
        %v237 = vld [vmem:[%s190] sm:$0xff]
        %v238 = vld [vmem:[%s190 + $0x8] sm:$0xff]
        %v239 = vld [vmem:[%s190 + $0x10] sm:$0xff]
        %v240 = vld [vmem:[%s190 + $0x18] sm:$0xff]
        %v241 = vld [vmem:[%s190 + $0x20] sm:$0xff]
        %v242 = vld [vmem:[%s190 + $0x28] sm:$0xff]
        %v243 = vld [vmem:[%s190 + $0x30] sm:$0xff]
        %v244 = vld [vmem:[%s190 + $0x38] sm:$0xff]
        %v245 = vld [vmem:[%s199] sm:$0xff]
        %v246 = vld [vmem:[%s199 + $0x8] sm:$0xff]
        %v247 = vld [vmem:[%s199 + $0x10] sm:$0xff]
        %v248 = vld [vmem:[%s199 + $0x18] sm:$0xff]
        %v249 = vld [vmem:[%s199 + $0x20] sm:$0xff]
        %v250 = vld [vmem:[%s199 + $0x28] sm:$0xff]
        %v251 = vld [vmem:[%s199 + $0x30] sm:$0xff]
        %v252 = vld [vmem:[%s199 + $0x38] sm:$0xff]
        %v253 = vld [vmem:[%s199 + $0x40] sm:$0xff]
        %v254 = vld [vmem:[%s199 + $0x48] sm:$0xff]
        %v255 = vld [vmem:[%s199 + $0x50] sm:$0xff]
        %v256 = vld [vmem:[%s199 + $0x58] sm:$0xff]
        %v257 = vld [vmem:[%s199 + $0x60] sm:$0xff]
        %v258 = vld [vmem:[%s199 + $0x68] sm:$0xff]
        %v259 = vld [vmem:[%s199 + $0x70] sm:$0xff]
        %v260 = vld [vmem:[%s199 + $0x78] sm:$0xff]
        %v261 = vld [vmem:[%s199 + $0x80] sm:$0xff]
        %v262 = vld [vmem:[%s199 + $0x88] sm:$0xff]
        %v263 = vld [vmem:[%s199 + $0x90] sm:$0xff]
        %v264 = vld [vmem:[%s199 + $0x98] sm:$0xff]
        %v265 = vld [vmem:[%s199 + $0xa0] sm:$0xff]
        %v266 = vld [vmem:[%s199 + $0xa8] sm:$0xff]
        %v267 = vld [vmem:[%s199 + $0xb0] sm:$0xff]
        %v268 = vld [vmem:[%s199 + $0xb8] sm:$0xff]
        %v269 = vld [vmem:[%s199 + $0xc0] sm:$0xff]
        %v270 = vld [vmem:[%s199 + $0xc8] sm:$0xff]
        %v271 = vld [vmem:[%s199 + $0xd0] sm:$0xff]
        %v272 = vld [vmem:[%s199 + $0xd8] sm:$0xff]
        %v273 = vld [vmem:[%s199 + $0xe0] sm:$0xff]
        %v274 = vld [vmem:[%s199 + $0xe8] sm:$0xff]
        %v275 = vld [vmem:[%s199 + $0xf0] sm:$0xff]
        %v276 = vld [vmem:[%s199 + $0xf8] sm:$0xff]
        %v277 = vld [vmem:[%s199 + $0x100] sm:$0xff]
        %v278 = vld [vmem:[%s199 + $0x108] sm:$0xff]
        %v279 = vld [vmem:[%s199 + $0x110] sm:$0xff]
        %v280 = vld [vmem:[%s199 + $0x118] sm:$0xff]
        %v281 = vld [vmem:[%s199 + $0x120] sm:$0xff]
        %v282 = vld [vmem:[%s199 + $0x128] sm:$0xff]
        %v283 = vld [vmem:[%s199 + $0x130] sm:$0xff]
        %v284 = vld [vmem:[%s199 + $0x138] sm:$0xff]
        %v285 = vld [vmem:[%s199 + $0x140] sm:$0xff]
        %v286 = vld [vmem:[%s199 + $0x148] sm:$0xff]
        %v287 = vld [vmem:[%s199 + $0x150] sm:$0xff]
        %v288 = vld [vmem:[%s199 + $0x158] sm:$0xff]
        %v289 = vld [vmem:[%s199 + $0x160] sm:$0xff]
        %v290 = vld [vmem:[%s199 + $0x168] sm:$0xff]
        %v291 = vld [vmem:[%s199 + $0x170] sm:$0xff]
        %v292 = vld [vmem:[%s199 + $0x178] sm:$0xff]
        %v293 = vld [vmem:[%s199 + $0x180] sm:$0xff]
        %v294 = vld [vmem:[%s199 + $0x188] sm:$0xff]
        %v295 = vld [vmem:[%s199 + $0x190] sm:$0xff]
        %v296 = vld [vmem:[%s199 + $0x198] sm:$0xff]
        %v297 = vld [vmem:[%s199 + $0x1a0] sm:$0xff]
        %v298 = vld [vmem:[%s199 + $0x1a8] sm:$0xff]
        %v299 = vld [vmem:[%s199 + $0x1b0] sm:$0xff]
        %v300 = vld [vmem:[%s199 + $0x1b8] sm:$0xff]
        %v301 = vld [vmem:[%s199 + $0x1c0] sm:$0xff]
        %v302 = vld [vmem:[%s199 + $0x1c8] sm:$0xff]
        %v303 = vld [vmem:[%s199 + $0x1d0] sm:$0xff]
        %v304 = vld [vmem:[%s199 + $0x1d8] sm:$0xff]
        %v305 = vld [vmem:[%s199 + $0x1e0] sm:$0xff]
        %v306 = vld [vmem:[%s199 + $0x1e8] sm:$0xff]
        %v307 = vld [vmem:[%s199 + $0x1f0] sm:$0xff]
        %v308 = vld [vmem:[%s199 + $0x1f8] sm:$0xff]
        %v309 = vld [vmem:[%s199 + $0x200] sm:$0xff]
        %v310 = vld [vmem:[%s199 + $0x208] sm:$0xff]
        %v311 = vld [vmem:[%s199 + $0x210] sm:$0xff]
        %v312 = vld [vmem:[%s199 + $0x218] sm:$0xff]
        %v313 = vld [vmem:[%s199 + $0x220] sm:$0xff]
        %v314 = vld [vmem:[%s199 + $0x228] sm:$0xff]
        %v315 = vld [vmem:[%s199 + $0x230] sm:$0xff]
        %v316 = vld [vmem:[%s199 + $0x238] sm:$0xff]
        %v317 = vld [vmem:[%s199 + $0x240] sm:$0xff]
        %v318 = vld [vmem:[%s199 + $0x248] sm:$0xff]
        %v319 = vld [vmem:[%s199 + $0x250] sm:$0xff]
        %v320 = vld [vmem:[%s199 + $0x258] sm:$0xff]
        %v321 = vld [vmem:[%s199 + $0x260] sm:$0xff]
        %v322 = vld [vmem:[%s199 + $0x268] sm:$0xff]
        %v323 = vld [vmem:[%s199 + $0x270] sm:$0xff]
        %v324 = vld [vmem:[%s199 + $0x278] sm:$0xff]
        %v325 = vld [vmem:[%s199 + $0x280] sm:$0xff]
        %v326 = vld [vmem:[%s199 + $0x288] sm:$0xff]
        %v327 = vld [vmem:[%s199 + $0x290] sm:$0xff]
        %v328 = vld [vmem:[%s199 + $0x298] sm:$0xff]
        %v329 = vld [vmem:[%s199 + $0x2a0] sm:$0xff]
        %v330 = vld [vmem:[%s199 + $0x2a8] sm:$0xff]
        %v331 = vld [vmem:[%s199 + $0x2b0] sm:$0xff]
        %v332 = vld [vmem:[%s199 + $0x2b8] sm:$0xff]
        %v333 = vld [vmem:[%s199 + $0x2c0] sm:$0xff]
        %v334 = vld [vmem:[%s199 + $0x2c8] sm:$0xff]
        %v335 = vld [vmem:[%s199 + $0x2d0] sm:$0xff]
        %v336 = vld [vmem:[%s199 + $0x2d8] sm:$0xff]
        %v337 = vld [vmem:[%s199 + $0x2e0] sm:$0xff]
        %v338 = vld [vmem:[%s199 + $0x2e8] sm:$0xff]
        %v339 = vld [vmem:[%s199 + $0x2f0] sm:$0xff]
        %v340 = vld [vmem:[%s199 + $0x2f8] sm:$0xff]
        %v341 = vld [vmem:[%s199 + $0x300] sm:$0xff]
        %v342 = vld [vmem:[%s199 + $0x308] sm:$0xff]
        %v343 = vld [vmem:[%s199 + $0x310] sm:$0xff]
        %v344 = vld [vmem:[%s199 + $0x318] sm:$0xff]
        %v345 = vld [vmem:[%s199 + $0x320] sm:$0xff]
        %v346 = vld [vmem:[%s199 + $0x328] sm:$0xff]
        %v347 = vld [vmem:[%s199 + $0x330] sm:$0xff]
        %v348 = vld [vmem:[%s199 + $0x338] sm:$0xff]
        %v349 = vld [vmem:[%s199 + $0x340] sm:$0xff]
        %v350 = vld [vmem:[%s199 + $0x348] sm:$0xff]
        %v351 = vld [vmem:[%s199 + $0x350] sm:$0xff]
        %v352 = vld [vmem:[%s199 + $0x358] sm:$0xff]
        %v353 = vld [vmem:[%s199 + $0x360] sm:$0xff]
        %v354 = vld [vmem:[%s199 + $0x368] sm:$0xff]
        %v355 = vld [vmem:[%s199 + $0x370] sm:$0xff]
        %v356 = vld [vmem:[%s199 + $0x378] sm:$0xff]
        %v357 = vld [vmem:[%s199 + $0x380] sm:$0xff]
        %v358 = vld [vmem:[%s199 + $0x388] sm:$0xff]
        %v359 = vld [vmem:[%s199 + $0x390] sm:$0xff]
        %v360 = vld [vmem:[%s199 + $0x398] sm:$0xff]
        %v361 = vld [vmem:[%s199 + $0x3a0] sm:$0xff]
        %v362 = vld [vmem:[%s199 + $0x3a8] sm:$0xff]
        %v363 = vld [vmem:[%s199 + $0x3b0] sm:$0xff]
        %v364 = vld [vmem:[%s199 + $0x3b8] sm:$0xff]
        %v365 = vld [vmem:[%s199 + $0x3c0] sm:$0xff]
        %v366 = vld [vmem:[%s199 + $0x3c8] sm:$0xff]
        %v367 = vld [vmem:[%s199 + $0x3d0] sm:$0xff]
        %v368 = vld [vmem:[%s199 + $0x3d8] sm:$0xff]
        %v369 = vld [vmem:[%s199 + $0x3e0] sm:$0xff]
        %v370 = vld [vmem:[%s199 + $0x3e8] sm:$0xff]
        %v371 = vld [vmem:[%s199 + $0x3f0] sm:$0xff]
        %v372 = vld [vmem:[%s199 + $0x3f8] sm:$0xff]
        %v373 = vld [vmem:[%s199 + $0x400] sm:$0xff]
        %v374 = vld [vmem:[%s199 + $0x408] sm:$0xff]
        %v375 = vld [vmem:[%s199 + $0x410] sm:$0xff]
        %v376 = vld [vmem:[%s199 + $0x418] sm:$0xff]
        %v377 = vld [vmem:[%s199 + $0x420] sm:$0xff]
        %v378 = vld [vmem:[%s199 + $0x428] sm:$0xff]
        %v379 = vld [vmem:[%s199 + $0x430] sm:$0xff]
        %v380 = vld [vmem:[%s199 + $0x438] sm:$0xff]
        %v381 = vld [vmem:[%s199 + $0x440] sm:$0xff]
        %v382 = vld [vmem:[%s199 + $0x448] sm:$0xff]
        %v383 = vld [vmem:[%s199 + $0x450] sm:$0xff]
        %v384 = vld [vmem:[%s199 + $0x458] sm:$0xff]
        %v385 = vld [vmem:[%s199 + $0x460] sm:$0xff]
        %v386 = vld [vmem:[%s199 + $0x468] sm:$0xff]
        %v387 = vld [vmem:[%s199 + $0x470] sm:$0xff]
        %v388 = vld [vmem:[%s199 + $0x478] sm:$0xff]
        %v389 = vld [vmem:[%s199 + $0x480] sm:$0xff]
        %v390 = vld [vmem:[%s199 + $0x488] sm:$0xff]
        %v391 = vld [vmem:[%s199 + $0x490] sm:$0xff]
        %v392 = vld [vmem:[%s199 + $0x498] sm:$0xff]
        %v393 = vld [vmem:[%s199 + $0x4a0] sm:$0xff]
        %v394 = vld [vmem:[%s199 + $0x4a8] sm:$0xff]
        %v395 = vld [vmem:[%s199 + $0x4b0] sm:$0xff]
        %v396 = vld [vmem:[%s199 + $0x4b8] sm:$0xff]
        %v397 = vld [vmem:[%s199 + $0x4c0] sm:$0xff]
        %v398 = vld [vmem:[%s199 + $0x4c8] sm:$0xff]
        %v399 = vld [vmem:[%s199 + $0x4d0] sm:$0xff]
        %v400 = vld [vmem:[%s199 + $0x4d8] sm:$0xff]
        %v401 = vld [vmem:[%s199 + $0x4e0] sm:$0xff]
        %v402 = vld [vmem:[%s199 + $0x4e8] sm:$0xff]
        %v403 = vld [vmem:[%s199 + $0x4f0] sm:$0xff]
        %v404 = vld [vmem:[%s199 + $0x4f8] sm:$0xff]
        %v405 = vld [vmem:[%s199 + $0x500] sm:$0xff]
        %v406 = vld [vmem:[%s199 + $0x508] sm:$0xff]
        %v407 = vld [vmem:[%s199 + $0x510] sm:$0xff]
        %v408 = vld [vmem:[%s199 + $0x518] sm:$0xff]
        %v409 = vld [vmem:[%s199 + $0x520] sm:$0xff]
        %v410 = vld [vmem:[%s199 + $0x528] sm:$0xff]
        %v411 = vld [vmem:[%s199 + $0x530] sm:$0xff]
        %v412 = vld [vmem:[%s199 + $0x538] sm:$0xff]
        %v413 = vld [vmem:[%s199 + $0x540] sm:$0xff]
        %v414 = vld [vmem:[%s199 + $0x548] sm:$0xff]
        %v415 = vld [vmem:[%s199 + $0x550] sm:$0xff]
        %v416 = vld [vmem:[%s199 + $0x558] sm:$0xff]
        %v417 = vld [vmem:[%s199 + $0x560] sm:$0xff]
        %v418 = vld [vmem:[%s199 + $0x568] sm:$0xff]
        %v419 = vld [vmem:[%s199 + $0x570] sm:$0xff]
        %v420 = vld [vmem:[%s199 + $0x578] sm:$0xff]
        %v421 = vld [vmem:[%s199 + $0x580] sm:$0xff]
        %v422 = vld [vmem:[%s199 + $0x588] sm:$0xff]
        %v423 = vld [vmem:[%s199 + $0x590] sm:$0xff]
        %v424 = vld [vmem:[%s199 + $0x598] sm:$0xff]
        %v425 = vld [vmem:[%s199 + $0x5a0] sm:$0xff]
        %v426 = vld [vmem:[%s199 + $0x5a8] sm:$0xff]
        %v427 = vld [vmem:[%s199 + $0x5b0] sm:$0xff]
        %v428 = vld [vmem:[%s199 + $0x5b8] sm:$0xff]
        %v429 = vld [vmem:[%s199 + $0x5c0] sm:$0xff]
        %v430 = vld [vmem:[%s199 + $0x5c8] sm:$0xff]
        %v431 = vld [vmem:[%s199 + $0x5d0] sm:$0xff]
        %v432 = vld [vmem:[%s199 + $0x5d8] sm:$0xff]
        %v433 = vld [vmem:[%s199 + $0x5e0] sm:$0xff]
        %v434 = vld [vmem:[%s199 + $0x5e8] sm:$0xff]
        %v435 = vld [vmem:[%s199 + $0x5f0] sm:$0xff]
        %v436 = vld [vmem:[%s199 + $0x5f8] sm:$0xff]
        %v437 = vld [vmem:[%s199 + $0x600] sm:$0xff]
        %v438 = vld [vmem:[%s199 + $0x608] sm:$0xff]
        %v439 = vld [vmem:[%s199 + $0x610] sm:$0xff]
        %v440 = vld [vmem:[%s199 + $0x618] sm:$0xff]
        %v441 = vld [vmem:[%s199 + $0x620] sm:$0xff]
        %v442 = vld [vmem:[%s199 + $0x628] sm:$0xff]
        %v443 = vld [vmem:[%s199 + $0x630] sm:$0xff]
        %v444 = vld [vmem:[%s199 + $0x638] sm:$0xff]
        %v445 = vld [vmem:[%s199 + $0x640] sm:$0xff]
        %v446 = vld [vmem:[%s199 + $0x648] sm:$0xff]
        %v447 = vld [vmem:[%s199 + $0x650] sm:$0xff]
        %v448 = vld [vmem:[%s199 + $0x658] sm:$0xff]
        %v449 = vld [vmem:[%s199 + $0x660] sm:$0xff]
        %v450 = vld [vmem:[%s199 + $0x668] sm:$0xff]
        %v451 = vld [vmem:[%s199 + $0x670] sm:$0xff]
        %v452 = vld [vmem:[%s199 + $0x678] sm:$0xff]
        %v453 = vld [vmem:[%s199 + $0x680] sm:$0xff]
        %v454 = vld [vmem:[%s199 + $0x688] sm:$0xff]
        %v455 = vld [vmem:[%s199 + $0x690] sm:$0xff]
        %v456 = vld [vmem:[%s199 + $0x698] sm:$0xff]
        %v457 = vld [vmem:[%s199 + $0x6a0] sm:$0xff]
        %v458 = vld [vmem:[%s199 + $0x6a8] sm:$0xff]
        %v459 = vld [vmem:[%s199 + $0x6b0] sm:$0xff]
        %v460 = vld [vmem:[%s199 + $0x6b8] sm:$0xff]
        %v461 = vld [vmem:[%s199 + $0x6c0] sm:$0xff]
        %v462 = vld [vmem:[%s199 + $0x6c8] sm:$0xff]
        %v463 = vld [vmem:[%s199 + $0x6d0] sm:$0xff]
        %v464 = vld [vmem:[%s199 + $0x6d8] sm:$0xff]
        %v465 = vld [vmem:[%s199 + $0x6e0] sm:$0xff]
        %v466 = vld [vmem:[%s199 + $0x6e8] sm:$0xff]
        %v467 = vld [vmem:[%s199 + $0x6f0] sm:$0xff]
        %v468 = vld [vmem:[%s199 + $0x6f8] sm:$0xff]
        %v469 = vld [vmem:[%s199 + $0x700] sm:$0xff]
        %v470 = vld [vmem:[%s199 + $0x708] sm:$0xff]
        %v471 = vld [vmem:[%s199 + $0x710] sm:$0xff]
        %v472 = vld [vmem:[%s199 + $0x718] sm:$0xff]
        %v473 = vld [vmem:[%s199 + $0x720] sm:$0xff]
        %v474 = vld [vmem:[%s199 + $0x728] sm:$0xff]
        %v475 = vld [vmem:[%s199 + $0x730] sm:$0xff]
        %v476 = vld [vmem:[%s199 + $0x738] sm:$0xff]
        %v477 = vld [vmem:[%s199 + $0x740] sm:$0xff]
        %v478 = vld [vmem:[%s199 + $0x748] sm:$0xff]
        %v479 = vld [vmem:[%s199 + $0x750] sm:$0xff]
        %v480 = vld [vmem:[%s199 + $0x758] sm:$0xff]
        %v481 = vld [vmem:[%s199 + $0x760] sm:$0xff]
        %v482 = vld [vmem:[%s199 + $0x768] sm:$0xff]
        %v483 = vld [vmem:[%s199 + $0x770] sm:$0xff]
        %v484 = vld [vmem:[%s199 + $0x778] sm:$0xff]
        %v485 = vld [vmem:[%s199 + $0x780] sm:$0xff]
        %v486 = vld [vmem:[%s199 + $0x788] sm:$0xff]
        %v487 = vld [vmem:[%s199 + $0x790] sm:$0xff]
        %v488 = vld [vmem:[%s199 + $0x798] sm:$0xff]
        %v489 = vld [vmem:[%s199 + $0x7a0] sm:$0xff]
        %v490 = vld [vmem:[%s199 + $0x7a8] sm:$0xff]
        %v491 = vld [vmem:[%s199 + $0x7b0] sm:$0xff]
        %v492 = vld [vmem:[%s199 + $0x7b8] sm:$0xff]
        %v493 = vld [vmem:[%s199 + $0x7c0] sm:$0xff]
        %v494 = vld [vmem:[%s199 + $0x7c8] sm:$0xff]
        %v495 = vld [vmem:[%s199 + $0x7d0] sm:$0xff]
        %v496 = vld [vmem:[%s199 + $0x7d8] sm:$0xff]
        %v497 = vld [vmem:[%s199 + $0x7e0] sm:$0xff]
        %v498 = vld [vmem:[%s199 + $0x7e8] sm:$0xff]
        %v499 = vld [vmem:[%s199 + $0x7f0] sm:$0xff]
        %v500 = vld [vmem:[%s199 + $0x7f8] sm:$0xff]
        %v501 = vld [vmem:[%s199 + $0x800] sm:$0xff]
        %v502 = vld [vmem:[%s199 + $0x808] sm:$0xff]
        %v503 = vld [vmem:[%s199 + $0x810] sm:$0xff]
        %v504 = vld [vmem:[%s199 + $0x818] sm:$0xff]
        %v505 = vld [vmem:[%s199 + $0x820] sm:$0xff]
        %v506 = vld [vmem:[%s199 + $0x828] sm:$0xff]
        %v507 = vld [vmem:[%s199 + $0x830] sm:$0xff]
        %v508 = vld [vmem:[%s199 + $0x838] sm:$0xff]
        %v509 = vld [vmem:[%s199 + $0x840] sm:$0xff]
        %v510 = vld [vmem:[%s199 + $0x848] sm:$0xff]
        %v511 = vld [vmem:[%s199 + $0x850] sm:$0xff]
        %v512 = vld [vmem:[%s199 + $0x858] sm:$0xff]
        %v513 = vld [vmem:[%s199 + $0x860] sm:$0xff]
        %v514 = vld [vmem:[%s199 + $0x868] sm:$0xff]
        %v515 = vld [vmem:[%s199 + $0x870] sm:$0xff]
        %v516 = vld [vmem:[%s199 + $0x878] sm:$0xff]
        %v517 = vld [vmem:[%s199 + $0x880] sm:$0xff]
        %v518 = vld [vmem:[%s199 + $0x888] sm:$0xff]
        %v519 = vld [vmem:[%s199 + $0x890] sm:$0xff]
        %v520 = vld [vmem:[%s199 + $0x898] sm:$0xff]
        %v521 = vld [vmem:[%s199 + $0x8a0] sm:$0xff]
        %v522 = vld [vmem:[%s199 + $0x8a8] sm:$0xff]
        %v523 = vld [vmem:[%s199 + $0x8b0] sm:$0xff]
        %v524 = vld [vmem:[%s199 + $0x8b8] sm:$0xff]
        %v525 = vld [vmem:[%s199 + $0x8c0] sm:$0xff]
        %v526 = vld [vmem:[%s199 + $0x8c8] sm:$0xff]
        %v527 = vld [vmem:[%s199 + $0x8d0] sm:$0xff]
        %v528 = vld [vmem:[%s199 + $0x8d8] sm:$0xff]
        %v529 = vld [vmem:[%s199 + $0x8e0] sm:$0xff]
        %v530 = vld [vmem:[%s199 + $0x8e8] sm:$0xff]
        %v531 = vld [vmem:[%s199 + $0x8f0] sm:$0xff]
        %v532 = vld [vmem:[%s199 + $0x8f8] sm:$0xff]
        %v533 = vld [vmem:[%s199 + $0x900] sm:$0xff]
        %v534 = vld [vmem:[%s199 + $0x908] sm:$0xff]
        %v535 = vld [vmem:[%s199 + $0x910] sm:$0xff]
        %v536 = vld [vmem:[%s199 + $0x918] sm:$0xff]
        %v537 = vld [vmem:[%s199 + $0x920] sm:$0xff]
        %v538 = vld [vmem:[%s199 + $0x928] sm:$0xff]
        %v539 = vld [vmem:[%s199 + $0x930] sm:$0xff]
        %v540 = vld [vmem:[%s199 + $0x938] sm:$0xff]
        %v541 = vld [vmem:[%s199 + $0x940] sm:$0xff]
        %v542 = vld [vmem:[%s199 + $0x948] sm:$0xff]
        %v543 = vld [vmem:[%s199 + $0x950] sm:$0xff]
        %v544 = vld [vmem:[%s199 + $0x958] sm:$0xff]
        %v545 = vld [vmem:[%s199 + $0x960] sm:$0xff]
        %v546 = vld [vmem:[%s199 + $0x968] sm:$0xff]
        %v547 = vld [vmem:[%s199 + $0x970] sm:$0xff]
        %v548 = vld [vmem:[%s199 + $0x978] sm:$0xff]
        %v549 = vld [vmem:[%s199 + $0x980] sm:$0xff]
        %v550 = vld [vmem:[%s199 + $0x988] sm:$0xff]
        %v551 = vld [vmem:[%s199 + $0x990] sm:$0xff]
        %v552 = vld [vmem:[%s199 + $0x998] sm:$0xff]
        %v553 = vld [vmem:[%s199 + $0x9a0] sm:$0xff]
        %v554 = vld [vmem:[%s199 + $0x9a8] sm:$0xff]
        %v555 = vld [vmem:[%s199 + $0x9b0] sm:$0xff]
        %v556 = vld [vmem:[%s199 + $0x9b8] sm:$0xff]
        %v557 = vld [vmem:[%s199 + $0x9c0] sm:$0xff]
        %v558 = vld [vmem:[%s199 + $0x9c8] sm:$0xff]
        %v559 = vld [vmem:[%s199 + $0x9d0] sm:$0xff]
        %v560 = vld [vmem:[%s199 + $0x9d8] sm:$0xff]
        %v561 = vld [vmem:[%s199 + $0x9e0] sm:$0xff]
        %v562 = vld [vmem:[%s199 + $0x9e8] sm:$0xff]
        %v563 = vld [vmem:[%s199 + $0x9f0] sm:$0xff]
        %v564 = vld [vmem:[%s199 + $0x9f8] sm:$0xff]
        %v565 = vld [vmem:[%s199 + $0xa00] sm:$0xff]
        %v566 = vld [vmem:[%s199 + $0xa08] sm:$0xff]
        %v567 = vld [vmem:[%s199 + $0xa10] sm:$0xff]
        %v568 = vld [vmem:[%s199 + $0xa18] sm:$0xff]
        %v569 = vld [vmem:[%s199 + $0xa20] sm:$0xff]
        %v570 = vld [vmem:[%s199 + $0xa28] sm:$0xff]
        %v571 = vld [vmem:[%s199 + $0xa30] sm:$0xff]
        %v572 = vld [vmem:[%s199 + $0xa38] sm:$0xff]
        %v573 = vld [vmem:[%s199 + $0xa40] sm:$0xff]
        %v574 = vld [vmem:[%s199 + $0xa48] sm:$0xff]
        %v575 = vld [vmem:[%s199 + $0xa50] sm:$0xff]
        %v576 = vld [vmem:[%s199 + $0xa58] sm:$0xff]
        %v577 = vld [vmem:[%s199 + $0xa60] sm:$0xff]
        %v578 = vld [vmem:[%s199 + $0xa68] sm:$0xff]
        %v579 = vld [vmem:[%s199 + $0xa70] sm:$0xff]
        %v580 = vld [vmem:[%s199 + $0xa78] sm:$0xff]
        %v581 = vld [vmem:[%s199 + $0xa80] sm:$0xff]
        %v582 = vld [vmem:[%s199 + $0xa88] sm:$0xff]
        %v583 = vld [vmem:[%s199 + $0xa90] sm:$0xff]
        %v584 = vld [vmem:[%s199 + $0xa98] sm:$0xff]
        %v585 = vld [vmem:[%s199 + $0xaa0] sm:$0xff]
        %v586 = vld [vmem:[%s199 + $0xaa8] sm:$0xff]
        %v587 = vld [vmem:[%s199 + $0xab0] sm:$0xff]
        %v588 = vld [vmem:[%s199 + $0xab8] sm:$0xff]
        %v589 = vld [vmem:[%s199 + $0xac0] sm:$0xff]
        %v590 = vld [vmem:[%s199 + $0xac8] sm:$0xff]
        %v591 = vld [vmem:[%s199 + $0xad0] sm:$0xff]
        %v592 = vld [vmem:[%s199 + $0xad8] sm:$0xff]
        %v593 = vld [vmem:[%s199 + $0xae0] sm:$0xff]
        %v594 = vld [vmem:[%s199 + $0xae8] sm:$0xff]
        %v595 = vld [vmem:[%s199 + $0xaf0] sm:$0xff]
        %v596 = vld [vmem:[%s199 + $0xaf8] sm:$0xff]
        %v597 = vld [vmem:[%s199 + $0xb00] sm:$0xff]
        %v598 = vld [vmem:[%s199 + $0xb08] sm:$0xff]
        %v599 = vld [vmem:[%s199 + $0xb10] sm:$0xff]
        %v600 = vld [vmem:[%s199 + $0xb18] sm:$0xff]
        %v601 = vld [vmem:[%s199 + $0xb20] sm:$0xff]
        %v602 = vld [vmem:[%s199 + $0xb28] sm:$0xff]
        %v603 = vld [vmem:[%s199 + $0xb30] sm:$0xff]
        %v604 = vld [vmem:[%s199 + $0xb38] sm:$0xff]
        %v605 = vld [vmem:[%s199 + $0xb40] sm:$0xff]
        %v606 = vld [vmem:[%s199 + $0xb48] sm:$0xff]
        %v607 = vld [vmem:[%s199 + $0xb50] sm:$0xff]
        %v608 = vld [vmem:[%s199 + $0xb58] sm:$0xff]
        %v609 = vld [vmem:[%s199 + $0xb60] sm:$0xff]
        %v610 = vld [vmem:[%s199 + $0xb68] sm:$0xff]
        %v611 = vld [vmem:[%s199 + $0xb70] sm:$0xff]
        %v612 = vld [vmem:[%s199 + $0xb78] sm:$0xff]
        %v613 = vld [vmem:[%s199 + $0xb80] sm:$0xff]
        %v614 = vld [vmem:[%s199 + $0xb88] sm:$0xff]
        %v615 = vld [vmem:[%s199 + $0xb90] sm:$0xff]
        %v616 = vld [vmem:[%s199 + $0xb98] sm:$0xff]
        %v617 = vld [vmem:[%s199 + $0xba0] sm:$0xff]
        %v618 = vld [vmem:[%s199 + $0xba8] sm:$0xff]
        %v619 = vld [vmem:[%s199 + $0xbb0] sm:$0xff]
        %v620 = vld [vmem:[%s199 + $0xbb8] sm:$0xff]
        %v621 = vld [vmem:[%s199 + $0xbc0] sm:$0xff]
        %v622 = vld [vmem:[%s199 + $0xbc8] sm:$0xff]
        %v623 = vld [vmem:[%s199 + $0xbd0] sm:$0xff]
        %v624 = vld [vmem:[%s199 + $0xbd8] sm:$0xff]
        %v625 = vld [vmem:[%s199 + $0xbe0] sm:$0xff]
        %v626 = vld [vmem:[%s199 + $0xbe8] sm:$0xff]
        %v627 = vld [vmem:[%s199 + $0xbf0] sm:$0xff]
        %v628 = vld [vmem:[%s199 + $0xbf8] sm:$0xff]
        %v629 = vld [vmem:[%s199 + $0xc00] sm:$0xff]
        %v630 = vld [vmem:[%s199 + $0xc08] sm:$0xff]
        %v631 = vld [vmem:[%s199 + $0xc10] sm:$0xff]
        %v632 = vld [vmem:[%s199 + $0xc18] sm:$0xff]
        %v633 = vld [vmem:[%s199 + $0xc20] sm:$0xff]
        %v634 = vld [vmem:[%s199 + $0xc28] sm:$0xff]
        %v635 = vld [vmem:[%s199 + $0xc30] sm:$0xff]
        %v636 = vld [vmem:[%s199 + $0xc38] sm:$0xff]
        %v637 = vld [vmem:[%s199 + $0xc40] sm:$0xff]
        %v638 = vld [vmem:[%s199 + $0xc48] sm:$0xff]
        %v639 = vld [vmem:[%s199 + $0xc50] sm:$0xff]
        %v640 = vld [vmem:[%s199 + $0xc58] sm:$0xff]
        %v641 = vld [vmem:[%s199 + $0xc60] sm:$0xff]
        %v642 = vld [vmem:[%s199 + $0xc68] sm:$0xff]
        %v643 = vld [vmem:[%s199 + $0xc70] sm:$0xff]
        %v644 = vld [vmem:[%s199 + $0xc78] sm:$0xff]
        %v645 = vld [vmem:[%s199 + $0xc80] sm:$0xff]
        %v646 = vld [vmem:[%s199 + $0xc88] sm:$0xff]
        %v647 = vld [vmem:[%s199 + $0xc90] sm:$0xff]
        %v648 = vld [vmem:[%s199 + $0xc98] sm:$0xff]
        %v649 = vld [vmem:[%s199 + $0xca0] sm:$0xff]
        %v650 = vld [vmem:[%s199 + $0xca8] sm:$0xff]
        %v651 = vld [vmem:[%s199 + $0xcb0] sm:$0xff]
        %v652 = vld [vmem:[%s199 + $0xcb8] sm:$0xff]
        %v653 = vld [vmem:[%s199 + $0xcc0] sm:$0xff]
        %v654 = vld [vmem:[%s199 + $0xcc8] sm:$0xff]
        %v655 = vld [vmem:[%s199 + $0xcd0] sm:$0xff]
        %v656 = vld [vmem:[%s199 + $0xcd8] sm:$0xff]
        %v657 = vld [vmem:[%s199 + $0xce0] sm:$0xff]
        %v658 = vld [vmem:[%s199 + $0xce8] sm:$0xff]
        %v659 = vld [vmem:[%s199 + $0xcf0] sm:$0xff]
        %v660 = vld [vmem:[%s199 + $0xcf8] sm:$0xff]
        %v661 = vld [vmem:[%s199 + $0xd00] sm:$0xff]
        %v662 = vld [vmem:[%s199 + $0xd08] sm:$0xff]
        %v663 = vld [vmem:[%s199 + $0xd10] sm:$0xff]
        %v664 = vld [vmem:[%s199 + $0xd18] sm:$0xff]
        %v665 = vld [vmem:[%s199 + $0xd20] sm:$0xff]
        %v666 = vld [vmem:[%s199 + $0xd28] sm:$0xff]
        %v667 = vld [vmem:[%s199 + $0xd30] sm:$0xff]
        %v668 = vld [vmem:[%s199 + $0xd38] sm:$0xff]
        %v669 = vld [vmem:[%s199 + $0xd40] sm:$0xff]
        %v670 = vld [vmem:[%s199 + $0xd48] sm:$0xff]
        %v671 = vld [vmem:[%s199 + $0xd50] sm:$0xff]
        %v672 = vld [vmem:[%s199 + $0xd58] sm:$0xff]
        %v673 = vld [vmem:[%s199 + $0xd60] sm:$0xff]
        %v674 = vld [vmem:[%s199 + $0xd68] sm:$0xff]
        %v675 = vld [vmem:[%s199 + $0xd70] sm:$0xff]
        %v676 = vld [vmem:[%s199 + $0xd78] sm:$0xff]
        %v677 = vld [vmem:[%s199 + $0xd80] sm:$0xff]
        %v678 = vld [vmem:[%s199 + $0xd88] sm:$0xff]
        %v679 = vld [vmem:[%s199 + $0xd90] sm:$0xff]
        %v680 = vld [vmem:[%s199 + $0xd98] sm:$0xff]
        %v681 = vld [vmem:[%s199 + $0xda0] sm:$0xff]
        %v682 = vld [vmem:[%s199 + $0xda8] sm:$0xff]
        %v683 = vld [vmem:[%s199 + $0xdb0] sm:$0xff]
        %v684 = vld [vmem:[%s199 + $0xdb8] sm:$0xff]
        %v685 = vld [vmem:[%s199 + $0xdc0] sm:$0xff]
        %v686 = vld [vmem:[%s199 + $0xdc8] sm:$0xff]
        %v687 = vld [vmem:[%s199 + $0xdd0] sm:$0xff]
        %v688 = vld [vmem:[%s199 + $0xdd8] sm:$0xff]
        %v689 = vld [vmem:[%s199 + $0xde0] sm:$0xff]
        %v690 = vld [vmem:[%s199 + $0xde8] sm:$0xff]
        %v691 = vld [vmem:[%s199 + $0xdf0] sm:$0xff]
        %v692 = vld [vmem:[%s199 + $0xdf8] sm:$0xff]
        %v693 = vld [vmem:[%s199 + $0xe00] sm:$0xff]
        %v694 = vld [vmem:[%s199 + $0xe08] sm:$0xff]
        %v695 = vld [vmem:[%s199 + $0xe10] sm:$0xff]
        %v696 = vld [vmem:[%s199 + $0xe18] sm:$0xff]
        %v697 = vld [vmem:[%s199 + $0xe20] sm:$0xff]
        %v698 = vld [vmem:[%s199 + $0xe28] sm:$0xff]
        %v699 = vld [vmem:[%s199 + $0xe30] sm:$0xff]
        %v700 = vld [vmem:[%s199 + $0xe38] sm:$0xff]
        %v701 = vld [vmem:[%s199 + $0xe40] sm:$0xff]
        %v702 = vld [vmem:[%s199 + $0xe48] sm:$0xff]
        %v703 = vld [vmem:[%s199 + $0xe50] sm:$0xff]
        %v704 = vld [vmem:[%s199 + $0xe58] sm:$0xff]
        %v705 = vld [vmem:[%s199 + $0xe60] sm:$0xff]
        %v706 = vld [vmem:[%s199 + $0xe68] sm:$0xff]
        %v707 = vld [vmem:[%s199 + $0xe70] sm:$0xff]
        %v708 = vld [vmem:[%s199 + $0xe78] sm:$0xff]
        %v709 = vld [vmem:[%s199 + $0xe80] sm:$0xff]
        %v710 = vld [vmem:[%s199 + $0xe88] sm:$0xff]
        %v711 = vld [vmem:[%s199 + $0xe90] sm:$0xff]
        %v712 = vld [vmem:[%s199 + $0xe98] sm:$0xff]
        %v713 = vld [vmem:[%s199 + $0xea0] sm:$0xff]
        %v714 = vld [vmem:[%s199 + $0xea8] sm:$0xff]
        %v715 = vld [vmem:[%s199 + $0xeb0] sm:$0xff]
        %v716 = vld [vmem:[%s199 + $0xeb8] sm:$0xff]
        %v717 = vld [vmem:[%s199 + $0xec0] sm:$0xff]
        %v718 = vld [vmem:[%s199 + $0xec8] sm:$0xff]
        %v719 = vld [vmem:[%s199 + $0xed0] sm:$0xff]
        %v720 = vld [vmem:[%s199 + $0xed8] sm:$0xff]
        %v721 = vld [vmem:[%s199 + $0xee0] sm:$0xff]
        %v722 = vld [vmem:[%s199 + $0xee8] sm:$0xff]
        %v723 = vld [vmem:[%s199 + $0xef0] sm:$0xff]
        %v724 = vld [vmem:[%s199 + $0xef8] sm:$0xff]
        %v725 = vld [vmem:[%s199 + $0xf00] sm:$0xff]
        %v726 = vld [vmem:[%s199 + $0xf08] sm:$0xff]
        %v727 = vld [vmem:[%s199 + $0xf10] sm:$0xff]
        %v728 = vld [vmem:[%s199 + $0xf18] sm:$0xff]
        %v729 = vld [vmem:[%s199 + $0xf20] sm:$0xff]
        %v730 = vld [vmem:[%s199 + $0xf28] sm:$0xff]
        %v731 = vld [vmem:[%s199 + $0xf30] sm:$0xff]
        %v732 = vld [vmem:[%s199 + $0xf38] sm:$0xff]
        %v733 = vld [vmem:[%s199 + $0xf40] sm:$0xff]
        %v734 = vld [vmem:[%s199 + $0xf48] sm:$0xff]
        %v735 = vld [vmem:[%s199 + $0xf50] sm:$0xff]
        %v736 = vld [vmem:[%s199 + $0xf58] sm:$0xff]
        %v737 = vld [vmem:[%s199 + $0xf60] sm:$0xff]
        %v738 = vld [vmem:[%s199 + $0xf68] sm:$0xff]
        %v739 = vld [vmem:[%s199 + $0xf70] sm:$0xff]
        %v740 = vld [vmem:[%s199 + $0xf78] sm:$0xff]
        %v741 = vld [vmem:[%s199 + $0xf80] sm:$0xff]
        %v742 = vld [vmem:[%s199 + $0xf88] sm:$0xff]
        %v743 = vld [vmem:[%s199 + $0xf90] sm:$0xff]
        %v744 = vld [vmem:[%s199 + $0xf98] sm:$0xff]
        %v745 = vld [vmem:[%s199 + $0xfa0] sm:$0xff]
        %v746 = vld [vmem:[%s199 + $0xfa8] sm:$0xff]
        %v747 = vld [vmem:[%s199 + $0xfb0] sm:$0xff]
        %v748 = vld [vmem:[%s199 + $0xfb8] sm:$0xff]
        %v749 = vld [vmem:[%s199 + $0xfc0] sm:$0xff]
        %v750 = vld [vmem:[%s199 + $0xfc8] sm:$0xff]
        %v751 = vld [vmem:[%s199 + $0xfd0] sm:$0xff]
        %v752 = vld [vmem:[%s199 + $0xfd8] sm:$0xff]
        %v753 = vld [vmem:[%s199 + $0xfe0] sm:$0xff]
        %v754 = vld [vmem:[%s199 + $0xfe8] sm:$0xff]
        %v755 = vld [vmem:[%s199 + $0xff0] sm:$0xff]
        %v756 = vld [vmem:[%s199 + $0xff8] sm:$0xff]
        %v757 = vld [vmem:[%s199 + $0x1000] sm:$0xff]
        %v758 = vld [vmem:[%s199 + $0x1008] sm:$0xff]
        %v759 = vld [vmem:[%s199 + $0x1010] sm:$0xff]
        %v760 = vld [vmem:[%s199 + $0x1018] sm:$0xff]
        %v761 = vld [vmem:[%s199 + $0x1020] sm:$0xff]
        %v762 = vld [vmem:[%s199 + $0x1028] sm:$0xff]
        %v763 = vld [vmem:[%s199 + $0x1030] sm:$0xff]
        %v764 = vld [vmem:[%s199 + $0x1038] sm:$0xff]
        %v765 = vld [vmem:[%s199 + $0x1040] sm:$0xff]
        %v766 = vld [vmem:[%s199 + $0x1048] sm:$0xff]
        %v767 = vld [vmem:[%s199 + $0x1050] sm:$0xff]
        %v768 = vld [vmem:[%s199 + $0x1058] sm:$0xff]
        %v769 = vld [vmem:[%s199 + $0x1060] sm:$0xff]
        %v770 = vld [vmem:[%s199 + $0x1068] sm:$0xff]
        %v771 = vld [vmem:[%s199 + $0x1070] sm:$0xff]
        %v772 = vld [vmem:[%s199 + $0x1078] sm:$0xff]
        %v773 = vld [vmem:[%s199 + $0x1080] sm:$0xff]
        %v774 = vld [vmem:[%s199 + $0x1088] sm:$0xff]
        %v775 = vld [vmem:[%s199 + $0x1090] sm:$0xff]
        %v776 = vld [vmem:[%s199 + $0x1098] sm:$0xff]
        %v777 = vld [vmem:[%s199 + $0x10a0] sm:$0xff]
        %v778 = vld [vmem:[%s199 + $0x10a8] sm:$0xff]
        %v779 = vld [vmem:[%s199 + $0x10b0] sm:$0xff]
        %v780 = vld [vmem:[%s199 + $0x10b8] sm:$0xff]
        %v781 = vld [vmem:[%s199 + $0x10c0] sm:$0xff]
        %v782 = vld [vmem:[%s199 + $0x10c8] sm:$0xff]
        %v783 = vld [vmem:[%s199 + $0x10d0] sm:$0xff]
        %v784 = vld [vmem:[%s199 + $0x10d8] sm:$0xff]
        %v785 = vld [vmem:[%s199 + $0x10e0] sm:$0xff]
        %v786 = vld [vmem:[%s199 + $0x10e8] sm:$0xff]
        %v787 = vld [vmem:[%s199 + $0x10f0] sm:$0xff]
        %v788 = vld [vmem:[%s199 + $0x10f8] sm:$0xff]
        %v789 = vld [vmem:[%s199 + $0x1100] sm:$0xff]
        %v790 = vld [vmem:[%s199 + $0x1108] sm:$0xff]
        %v791 = vld [vmem:[%s199 + $0x1110] sm:$0xff]
        %v792 = vld [vmem:[%s199 + $0x1118] sm:$0xff]
        %v793 = vld [vmem:[%s199 + $0x1120] sm:$0xff]
        %v794 = vld [vmem:[%s199 + $0x1128] sm:$0xff]
        %v795 = vld [vmem:[%s199 + $0x1130] sm:$0xff]
        %v796 = vld [vmem:[%s199 + $0x1138] sm:$0xff]
        %v797 = vld [vmem:[%s199 + $0x1140] sm:$0xff]
        %v798 = vld [vmem:[%s199 + $0x1148] sm:$0xff]
        %v799 = vld [vmem:[%s199 + $0x1150] sm:$0xff]
        %v800 = vld [vmem:[%s199 + $0x1158] sm:$0xff]
        %v801 = vld [vmem:[%s199 + $0x1160] sm:$0xff]
        %v802 = vld [vmem:[%s199 + $0x1168] sm:$0xff]
        %v803 = vld [vmem:[%s199 + $0x1170] sm:$0xff]
        %v804 = vld [vmem:[%s199 + $0x1178] sm:$0xff]
        %v805 = vld [vmem:[%s199 + $0x1180] sm:$0xff]
        %v806 = vld [vmem:[%s199 + $0x1188] sm:$0xff]
        %v807 = vld [vmem:[%s199 + $0x1190] sm:$0xff]
        %v808 = vld [vmem:[%s199 + $0x1198] sm:$0xff]
        %v809 = vld [vmem:[%s199 + $0x11a0] sm:$0xff]
        %v810 = vld [vmem:[%s199 + $0x11a8] sm:$0xff]
        %v811 = vld [vmem:[%s199 + $0x11b0] sm:$0xff]
        %v812 = vld [vmem:[%s199 + $0x11b8] sm:$0xff]
        %v813 = vld [vmem:[%s199 + $0x11c0] sm:$0xff]
        %v814 = vld [vmem:[%s199 + $0x11c8] sm:$0xff]
        %v815 = vld [vmem:[%s199 + $0x11d0] sm:$0xff]
        %v816 = vld [vmem:[%s199 + $0x11d8] sm:$0xff]
        %v817 = vld [vmem:[%s199 + $0x11e0] sm:$0xff]
        %v818 = vld [vmem:[%s199 + $0x11e8] sm:$0xff]
        %v819 = vld [vmem:[%s199 + $0x11f0] sm:$0xff]
        %v820 = vld [vmem:[%s199 + $0x11f8] sm:$0xff]
        %v821 = vld [vmem:[%s199 + $0x1200] sm:$0xff]
        %v822 = vld [vmem:[%s199 + $0x1208] sm:$0xff]
        %v823 = vld [vmem:[%s199 + $0x1210] sm:$0xff]
        %v824 = vld [vmem:[%s199 + $0x1218] sm:$0xff]
        %v825 = vld [vmem:[%s199 + $0x1220] sm:$0xff]
        %v826 = vld [vmem:[%s199 + $0x1228] sm:$0xff]
        %v827 = vld [vmem:[%s199 + $0x1230] sm:$0xff]
        %v828 = vld [vmem:[%s199 + $0x1238] sm:$0xff]
        %v829 = vld [vmem:[%s199 + $0x1240] sm:$0xff]
        %v830 = vld [vmem:[%s199 + $0x1248] sm:$0xff]
        %v831 = vld [vmem:[%s199 + $0x1250] sm:$0xff]
        %v832 = vld [vmem:[%s199 + $0x1258] sm:$0xff]
        %v833 = vld [vmem:[%s199 + $0x1260] sm:$0xff]
        %v834 = vld [vmem:[%s199 + $0x1268] sm:$0xff]
        %v835 = vld [vmem:[%s199 + $0x1270] sm:$0xff]
        %v836 = vld [vmem:[%s199 + $0x1278] sm:$0xff]
        %v837 = vld [vmem:[%s199 + $0x1280] sm:$0xff]
        %v838 = vld [vmem:[%s199 + $0x1288] sm:$0xff]
        %v839 = vld [vmem:[%s199 + $0x1290] sm:$0xff]
        %v840 = vld [vmem:[%s199 + $0x1298] sm:$0xff]
        %v841 = vld [vmem:[%s199 + $0x12a0] sm:$0xff]
        %v842 = vld [vmem:[%s199 + $0x12a8] sm:$0xff]
        %v843 = vld [vmem:[%s199 + $0x12b0] sm:$0xff]
        %v844 = vld [vmem:[%s199 + $0x12b8] sm:$0xff]
        %v845 = vld [vmem:[%s199 + $0x12c0] sm:$0xff]
        %v846 = vld [vmem:[%s199 + $0x12c8] sm:$0xff]
        %v847 = vld [vmem:[%s199 + $0x12d0] sm:$0xff]
        %v848 = vld [vmem:[%s199 + $0x12d8] sm:$0xff]
        %v849 = vld [vmem:[%s199 + $0x12e0] sm:$0xff]
        %v850 = vld [vmem:[%s199 + $0x12e8] sm:$0xff]
        %v851 = vld [vmem:[%s199 + $0x12f0] sm:$0xff]
        %v852 = vld [vmem:[%s199 + $0x12f8] sm:$0xff]
        %v853 = vld [vmem:[%s199 + $0x1300] sm:$0xff]
        %v854 = vld [vmem:[%s199 + $0x1308] sm:$0xff]
        %v855 = vld [vmem:[%s199 + $0x1310] sm:$0xff]
        %v856 = vld [vmem:[%s199 + $0x1318] sm:$0xff]
        %v857 = vld [vmem:[%s199 + $0x1320] sm:$0xff]
        %v858 = vld [vmem:[%s199 + $0x1328] sm:$0xff]
        %v859 = vld [vmem:[%s199 + $0x1330] sm:$0xff]
        %v860 = vld [vmem:[%s199 + $0x1338] sm:$0xff]
        %v861 = vld [vmem:[%s199 + $0x1340] sm:$0xff]
        %v862 = vld [vmem:[%s199 + $0x1348] sm:$0xff]
        %v863 = vld [vmem:[%s199 + $0x1350] sm:$0xff]
        %v864 = vld [vmem:[%s199 + $0x1358] sm:$0xff]
        %v865 = vld [vmem:[%s199 + $0x1360] sm:$0xff]
        %v866 = vld [vmem:[%s199 + $0x1368] sm:$0xff]
        %v867 = vld [vmem:[%s199 + $0x1370] sm:$0xff]
        %v868 = vld [vmem:[%s199 + $0x1378] sm:$0xff]
        %v869 = vld [vmem:[%s199 + $0x1380] sm:$0xff]
        %v870 = vld [vmem:[%s199 + $0x1388] sm:$0xff]
        %v871 = vld [vmem:[%s199 + $0x1390] sm:$0xff]
        %v872 = vld [vmem:[%s199 + $0x1398] sm:$0xff]
        %v873 = vld [vmem:[%s199 + $0x13a0] sm:$0xff]
        %v874 = vld [vmem:[%s199 + $0x13a8] sm:$0xff]
        %v875 = vld [vmem:[%s199 + $0x13b0] sm:$0xff]
        %v876 = vld [vmem:[%s199 + $0x13b8] sm:$0xff]
        %v877 = vld [vmem:[%s199 + $0x13c0] sm:$0xff]
        %v878 = vld [vmem:[%s199 + $0x13c8] sm:$0xff]
        %v879 = vld [vmem:[%s199 + $0x13d0] sm:$0xff]
        %v880 = vld [vmem:[%s199 + $0x13d8] sm:$0xff]
        %v881 = vld [vmem:[%s199 + $0x13e0] sm:$0xff]
        %v882 = vld [vmem:[%s199 + $0x13e8] sm:$0xff]
        %v883 = vld [vmem:[%s199 + $0x13f0] sm:$0xff]
        %v884 = vld [vmem:[%s199 + $0x13f8] sm:$0xff]
        %v885 = vld [vmem:[%s199 + $0x1400] sm:$0xff]
        %v886 = vld [vmem:[%s199 + $0x1408] sm:$0xff]
        %v887 = vld [vmem:[%s199 + $0x1410] sm:$0xff]
        %v888 = vld [vmem:[%s199 + $0x1418] sm:$0xff]
        %v889 = vld [vmem:[%s199 + $0x1420] sm:$0xff]
        %v890 = vld [vmem:[%s199 + $0x1428] sm:$0xff]
        %v891 = vld [vmem:[%s199 + $0x1430] sm:$0xff]
        %v892 = vld [vmem:[%s199 + $0x1438] sm:$0xff]
        %v893 = vld [vmem:[%s199 + $0x1440] sm:$0xff]
        %v894 = vld [vmem:[%s199 + $0x1448] sm:$0xff]
        %v895 = vld [vmem:[%s199 + $0x1450] sm:$0xff]
        %v896 = vld [vmem:[%s199 + $0x1458] sm:$0xff]
        %v897 = vld [vmem:[%s199 + $0x1460] sm:$0xff]
        %v898 = vld [vmem:[%s199 + $0x1468] sm:$0xff]
        %v899 = vld [vmem:[%s199 + $0x1470] sm:$0xff]
        %v900 = vld [vmem:[%s199 + $0x1478] sm:$0xff]
        %v901 = vld [vmem:[%s199 + $0x1480] sm:$0xff]
        %v902 = vld [vmem:[%s199 + $0x1488] sm:$0xff]
        %v903 = vld [vmem:[%s199 + $0x1490] sm:$0xff]
        %v904 = vld [vmem:[%s199 + $0x1498] sm:$0xff]
        %v905 = vld [vmem:[%s199 + $0x14a0] sm:$0xff]
        %v906 = vld [vmem:[%s199 + $0x14a8] sm:$0xff]
        %v907 = vld [vmem:[%s199 + $0x14b0] sm:$0xff]
        %v908 = vld [vmem:[%s199 + $0x14b8] sm:$0xff]
        %v909 = vld [vmem:[%s199 + $0x14c0] sm:$0xff]
        %v910 = vld [vmem:[%s199 + $0x14c8] sm:$0xff]
        %v911 = vld [vmem:[%s199 + $0x14d0] sm:$0xff]
        %v912 = vld [vmem:[%s199 + $0x14d8] sm:$0xff]
        %v913 = vld [vmem:[%s199 + $0x14e0] sm:$0xff]
        %v914 = vld [vmem:[%s199 + $0x14e8] sm:$0xff]
        %v915 = vld [vmem:[%s199 + $0x14f0] sm:$0xff]
        %v916 = vld [vmem:[%s199 + $0x14f8] sm:$0xff]
        %v917 = vld [vmem:[%s199 + $0x1500] sm:$0xff]
        %v918 = vld [vmem:[%s199 + $0x1508] sm:$0xff]
        %v919 = vld [vmem:[%s199 + $0x1510] sm:$0xff]
        %v920 = vld [vmem:[%s199 + $0x1518] sm:$0xff]
        %v921 = vld [vmem:[%s199 + $0x1520] sm:$0xff]
        %v922 = vld [vmem:[%s199 + $0x1528] sm:$0xff]
        %v923 = vld [vmem:[%s199 + $0x1530] sm:$0xff]
        %v924 = vld [vmem:[%s199 + $0x1538] sm:$0xff]
        %v925 = vld [vmem:[%s199 + $0x1540] sm:$0xff]
        %v926 = vld [vmem:[%s199 + $0x1548] sm:$0xff]
        %v927 = vld [vmem:[%s199 + $0x1550] sm:$0xff]
        %v928 = vld [vmem:[%s199 + $0x1558] sm:$0xff]
        %v929 = vld [vmem:[%s199 + $0x1560] sm:$0xff]
        %v930 = vld [vmem:[%s199 + $0x1568] sm:$0xff]
        %v931 = vld [vmem:[%s199 + $0x1570] sm:$0xff]
        %v932 = vld [vmem:[%s199 + $0x1578] sm:$0xff]
        %v933 = vld [vmem:[%s199 + $0x1580] sm:$0xff]
        %v934 = vld [vmem:[%s199 + $0x1588] sm:$0xff]
        %v935 = vld [vmem:[%s199 + $0x1590] sm:$0xff]
        %v936 = vld [vmem:[%s199 + $0x1598] sm:$0xff]
        %v937 = vld [vmem:[%s199 + $0x15a0] sm:$0xff]
        %v938 = vld [vmem:[%s199 + $0x15a8] sm:$0xff]
        %v939 = vld [vmem:[%s199 + $0x15b0] sm:$0xff]
        %v940 = vld [vmem:[%s199 + $0x15b8] sm:$0xff]
        %v941 = vld [vmem:[%s199 + $0x15c0] sm:$0xff]
        %v942 = vld [vmem:[%s199 + $0x15c8] sm:$0xff]
        %v943 = vld [vmem:[%s199 + $0x15d0] sm:$0xff]
        %v944 = vld [vmem:[%s199 + $0x15d8] sm:$0xff]
        %v945 = vld [vmem:[%s199 + $0x15e0] sm:$0xff]
        %v946 = vld [vmem:[%s199 + $0x15e8] sm:$0xff]
        %v947 = vld [vmem:[%s199 + $0x15f0] sm:$0xff]
        %v948 = vld [vmem:[%s199 + $0x15f8] sm:$0xff]
        %v949 = vld [vmem:[%s199 + $0x1600] sm:$0xff]
        %v950 = vld [vmem:[%s199 + $0x1608] sm:$0xff]
        %v951 = vld [vmem:[%s199 + $0x1610] sm:$0xff]
        %v952 = vld [vmem:[%s199 + $0x1618] sm:$0xff]
        %v953 = vld [vmem:[%s199 + $0x1620] sm:$0xff]
        %v954 = vld [vmem:[%s199 + $0x1628] sm:$0xff]
        %v955 = vld [vmem:[%s199 + $0x1630] sm:$0xff]
        %v956 = vld [vmem:[%s199 + $0x1638] sm:$0xff]
        %v957 = vld [vmem:[%s199 + $0x1640] sm:$0xff]
        %v958 = vld [vmem:[%s199 + $0x1648] sm:$0xff]
        %v959 = vld [vmem:[%s199 + $0x1650] sm:$0xff]
        %v960 = vld [vmem:[%s199 + $0x1658] sm:$0xff]
        %v961 = vld [vmem:[%s199 + $0x1660] sm:$0xff]
        %v962 = vld [vmem:[%s199 + $0x1668] sm:$0xff]
        %v963 = vld [vmem:[%s199 + $0x1670] sm:$0xff]
        %v964 = vld [vmem:[%s199 + $0x1678] sm:$0xff]
        %v965 = vld [vmem:[%s199 + $0x1680] sm:$0xff]
        %v966 = vld [vmem:[%s199 + $0x1688] sm:$0xff]
        %v967 = vld [vmem:[%s199 + $0x1690] sm:$0xff]
        %v968 = vld [vmem:[%s199 + $0x1698] sm:$0xff]
        %v969 = vld [vmem:[%s199 + $0x16a0] sm:$0xff]
        %v970 = vld [vmem:[%s199 + $0x16a8] sm:$0xff]
        %v971 = vld [vmem:[%s199 + $0x16b0] sm:$0xff]
        %v972 = vld [vmem:[%s199 + $0x16b8] sm:$0xff]
        %v973 = vld [vmem:[%s199 + $0x16c0] sm:$0xff]
        %v974 = vld [vmem:[%s199 + $0x16c8] sm:$0xff]
        %v975 = vld [vmem:[%s199 + $0x16d0] sm:$0xff]
        %v976 = vld [vmem:[%s199 + $0x16d8] sm:$0xff]
        %v977 = vld [vmem:[%s199 + $0x16e0] sm:$0xff]
        %v978 = vld [vmem:[%s199 + $0x16e8] sm:$0xff]
        %v979 = vld [vmem:[%s199 + $0x16f0] sm:$0xff]
        %v980 = vld [vmem:[%s199 + $0x16f8] sm:$0xff]
        %v981 = vld [vmem:[%s199 + $0x1700] sm:$0xff]
        %v982 = vld [vmem:[%s199 + $0x1708] sm:$0xff]
        %v983 = vld [vmem:[%s199 + $0x1710] sm:$0xff]
        %v984 = vld [vmem:[%s199 + $0x1718] sm:$0xff]
        %v985 = vld [vmem:[%s199 + $0x1720] sm:$0xff]
        %v986 = vld [vmem:[%s199 + $0x1728] sm:$0xff]
        %v987 = vld [vmem:[%s199 + $0x1730] sm:$0xff]
        %v988 = vld [vmem:[%s199 + $0x1738] sm:$0xff]
        %v989 = vld [vmem:[%s199 + $0x1740] sm:$0xff]
        %v990 = vld [vmem:[%s199 + $0x1748] sm:$0xff]
        %v991 = vld [vmem:[%s199 + $0x1750] sm:$0xff]
        %v992 = vld [vmem:[%s199 + $0x1758] sm:$0xff]
        %v993 = vld [vmem:[%s199 + $0x1760] sm:$0xff]
        %v994 = vld [vmem:[%s199 + $0x1768] sm:$0xff]
        %v995 = vld [vmem:[%s199 + $0x1770] sm:$0xff]
        %v996 = vld [vmem:[%s199 + $0x1778] sm:$0xff]
        %v997 = vld [vmem:[%s199 + $0x1780] sm:$0xff]
        %v998 = vld [vmem:[%s199 + $0x1788] sm:$0xff]
        %v999 = vld [vmem:[%s199 + $0x1790] sm:$0xff]
        %v1000 = vld [vmem:[%s199 + $0x1798] sm:$0xff]
        %v1001 = vld [vmem:[%s199 + $0x17a0] sm:$0xff]
        %v1002 = vld [vmem:[%s199 + $0x17a8] sm:$0xff]
        %v1003 = vld [vmem:[%s199 + $0x17b0] sm:$0xff]
        %v1004 = vld [vmem:[%s199 + $0x17b8] sm:$0xff]
        %v1005 = vld [vmem:[%s199 + $0x17c0] sm:$0xff]
        %v1006 = vld [vmem:[%s199 + $0x17c8] sm:$0xff]
        %v1007 = vld [vmem:[%s199 + $0x17d0] sm:$0xff]
        %v1008 = vld [vmem:[%s199 + $0x17d8] sm:$0xff]
        %v1009 = vld [vmem:[%s199 + $0x17e0] sm:$0xff]
        %v1010 = vld [vmem:[%s199 + $0x17e8] sm:$0xff]
        %v1011 = vld [vmem:[%s199 + $0x17f0] sm:$0xff]
        %v1012 = vld [vmem:[%s199 + $0x17f8] sm:$0xff]
        %v1013 = vld [vmem:[%s199 + $0x1800] sm:$0xff]
        %v1014 = vld [vmem:[%s199 + $0x1808] sm:$0xff]
        %v1015 = vld [vmem:[%s199 + $0x1810] sm:$0xff]
        %v1016 = vld [vmem:[%s199 + $0x1818] sm:$0xff]
        %v1017 = vld [vmem:[%s199 + $0x1820] sm:$0xff]
        %v1018 = vld [vmem:[%s199 + $0x1828] sm:$0xff]
        %v1019 = vld [vmem:[%s199 + $0x1830] sm:$0xff]
        %v1020 = vld [vmem:[%s199 + $0x1838] sm:$0xff]
        %v1021 = vld [vmem:[%s199 + $0x1840] sm:$0xff]
        %v1022 = vld [vmem:[%s199 + $0x1848] sm:$0xff]
        %v1023 = vld [vmem:[%s199 + $0x1850] sm:$0xff]
        %v1024 = vld [vmem:[%s199 + $0x1858] sm:$0xff]
        %v1025 = vld [vmem:[%s199 + $0x1860] sm:$0xff]
        %v1026 = vld [vmem:[%s199 + $0x1868] sm:$0xff]
        %v1027 = vld [vmem:[%s199 + $0x1870] sm:$0xff]
        %v1028 = vld [vmem:[%s199 + $0x1878] sm:$0xff]
        %v1029 = vld [vmem:[%s199 + $0x1880] sm:$0xff]
        %v1030 = vld [vmem:[%s199 + $0x1888] sm:$0xff]
        %v1031 = vld [vmem:[%s199 + $0x1890] sm:$0xff]
        %v1032 = vld [vmem:[%s199 + $0x1898] sm:$0xff]
        %v1033 = vld [vmem:[%s199 + $0x18a0] sm:$0xff]
        %v1034 = vld [vmem:[%s199 + $0x18a8] sm:$0xff]
        %v1035 = vld [vmem:[%s199 + $0x18b0] sm:$0xff]
        %v1036 = vld [vmem:[%s199 + $0x18b8] sm:$0xff]
        %v1037 = vld [vmem:[%s199 + $0x18c0] sm:$0xff]
        %v1038 = vld [vmem:[%s199 + $0x18c8] sm:$0xff]
        %v1039 = vld [vmem:[%s199 + $0x18d0] sm:$0xff]
        %v1040 = vld [vmem:[%s199 + $0x18d8] sm:$0xff]
        %v1041 = vld [vmem:[%s199 + $0x18e0] sm:$0xff]
        %v1042 = vld [vmem:[%s199 + $0x18e8] sm:$0xff]
        %v1043 = vld [vmem:[%s199 + $0x18f0] sm:$0xff]
        %v1044 = vld [vmem:[%s199 + $0x18f8] sm:$0xff]
        %v1045 = vld [vmem:[%s199 + $0x1900] sm:$0xff]
        %v1046 = vld [vmem:[%s199 + $0x1908] sm:$0xff]
        %v1047 = vld [vmem:[%s199 + $0x1910] sm:$0xff]
        %v1048 = vld [vmem:[%s199 + $0x1918] sm:$0xff]
        %v1049 = vld [vmem:[%s199 + $0x1920] sm:$0xff]
        %v1050 = vld [vmem:[%s199 + $0x1928] sm:$0xff]
        %v1051 = vld [vmem:[%s199 + $0x1930] sm:$0xff]
        %v1052 = vld [vmem:[%s199 + $0x1938] sm:$0xff]
        %v1053 = vld [vmem:[%s199 + $0x1940] sm:$0xff]
        %v1054 = vld [vmem:[%s199 + $0x1948] sm:$0xff]
        %v1055 = vld [vmem:[%s199 + $0x1950] sm:$0xff]
        %v1056 = vld [vmem:[%s199 + $0x1958] sm:$0xff]
        %v1057 = vld [vmem:[%s199 + $0x1960] sm:$0xff]
        %v1058 = vld [vmem:[%s199 + $0x1968] sm:$0xff]
        %v1059 = vld [vmem:[%s199 + $0x1970] sm:$0xff]
        %v1060 = vld [vmem:[%s199 + $0x1978] sm:$0xff]
        %v1061 = vld [vmem:[%s199 + $0x1980] sm:$0xff]
        %v1062 = vld [vmem:[%s199 + $0x1988] sm:$0xff]
        %v1063 = vld [vmem:[%s199 + $0x1990] sm:$0xff]
        %v1064 = vld [vmem:[%s199 + $0x1998] sm:$0xff]
        %v1065 = vld [vmem:[%s199 + $0x19a0] sm:$0xff]
        %v1066 = vld [vmem:[%s199 + $0x19a8] sm:$0xff]
        %v1067 = vld [vmem:[%s199 + $0x19b0] sm:$0xff]
        %v1068 = vld [vmem:[%s199 + $0x19b8] sm:$0xff]
        %v1069 = vld [vmem:[%s199 + $0x19c0] sm:$0xff]
        %v1070 = vld [vmem:[%s199 + $0x19c8] sm:$0xff]
        %v1071 = vld [vmem:[%s199 + $0x19d0] sm:$0xff]
        %v1072 = vld [vmem:[%s199 + $0x19d8] sm:$0xff]
        %v1073 = vld [vmem:[%s199 + $0x19e0] sm:$0xff]
        %v1074 = vld [vmem:[%s199 + $0x19e8] sm:$0xff]
        %v1075 = vld [vmem:[%s199 + $0x19f0] sm:$0xff]
        %v1076 = vld [vmem:[%s199 + $0x19f8] sm:$0xff]
        %v1077 = vld [vmem:[%s199 + $0x1a00] sm:$0xff]
        %v1078 = vld [vmem:[%s199 + $0x1a08] sm:$0xff]
        %v1079 = vld [vmem:[%s199 + $0x1a10] sm:$0xff]
        %v1080 = vld [vmem:[%s199 + $0x1a18] sm:$0xff]
        %v1081 = vld [vmem:[%s199 + $0x1a20] sm:$0xff]
        %v1082 = vld [vmem:[%s199 + $0x1a28] sm:$0xff]
        %v1083 = vld [vmem:[%s199 + $0x1a30] sm:$0xff]
        %v1084 = vld [vmem:[%s199 + $0x1a38] sm:$0xff]
        %v1085 = vld [vmem:[%s199 + $0x1a40] sm:$0xff]
        %v1086 = vld [vmem:[%s199 + $0x1a48] sm:$0xff]
        %v1087 = vld [vmem:[%s199 + $0x1a50] sm:$0xff]
        %v1088 = vld [vmem:[%s199 + $0x1a58] sm:$0xff]
        %v1089 = vld [vmem:[%s199 + $0x1a60] sm:$0xff]
        %v1090 = vld [vmem:[%s199 + $0x1a68] sm:$0xff]
        %v1091 = vld [vmem:[%s199 + $0x1a70] sm:$0xff]
        %v1092 = vld [vmem:[%s199 + $0x1a78] sm:$0xff]
        %v1093 = vld [vmem:[%s199 + $0x1a80] sm:$0xff]
        %v1094 = vld [vmem:[%s199 + $0x1a88] sm:$0xff]
        %v1095 = vld [vmem:[%s199 + $0x1a90] sm:$0xff]
        %v1096 = vld [vmem:[%s199 + $0x1a98] sm:$0xff]
        %v1097 = vld [vmem:[%s199 + $0x1aa0] sm:$0xff]
        %v1098 = vld [vmem:[%s199 + $0x1aa8] sm:$0xff]
        %v1099 = vld [vmem:[%s199 + $0x1ab0] sm:$0xff]
        %v1100 = vld [vmem:[%s199 + $0x1ab8] sm:$0xff]
        %v1101 = vld [vmem:[%s199 + $0x1ac0] sm:$0xff]
        %v1102 = vld [vmem:[%s199 + $0x1ac8] sm:$0xff]
        %v1103 = vld [vmem:[%s199 + $0x1ad0] sm:$0xff]
        %v1104 = vld [vmem:[%s199 + $0x1ad8] sm:$0xff]
        %v1105 = vld [vmem:[%s199 + $0x1ae0] sm:$0xff]
        %v1106 = vld [vmem:[%s199 + $0x1ae8] sm:$0xff]
        %v1107 = vld [vmem:[%s199 + $0x1af0] sm:$0xff]
        %v1108 = vld [vmem:[%s199 + $0x1af8] sm:$0xff]
        %v1109 = vld [vmem:[%s199 + $0x1b00] sm:$0xff]
        %v1110 = vld [vmem:[%s199 + $0x1b08] sm:$0xff]
        %v1111 = vld [vmem:[%s199 + $0x1b10] sm:$0xff]
        %v1112 = vld [vmem:[%s199 + $0x1b18] sm:$0xff]
        %v1113 = vld [vmem:[%s199 + $0x1b20] sm:$0xff]
        %v1114 = vld [vmem:[%s199 + $0x1b28] sm:$0xff]
        %v1115 = vld [vmem:[%s199 + $0x1b30] sm:$0xff]
        %v1116 = vld [vmem:[%s199 + $0x1b38] sm:$0xff]
        %v1117 = vld [vmem:[%s199 + $0x1b40] sm:$0xff]
        %v1118 = vld [vmem:[%s199 + $0x1b48] sm:$0xff]
        %v1119 = vld [vmem:[%s199 + $0x1b50] sm:$0xff]
        %v1120 = vld [vmem:[%s199 + $0x1b58] sm:$0xff]
        %v1121 = vld [vmem:[%s199 + $0x1b60] sm:$0xff]
        %v1122 = vld [vmem:[%s199 + $0x1b68] sm:$0xff]
        %v1123 = vld [vmem:[%s199 + $0x1b70] sm:$0xff]
        %v1124 = vld [vmem:[%s199 + $0x1b78] sm:$0xff]
        %v1125 = vld [vmem:[%s199 + $0x1b80] sm:$0xff]
        %v1126 = vld [vmem:[%s199 + $0x1b88] sm:$0xff]
        %v1127 = vld [vmem:[%s199 + $0x1b90] sm:$0xff]
        %v1128 = vld [vmem:[%s199 + $0x1b98] sm:$0xff]
        %v1129 = vld [vmem:[%s199 + $0x1ba0] sm:$0xff]
        %v1130 = vld [vmem:[%s199 + $0x1ba8] sm:$0xff]
        %v1131 = vld [vmem:[%s199 + $0x1bb0] sm:$0xff]
        %v1132 = vld [vmem:[%s199 + $0x1bb8] sm:$0xff]
        %v1133 = vld [vmem:[%s199 + $0x1bc0] sm:$0xff]
        %v1134 = vld [vmem:[%s199 + $0x1bc8] sm:$0xff]
        %v1135 = vld [vmem:[%s199 + $0x1bd0] sm:$0xff]
        %v1136 = vld [vmem:[%s199 + $0x1bd8] sm:$0xff]
        %v1137 = vld [vmem:[%s199 + $0x1be0] sm:$0xff]
        %v1138 = vld [vmem:[%s199 + $0x1be8] sm:$0xff]
        %v1139 = vld [vmem:[%s199 + $0x1bf0] sm:$0xff]
        %v1140 = vld [vmem:[%s199 + $0x1bf8] sm:$0xff]
        %v1141 = vld [vmem:[%s199 + $0x1c00] sm:$0xff]
        %v1142 = vld [vmem:[%s199 + $0x1c08] sm:$0xff]
        %v1143 = vld [vmem:[%s199 + $0x1c10] sm:$0xff]
        %v1144 = vld [vmem:[%s199 + $0x1c18] sm:$0xff]
        %v1145 = vld [vmem:[%s199 + $0x1c20] sm:$0xff]
        %v1146 = vld [vmem:[%s199 + $0x1c28] sm:$0xff]
        %v1147 = vld [vmem:[%s199 + $0x1c30] sm:$0xff]
        %v1148 = vld [vmem:[%s199 + $0x1c38] sm:$0xff]
        %v1149 = vld [vmem:[%s199 + $0x1c40] sm:$0xff]
        %v1150 = vld [vmem:[%s199 + $0x1c48] sm:$0xff]
        %v1151 = vld [vmem:[%s199 + $0x1c50] sm:$0xff]
        %v1152 = vld [vmem:[%s199 + $0x1c58] sm:$0xff]
        %v1153 = vld [vmem:[%s199 + $0x1c60] sm:$0xff]
        %v1154 = vld [vmem:[%s199 + $0x1c68] sm:$0xff]
        %v1155 = vld [vmem:[%s199 + $0x1c70] sm:$0xff]
        %v1156 = vld [vmem:[%s199 + $0x1c78] sm:$0xff]
        %v1157 = vld [vmem:[%s199 + $0x1c80] sm:$0xff]
        %v1158 = vld [vmem:[%s199 + $0x1c88] sm:$0xff]
        %v1159 = vld [vmem:[%s199 + $0x1c90] sm:$0xff]
        %v1160 = vld [vmem:[%s199 + $0x1c98] sm:$0xff]
        %v1161 = vld [vmem:[%s199 + $0x1ca0] sm:$0xff]
        %v1162 = vld [vmem:[%s199 + $0x1ca8] sm:$0xff]
        %v1163 = vld [vmem:[%s199 + $0x1cb0] sm:$0xff]
        %v1164 = vld [vmem:[%s199 + $0x1cb8] sm:$0xff]
        %v1165 = vld [vmem:[%s199 + $0x1cc0] sm:$0xff]
        %v1166 = vld [vmem:[%s199 + $0x1cc8] sm:$0xff]
        %v1167 = vld [vmem:[%s199 + $0x1cd0] sm:$0xff]
        %v1168 = vld [vmem:[%s199 + $0x1cd8] sm:$0xff]
        %v1169 = vld [vmem:[%s199 + $0x1ce0] sm:$0xff]
        %v1170 = vld [vmem:[%s199 + $0x1ce8] sm:$0xff]
        %v1171 = vld [vmem:[%s199 + $0x1cf0] sm:$0xff]
        %v1172 = vld [vmem:[%s199 + $0x1cf8] sm:$0xff]
        %v1173 = vld [vmem:[%s199 + $0x1d00] sm:$0xff]
        %v1174 = vld [vmem:[%s199 + $0x1d08] sm:$0xff]
        %v1175 = vld [vmem:[%s199 + $0x1d10] sm:$0xff]
        %v1176 = vld [vmem:[%s199 + $0x1d18] sm:$0xff]
        %v1177 = vld [vmem:[%s199 + $0x1d20] sm:$0xff]
        %v1178 = vld [vmem:[%s199 + $0x1d28] sm:$0xff]
        %v1179 = vld [vmem:[%s199 + $0x1d30] sm:$0xff]
        %v1180 = vld [vmem:[%s199 + $0x1d38] sm:$0xff]
        %v1181 = vld [vmem:[%s199 + $0x1d40] sm:$0xff]
        %v1182 = vld [vmem:[%s199 + $0x1d48] sm:$0xff]
        %v1183 = vld [vmem:[%s199 + $0x1d50] sm:$0xff]
        %v1184 = vld [vmem:[%s199 + $0x1d58] sm:$0xff]
        %v1185 = vld [vmem:[%s199 + $0x1d60] sm:$0xff]
        %v1186 = vld [vmem:[%s199 + $0x1d68] sm:$0xff]
        %v1187 = vld [vmem:[%s199 + $0x1d70] sm:$0xff]
        %v1188 = vld [vmem:[%s199 + $0x1d78] sm:$0xff]
        %v1189 = vld [vmem:[%s199 + $0x1d80] sm:$0xff]
        %v1190 = vld [vmem:[%s199 + $0x1d88] sm:$0xff]
        %v1191 = vld [vmem:[%s199 + $0x1d90] sm:$0xff]
        %v1192 = vld [vmem:[%s199 + $0x1d98] sm:$0xff]
        %v1193 = vld [vmem:[%s199 + $0x1da0] sm:$0xff]
        %v1194 = vld [vmem:[%s199 + $0x1da8] sm:$0xff]
        %v1195 = vld [vmem:[%s199 + $0x1db0] sm:$0xff]
        %v1196 = vld [vmem:[%s199 + $0x1db8] sm:$0xff]
        %v1197 = vld [vmem:[%s199 + $0x1dc0] sm:$0xff]
        %v1198 = vld [vmem:[%s199 + $0x1dc8] sm:$0xff]
        %v1199 = vld [vmem:[%s199 + $0x1dd0] sm:$0xff]
        %v1200 = vld [vmem:[%s199 + $0x1dd8] sm:$0xff]
        %v1201 = vld [vmem:[%s199 + $0x1de0] sm:$0xff]
        %v1202 = vld [vmem:[%s199 + $0x1de8] sm:$0xff]
        %v1203 = vld [vmem:[%s199 + $0x1df0] sm:$0xff]
        %v1204 = vld [vmem:[%s199 + $0x1df8] sm:$0xff]
        %v1205 = vld [vmem:[%s199 + $0x1e00] sm:$0xff]
        %v1206 = vld [vmem:[%s199 + $0x1e08] sm:$0xff]
        %v1207 = vld [vmem:[%s199 + $0x1e10] sm:$0xff]
        %v1208 = vld [vmem:[%s199 + $0x1e18] sm:$0xff]
        %v1209 = vld [vmem:[%s199 + $0x1e20] sm:$0xff]
        %v1210 = vld [vmem:[%s199 + $0x1e28] sm:$0xff]
        %v1211 = vld [vmem:[%s199 + $0x1e30] sm:$0xff]
        %v1212 = vld [vmem:[%s199 + $0x1e38] sm:$0xff]
        %v1213 = vld [vmem:[%s199 + $0x1e40] sm:$0xff]
        %v1214 = vld [vmem:[%s199 + $0x1e48] sm:$0xff]
        %v1215 = vld [vmem:[%s199 + $0x1e50] sm:$0xff]
        %v1216 = vld [vmem:[%s199 + $0x1e58] sm:$0xff]
        %v1217 = vld [vmem:[%s199 + $0x1e60] sm:$0xff]
        %v1218 = vld [vmem:[%s199 + $0x1e68] sm:$0xff]
        %v1219 = vld [vmem:[%s199 + $0x1e70] sm:$0xff]
        %v1220 = vld [vmem:[%s199 + $0x1e78] sm:$0xff]
        %v1221 = vld [vmem:[%s199 + $0x1e80] sm:$0xff]
        %v1222 = vld [vmem:[%s199 + $0x1e88] sm:$0xff]
        %v1223 = vld [vmem:[%s199 + $0x1e90] sm:$0xff]
        %v1224 = vld [vmem:[%s199 + $0x1e98] sm:$0xff]
        %v1225 = vld [vmem:[%s199 + $0x1ea0] sm:$0xff]
        %v1226 = vld [vmem:[%s199 + $0x1ea8] sm:$0xff]
        %v1227 = vld [vmem:[%s199 + $0x1eb0] sm:$0xff]
        %v1228 = vld [vmem:[%s199 + $0x1eb8] sm:$0xff]
        %v1229 = vld [vmem:[%s199 + $0x1ec0] sm:$0xff]
        %v1230 = vld [vmem:[%s199 + $0x1ec8] sm:$0xff]
        %v1231 = vld [vmem:[%s199 + $0x1ed0] sm:$0xff]
        %v1232 = vld [vmem:[%s199 + $0x1ed8] sm:$0xff]
        %v1233 = vld [vmem:[%s199 + $0x1ee0] sm:$0xff]
        %v1234 = vld [vmem:[%s199 + $0x1ee8] sm:$0xff]
        %v1235 = vld [vmem:[%s199 + $0x1ef0] sm:$0xff]
        %v1236 = vld [vmem:[%s199 + $0x1ef8] sm:$0xff]
        %v1237 = vld [vmem:[%s199 + $0x1f00] sm:$0xff]
        %v1238 = vld [vmem:[%s199 + $0x1f08] sm:$0xff]
        %v1239 = vld [vmem:[%s199 + $0x1f10] sm:$0xff]
        %v1240 = vld [vmem:[%s199 + $0x1f18] sm:$0xff]
        %v1241 = vld [vmem:[%s199 + $0x1f20] sm:$0xff]
        %v1242 = vld [vmem:[%s199 + $0x1f28] sm:$0xff]
        %v1243 = vld [vmem:[%s199 + $0x1f30] sm:$0xff]
        %v1244 = vld [vmem:[%s199 + $0x1f38] sm:$0xff]
        %v1245 = vld [vmem:[%s199 + $0x1f40] sm:$0xff]
        %v1246 = vld [vmem:[%s199 + $0x1f48] sm:$0xff]
        %v1247 = vld [vmem:[%s199 + $0x1f50] sm:$0xff]
        %v1248 = vld [vmem:[%s199 + $0x1f58] sm:$0xff]
        %v1249 = vld [vmem:[%s199 + $0x1f60] sm:$0xff]
        %v1250 = vld [vmem:[%s199 + $0x1f68] sm:$0xff]
        %v1251 = vld [vmem:[%s199 + $0x1f70] sm:$0xff]
        %v1252 = vld [vmem:[%s199 + $0x1f78] sm:$0xff]
        %v1253 = vld [vmem:[%s199 + $0x1f80] sm:$0xff]
        %v1254 = vld [vmem:[%s199 + $0x1f88] sm:$0xff]
        %v1255 = vld [vmem:[%s199 + $0x1f90] sm:$0xff]
        %v1256 = vld [vmem:[%s199 + $0x1f98] sm:$0xff]
        %v1257 = vld [vmem:[%s199 + $0x1fa0] sm:$0xff]
        %v1258 = vld [vmem:[%s199 + $0x1fa8] sm:$0xff]
        %v1259 = vld [vmem:[%s199 + $0x1fb0] sm:$0xff]
        %v1260 = vld [vmem:[%s199 + $0x1fb8] sm:$0xff]
        %v1261 = vld [vmem:[%s199 + $0x1fc0] sm:$0xff]
        %v1262 = vld [vmem:[%s199 + $0x1fc8] sm:$0xff]
        %v1263 = vld [vmem:[%s199 + $0x1fd0] sm:$0xff]
        %v1264 = vld [vmem:[%s199 + $0x1fd8] sm:$0xff]
        %v1265 = vld [vmem:[%s199 + $0x1fe0] sm:$0xff]
        %v1266 = vld [vmem:[%s199 + $0x1fe8] sm:$0xff]
        %v1267 = vld [vmem:[%s199 + $0x1ff0] sm:$0xff]
        %v1268 = vld [vmem:[%s199 + $0x1ff8] sm:$0xff]
        %v1277 = vcombine.high %v237, %v237
        %v1279 = vunpack.c.l.s4 1966171168
        %v1280 = vunpack.c.0.s8 %v1279
        %v1281 = vlaneseq
        %v1282 = vshrl.u32 %v1281, 7
        %v1283 = vsub.s32 %v1280, %v1282
        %v1284 = vrot.slane %v237, %v1283
        %v1286 = vunpack.c.l.s4 1966171168
        %v1287 = vunpack.c.0.s8 %v1286
        %v1288 = vlaneseq
        %v1289 = vshrl.u32 %v1288, 7
        %v1290 = vsub.s32 %v1287, %v1289
        %v1291 = vrot.slane %v1277, %v1290
        %v1292 = vcombine.high %v1284, %v1284
        %v1293 = vcombine.high %v1291, %v1291
        %v1295 = vunpack.c.l.s4 1966171168
        %v1296 = vunpack.c.0.s8 %v1295
        %v1297 = vlaneseq
        %v1298 = vshrl.u32 %v1297, 7
        %v1299 = vsub.s32 %v1296, %v1298
        %v1300 = vrot.slane %v1284, %v1299
        %v1302 = vunpack.c.l.s4 1966171168
        %v1303 = vunpack.c.0.s8 %v1302
        %v1304 = vlaneseq
        %v1305 = vshrl.u32 %v1304, 7
        %v1306 = vsub.s32 %v1303, %v1305
        %v1307 = vrot.slane %v1291, %v1306
        %v1309 = vunpack.c.l.s4 1966171168
        %v1310 = vunpack.c.0.s8 %v1309
        %v1311 = vlaneseq
        %v1312 = vshrl.u32 %v1311, 7
        %v1313 = vsub.s32 %v1310, %v1312
        %v1314 = vrot.slane %v1292, %v1313
        %v1316 = vunpack.c.l.s4 1966171168
        %v1317 = vunpack.c.0.s8 %v1316
        %v1318 = vlaneseq
        %v1319 = vshrl.u32 %v1318, 7
        %v1320 = vsub.s32 %v1317, %v1319
        %v1321 = vrot.slane %v1293, %v1320
        %v1322 = vcombine.high %v1300, %v1300
        %v1323 = vcombine.high %v1307, %v1307
        %v1324 = vcombine.high %v1314, %v1314
        %v1325 = vcombine.high %v1321, %v1321
        %v1326 = vcombine.high %v238, %v238
        %v1328 = vunpack.c.l.s4 1966171168
        %v1329 = vunpack.c.0.s8 %v1328
        %v1330 = vlaneseq
        %v1331 = vshrl.u32 %v1330, 7
        %v1332 = vsub.s32 %v1329, %v1331
        %v1333 = vrot.slane %v238, %v1332
        %v1335 = vunpack.c.l.s4 1966171168
        %v1336 = vunpack.c.0.s8 %v1335
        %v1337 = vlaneseq
        %v1338 = vshrl.u32 %v1337, 7
        %v1339 = vsub.s32 %v1336, %v1338
        %v1340 = vrot.slane %v1326, %v1339
        %v1341 = vcombine.high %v1333, %v1333
        %v1342 = vcombine.high %v1340, %v1340
        %v1344 = vunpack.c.l.s4 1966171168
        %v1345 = vunpack.c.0.s8 %v1344
        %v1346 = vlaneseq
        %v1347 = vshrl.u32 %v1346, 7
        %v1348 = vsub.s32 %v1345, %v1347
        %v1349 = vrot.slane %v1333, %v1348
        %v1351 = vunpack.c.l.s4 1966171168
        %v1352 = vunpack.c.0.s8 %v1351
        %v1353 = vlaneseq
        %v1354 = vshrl.u32 %v1353, 7
        %v1355 = vsub.s32 %v1352, %v1354
        %v1356 = vrot.slane %v1340, %v1355
        %v1358 = vunpack.c.l.s4 1966171168
        %v1359 = vunpack.c.0.s8 %v1358
        %v1360 = vlaneseq
        %v1361 = vshrl.u32 %v1360, 7
        %v1362 = vsub.s32 %v1359, %v1361
        %v1363 = vrot.slane %v1341, %v1362
        %v1365 = vunpack.c.l.s4 1966171168
        %v1366 = vunpack.c.0.s8 %v1365
        %v1367 = vlaneseq
        %v1368 = vshrl.u32 %v1367, 7
        %v1369 = vsub.s32 %v1366, %v1368
        %v1370 = vrot.slane %v1342, %v1369
        %v1371 = vcombine.high %v1349, %v1349
        %v1372 = vcombine.high %v1356, %v1356
        %v1373 = vcombine.high %v1363, %v1363
        %v1374 = vcombine.high %v1370, %v1370
        %v1375 = vcombine.high %v239, %v239
        %v1377 = vunpack.c.l.s4 1966171168
        %v1378 = vunpack.c.0.s8 %v1377
        %v1379 = vlaneseq
        %v1380 = vshrl.u32 %v1379, 7
        %v1381 = vsub.s32 %v1378, %v1380
        %v1382 = vrot.slane %v239, %v1381
        %v1384 = vunpack.c.l.s4 1966171168
        %v1385 = vunpack.c.0.s8 %v1384
        %v1386 = vlaneseq
        %v1387 = vshrl.u32 %v1386, 7
        %v1388 = vsub.s32 %v1385, %v1387
        %v1389 = vrot.slane %v1375, %v1388
        %v1390 = vcombine.high %v1382, %v1382
        %v1391 = vcombine.high %v1389, %v1389
        %v1393 = vunpack.c.l.s4 1966171168
        %v1394 = vunpack.c.0.s8 %v1393
        %v1395 = vlaneseq
        %v1396 = vshrl.u32 %v1395, 7
        %v1397 = vsub.s32 %v1394, %v1396
        %v1398 = vrot.slane %v1382, %v1397
        %v1400 = vunpack.c.l.s4 1966171168
        %v1401 = vunpack.c.0.s8 %v1400
        %v1402 = vlaneseq
        %v1403 = vshrl.u32 %v1402, 7
        %v1404 = vsub.s32 %v1401, %v1403
        %v1405 = vrot.slane %v1389, %v1404
        %v1407 = vunpack.c.l.s4 1966171168
        %v1408 = vunpack.c.0.s8 %v1407
        %v1409 = vlaneseq
        %v1410 = vshrl.u32 %v1409, 7
        %v1411 = vsub.s32 %v1408, %v1410
        %v1412 = vrot.slane %v1390, %v1411
        %v1414 = vunpack.c.l.s4 1966171168
        %v1415 = vunpack.c.0.s8 %v1414
        %v1416 = vlaneseq
        %v1417 = vshrl.u32 %v1416, 7
        %v1418 = vsub.s32 %v1415, %v1417
        %v1419 = vrot.slane %v1391, %v1418
        %v1420 = vcombine.high %v1398, %v1398
        %v1421 = vcombine.high %v1405, %v1405
        %v1422 = vcombine.high %v1412, %v1412
        %v1423 = vcombine.high %v1419, %v1419
        %v1424 = vcombine.high %v240, %v240
        %v1426 = vunpack.c.l.s4 1966171168
        %v1427 = vunpack.c.0.s8 %v1426
        %v1428 = vlaneseq
        %v1429 = vshrl.u32 %v1428, 7
        %v1430 = vsub.s32 %v1427, %v1429
        %v1431 = vrot.slane %v240, %v1430
        %v1433 = vunpack.c.l.s4 1966171168
        %v1434 = vunpack.c.0.s8 %v1433
        %v1435 = vlaneseq
        %v1436 = vshrl.u32 %v1435, 7
        %v1437 = vsub.s32 %v1434, %v1436
        %v1438 = vrot.slane %v1424, %v1437
        %v1439 = vcombine.high %v1431, %v1431
        %v1440 = vcombine.high %v1438, %v1438
        %v1442 = vunpack.c.l.s4 1966171168
        %v1443 = vunpack.c.0.s8 %v1442
        %v1444 = vlaneseq
        %v1445 = vshrl.u32 %v1444, 7
        %v1446 = vsub.s32 %v1443, %v1445
        %v1447 = vrot.slane %v1431, %v1446
        %v1449 = vunpack.c.l.s4 1966171168
        %v1450 = vunpack.c.0.s8 %v1449
        %v1451 = vlaneseq
        %v1452 = vshrl.u32 %v1451, 7
        %v1453 = vsub.s32 %v1450, %v1452
        %v1454 = vrot.slane %v1438, %v1453
        %v1456 = vunpack.c.l.s4 1966171168
        %v1457 = vunpack.c.0.s8 %v1456
        %v1458 = vlaneseq
        %v1459 = vshrl.u32 %v1458, 7
        %v1460 = vsub.s32 %v1457, %v1459
        %v1461 = vrot.slane %v1439, %v1460
        %v1463 = vunpack.c.l.s4 1966171168
        %v1464 = vunpack.c.0.s8 %v1463
        %v1465 = vlaneseq
        %v1466 = vshrl.u32 %v1465, 7
        %v1467 = vsub.s32 %v1464, %v1466
        %v1468 = vrot.slane %v1440, %v1467
        %v1469 = vcombine.high %v1447, %v1447
        %v1470 = vcombine.high %v1454, %v1454
        %v1471 = vcombine.high %v1461, %v1461
        %v1472 = vcombine.high %v1468, %v1468
        %v1473 = vcombine.high %v241, %v241
        %v1475 = vunpack.c.l.s4 1966171168
        %v1476 = vunpack.c.0.s8 %v1475
        %v1477 = vlaneseq
        %v1478 = vshrl.u32 %v1477, 7
        %v1479 = vsub.s32 %v1476, %v1478
        %v1480 = vrot.slane %v241, %v1479
        %v1482 = vunpack.c.l.s4 1966171168
        %v1483 = vunpack.c.0.s8 %v1482
        %v1484 = vlaneseq
        %v1485 = vshrl.u32 %v1484, 7
        %v1486 = vsub.s32 %v1483, %v1485
        %v1487 = vrot.slane %v1473, %v1486
        %v1488 = vcombine.high %v1480, %v1480
        %v1489 = vcombine.high %v1487, %v1487
        %v1491 = vunpack.c.l.s4 1966171168
        %v1492 = vunpack.c.0.s8 %v1491
        %v1493 = vlaneseq
        %v1494 = vshrl.u32 %v1493, 7
        %v1495 = vsub.s32 %v1492, %v1494
        %v1496 = vrot.slane %v1480, %v1495
        %v1498 = vunpack.c.l.s4 1966171168
        %v1499 = vunpack.c.0.s8 %v1498
        %v1500 = vlaneseq
        %v1501 = vshrl.u32 %v1500, 7
        %v1502 = vsub.s32 %v1499, %v1501
        %v1503 = vrot.slane %v1487, %v1502
        %v1505 = vunpack.c.l.s4 1966171168
        %v1506 = vunpack.c.0.s8 %v1505
        %v1507 = vlaneseq
        %v1508 = vshrl.u32 %v1507, 7
        %v1509 = vsub.s32 %v1506, %v1508
        %v1510 = vrot.slane %v1488, %v1509
        %v1512 = vunpack.c.l.s4 1966171168
        %v1513 = vunpack.c.0.s8 %v1512
        %v1514 = vlaneseq
        %v1515 = vshrl.u32 %v1514, 7
        %v1516 = vsub.s32 %v1513, %v1515
        %v1517 = vrot.slane %v1489, %v1516
        %v1518 = vcombine.high %v1496, %v1496
        %v1519 = vcombine.high %v1503, %v1503
        %v1520 = vcombine.high %v1510, %v1510
        %v1521 = vcombine.high %v1517, %v1517
        %v1522 = vcombine.high %v242, %v242
        %v1524 = vunpack.c.l.s4 1966171168
        %v1525 = vunpack.c.0.s8 %v1524
        %v1526 = vlaneseq
        %v1527 = vshrl.u32 %v1526, 7
        %v1528 = vsub.s32 %v1525, %v1527
        %v1529 = vrot.slane %v242, %v1528
        %v1531 = vunpack.c.l.s4 1966171168
        %v1532 = vunpack.c.0.s8 %v1531
        %v1533 = vlaneseq
        %v1534 = vshrl.u32 %v1533, 7
        %v1535 = vsub.s32 %v1532, %v1534
        %v1536 = vrot.slane %v1522, %v1535
        %v1537 = vcombine.high %v1529, %v1529
        %v1538 = vcombine.high %v1536, %v1536
        %v1540 = vunpack.c.l.s4 1966171168
        %v1541 = vunpack.c.0.s8 %v1540
        %v1542 = vlaneseq
        %v1543 = vshrl.u32 %v1542, 7
        %v1544 = vsub.s32 %v1541, %v1543
        %v1545 = vrot.slane %v1529, %v1544
        %v1547 = vunpack.c.l.s4 1966171168
        %v1548 = vunpack.c.0.s8 %v1547
        %v1549 = vlaneseq
        %v1550 = vshrl.u32 %v1549, 7
        %v1551 = vsub.s32 %v1548, %v1550
        %v1552 = vrot.slane %v1536, %v1551
        %v1554 = vunpack.c.l.s4 1966171168
        %v1555 = vunpack.c.0.s8 %v1554
        %v1556 = vlaneseq
        %v1557 = vshrl.u32 %v1556, 7
        %v1558 = vsub.s32 %v1555, %v1557
        %v1559 = vrot.slane %v1537, %v1558
        %v1561 = vunpack.c.l.s4 1966171168
        %v1562 = vunpack.c.0.s8 %v1561
        %v1563 = vlaneseq
        %v1564 = vshrl.u32 %v1563, 7
        %v1565 = vsub.s32 %v1562, %v1564
        %v1566 = vrot.slane %v1538, %v1565
        %v1567 = vcombine.high %v1545, %v1545
        %v1568 = vcombine.high %v1552, %v1552
        %v1569 = vcombine.high %v1559, %v1559
        %v1570 = vcombine.high %v1566, %v1566
        %v1571 = vcombine.high %v243, %v243
        %v1573 = vunpack.c.l.s4 1966171168
        %v1574 = vunpack.c.0.s8 %v1573
        %v1575 = vlaneseq
        %v1576 = vshrl.u32 %v1575, 7
        %v1577 = vsub.s32 %v1574, %v1576
        %v1578 = vrot.slane %v243, %v1577
        %v1580 = vunpack.c.l.s4 1966171168
        %v1581 = vunpack.c.0.s8 %v1580
        %v1582 = vlaneseq
        %v1583 = vshrl.u32 %v1582, 7
        %v1584 = vsub.s32 %v1581, %v1583
        %v1585 = vrot.slane %v1571, %v1584
        %v1586 = vcombine.high %v1578, %v1578
        %v1587 = vcombine.high %v1585, %v1585
        %v1589 = vunpack.c.l.s4 1966171168
        %v1590 = vunpack.c.0.s8 %v1589
        %v1591 = vlaneseq
        %v1592 = vshrl.u32 %v1591, 7
        %v1593 = vsub.s32 %v1590, %v1592
        %v1594 = vrot.slane %v1578, %v1593
        %v1596 = vunpack.c.l.s4 1966171168
        %v1597 = vunpack.c.0.s8 %v1596
        %v1598 = vlaneseq
        %v1599 = vshrl.u32 %v1598, 7
        %v1600 = vsub.s32 %v1597, %v1599
        %v1601 = vrot.slane %v1585, %v1600
        %v1603 = vunpack.c.l.s4 1966171168
        %v1604 = vunpack.c.0.s8 %v1603
        %v1605 = vlaneseq
        %v1606 = vshrl.u32 %v1605, 7
        %v1607 = vsub.s32 %v1604, %v1606
        %v1608 = vrot.slane %v1586, %v1607
        %v1610 = vunpack.c.l.s4 1966171168
        %v1611 = vunpack.c.0.s8 %v1610
        %v1612 = vlaneseq
        %v1613 = vshrl.u32 %v1612, 7
        %v1614 = vsub.s32 %v1611, %v1613
        %v1615 = vrot.slane %v1587, %v1614
        %v1616 = vcombine.high %v1594, %v1594
        %v1617 = vcombine.high %v1601, %v1601
        %v1618 = vcombine.high %v1608, %v1608
        %v1619 = vcombine.high %v1615, %v1615
        %v1620 = vcombine.high %v244, %v244
        %v1622 = vunpack.c.l.s4 1966171168
        %v1623 = vunpack.c.0.s8 %v1622
        %v1624 = vlaneseq
        %v1625 = vshrl.u32 %v1624, 7
        %v1626 = vsub.s32 %v1623, %v1625
        %v1627 = vrot.slane %v244, %v1626
        %v1629 = vunpack.c.l.s4 1966171168
        %v1630 = vunpack.c.0.s8 %v1629
        %v1631 = vlaneseq
        %v1632 = vshrl.u32 %v1631, 7
        %v1633 = vsub.s32 %v1630, %v1632
        %v1634 = vrot.slane %v1620, %v1633
        %v1635 = vcombine.high %v1627, %v1627
        %v1636 = vcombine.high %v1634, %v1634
        %v1638 = vunpack.c.l.s4 1966171168
        %v1639 = vunpack.c.0.s8 %v1638
        %v1640 = vlaneseq
        %v1641 = vshrl.u32 %v1640, 7
        %v1642 = vsub.s32 %v1639, %v1641
        %v1643 = vrot.slane %v1627, %v1642
        %v1645 = vunpack.c.l.s4 1966171168
        %v1646 = vunpack.c.0.s8 %v1645
        %v1647 = vlaneseq
        %v1648 = vshrl.u32 %v1647, 7
        %v1649 = vsub.s32 %v1646, %v1648
        %v1650 = vrot.slane %v1634, %v1649
        %v1652 = vunpack.c.l.s4 1966171168
        %v1653 = vunpack.c.0.s8 %v1652
        %v1654 = vlaneseq
        %v1655 = vshrl.u32 %v1654, 7
        %v1656 = vsub.s32 %v1653, %v1655
        %v1657 = vrot.slane %v1635, %v1656
        %v1659 = vunpack.c.l.s4 1966171168
        %v1660 = vunpack.c.0.s8 %v1659
        %v1661 = vlaneseq
        %v1662 = vshrl.u32 %v1661, 7
        %v1663 = vsub.s32 %v1660, %v1662
        %v1664 = vrot.slane %v1636, %v1663
        %v1665 = vcombine.high %v1643, %v1643
        %v1666 = vcombine.high %v1650, %v1650
        %v1667 = vcombine.high %v1657, %v1657
        %v1668 = vcombine.high %v1664, %v1664
        %v2757 = vunpack.c.l.b16 %v245
        %v2758 = vunpack.c.h.b16 %v245
        %v2759 = vunpack.c.l.b16 %v246
        %v2760 = vunpack.c.h.b16 %v246
        %v2761 = vunpack.c.l.b16 %v247
        %v2762 = vunpack.c.h.b16 %v247
        %v2763 = vunpack.c.l.b16 %v248
        %v2764 = vunpack.c.h.b16 %v248
        %v2765 = vunpack.c.l.b16 %v249
        %v2766 = vunpack.c.h.b16 %v249
        %v2767 = vunpack.c.l.b16 %v250
        %v2768 = vunpack.c.h.b16 %v250
        %v2769 = vunpack.c.l.b16 %v251
        %v2770 = vunpack.c.h.b16 %v251
        %v2771 = vunpack.c.l.b16 %v252
        %v2772 = vunpack.c.h.b16 %v252
        %v2773 = vunpack.c.l.b16 %v253
        %v2774 = vunpack.c.h.b16 %v253
        %v2775 = vunpack.c.l.b16 %v254
        %v2776 = vunpack.c.h.b16 %v254
        %v2777 = vunpack.c.l.b16 %v255
        %v2778 = vunpack.c.h.b16 %v255
        %v2779 = vunpack.c.l.b16 %v256
        %v2780 = vunpack.c.h.b16 %v256
        %v2781 = vunpack.c.l.b16 %v257
        %v2782 = vunpack.c.h.b16 %v257
        %v2783 = vunpack.c.l.b16 %v258
        %v2784 = vunpack.c.h.b16 %v258
        %v2785 = vunpack.c.l.b16 %v259
        %v2786 = vunpack.c.h.b16 %v259
        %v2787 = vunpack.c.l.b16 %v260
        %v2788 = vunpack.c.h.b16 %v260
        %v2789 = vunpack.c.l.b16 %v261
        %v2790 = vunpack.c.h.b16 %v261
        %v2791 = vunpack.c.l.b16 %v262
        %v2792 = vunpack.c.h.b16 %v262
        %v2793 = vunpack.c.l.b16 %v263
        %v2794 = vunpack.c.h.b16 %v263
        %v2795 = vunpack.c.l.b16 %v264
        %v2796 = vunpack.c.h.b16 %v264
        %v2797 = vunpack.c.l.b16 %v265
        %v2798 = vunpack.c.h.b16 %v265
        %v2799 = vunpack.c.l.b16 %v266
        %v2800 = vunpack.c.h.b16 %v266
        %v2801 = vunpack.c.l.b16 %v267
        %v2802 = vunpack.c.h.b16 %v267
        %v2803 = vunpack.c.l.b16 %v268
        %v2804 = vunpack.c.h.b16 %v268
        %v2805 = vunpack.c.l.b16 %v269
        %v2806 = vunpack.c.h.b16 %v269
        %v2807 = vunpack.c.l.b16 %v270
        %v2808 = vunpack.c.h.b16 %v270
        %v2809 = vunpack.c.l.b16 %v271
        %v2810 = vunpack.c.h.b16 %v271
        %v2811 = vunpack.c.l.b16 %v272
        %v2812 = vunpack.c.h.b16 %v272
        %v2813 = vunpack.c.l.b16 %v273
        %v2814 = vunpack.c.h.b16 %v273
        %v2815 = vunpack.c.l.b16 %v274
        %v2816 = vunpack.c.h.b16 %v274
        %v2817 = vunpack.c.l.b16 %v275
        %v2818 = vunpack.c.h.b16 %v275
        %v2819 = vunpack.c.l.b16 %v276
        %v2820 = vunpack.c.h.b16 %v276
        %v2821 = vunpack.c.l.b16 %v277
        %v2822 = vunpack.c.h.b16 %v277
        %v2823 = vunpack.c.l.b16 %v278
        %v2824 = vunpack.c.h.b16 %v278
        %v2825 = vunpack.c.l.b16 %v279
        %v2826 = vunpack.c.h.b16 %v279
        %v2827 = vunpack.c.l.b16 %v280
        %v2828 = vunpack.c.h.b16 %v280
        %v2829 = vunpack.c.l.b16 %v281
        %v2830 = vunpack.c.h.b16 %v281
        %v2831 = vunpack.c.l.b16 %v282
        %v2832 = vunpack.c.h.b16 %v282
        %v2833 = vunpack.c.l.b16 %v283
        %v2834 = vunpack.c.h.b16 %v283
        %v2835 = vunpack.c.l.b16 %v284
        %v2836 = vunpack.c.h.b16 %v284
        %v2837 = vunpack.c.l.b16 %v285
        %v2838 = vunpack.c.h.b16 %v285
        %v2839 = vunpack.c.l.b16 %v286
        %v2840 = vunpack.c.h.b16 %v286
        %v2841 = vunpack.c.l.b16 %v287
        %v2842 = vunpack.c.h.b16 %v287
        %v2843 = vunpack.c.l.b16 %v288
        %v2844 = vunpack.c.h.b16 %v288
        %v2845 = vunpack.c.l.b16 %v289
        %v2846 = vunpack.c.h.b16 %v289
        %v2847 = vunpack.c.l.b16 %v290
        %v2848 = vunpack.c.h.b16 %v290
        %v2849 = vunpack.c.l.b16 %v291
        %v2850 = vunpack.c.h.b16 %v291
        %v2851 = vunpack.c.l.b16 %v292
        %v2852 = vunpack.c.h.b16 %v292
        %v2853 = vunpack.c.l.b16 %v293
        %v2854 = vunpack.c.h.b16 %v293
        %v2855 = vunpack.c.l.b16 %v294
        %v2856 = vunpack.c.h.b16 %v294
        %v2857 = vunpack.c.l.b16 %v295
        %v2858 = vunpack.c.h.b16 %v295
        %v2859 = vunpack.c.l.b16 %v296
        %v2860 = vunpack.c.h.b16 %v296
        %v2861 = vunpack.c.l.b16 %v297
        %v2862 = vunpack.c.h.b16 %v297
        %v2863 = vunpack.c.l.b16 %v298
        %v2864 = vunpack.c.h.b16 %v298
        %v2865 = vunpack.c.l.b16 %v299
        %v2866 = vunpack.c.h.b16 %v299
        %v2867 = vunpack.c.l.b16 %v300
        %v2868 = vunpack.c.h.b16 %v300
        %v2869 = vunpack.c.l.b16 %v301
        %v2870 = vunpack.c.h.b16 %v301
        %v2871 = vunpack.c.l.b16 %v302
        %v2872 = vunpack.c.h.b16 %v302
        %v2873 = vunpack.c.l.b16 %v303
        %v2874 = vunpack.c.h.b16 %v303
        %v2875 = vunpack.c.l.b16 %v304
        %v2876 = vunpack.c.h.b16 %v304
        %v2877 = vunpack.c.l.b16 %v305
        %v2878 = vunpack.c.h.b16 %v305
        %v2879 = vunpack.c.l.b16 %v306
        %v2880 = vunpack.c.h.b16 %v306
        %v2881 = vunpack.c.l.b16 %v307
        %v2882 = vunpack.c.h.b16 %v307
        %v2883 = vunpack.c.l.b16 %v308
        %v2884 = vunpack.c.h.b16 %v308
        %v2885 = vunpack.c.l.b16 %v309
        %v2886 = vunpack.c.h.b16 %v309
        %v2887 = vunpack.c.l.b16 %v310
        %v2888 = vunpack.c.h.b16 %v310
        %v2889 = vunpack.c.l.b16 %v311
        %v2890 = vunpack.c.h.b16 %v311
        %v2891 = vunpack.c.l.b16 %v312
        %v2892 = vunpack.c.h.b16 %v312
        %v2893 = vunpack.c.l.b16 %v313
        %v2894 = vunpack.c.h.b16 %v313
        %v2895 = vunpack.c.l.b16 %v314
        %v2896 = vunpack.c.h.b16 %v314
        %v2897 = vunpack.c.l.b16 %v315
        %v2898 = vunpack.c.h.b16 %v315
        %v2899 = vunpack.c.l.b16 %v316
        %v2900 = vunpack.c.h.b16 %v316
        %v2901 = vunpack.c.l.b16 %v317
        %v2902 = vunpack.c.h.b16 %v317
        %v2903 = vunpack.c.l.b16 %v318
        %v2904 = vunpack.c.h.b16 %v318
        %v2905 = vunpack.c.l.b16 %v319
        %v2906 = vunpack.c.h.b16 %v319
        %v2907 = vunpack.c.l.b16 %v320
        %v2908 = vunpack.c.h.b16 %v320
        %v2909 = vunpack.c.l.b16 %v321
        %v2910 = vunpack.c.h.b16 %v321
        %v2911 = vunpack.c.l.b16 %v322
        %v2912 = vunpack.c.h.b16 %v322
        %v2913 = vunpack.c.l.b16 %v323
        %v2914 = vunpack.c.h.b16 %v323
        %v2915 = vunpack.c.l.b16 %v324
        %v2916 = vunpack.c.h.b16 %v324
        %v2917 = vunpack.c.l.b16 %v325
        %v2918 = vunpack.c.h.b16 %v325
        %v2919 = vunpack.c.l.b16 %v326
        %v2920 = vunpack.c.h.b16 %v326
        %v2921 = vunpack.c.l.b16 %v327
        %v2922 = vunpack.c.h.b16 %v327
        %v2923 = vunpack.c.l.b16 %v328
        %v2924 = vunpack.c.h.b16 %v328
        %v2925 = vunpack.c.l.b16 %v329
        %v2926 = vunpack.c.h.b16 %v329
        %v2927 = vunpack.c.l.b16 %v330
        %v2928 = vunpack.c.h.b16 %v330
        %v2929 = vunpack.c.l.b16 %v331
        %v2930 = vunpack.c.h.b16 %v331
        %v2931 = vunpack.c.l.b16 %v332
        %v2932 = vunpack.c.h.b16 %v332
        %v2933 = vunpack.c.l.b16 %v333
        %v2934 = vunpack.c.h.b16 %v333
        %v2935 = vunpack.c.l.b16 %v334
        %v2936 = vunpack.c.h.b16 %v334
        %v2937 = vunpack.c.l.b16 %v335
        %v2938 = vunpack.c.h.b16 %v335
        %v2939 = vunpack.c.l.b16 %v336
        %v2940 = vunpack.c.h.b16 %v336
        %v2941 = vunpack.c.l.b16 %v337
        %v2942 = vunpack.c.h.b16 %v337
        %v2943 = vunpack.c.l.b16 %v338
        %v2944 = vunpack.c.h.b16 %v338
        %v2945 = vunpack.c.l.b16 %v339
        %v2946 = vunpack.c.h.b16 %v339
        %v2947 = vunpack.c.l.b16 %v340
        %v2948 = vunpack.c.h.b16 %v340
        %v2949 = vunpack.c.l.b16 %v341
        %v2950 = vunpack.c.h.b16 %v341
        %v2951 = vunpack.c.l.b16 %v342
        %v2952 = vunpack.c.h.b16 %v342
        %v2953 = vunpack.c.l.b16 %v343
        %v2954 = vunpack.c.h.b16 %v343
        %v2955 = vunpack.c.l.b16 %v344
        %v2956 = vunpack.c.h.b16 %v344
        %v2957 = vunpack.c.l.b16 %v345
        %v2958 = vunpack.c.h.b16 %v345
        %v2959 = vunpack.c.l.b16 %v346
        %v2960 = vunpack.c.h.b16 %v346
        %v2961 = vunpack.c.l.b16 %v347
        %v2962 = vunpack.c.h.b16 %v347
        %v2963 = vunpack.c.l.b16 %v348
        %v2964 = vunpack.c.h.b16 %v348
        %v2965 = vunpack.c.l.b16 %v349
        %v2966 = vunpack.c.h.b16 %v349
        %v2967 = vunpack.c.l.b16 %v350
        %v2968 = vunpack.c.h.b16 %v350
        %v2969 = vunpack.c.l.b16 %v351
        %v2970 = vunpack.c.h.b16 %v351
        %v2971 = vunpack.c.l.b16 %v352
        %v2972 = vunpack.c.h.b16 %v352
        %v2973 = vunpack.c.l.b16 %v353
        %v2974 = vunpack.c.h.b16 %v353
        %v2975 = vunpack.c.l.b16 %v354
        %v2976 = vunpack.c.h.b16 %v354
        %v2977 = vunpack.c.l.b16 %v355
        %v2978 = vunpack.c.h.b16 %v355
        %v2979 = vunpack.c.l.b16 %v356
        %v2980 = vunpack.c.h.b16 %v356
        %v2981 = vunpack.c.l.b16 %v357
        %v2982 = vunpack.c.h.b16 %v357
        %v2983 = vunpack.c.l.b16 %v358
        %v2984 = vunpack.c.h.b16 %v358
        %v2985 = vunpack.c.l.b16 %v359
        %v2986 = vunpack.c.h.b16 %v359
        %v2987 = vunpack.c.l.b16 %v360
        %v2988 = vunpack.c.h.b16 %v360
        %v2989 = vunpack.c.l.b16 %v361
        %v2990 = vunpack.c.h.b16 %v361
        %v2991 = vunpack.c.l.b16 %v362
        %v2992 = vunpack.c.h.b16 %v362
        %v2993 = vunpack.c.l.b16 %v363
        %v2994 = vunpack.c.h.b16 %v363
        %v2995 = vunpack.c.l.b16 %v364
        %v2996 = vunpack.c.h.b16 %v364
        %v2997 = vunpack.c.l.b16 %v365
        %v2998 = vunpack.c.h.b16 %v365
        %v2999 = vunpack.c.l.b16 %v366
        %v3000 = vunpack.c.h.b16 %v366
        %v3001 = vunpack.c.l.b16 %v367
        %v3002 = vunpack.c.h.b16 %v367
        %v3003 = vunpack.c.l.b16 %v368
        %v3004 = vunpack.c.h.b16 %v368
        %v3005 = vunpack.c.l.b16 %v369
        %v3006 = vunpack.c.h.b16 %v369
        %v3007 = vunpack.c.l.b16 %v370
        %v3008 = vunpack.c.h.b16 %v370
        %v3009 = vunpack.c.l.b16 %v371
        %v3010 = vunpack.c.h.b16 %v371
        %v3011 = vunpack.c.l.b16 %v372
        %v3012 = vunpack.c.h.b16 %v372
        %v3013 = vunpack.c.l.b16 %v373
        %v3014 = vunpack.c.h.b16 %v373
        %v3015 = vunpack.c.l.b16 %v374
        %v3016 = vunpack.c.h.b16 %v374
        %v3017 = vunpack.c.l.b16 %v375
        %v3018 = vunpack.c.h.b16 %v375
        %v3019 = vunpack.c.l.b16 %v376
        %v3020 = vunpack.c.h.b16 %v376
        %v3021 = vunpack.c.l.b16 %v377
        %v3022 = vunpack.c.h.b16 %v377
        %v3023 = vunpack.c.l.b16 %v378
        %v3024 = vunpack.c.h.b16 %v378
        %v3025 = vunpack.c.l.b16 %v379
        %v3026 = vunpack.c.h.b16 %v379
        %v3027 = vunpack.c.l.b16 %v380
        %v3028 = vunpack.c.h.b16 %v380
        %v3029 = vunpack.c.l.b16 %v381
        %v3030 = vunpack.c.h.b16 %v381
        %v3031 = vunpack.c.l.b16 %v382
        %v3032 = vunpack.c.h.b16 %v382
        %v3033 = vunpack.c.l.b16 %v383
        %v3034 = vunpack.c.h.b16 %v383
        %v3035 = vunpack.c.l.b16 %v384
        %v3036 = vunpack.c.h.b16 %v384
        %v3037 = vunpack.c.l.b16 %v385
        %v3038 = vunpack.c.h.b16 %v385
        %v3039 = vunpack.c.l.b16 %v386
        %v3040 = vunpack.c.h.b16 %v386
        %v3041 = vunpack.c.l.b16 %v387
        %v3042 = vunpack.c.h.b16 %v387
        %v3043 = vunpack.c.l.b16 %v388
        %v3044 = vunpack.c.h.b16 %v388
        %v3045 = vunpack.c.l.b16 %v389
        %v3046 = vunpack.c.h.b16 %v389
        %v3047 = vunpack.c.l.b16 %v390
        %v3048 = vunpack.c.h.b16 %v390
        %v3049 = vunpack.c.l.b16 %v391
        %v3050 = vunpack.c.h.b16 %v391
        %v3051 = vunpack.c.l.b16 %v392
        %v3052 = vunpack.c.h.b16 %v392
        %v3053 = vunpack.c.l.b16 %v393
        %v3054 = vunpack.c.h.b16 %v393
        %v3055 = vunpack.c.l.b16 %v394
        %v3056 = vunpack.c.h.b16 %v394
        %v3057 = vunpack.c.l.b16 %v395
        %v3058 = vunpack.c.h.b16 %v395
        %v3059 = vunpack.c.l.b16 %v396
        %v3060 = vunpack.c.h.b16 %v396
        %v3061 = vunpack.c.l.b16 %v397
        %v3062 = vunpack.c.h.b16 %v397
        %v3063 = vunpack.c.l.b16 %v398
        %v3064 = vunpack.c.h.b16 %v398
        %v3065 = vunpack.c.l.b16 %v399
        %v3066 = vunpack.c.h.b16 %v399
        %v3067 = vunpack.c.l.b16 %v400
        %v3068 = vunpack.c.h.b16 %v400
        %v3069 = vunpack.c.l.b16 %v401
        %v3070 = vunpack.c.h.b16 %v401
        %v3071 = vunpack.c.l.b16 %v402
        %v3072 = vunpack.c.h.b16 %v402
        %v3073 = vunpack.c.l.b16 %v403
        %v3074 = vunpack.c.h.b16 %v403
        %v3075 = vunpack.c.l.b16 %v404
        %v3076 = vunpack.c.h.b16 %v404
        %v3077 = vunpack.c.l.b16 %v405
        %v3078 = vunpack.c.h.b16 %v405
        %v3079 = vunpack.c.l.b16 %v406
        %v3080 = vunpack.c.h.b16 %v406
        %v3081 = vunpack.c.l.b16 %v407
        %v3082 = vunpack.c.h.b16 %v407
        %v3083 = vunpack.c.l.b16 %v408
        %v3084 = vunpack.c.h.b16 %v408
        %v3085 = vunpack.c.l.b16 %v409
        %v3086 = vunpack.c.h.b16 %v409
        %v3087 = vunpack.c.l.b16 %v410
        %v3088 = vunpack.c.h.b16 %v410
        %v3089 = vunpack.c.l.b16 %v411
        %v3090 = vunpack.c.h.b16 %v411
        %v3091 = vunpack.c.l.b16 %v412
        %v3092 = vunpack.c.h.b16 %v412
        %v3093 = vunpack.c.l.b16 %v413
        %v3094 = vunpack.c.h.b16 %v413
        %v3095 = vunpack.c.l.b16 %v414
        %v3096 = vunpack.c.h.b16 %v414
        %v3097 = vunpack.c.l.b16 %v415
        %v3098 = vunpack.c.h.b16 %v415
        %v3099 = vunpack.c.l.b16 %v416
        %v3100 = vunpack.c.h.b16 %v416
        %v3101 = vunpack.c.l.b16 %v417
        %v3102 = vunpack.c.h.b16 %v417
        %v3103 = vunpack.c.l.b16 %v418
        %v3104 = vunpack.c.h.b16 %v418
        %v3105 = vunpack.c.l.b16 %v419
        %v3106 = vunpack.c.h.b16 %v419
        %v3107 = vunpack.c.l.b16 %v420
        %v3108 = vunpack.c.h.b16 %v420
        %v3109 = vunpack.c.l.b16 %v421
        %v3110 = vunpack.c.h.b16 %v421
        %v3111 = vunpack.c.l.b16 %v422
        %v3112 = vunpack.c.h.b16 %v422
        %v3113 = vunpack.c.l.b16 %v423
        %v3114 = vunpack.c.h.b16 %v423
        %v3115 = vunpack.c.l.b16 %v424
        %v3116 = vunpack.c.h.b16 %v424
        %v3117 = vunpack.c.l.b16 %v425
        %v3118 = vunpack.c.h.b16 %v425
        %v3119 = vunpack.c.l.b16 %v426
        %v3120 = vunpack.c.h.b16 %v426
        %v3121 = vunpack.c.l.b16 %v427
        %v3122 = vunpack.c.h.b16 %v427
        %v3123 = vunpack.c.l.b16 %v428
        %v3124 = vunpack.c.h.b16 %v428
        %v3125 = vunpack.c.l.b16 %v429
        %v3126 = vunpack.c.h.b16 %v429
        %v3127 = vunpack.c.l.b16 %v430
        %v3128 = vunpack.c.h.b16 %v430
        %v3129 = vunpack.c.l.b16 %v431
        %v3130 = vunpack.c.h.b16 %v431
        %v3131 = vunpack.c.l.b16 %v432
        %v3132 = vunpack.c.h.b16 %v432
        %v3133 = vunpack.c.l.b16 %v433
        %v3134 = vunpack.c.h.b16 %v433
        %v3135 = vunpack.c.l.b16 %v434
        %v3136 = vunpack.c.h.b16 %v434
        %v3137 = vunpack.c.l.b16 %v435
        %v3138 = vunpack.c.h.b16 %v435
        %v3139 = vunpack.c.l.b16 %v436
        %v3140 = vunpack.c.h.b16 %v436
        %v3141 = vunpack.c.l.b16 %v437
        %v3142 = vunpack.c.h.b16 %v437
        %v3143 = vunpack.c.l.b16 %v438
        %v3144 = vunpack.c.h.b16 %v438
        %v3145 = vunpack.c.l.b16 %v439
        %v3146 = vunpack.c.h.b16 %v439
        %v3147 = vunpack.c.l.b16 %v440
        %v3148 = vunpack.c.h.b16 %v440
        %v3149 = vunpack.c.l.b16 %v441
        %v3150 = vunpack.c.h.b16 %v441
        %v3151 = vunpack.c.l.b16 %v442
        %v3152 = vunpack.c.h.b16 %v442
        %v3153 = vunpack.c.l.b16 %v443
        %v3154 = vunpack.c.h.b16 %v443
        %v3155 = vunpack.c.l.b16 %v444
        %v3156 = vunpack.c.h.b16 %v444
        %v3157 = vunpack.c.l.b16 %v445
        %v3158 = vunpack.c.h.b16 %v445
        %v3159 = vunpack.c.l.b16 %v446
        %v3160 = vunpack.c.h.b16 %v446
        %v3161 = vunpack.c.l.b16 %v447
        %v3162 = vunpack.c.h.b16 %v447
        %v3163 = vunpack.c.l.b16 %v448
        %v3164 = vunpack.c.h.b16 %v448
        %v3165 = vunpack.c.l.b16 %v449
        %v3166 = vunpack.c.h.b16 %v449
        %v3167 = vunpack.c.l.b16 %v450
        %v3168 = vunpack.c.h.b16 %v450
        %v3169 = vunpack.c.l.b16 %v451
        %v3170 = vunpack.c.h.b16 %v451
        %v3171 = vunpack.c.l.b16 %v452
        %v3172 = vunpack.c.h.b16 %v452
        %v3173 = vunpack.c.l.b16 %v453
        %v3174 = vunpack.c.h.b16 %v453
        %v3175 = vunpack.c.l.b16 %v454
        %v3176 = vunpack.c.h.b16 %v454
        %v3177 = vunpack.c.l.b16 %v455
        %v3178 = vunpack.c.h.b16 %v455
        %v3179 = vunpack.c.l.b16 %v456
        %v3180 = vunpack.c.h.b16 %v456
        %v3181 = vunpack.c.l.b16 %v457
        %v3182 = vunpack.c.h.b16 %v457
        %v3183 = vunpack.c.l.b16 %v458
        %v3184 = vunpack.c.h.b16 %v458
        %v3185 = vunpack.c.l.b16 %v459
        %v3186 = vunpack.c.h.b16 %v459
        %v3187 = vunpack.c.l.b16 %v460
        %v3188 = vunpack.c.h.b16 %v460
        %v3189 = vunpack.c.l.b16 %v461
        %v3190 = vunpack.c.h.b16 %v461
        %v3191 = vunpack.c.l.b16 %v462
        %v3192 = vunpack.c.h.b16 %v462
        %v3193 = vunpack.c.l.b16 %v463
        %v3194 = vunpack.c.h.b16 %v463
        %v3195 = vunpack.c.l.b16 %v464
        %v3196 = vunpack.c.h.b16 %v464
        %v3197 = vunpack.c.l.b16 %v465
        %v3198 = vunpack.c.h.b16 %v465
        %v3199 = vunpack.c.l.b16 %v466
        %v3200 = vunpack.c.h.b16 %v466
        %v3201 = vunpack.c.l.b16 %v467
        %v3202 = vunpack.c.h.b16 %v467
        %v3203 = vunpack.c.l.b16 %v468
        %v3204 = vunpack.c.h.b16 %v468
        %v3205 = vunpack.c.l.b16 %v469
        %v3206 = vunpack.c.h.b16 %v469
        %v3207 = vunpack.c.l.b16 %v470
        %v3208 = vunpack.c.h.b16 %v470
        %v3209 = vunpack.c.l.b16 %v471
        %v3210 = vunpack.c.h.b16 %v471
        %v3211 = vunpack.c.l.b16 %v472
        %v3212 = vunpack.c.h.b16 %v472
        %v3213 = vunpack.c.l.b16 %v473
        %v3214 = vunpack.c.h.b16 %v473
        %v3215 = vunpack.c.l.b16 %v474
        %v3216 = vunpack.c.h.b16 %v474
        %v3217 = vunpack.c.l.b16 %v475
        %v3218 = vunpack.c.h.b16 %v475
        %v3219 = vunpack.c.l.b16 %v476
        %v3220 = vunpack.c.h.b16 %v476
        %v3221 = vunpack.c.l.b16 %v477
        %v3222 = vunpack.c.h.b16 %v477
        %v3223 = vunpack.c.l.b16 %v478
        %v3224 = vunpack.c.h.b16 %v478
        %v3225 = vunpack.c.l.b16 %v479
        %v3226 = vunpack.c.h.b16 %v479
        %v3227 = vunpack.c.l.b16 %v480
        %v3228 = vunpack.c.h.b16 %v480
        %v3229 = vunpack.c.l.b16 %v481
        %v3230 = vunpack.c.h.b16 %v481
        %v3231 = vunpack.c.l.b16 %v482
        %v3232 = vunpack.c.h.b16 %v482
        %v3233 = vunpack.c.l.b16 %v483
        %v3234 = vunpack.c.h.b16 %v483
        %v3235 = vunpack.c.l.b16 %v484
        %v3236 = vunpack.c.h.b16 %v484
        %v3237 = vunpack.c.l.b16 %v485
        %v3238 = vunpack.c.h.b16 %v485
        %v3239 = vunpack.c.l.b16 %v486
        %v3240 = vunpack.c.h.b16 %v486
        %v3241 = vunpack.c.l.b16 %v487
        %v3242 = vunpack.c.h.b16 %v487
        %v3243 = vunpack.c.l.b16 %v488
        %v3244 = vunpack.c.h.b16 %v488
        %v3245 = vunpack.c.l.b16 %v489
        %v3246 = vunpack.c.h.b16 %v489
        %v3247 = vunpack.c.l.b16 %v490
        %v3248 = vunpack.c.h.b16 %v490
        %v3249 = vunpack.c.l.b16 %v491
        %v3250 = vunpack.c.h.b16 %v491
        %v3251 = vunpack.c.l.b16 %v492
        %v3252 = vunpack.c.h.b16 %v492
        %v3253 = vunpack.c.l.b16 %v493
        %v3254 = vunpack.c.h.b16 %v493
        %v3255 = vunpack.c.l.b16 %v494
        %v3256 = vunpack.c.h.b16 %v494
        %v3257 = vunpack.c.l.b16 %v495
        %v3258 = vunpack.c.h.b16 %v495
        %v3259 = vunpack.c.l.b16 %v496
        %v3260 = vunpack.c.h.b16 %v496
        %v3261 = vunpack.c.l.b16 %v497
        %v3262 = vunpack.c.h.b16 %v497
        %v3263 = vunpack.c.l.b16 %v498
        %v3264 = vunpack.c.h.b16 %v498
        %v3265 = vunpack.c.l.b16 %v499
        %v3266 = vunpack.c.h.b16 %v499
        %v3267 = vunpack.c.l.b16 %v500
        %v3268 = vunpack.c.h.b16 %v500
        %v3269 = vunpack.c.l.b16 %v501
        %v3270 = vunpack.c.h.b16 %v501
        %v3271 = vunpack.c.l.b16 %v502
        %v3272 = vunpack.c.h.b16 %v502
        %v3273 = vunpack.c.l.b16 %v503
        %v3274 = vunpack.c.h.b16 %v503
        %v3275 = vunpack.c.l.b16 %v504
        %v3276 = vunpack.c.h.b16 %v504
        %v3277 = vunpack.c.l.b16 %v505
        %v3278 = vunpack.c.h.b16 %v505
        %v3279 = vunpack.c.l.b16 %v506
        %v3280 = vunpack.c.h.b16 %v506
        %v3281 = vunpack.c.l.b16 %v507
        %v3282 = vunpack.c.h.b16 %v507
        %v3283 = vunpack.c.l.b16 %v508
        %v3284 = vunpack.c.h.b16 %v508
        %v3285 = vunpack.c.l.b16 %v509
        %v3286 = vunpack.c.h.b16 %v509
        %v3287 = vunpack.c.l.b16 %v510
        %v3288 = vunpack.c.h.b16 %v510
        %v3289 = vunpack.c.l.b16 %v511
        %v3290 = vunpack.c.h.b16 %v511
        %v3291 = vunpack.c.l.b16 %v512
        %v3292 = vunpack.c.h.b16 %v512
        %v3293 = vunpack.c.l.b16 %v513
        %v3294 = vunpack.c.h.b16 %v513
        %v3295 = vunpack.c.l.b16 %v514
        %v3296 = vunpack.c.h.b16 %v514
        %v3297 = vunpack.c.l.b16 %v515
        %v3298 = vunpack.c.h.b16 %v515
        %v3299 = vunpack.c.l.b16 %v516
        %v3300 = vunpack.c.h.b16 %v516
        %v3301 = vunpack.c.l.b16 %v517
        %v3302 = vunpack.c.h.b16 %v517
        %v3303 = vunpack.c.l.b16 %v518
        %v3304 = vunpack.c.h.b16 %v518
        %v3305 = vunpack.c.l.b16 %v519
        %v3306 = vunpack.c.h.b16 %v519
        %v3307 = vunpack.c.l.b16 %v520
        %v3308 = vunpack.c.h.b16 %v520
        %v3309 = vunpack.c.l.b16 %v521
        %v3310 = vunpack.c.h.b16 %v521
        %v3311 = vunpack.c.l.b16 %v522
        %v3312 = vunpack.c.h.b16 %v522
        %v3313 = vunpack.c.l.b16 %v523
        %v3314 = vunpack.c.h.b16 %v523
        %v3315 = vunpack.c.l.b16 %v524
        %v3316 = vunpack.c.h.b16 %v524
        %v3317 = vunpack.c.l.b16 %v525
        %v3318 = vunpack.c.h.b16 %v525
        %v3319 = vunpack.c.l.b16 %v526
        %v3320 = vunpack.c.h.b16 %v526
        %v3321 = vunpack.c.l.b16 %v527
        %v3322 = vunpack.c.h.b16 %v527
        %v3323 = vunpack.c.l.b16 %v528
        %v3324 = vunpack.c.h.b16 %v528
        %v3325 = vunpack.c.l.b16 %v529
        %v3326 = vunpack.c.h.b16 %v529
        %v3327 = vunpack.c.l.b16 %v530
        %v3328 = vunpack.c.h.b16 %v530
        %v3329 = vunpack.c.l.b16 %v531
        %v3330 = vunpack.c.h.b16 %v531
        %v3331 = vunpack.c.l.b16 %v532
        %v3332 = vunpack.c.h.b16 %v532
        %v3333 = vunpack.c.l.b16 %v533
        %v3334 = vunpack.c.h.b16 %v533
        %v3335 = vunpack.c.l.b16 %v534
        %v3336 = vunpack.c.h.b16 %v534
        %v3337 = vunpack.c.l.b16 %v535
        %v3338 = vunpack.c.h.b16 %v535
        %v3339 = vunpack.c.l.b16 %v536
        %v3340 = vunpack.c.h.b16 %v536
        %v3341 = vunpack.c.l.b16 %v537
        %v3342 = vunpack.c.h.b16 %v537
        %v3343 = vunpack.c.l.b16 %v538
        %v3344 = vunpack.c.h.b16 %v538
        %v3345 = vunpack.c.l.b16 %v539
        %v3346 = vunpack.c.h.b16 %v539
        %v3347 = vunpack.c.l.b16 %v540
        %v3348 = vunpack.c.h.b16 %v540
        %v3349 = vunpack.c.l.b16 %v541
        %v3350 = vunpack.c.h.b16 %v541
        %v3351 = vunpack.c.l.b16 %v542
        %v3352 = vunpack.c.h.b16 %v542
        %v3353 = vunpack.c.l.b16 %v543
        %v3354 = vunpack.c.h.b16 %v543
        %v3355 = vunpack.c.l.b16 %v544
        %v3356 = vunpack.c.h.b16 %v544
        %v3357 = vunpack.c.l.b16 %v545
        %v3358 = vunpack.c.h.b16 %v545
        %v3359 = vunpack.c.l.b16 %v546
        %v3360 = vunpack.c.h.b16 %v546
        %v3361 = vunpack.c.l.b16 %v547
        %v3362 = vunpack.c.h.b16 %v547
        %v3363 = vunpack.c.l.b16 %v548
        %v3364 = vunpack.c.h.b16 %v548
        %v3365 = vunpack.c.l.b16 %v549
        %v3366 = vunpack.c.h.b16 %v549
        %v3367 = vunpack.c.l.b16 %v550
        %v3368 = vunpack.c.h.b16 %v550
        %v3369 = vunpack.c.l.b16 %v551
        %v3370 = vunpack.c.h.b16 %v551
        %v3371 = vunpack.c.l.b16 %v552
        %v3372 = vunpack.c.h.b16 %v552
        %v3373 = vunpack.c.l.b16 %v553
        %v3374 = vunpack.c.h.b16 %v553
        %v3375 = vunpack.c.l.b16 %v554
        %v3376 = vunpack.c.h.b16 %v554
        %v3377 = vunpack.c.l.b16 %v555
        %v3378 = vunpack.c.h.b16 %v555
        %v3379 = vunpack.c.l.b16 %v556
        %v3380 = vunpack.c.h.b16 %v556
        %v3381 = vunpack.c.l.b16 %v557
        %v3382 = vunpack.c.h.b16 %v557
        %v3383 = vunpack.c.l.b16 %v558
        %v3384 = vunpack.c.h.b16 %v558
        %v3385 = vunpack.c.l.b16 %v559
        %v3386 = vunpack.c.h.b16 %v559
        %v3387 = vunpack.c.l.b16 %v560
        %v3388 = vunpack.c.h.b16 %v560
        %v3389 = vunpack.c.l.b16 %v561
        %v3390 = vunpack.c.h.b16 %v561
        %v3391 = vunpack.c.l.b16 %v562
        %v3392 = vunpack.c.h.b16 %v562
        %v3393 = vunpack.c.l.b16 %v563
        %v3394 = vunpack.c.h.b16 %v563
        %v3395 = vunpack.c.l.b16 %v564
        %v3396 = vunpack.c.h.b16 %v564
        %v3397 = vunpack.c.l.b16 %v565
        %v3398 = vunpack.c.h.b16 %v565
        %v3399 = vunpack.c.l.b16 %v566
        %v3400 = vunpack.c.h.b16 %v566
        %v3401 = vunpack.c.l.b16 %v567
        %v3402 = vunpack.c.h.b16 %v567
        %v3403 = vunpack.c.l.b16 %v568
        %v3404 = vunpack.c.h.b16 %v568
        %v3405 = vunpack.c.l.b16 %v569
        %v3406 = vunpack.c.h.b16 %v569
        %v3407 = vunpack.c.l.b16 %v570
        %v3408 = vunpack.c.h.b16 %v570
        %v3409 = vunpack.c.l.b16 %v571
        %v3410 = vunpack.c.h.b16 %v571
        %v3411 = vunpack.c.l.b16 %v572
        %v3412 = vunpack.c.h.b16 %v572
        %v3413 = vunpack.c.l.b16 %v573
        %v3414 = vunpack.c.h.b16 %v573
        %v3415 = vunpack.c.l.b16 %v574
        %v3416 = vunpack.c.h.b16 %v574
        %v3417 = vunpack.c.l.b16 %v575
        %v3418 = vunpack.c.h.b16 %v575
        %v3419 = vunpack.c.l.b16 %v576
        %v3420 = vunpack.c.h.b16 %v576
        %v3421 = vunpack.c.l.b16 %v577
        %v3422 = vunpack.c.h.b16 %v577
        %v3423 = vunpack.c.l.b16 %v578
        %v3424 = vunpack.c.h.b16 %v578
        %v3425 = vunpack.c.l.b16 %v579
        %v3426 = vunpack.c.h.b16 %v579
        %v3427 = vunpack.c.l.b16 %v580
        %v3428 = vunpack.c.h.b16 %v580
        %v3429 = vunpack.c.l.b16 %v581
        %v3430 = vunpack.c.h.b16 %v581
        %v3431 = vunpack.c.l.b16 %v582
        %v3432 = vunpack.c.h.b16 %v582
        %v3433 = vunpack.c.l.b16 %v583
        %v3434 = vunpack.c.h.b16 %v583
        %v3435 = vunpack.c.l.b16 %v584
        %v3436 = vunpack.c.h.b16 %v584
        %v3437 = vunpack.c.l.b16 %v585
        %v3438 = vunpack.c.h.b16 %v585
        %v3439 = vunpack.c.l.b16 %v586
        %v3440 = vunpack.c.h.b16 %v586
        %v3441 = vunpack.c.l.b16 %v587
        %v3442 = vunpack.c.h.b16 %v587
        %v3443 = vunpack.c.l.b16 %v588
        %v3444 = vunpack.c.h.b16 %v588
        %v3445 = vunpack.c.l.b16 %v589
        %v3446 = vunpack.c.h.b16 %v589
        %v3447 = vunpack.c.l.b16 %v590
        %v3448 = vunpack.c.h.b16 %v590
        %v3449 = vunpack.c.l.b16 %v591
        %v3450 = vunpack.c.h.b16 %v591
        %v3451 = vunpack.c.l.b16 %v592
        %v3452 = vunpack.c.h.b16 %v592
        %v3453 = vunpack.c.l.b16 %v593
        %v3454 = vunpack.c.h.b16 %v593
        %v3455 = vunpack.c.l.b16 %v594
        %v3456 = vunpack.c.h.b16 %v594
        %v3457 = vunpack.c.l.b16 %v595
        %v3458 = vunpack.c.h.b16 %v595
        %v3459 = vunpack.c.l.b16 %v596
        %v3460 = vunpack.c.h.b16 %v596
        %v3461 = vunpack.c.l.b16 %v597
        %v3462 = vunpack.c.h.b16 %v597
        %v3463 = vunpack.c.l.b16 %v598
        %v3464 = vunpack.c.h.b16 %v598
        %v3465 = vunpack.c.l.b16 %v599
        %v3466 = vunpack.c.h.b16 %v599
        %v3467 = vunpack.c.l.b16 %v600
        %v3468 = vunpack.c.h.b16 %v600
        %v3469 = vunpack.c.l.b16 %v601
        %v3470 = vunpack.c.h.b16 %v601
        %v3471 = vunpack.c.l.b16 %v602
        %v3472 = vunpack.c.h.b16 %v602
        %v3473 = vunpack.c.l.b16 %v603
        %v3474 = vunpack.c.h.b16 %v603
        %v3475 = vunpack.c.l.b16 %v604
        %v3476 = vunpack.c.h.b16 %v604
        %v3477 = vunpack.c.l.b16 %v605
        %v3478 = vunpack.c.h.b16 %v605
        %v3479 = vunpack.c.l.b16 %v606
        %v3480 = vunpack.c.h.b16 %v606
        %v3481 = vunpack.c.l.b16 %v607
        %v3482 = vunpack.c.h.b16 %v607
        %v3483 = vunpack.c.l.b16 %v608
        %v3484 = vunpack.c.h.b16 %v608
        %v3485 = vunpack.c.l.b16 %v609
        %v3486 = vunpack.c.h.b16 %v609
        %v3487 = vunpack.c.l.b16 %v610
        %v3488 = vunpack.c.h.b16 %v610
        %v3489 = vunpack.c.l.b16 %v611
        %v3490 = vunpack.c.h.b16 %v611
        %v3491 = vunpack.c.l.b16 %v612
        %v3492 = vunpack.c.h.b16 %v612
        %v3493 = vunpack.c.l.b16 %v613
        %v3494 = vunpack.c.h.b16 %v613
        %v3495 = vunpack.c.l.b16 %v614
        %v3496 = vunpack.c.h.b16 %v614
        %v3497 = vunpack.c.l.b16 %v615
        %v3498 = vunpack.c.h.b16 %v615
        %v3499 = vunpack.c.l.b16 %v616
        %v3500 = vunpack.c.h.b16 %v616
        %v3501 = vunpack.c.l.b16 %v617
        %v3502 = vunpack.c.h.b16 %v617
        %v3503 = vunpack.c.l.b16 %v618
        %v3504 = vunpack.c.h.b16 %v618
        %v3505 = vunpack.c.l.b16 %v619
        %v3506 = vunpack.c.h.b16 %v619
        %v3507 = vunpack.c.l.b16 %v620
        %v3508 = vunpack.c.h.b16 %v620
        %v3509 = vunpack.c.l.b16 %v621
        %v3510 = vunpack.c.h.b16 %v621
        %v3511 = vunpack.c.l.b16 %v622
        %v3512 = vunpack.c.h.b16 %v622
        %v3513 = vunpack.c.l.b16 %v623
        %v3514 = vunpack.c.h.b16 %v623
        %v3515 = vunpack.c.l.b16 %v624
        %v3516 = vunpack.c.h.b16 %v624
        %v3517 = vunpack.c.l.b16 %v625
        %v3518 = vunpack.c.h.b16 %v625
        %v3519 = vunpack.c.l.b16 %v626
        %v3520 = vunpack.c.h.b16 %v626
        %v3521 = vunpack.c.l.b16 %v627
        %v3522 = vunpack.c.h.b16 %v627
        %v3523 = vunpack.c.l.b16 %v628
        %v3524 = vunpack.c.h.b16 %v628
        %v3525 = vunpack.c.l.b16 %v629
        %v3526 = vunpack.c.h.b16 %v629
        %v3527 = vunpack.c.l.b16 %v630
        %v3528 = vunpack.c.h.b16 %v630
        %v3529 = vunpack.c.l.b16 %v631
        %v3530 = vunpack.c.h.b16 %v631
        %v3531 = vunpack.c.l.b16 %v632
        %v3532 = vunpack.c.h.b16 %v632
        %v3533 = vunpack.c.l.b16 %v633
        %v3534 = vunpack.c.h.b16 %v633
        %v3535 = vunpack.c.l.b16 %v634
        %v3536 = vunpack.c.h.b16 %v634
        %v3537 = vunpack.c.l.b16 %v635
        %v3538 = vunpack.c.h.b16 %v635
        %v3539 = vunpack.c.l.b16 %v636
        %v3540 = vunpack.c.h.b16 %v636
        %v3541 = vunpack.c.l.b16 %v637
        %v3542 = vunpack.c.h.b16 %v637
        %v3543 = vunpack.c.l.b16 %v638
        %v3544 = vunpack.c.h.b16 %v638
        %v3545 = vunpack.c.l.b16 %v639
        %v3546 = vunpack.c.h.b16 %v639
        %v3547 = vunpack.c.l.b16 %v640
        %v3548 = vunpack.c.h.b16 %v640
        %v3549 = vunpack.c.l.b16 %v641
        %v3550 = vunpack.c.h.b16 %v641
        %v3551 = vunpack.c.l.b16 %v642
        %v3552 = vunpack.c.h.b16 %v642
        %v3553 = vunpack.c.l.b16 %v643
        %v3554 = vunpack.c.h.b16 %v643
        %v3555 = vunpack.c.l.b16 %v644
        %v3556 = vunpack.c.h.b16 %v644
        %v3557 = vunpack.c.l.b16 %v645
        %v3558 = vunpack.c.h.b16 %v645
        %v3559 = vunpack.c.l.b16 %v646
        %v3560 = vunpack.c.h.b16 %v646
        %v3561 = vunpack.c.l.b16 %v647
        %v3562 = vunpack.c.h.b16 %v647
        %v3563 = vunpack.c.l.b16 %v648
        %v3564 = vunpack.c.h.b16 %v648
        %v3565 = vunpack.c.l.b16 %v649
        %v3566 = vunpack.c.h.b16 %v649
        %v3567 = vunpack.c.l.b16 %v650
        %v3568 = vunpack.c.h.b16 %v650
        %v3569 = vunpack.c.l.b16 %v651
        %v3570 = vunpack.c.h.b16 %v651
        %v3571 = vunpack.c.l.b16 %v652
        %v3572 = vunpack.c.h.b16 %v652
        %v3573 = vunpack.c.l.b16 %v653
        %v3574 = vunpack.c.h.b16 %v653
        %v3575 = vunpack.c.l.b16 %v654
        %v3576 = vunpack.c.h.b16 %v654
        %v3577 = vunpack.c.l.b16 %v655
        %v3578 = vunpack.c.h.b16 %v655
        %v3579 = vunpack.c.l.b16 %v656
        %v3580 = vunpack.c.h.b16 %v656
        %v3581 = vunpack.c.l.b16 %v657
        %v3582 = vunpack.c.h.b16 %v657
        %v3583 = vunpack.c.l.b16 %v658
        %v3584 = vunpack.c.h.b16 %v658
        %v3585 = vunpack.c.l.b16 %v659
        %v3586 = vunpack.c.h.b16 %v659
        %v3587 = vunpack.c.l.b16 %v660
        %v3588 = vunpack.c.h.b16 %v660
        %v3589 = vunpack.c.l.b16 %v661
        %v3590 = vunpack.c.h.b16 %v661
        %v3591 = vunpack.c.l.b16 %v662
        %v3592 = vunpack.c.h.b16 %v662
        %v3593 = vunpack.c.l.b16 %v663
        %v3594 = vunpack.c.h.b16 %v663
        %v3595 = vunpack.c.l.b16 %v664
        %v3596 = vunpack.c.h.b16 %v664
        %v3597 = vunpack.c.l.b16 %v665
        %v3598 = vunpack.c.h.b16 %v665
        %v3599 = vunpack.c.l.b16 %v666
        %v3600 = vunpack.c.h.b16 %v666
        %v3601 = vunpack.c.l.b16 %v667
        %v3602 = vunpack.c.h.b16 %v667
        %v3603 = vunpack.c.l.b16 %v668
        %v3604 = vunpack.c.h.b16 %v668
        %v3605 = vunpack.c.l.b16 %v669
        %v3606 = vunpack.c.h.b16 %v669
        %v3607 = vunpack.c.l.b16 %v670
        %v3608 = vunpack.c.h.b16 %v670
        %v3609 = vunpack.c.l.b16 %v671
        %v3610 = vunpack.c.h.b16 %v671
        %v3611 = vunpack.c.l.b16 %v672
        %v3612 = vunpack.c.h.b16 %v672
        %v3613 = vunpack.c.l.b16 %v673
        %v3614 = vunpack.c.h.b16 %v673
        %v3615 = vunpack.c.l.b16 %v674
        %v3616 = vunpack.c.h.b16 %v674
        %v3617 = vunpack.c.l.b16 %v675
        %v3618 = vunpack.c.h.b16 %v675
        %v3619 = vunpack.c.l.b16 %v676
        %v3620 = vunpack.c.h.b16 %v676
        %v3621 = vunpack.c.l.b16 %v677
        %v3622 = vunpack.c.h.b16 %v677
        %v3623 = vunpack.c.l.b16 %v678
        %v3624 = vunpack.c.h.b16 %v678
        %v3625 = vunpack.c.l.b16 %v679
        %v3626 = vunpack.c.h.b16 %v679
        %v3627 = vunpack.c.l.b16 %v680
        %v3628 = vunpack.c.h.b16 %v680
        %v3629 = vunpack.c.l.b16 %v681
        %v3630 = vunpack.c.h.b16 %v681
        %v3631 = vunpack.c.l.b16 %v682
        %v3632 = vunpack.c.h.b16 %v682
        %v3633 = vunpack.c.l.b16 %v683
        %v3634 = vunpack.c.h.b16 %v683
        %v3635 = vunpack.c.l.b16 %v684
        %v3636 = vunpack.c.h.b16 %v684
        %v3637 = vunpack.c.l.b16 %v685
        %v3638 = vunpack.c.h.b16 %v685
        %v3639 = vunpack.c.l.b16 %v686
        %v3640 = vunpack.c.h.b16 %v686
        %v3641 = vunpack.c.l.b16 %v687
        %v3642 = vunpack.c.h.b16 %v687
        %v3643 = vunpack.c.l.b16 %v688
        %v3644 = vunpack.c.h.b16 %v688
        %v3645 = vunpack.c.l.b16 %v689
        %v3646 = vunpack.c.h.b16 %v689
        %v3647 = vunpack.c.l.b16 %v690
        %v3648 = vunpack.c.h.b16 %v690
        %v3649 = vunpack.c.l.b16 %v691
        %v3650 = vunpack.c.h.b16 %v691
        %v3651 = vunpack.c.l.b16 %v692
        %v3652 = vunpack.c.h.b16 %v692
        %v3653 = vunpack.c.l.b16 %v693
        %v3654 = vunpack.c.h.b16 %v693
        %v3655 = vunpack.c.l.b16 %v694
        %v3656 = vunpack.c.h.b16 %v694
        %v3657 = vunpack.c.l.b16 %v695
        %v3658 = vunpack.c.h.b16 %v695
        %v3659 = vunpack.c.l.b16 %v696
        %v3660 = vunpack.c.h.b16 %v696
        %v3661 = vunpack.c.l.b16 %v697
        %v3662 = vunpack.c.h.b16 %v697
        %v3663 = vunpack.c.l.b16 %v698
        %v3664 = vunpack.c.h.b16 %v698
        %v3665 = vunpack.c.l.b16 %v699
        %v3666 = vunpack.c.h.b16 %v699
        %v3667 = vunpack.c.l.b16 %v700
        %v3668 = vunpack.c.h.b16 %v700
        %v3669 = vunpack.c.l.b16 %v701
        %v3670 = vunpack.c.h.b16 %v701
        %v3671 = vunpack.c.l.b16 %v702
        %v3672 = vunpack.c.h.b16 %v702
        %v3673 = vunpack.c.l.b16 %v703
        %v3674 = vunpack.c.h.b16 %v703
        %v3675 = vunpack.c.l.b16 %v704
        %v3676 = vunpack.c.h.b16 %v704
        %v3677 = vunpack.c.l.b16 %v705
        %v3678 = vunpack.c.h.b16 %v705
        %v3679 = vunpack.c.l.b16 %v706
        %v3680 = vunpack.c.h.b16 %v706
        %v3681 = vunpack.c.l.b16 %v707
        %v3682 = vunpack.c.h.b16 %v707
        %v3683 = vunpack.c.l.b16 %v708
        %v3684 = vunpack.c.h.b16 %v708
        %v3685 = vunpack.c.l.b16 %v709
        %v3686 = vunpack.c.h.b16 %v709
        %v3687 = vunpack.c.l.b16 %v710
        %v3688 = vunpack.c.h.b16 %v710
        %v3689 = vunpack.c.l.b16 %v711
        %v3690 = vunpack.c.h.b16 %v711
        %v3691 = vunpack.c.l.b16 %v712
        %v3692 = vunpack.c.h.b16 %v712
        %v3693 = vunpack.c.l.b16 %v713
        %v3694 = vunpack.c.h.b16 %v713
        %v3695 = vunpack.c.l.b16 %v714
        %v3696 = vunpack.c.h.b16 %v714
        %v3697 = vunpack.c.l.b16 %v715
        %v3698 = vunpack.c.h.b16 %v715
        %v3699 = vunpack.c.l.b16 %v716
        %v3700 = vunpack.c.h.b16 %v716
        %v3701 = vunpack.c.l.b16 %v717
        %v3702 = vunpack.c.h.b16 %v717
        %v3703 = vunpack.c.l.b16 %v718
        %v3704 = vunpack.c.h.b16 %v718
        %v3705 = vunpack.c.l.b16 %v719
        %v3706 = vunpack.c.h.b16 %v719
        %v3707 = vunpack.c.l.b16 %v720
        %v3708 = vunpack.c.h.b16 %v720
        %v3709 = vunpack.c.l.b16 %v721
        %v3710 = vunpack.c.h.b16 %v721
        %v3711 = vunpack.c.l.b16 %v722
        %v3712 = vunpack.c.h.b16 %v722
        %v3713 = vunpack.c.l.b16 %v723
        %v3714 = vunpack.c.h.b16 %v723
        %v3715 = vunpack.c.l.b16 %v724
        %v3716 = vunpack.c.h.b16 %v724
        %v3717 = vunpack.c.l.b16 %v725
        %v3718 = vunpack.c.h.b16 %v725
        %v3719 = vunpack.c.l.b16 %v726
        %v3720 = vunpack.c.h.b16 %v726
        %v3721 = vunpack.c.l.b16 %v727
        %v3722 = vunpack.c.h.b16 %v727
        %v3723 = vunpack.c.l.b16 %v728
        %v3724 = vunpack.c.h.b16 %v728
        %v3725 = vunpack.c.l.b16 %v729
        %v3726 = vunpack.c.h.b16 %v729
        %v3727 = vunpack.c.l.b16 %v730
        %v3728 = vunpack.c.h.b16 %v730
        %v3729 = vunpack.c.l.b16 %v731
        %v3730 = vunpack.c.h.b16 %v731
        %v3731 = vunpack.c.l.b16 %v732
        %v3732 = vunpack.c.h.b16 %v732
        %v3733 = vunpack.c.l.b16 %v733
        %v3734 = vunpack.c.h.b16 %v733
        %v3735 = vunpack.c.l.b16 %v734
        %v3736 = vunpack.c.h.b16 %v734
        %v3737 = vunpack.c.l.b16 %v735
        %v3738 = vunpack.c.h.b16 %v735
        %v3739 = vunpack.c.l.b16 %v736
        %v3740 = vunpack.c.h.b16 %v736
        %v3741 = vunpack.c.l.b16 %v737
        %v3742 = vunpack.c.h.b16 %v737
        %v3743 = vunpack.c.l.b16 %v738
        %v3744 = vunpack.c.h.b16 %v738
        %v3745 = vunpack.c.l.b16 %v739
        %v3746 = vunpack.c.h.b16 %v739
        %v3747 = vunpack.c.l.b16 %v740
        %v3748 = vunpack.c.h.b16 %v740
        %v3749 = vunpack.c.l.b16 %v741
        %v3750 = vunpack.c.h.b16 %v741
        %v3751 = vunpack.c.l.b16 %v742
        %v3752 = vunpack.c.h.b16 %v742
        %v3753 = vunpack.c.l.b16 %v743
        %v3754 = vunpack.c.h.b16 %v743
        %v3755 = vunpack.c.l.b16 %v744
        %v3756 = vunpack.c.h.b16 %v744
        %v3757 = vunpack.c.l.b16 %v745
        %v3758 = vunpack.c.h.b16 %v745
        %v3759 = vunpack.c.l.b16 %v746
        %v3760 = vunpack.c.h.b16 %v746
        %v3761 = vunpack.c.l.b16 %v747
        %v3762 = vunpack.c.h.b16 %v747
        %v3763 = vunpack.c.l.b16 %v748
        %v3764 = vunpack.c.h.b16 %v748
        %v3765 = vunpack.c.l.b16 %v749
        %v3766 = vunpack.c.h.b16 %v749
        %v3767 = vunpack.c.l.b16 %v750
        %v3768 = vunpack.c.h.b16 %v750
        %v3769 = vunpack.c.l.b16 %v751
        %v3770 = vunpack.c.h.b16 %v751
        %v3771 = vunpack.c.l.b16 %v752
        %v3772 = vunpack.c.h.b16 %v752
        %v3773 = vunpack.c.l.b16 %v753
        %v3774 = vunpack.c.h.b16 %v753
        %v3775 = vunpack.c.l.b16 %v754
        %v3776 = vunpack.c.h.b16 %v754
        %v3777 = vunpack.c.l.b16 %v755
        %v3778 = vunpack.c.h.b16 %v755
        %v3779 = vunpack.c.l.b16 %v756
        %v3780 = vunpack.c.h.b16 %v756
        %v3781 = vunpack.c.l.b16 %v757
        %v3782 = vunpack.c.h.b16 %v757
        %v3783 = vunpack.c.l.b16 %v758
        %v3784 = vunpack.c.h.b16 %v758
        %v3785 = vunpack.c.l.b16 %v759
        %v3786 = vunpack.c.h.b16 %v759
        %v3787 = vunpack.c.l.b16 %v760
        %v3788 = vunpack.c.h.b16 %v760
        %v3789 = vunpack.c.l.b16 %v761
        %v3790 = vunpack.c.h.b16 %v761
        %v3791 = vunpack.c.l.b16 %v762
        %v3792 = vunpack.c.h.b16 %v762
        %v3793 = vunpack.c.l.b16 %v763
        %v3794 = vunpack.c.h.b16 %v763
        %v3795 = vunpack.c.l.b16 %v764
        %v3796 = vunpack.c.h.b16 %v764
        %v3797 = vunpack.c.l.b16 %v765
        %v3798 = vunpack.c.h.b16 %v765
        %v3799 = vunpack.c.l.b16 %v766
        %v3800 = vunpack.c.h.b16 %v766
        %v3801 = vunpack.c.l.b16 %v767
        %v3802 = vunpack.c.h.b16 %v767
        %v3803 = vunpack.c.l.b16 %v768
        %v3804 = vunpack.c.h.b16 %v768
        %v3805 = vunpack.c.l.b16 %v769
        %v3806 = vunpack.c.h.b16 %v769
        %v3807 = vunpack.c.l.b16 %v770
        %v3808 = vunpack.c.h.b16 %v770
        %v3809 = vunpack.c.l.b16 %v771
        %v3810 = vunpack.c.h.b16 %v771
        %v3811 = vunpack.c.l.b16 %v772
        %v3812 = vunpack.c.h.b16 %v772
        %v3813 = vunpack.c.l.b16 %v773
        %v3814 = vunpack.c.h.b16 %v773
        %v3815 = vunpack.c.l.b16 %v774
        %v3816 = vunpack.c.h.b16 %v774
        %v3817 = vunpack.c.l.b16 %v775
        %v3818 = vunpack.c.h.b16 %v775
        %v3819 = vunpack.c.l.b16 %v776
        %v3820 = vunpack.c.h.b16 %v776
        %v3821 = vunpack.c.l.b16 %v777
        %v3822 = vunpack.c.h.b16 %v777
        %v3823 = vunpack.c.l.b16 %v778
        %v3824 = vunpack.c.h.b16 %v778
        %v3825 = vunpack.c.l.b16 %v779
        %v3826 = vunpack.c.h.b16 %v779
        %v3827 = vunpack.c.l.b16 %v780
        %v3828 = vunpack.c.h.b16 %v780
        %v3829 = vunpack.c.l.b16 %v781
        %v3830 = vunpack.c.h.b16 %v781
        %v3831 = vunpack.c.l.b16 %v782
        %v3832 = vunpack.c.h.b16 %v782
        %v3833 = vunpack.c.l.b16 %v783
        %v3834 = vunpack.c.h.b16 %v783
        %v3835 = vunpack.c.l.b16 %v784
        %v3836 = vunpack.c.h.b16 %v784
        %v3837 = vunpack.c.l.b16 %v785
        %v3838 = vunpack.c.h.b16 %v785
        %v3839 = vunpack.c.l.b16 %v786
        %v3840 = vunpack.c.h.b16 %v786
        %v3841 = vunpack.c.l.b16 %v787
        %v3842 = vunpack.c.h.b16 %v787
        %v3843 = vunpack.c.l.b16 %v788
        %v3844 = vunpack.c.h.b16 %v788
        %v3845 = vunpack.c.l.b16 %v789
        %v3846 = vunpack.c.h.b16 %v789
        %v3847 = vunpack.c.l.b16 %v790
        %v3848 = vunpack.c.h.b16 %v790
        %v3849 = vunpack.c.l.b16 %v791
        %v3850 = vunpack.c.h.b16 %v791
        %v3851 = vunpack.c.l.b16 %v792
        %v3852 = vunpack.c.h.b16 %v792
        %v3853 = vunpack.c.l.b16 %v793
        %v3854 = vunpack.c.h.b16 %v793
        %v3855 = vunpack.c.l.b16 %v794
        %v3856 = vunpack.c.h.b16 %v794
        %v3857 = vunpack.c.l.b16 %v795
        %v3858 = vunpack.c.h.b16 %v795
        %v3859 = vunpack.c.l.b16 %v796
        %v3860 = vunpack.c.h.b16 %v796
        %v3861 = vunpack.c.l.b16 %v797
        %v3862 = vunpack.c.h.b16 %v797
        %v3863 = vunpack.c.l.b16 %v798
        %v3864 = vunpack.c.h.b16 %v798
        %v3865 = vunpack.c.l.b16 %v799
        %v3866 = vunpack.c.h.b16 %v799
        %v3867 = vunpack.c.l.b16 %v800
        %v3868 = vunpack.c.h.b16 %v800
        %v3869 = vunpack.c.l.b16 %v801
        %v3870 = vunpack.c.h.b16 %v801
        %v3871 = vunpack.c.l.b16 %v802
        %v3872 = vunpack.c.h.b16 %v802
        %v3873 = vunpack.c.l.b16 %v803
        %v3874 = vunpack.c.h.b16 %v803
        %v3875 = vunpack.c.l.b16 %v804
        %v3876 = vunpack.c.h.b16 %v804
        %v3877 = vunpack.c.l.b16 %v805
        %v3878 = vunpack.c.h.b16 %v805
        %v3879 = vunpack.c.l.b16 %v806
        %v3880 = vunpack.c.h.b16 %v806
        %v3881 = vunpack.c.l.b16 %v807
        %v3882 = vunpack.c.h.b16 %v807
        %v3883 = vunpack.c.l.b16 %v808
        %v3884 = vunpack.c.h.b16 %v808
        %v3885 = vunpack.c.l.b16 %v809
        %v3886 = vunpack.c.h.b16 %v809
        %v3887 = vunpack.c.l.b16 %v810
        %v3888 = vunpack.c.h.b16 %v810
        %v3889 = vunpack.c.l.b16 %v811
        %v3890 = vunpack.c.h.b16 %v811
        %v3891 = vunpack.c.l.b16 %v812
        %v3892 = vunpack.c.h.b16 %v812
        %v3893 = vunpack.c.l.b16 %v813
        %v3894 = vunpack.c.h.b16 %v813
        %v3895 = vunpack.c.l.b16 %v814
        %v3896 = vunpack.c.h.b16 %v814
        %v3897 = vunpack.c.l.b16 %v815
        %v3898 = vunpack.c.h.b16 %v815
        %v3899 = vunpack.c.l.b16 %v816
        %v3900 = vunpack.c.h.b16 %v816
        %v3901 = vunpack.c.l.b16 %v817
        %v3902 = vunpack.c.h.b16 %v817
        %v3903 = vunpack.c.l.b16 %v818
        %v3904 = vunpack.c.h.b16 %v818
        %v3905 = vunpack.c.l.b16 %v819
        %v3906 = vunpack.c.h.b16 %v819
        %v3907 = vunpack.c.l.b16 %v820
        %v3908 = vunpack.c.h.b16 %v820
        %v3909 = vunpack.c.l.b16 %v821
        %v3910 = vunpack.c.h.b16 %v821
        %v3911 = vunpack.c.l.b16 %v822
        %v3912 = vunpack.c.h.b16 %v822
        %v3913 = vunpack.c.l.b16 %v823
        %v3914 = vunpack.c.h.b16 %v823
        %v3915 = vunpack.c.l.b16 %v824
        %v3916 = vunpack.c.h.b16 %v824
        %v3917 = vunpack.c.l.b16 %v825
        %v3918 = vunpack.c.h.b16 %v825
        %v3919 = vunpack.c.l.b16 %v826
        %v3920 = vunpack.c.h.b16 %v826
        %v3921 = vunpack.c.l.b16 %v827
        %v3922 = vunpack.c.h.b16 %v827
        %v3923 = vunpack.c.l.b16 %v828
        %v3924 = vunpack.c.h.b16 %v828
        %v3925 = vunpack.c.l.b16 %v829
        %v3926 = vunpack.c.h.b16 %v829
        %v3927 = vunpack.c.l.b16 %v830
        %v3928 = vunpack.c.h.b16 %v830
        %v3929 = vunpack.c.l.b16 %v831
        %v3930 = vunpack.c.h.b16 %v831
        %v3931 = vunpack.c.l.b16 %v832
        %v3932 = vunpack.c.h.b16 %v832
        %v3933 = vunpack.c.l.b16 %v833
        %v3934 = vunpack.c.h.b16 %v833
        %v3935 = vunpack.c.l.b16 %v834
        %v3936 = vunpack.c.h.b16 %v834
        %v3937 = vunpack.c.l.b16 %v835
        %v3938 = vunpack.c.h.b16 %v835
        %v3939 = vunpack.c.l.b16 %v836
        %v3940 = vunpack.c.h.b16 %v836
        %v3941 = vunpack.c.l.b16 %v837
        %v3942 = vunpack.c.h.b16 %v837
        %v3943 = vunpack.c.l.b16 %v838
        %v3944 = vunpack.c.h.b16 %v838
        %v3945 = vunpack.c.l.b16 %v839
        %v3946 = vunpack.c.h.b16 %v839
        %v3947 = vunpack.c.l.b16 %v840
        %v3948 = vunpack.c.h.b16 %v840
        %v3949 = vunpack.c.l.b16 %v841
        %v3950 = vunpack.c.h.b16 %v841
        %v3951 = vunpack.c.l.b16 %v842
        %v3952 = vunpack.c.h.b16 %v842
        %v3953 = vunpack.c.l.b16 %v843
        %v3954 = vunpack.c.h.b16 %v843
        %v3955 = vunpack.c.l.b16 %v844
        %v3956 = vunpack.c.h.b16 %v844
        %v3957 = vunpack.c.l.b16 %v845
        %v3958 = vunpack.c.h.b16 %v845
        %v3959 = vunpack.c.l.b16 %v846
        %v3960 = vunpack.c.h.b16 %v846
        %v3961 = vunpack.c.l.b16 %v847
        %v3962 = vunpack.c.h.b16 %v847
        %v3963 = vunpack.c.l.b16 %v848
        %v3964 = vunpack.c.h.b16 %v848
        %v3965 = vunpack.c.l.b16 %v849
        %v3966 = vunpack.c.h.b16 %v849
        %v3967 = vunpack.c.l.b16 %v850
        %v3968 = vunpack.c.h.b16 %v850
        %v3969 = vunpack.c.l.b16 %v851
        %v3970 = vunpack.c.h.b16 %v851
        %v3971 = vunpack.c.l.b16 %v852
        %v3972 = vunpack.c.h.b16 %v852
        %v3973 = vunpack.c.l.b16 %v853
        %v3974 = vunpack.c.h.b16 %v853
        %v3975 = vunpack.c.l.b16 %v854
        %v3976 = vunpack.c.h.b16 %v854
        %v3977 = vunpack.c.l.b16 %v855
        %v3978 = vunpack.c.h.b16 %v855
        %v3979 = vunpack.c.l.b16 %v856
        %v3980 = vunpack.c.h.b16 %v856
        %v3981 = vunpack.c.l.b16 %v857
        %v3982 = vunpack.c.h.b16 %v857
        %v3983 = vunpack.c.l.b16 %v858
        %v3984 = vunpack.c.h.b16 %v858
        %v3985 = vunpack.c.l.b16 %v859
        %v3986 = vunpack.c.h.b16 %v859
        %v3987 = vunpack.c.l.b16 %v860
        %v3988 = vunpack.c.h.b16 %v860
        %v3989 = vunpack.c.l.b16 %v861
        %v3990 = vunpack.c.h.b16 %v861
        %v3991 = vunpack.c.l.b16 %v862
        %v3992 = vunpack.c.h.b16 %v862
        %v3993 = vunpack.c.l.b16 %v863
        %v3994 = vunpack.c.h.b16 %v863
        %v3995 = vunpack.c.l.b16 %v864
        %v3996 = vunpack.c.h.b16 %v864
        %v3997 = vunpack.c.l.b16 %v865
        %v3998 = vunpack.c.h.b16 %v865
        %v3999 = vunpack.c.l.b16 %v866
        %v4000 = vunpack.c.h.b16 %v866
        %v4001 = vunpack.c.l.b16 %v867
        %v4002 = vunpack.c.h.b16 %v867
        %v4003 = vunpack.c.l.b16 %v868
        %v4004 = vunpack.c.h.b16 %v868
        %v4005 = vunpack.c.l.b16 %v869
        %v4006 = vunpack.c.h.b16 %v869
        %v4007 = vunpack.c.l.b16 %v870
        %v4008 = vunpack.c.h.b16 %v870
        %v4009 = vunpack.c.l.b16 %v871
        %v4010 = vunpack.c.h.b16 %v871
        %v4011 = vunpack.c.l.b16 %v872
        %v4012 = vunpack.c.h.b16 %v872
        %v4013 = vunpack.c.l.b16 %v873
        %v4014 = vunpack.c.h.b16 %v873
        %v4015 = vunpack.c.l.b16 %v874
        %v4016 = vunpack.c.h.b16 %v874
        %v4017 = vunpack.c.l.b16 %v875
        %v4018 = vunpack.c.h.b16 %v875
        %v4019 = vunpack.c.l.b16 %v876
        %v4020 = vunpack.c.h.b16 %v876
        %v4021 = vunpack.c.l.b16 %v877
        %v4022 = vunpack.c.h.b16 %v877
        %v4023 = vunpack.c.l.b16 %v878
        %v4024 = vunpack.c.h.b16 %v878
        %v4025 = vunpack.c.l.b16 %v879
        %v4026 = vunpack.c.h.b16 %v879
        %v4027 = vunpack.c.l.b16 %v880
        %v4028 = vunpack.c.h.b16 %v880
        %v4029 = vunpack.c.l.b16 %v881
        %v4030 = vunpack.c.h.b16 %v881
        %v4031 = vunpack.c.l.b16 %v882
        %v4032 = vunpack.c.h.b16 %v882
        %v4033 = vunpack.c.l.b16 %v883
        %v4034 = vunpack.c.h.b16 %v883
        %v4035 = vunpack.c.l.b16 %v884
        %v4036 = vunpack.c.h.b16 %v884
        %v4037 = vunpack.c.l.b16 %v885
        %v4038 = vunpack.c.h.b16 %v885
        %v4039 = vunpack.c.l.b16 %v886
        %v4040 = vunpack.c.h.b16 %v886
        %v4041 = vunpack.c.l.b16 %v887
        %v4042 = vunpack.c.h.b16 %v887
        %v4043 = vunpack.c.l.b16 %v888
        %v4044 = vunpack.c.h.b16 %v888
        %v4045 = vunpack.c.l.b16 %v889
        %v4046 = vunpack.c.h.b16 %v889
        %v4047 = vunpack.c.l.b16 %v890
        %v4048 = vunpack.c.h.b16 %v890
        %v4049 = vunpack.c.l.b16 %v891
        %v4050 = vunpack.c.h.b16 %v891
        %v4051 = vunpack.c.l.b16 %v892
        %v4052 = vunpack.c.h.b16 %v892
        %v4053 = vunpack.c.l.b16 %v893
        %v4054 = vunpack.c.h.b16 %v893
        %v4055 = vunpack.c.l.b16 %v894
        %v4056 = vunpack.c.h.b16 %v894
        %v4057 = vunpack.c.l.b16 %v895
        %v4058 = vunpack.c.h.b16 %v895
        %v4059 = vunpack.c.l.b16 %v896
        %v4060 = vunpack.c.h.b16 %v896
        %v4061 = vunpack.c.l.b16 %v897
        %v4062 = vunpack.c.h.b16 %v897
        %v4063 = vunpack.c.l.b16 %v898
        %v4064 = vunpack.c.h.b16 %v898
        %v4065 = vunpack.c.l.b16 %v899
        %v4066 = vunpack.c.h.b16 %v899
        %v4067 = vunpack.c.l.b16 %v900
        %v4068 = vunpack.c.h.b16 %v900
        %v4069 = vunpack.c.l.b16 %v901
        %v4070 = vunpack.c.h.b16 %v901
        %v4071 = vunpack.c.l.b16 %v902
        %v4072 = vunpack.c.h.b16 %v902
        %v4073 = vunpack.c.l.b16 %v903
        %v4074 = vunpack.c.h.b16 %v903
        %v4075 = vunpack.c.l.b16 %v904
        %v4076 = vunpack.c.h.b16 %v904
        %v4077 = vunpack.c.l.b16 %v905
        %v4078 = vunpack.c.h.b16 %v905
        %v4079 = vunpack.c.l.b16 %v906
        %v4080 = vunpack.c.h.b16 %v906
        %v4081 = vunpack.c.l.b16 %v907
        %v4082 = vunpack.c.h.b16 %v907
        %v4083 = vunpack.c.l.b16 %v908
        %v4084 = vunpack.c.h.b16 %v908
        %v4085 = vunpack.c.l.b16 %v909
        %v4086 = vunpack.c.h.b16 %v909
        %v4087 = vunpack.c.l.b16 %v910
        %v4088 = vunpack.c.h.b16 %v910
        %v4089 = vunpack.c.l.b16 %v911
        %v4090 = vunpack.c.h.b16 %v911
        %v4091 = vunpack.c.l.b16 %v912
        %v4092 = vunpack.c.h.b16 %v912
        %v4093 = vunpack.c.l.b16 %v913
        %v4094 = vunpack.c.h.b16 %v913
        %v4095 = vunpack.c.l.b16 %v914
        %v4096 = vunpack.c.h.b16 %v914
        %v4097 = vunpack.c.l.b16 %v915
        %v4098 = vunpack.c.h.b16 %v915
        %v4099 = vunpack.c.l.b16 %v916
        %v4100 = vunpack.c.h.b16 %v916
        %v4101 = vunpack.c.l.b16 %v917
        %v4102 = vunpack.c.h.b16 %v917
        %v4103 = vunpack.c.l.b16 %v918
        %v4104 = vunpack.c.h.b16 %v918
        %v4105 = vunpack.c.l.b16 %v919
        %v4106 = vunpack.c.h.b16 %v919
        %v4107 = vunpack.c.l.b16 %v920
        %v4108 = vunpack.c.h.b16 %v920
        %v4109 = vunpack.c.l.b16 %v921
        %v4110 = vunpack.c.h.b16 %v921
        %v4111 = vunpack.c.l.b16 %v922
        %v4112 = vunpack.c.h.b16 %v922
        %v4113 = vunpack.c.l.b16 %v923
        %v4114 = vunpack.c.h.b16 %v923
        %v4115 = vunpack.c.l.b16 %v924
        %v4116 = vunpack.c.h.b16 %v924
        %v4117 = vunpack.c.l.b16 %v925
        %v4118 = vunpack.c.h.b16 %v925
        %v4119 = vunpack.c.l.b16 %v926
        %v4120 = vunpack.c.h.b16 %v926
        %v4121 = vunpack.c.l.b16 %v927
        %v4122 = vunpack.c.h.b16 %v927
        %v4123 = vunpack.c.l.b16 %v928
        %v4124 = vunpack.c.h.b16 %v928
        %v4125 = vunpack.c.l.b16 %v929
        %v4126 = vunpack.c.h.b16 %v929
        %v4127 = vunpack.c.l.b16 %v930
        %v4128 = vunpack.c.h.b16 %v930
        %v4129 = vunpack.c.l.b16 %v931
        %v4130 = vunpack.c.h.b16 %v931
        %v4131 = vunpack.c.l.b16 %v932
        %v4132 = vunpack.c.h.b16 %v932
        %v4133 = vunpack.c.l.b16 %v933
        %v4134 = vunpack.c.h.b16 %v933
        %v4135 = vunpack.c.l.b16 %v934
        %v4136 = vunpack.c.h.b16 %v934
        %v4137 = vunpack.c.l.b16 %v935
        %v4138 = vunpack.c.h.b16 %v935
        %v4139 = vunpack.c.l.b16 %v936
        %v4140 = vunpack.c.h.b16 %v936
        %v4141 = vunpack.c.l.b16 %v937
        %v4142 = vunpack.c.h.b16 %v937
        %v4143 = vunpack.c.l.b16 %v938
        %v4144 = vunpack.c.h.b16 %v938
        %v4145 = vunpack.c.l.b16 %v939
        %v4146 = vunpack.c.h.b16 %v939
        %v4147 = vunpack.c.l.b16 %v940
        %v4148 = vunpack.c.h.b16 %v940
        %v4149 = vunpack.c.l.b16 %v941
        %v4150 = vunpack.c.h.b16 %v941
        %v4151 = vunpack.c.l.b16 %v942
        %v4152 = vunpack.c.h.b16 %v942
        %v4153 = vunpack.c.l.b16 %v943
        %v4154 = vunpack.c.h.b16 %v943
        %v4155 = vunpack.c.l.b16 %v944
        %v4156 = vunpack.c.h.b16 %v944
        %v4157 = vunpack.c.l.b16 %v945
        %v4158 = vunpack.c.h.b16 %v945
        %v4159 = vunpack.c.l.b16 %v946
        %v4160 = vunpack.c.h.b16 %v946
        %v4161 = vunpack.c.l.b16 %v947
        %v4162 = vunpack.c.h.b16 %v947
        %v4163 = vunpack.c.l.b16 %v948
        %v4164 = vunpack.c.h.b16 %v948
        %v4165 = vunpack.c.l.b16 %v949
        %v4166 = vunpack.c.h.b16 %v949
        %v4167 = vunpack.c.l.b16 %v950
        %v4168 = vunpack.c.h.b16 %v950
        %v4169 = vunpack.c.l.b16 %v951
        %v4170 = vunpack.c.h.b16 %v951
        %v4171 = vunpack.c.l.b16 %v952
        %v4172 = vunpack.c.h.b16 %v952
        %v4173 = vunpack.c.l.b16 %v953
        %v4174 = vunpack.c.h.b16 %v953
        %v4175 = vunpack.c.l.b16 %v954
        %v4176 = vunpack.c.h.b16 %v954
        %v4177 = vunpack.c.l.b16 %v955
        %v4178 = vunpack.c.h.b16 %v955
        %v4179 = vunpack.c.l.b16 %v956
        %v4180 = vunpack.c.h.b16 %v956
        %v4181 = vunpack.c.l.b16 %v957
        %v4182 = vunpack.c.h.b16 %v957
        %v4183 = vunpack.c.l.b16 %v958
        %v4184 = vunpack.c.h.b16 %v958
        %v4185 = vunpack.c.l.b16 %v959
        %v4186 = vunpack.c.h.b16 %v959
        %v4187 = vunpack.c.l.b16 %v960
        %v4188 = vunpack.c.h.b16 %v960
        %v4189 = vunpack.c.l.b16 %v961
        %v4190 = vunpack.c.h.b16 %v961
        %v4191 = vunpack.c.l.b16 %v962
        %v4192 = vunpack.c.h.b16 %v962
        %v4193 = vunpack.c.l.b16 %v963
        %v4194 = vunpack.c.h.b16 %v963
        %v4195 = vunpack.c.l.b16 %v964
        %v4196 = vunpack.c.h.b16 %v964
        %v4197 = vunpack.c.l.b16 %v965
        %v4198 = vunpack.c.h.b16 %v965
        %v4199 = vunpack.c.l.b16 %v966
        %v4200 = vunpack.c.h.b16 %v966
        %v4201 = vunpack.c.l.b16 %v967
        %v4202 = vunpack.c.h.b16 %v967
        %v4203 = vunpack.c.l.b16 %v968
        %v4204 = vunpack.c.h.b16 %v968
        %v4205 = vunpack.c.l.b16 %v969
        %v4206 = vunpack.c.h.b16 %v969
        %v4207 = vunpack.c.l.b16 %v970
        %v4208 = vunpack.c.h.b16 %v970
        %v4209 = vunpack.c.l.b16 %v971
        %v4210 = vunpack.c.h.b16 %v971
        %v4211 = vunpack.c.l.b16 %v972
        %v4212 = vunpack.c.h.b16 %v972
        %v4213 = vunpack.c.l.b16 %v973
        %v4214 = vunpack.c.h.b16 %v973
        %v4215 = vunpack.c.l.b16 %v974
        %v4216 = vunpack.c.h.b16 %v974
        %v4217 = vunpack.c.l.b16 %v975
        %v4218 = vunpack.c.h.b16 %v975
        %v4219 = vunpack.c.l.b16 %v976
        %v4220 = vunpack.c.h.b16 %v976
        %v4221 = vunpack.c.l.b16 %v977
        %v4222 = vunpack.c.h.b16 %v977
        %v4223 = vunpack.c.l.b16 %v978
        %v4224 = vunpack.c.h.b16 %v978
        %v4225 = vunpack.c.l.b16 %v979
        %v4226 = vunpack.c.h.b16 %v979
        %v4227 = vunpack.c.l.b16 %v980
        %v4228 = vunpack.c.h.b16 %v980
        %v4229 = vunpack.c.l.b16 %v981
        %v4230 = vunpack.c.h.b16 %v981
        %v4231 = vunpack.c.l.b16 %v982
        %v4232 = vunpack.c.h.b16 %v982
        %v4233 = vunpack.c.l.b16 %v983
        %v4234 = vunpack.c.h.b16 %v983
        %v4235 = vunpack.c.l.b16 %v984
        %v4236 = vunpack.c.h.b16 %v984
        %v4237 = vunpack.c.l.b16 %v985
        %v4238 = vunpack.c.h.b16 %v985
        %v4239 = vunpack.c.l.b16 %v986
        %v4240 = vunpack.c.h.b16 %v986
        %v4241 = vunpack.c.l.b16 %v987
        %v4242 = vunpack.c.h.b16 %v987
        %v4243 = vunpack.c.l.b16 %v988
        %v4244 = vunpack.c.h.b16 %v988
        %v4245 = vunpack.c.l.b16 %v989
        %v4246 = vunpack.c.h.b16 %v989
        %v4247 = vunpack.c.l.b16 %v990
        %v4248 = vunpack.c.h.b16 %v990
        %v4249 = vunpack.c.l.b16 %v991
        %v4250 = vunpack.c.h.b16 %v991
        %v4251 = vunpack.c.l.b16 %v992
        %v4252 = vunpack.c.h.b16 %v992
        %v4253 = vunpack.c.l.b16 %v993
        %v4254 = vunpack.c.h.b16 %v993
        %v4255 = vunpack.c.l.b16 %v994
        %v4256 = vunpack.c.h.b16 %v994
        %v4257 = vunpack.c.l.b16 %v995
        %v4258 = vunpack.c.h.b16 %v995
        %v4259 = vunpack.c.l.b16 %v996
        %v4260 = vunpack.c.h.b16 %v996
        %v4261 = vunpack.c.l.b16 %v997
        %v4262 = vunpack.c.h.b16 %v997
        %v4263 = vunpack.c.l.b16 %v998
        %v4264 = vunpack.c.h.b16 %v998
        %v4265 = vunpack.c.l.b16 %v999
        %v4266 = vunpack.c.h.b16 %v999
        %v4267 = vunpack.c.l.b16 %v1000
        %v4268 = vunpack.c.h.b16 %v1000
        %v4269 = vunpack.c.l.b16 %v1001
        %v4270 = vunpack.c.h.b16 %v1001
        %v4271 = vunpack.c.l.b16 %v1002
        %v4272 = vunpack.c.h.b16 %v1002
        %v4273 = vunpack.c.l.b16 %v1003
        %v4274 = vunpack.c.h.b16 %v1003
        %v4275 = vunpack.c.l.b16 %v1004
        %v4276 = vunpack.c.h.b16 %v1004
        %v4277 = vunpack.c.l.b16 %v1005
        %v4278 = vunpack.c.h.b16 %v1005
        %v4279 = vunpack.c.l.b16 %v1006
        %v4280 = vunpack.c.h.b16 %v1006
        %v4281 = vunpack.c.l.b16 %v1007
        %v4282 = vunpack.c.h.b16 %v1007
        %v4283 = vunpack.c.l.b16 %v1008
        %v4284 = vunpack.c.h.b16 %v1008
        %v4285 = vunpack.c.l.b16 %v1009
        %v4286 = vunpack.c.h.b16 %v1009
        %v4287 = vunpack.c.l.b16 %v1010
        %v4288 = vunpack.c.h.b16 %v1010
        %v4289 = vunpack.c.l.b16 %v1011
        %v4290 = vunpack.c.h.b16 %v1011
        %v4291 = vunpack.c.l.b16 %v1012
        %v4292 = vunpack.c.h.b16 %v1012
        %v4293 = vunpack.c.l.b16 %v1013
        %v4294 = vunpack.c.h.b16 %v1013
        %v4295 = vunpack.c.l.b16 %v1014
        %v4296 = vunpack.c.h.b16 %v1014
        %v4297 = vunpack.c.l.b16 %v1015
        %v4298 = vunpack.c.h.b16 %v1015
        %v4299 = vunpack.c.l.b16 %v1016
        %v4300 = vunpack.c.h.b16 %v1016
        %v4301 = vunpack.c.l.b16 %v1017
        %v4302 = vunpack.c.h.b16 %v1017
        %v4303 = vunpack.c.l.b16 %v1018
        %v4304 = vunpack.c.h.b16 %v1018
        %v4305 = vunpack.c.l.b16 %v1019
        %v4306 = vunpack.c.h.b16 %v1019
        %v4307 = vunpack.c.l.b16 %v1020
        %v4308 = vunpack.c.h.b16 %v1020
        %v4309 = vunpack.c.l.b16 %v1021
        %v4310 = vunpack.c.h.b16 %v1021
        %v4311 = vunpack.c.l.b16 %v1022
        %v4312 = vunpack.c.h.b16 %v1022
        %v4313 = vunpack.c.l.b16 %v1023
        %v4314 = vunpack.c.h.b16 %v1023
        %v4315 = vunpack.c.l.b16 %v1024
        %v4316 = vunpack.c.h.b16 %v1024
        %v4317 = vunpack.c.l.b16 %v1025
        %v4318 = vunpack.c.h.b16 %v1025
        %v4319 = vunpack.c.l.b16 %v1026
        %v4320 = vunpack.c.h.b16 %v1026
        %v4321 = vunpack.c.l.b16 %v1027
        %v4322 = vunpack.c.h.b16 %v1027
        %v4323 = vunpack.c.l.b16 %v1028
        %v4324 = vunpack.c.h.b16 %v1028
        %v4325 = vunpack.c.l.b16 %v1029
        %v4326 = vunpack.c.h.b16 %v1029
        %v4327 = vunpack.c.l.b16 %v1030
        %v4328 = vunpack.c.h.b16 %v1030
        %v4329 = vunpack.c.l.b16 %v1031
        %v4330 = vunpack.c.h.b16 %v1031
        %v4331 = vunpack.c.l.b16 %v1032
        %v4332 = vunpack.c.h.b16 %v1032
        %v4333 = vunpack.c.l.b16 %v1033
        %v4334 = vunpack.c.h.b16 %v1033
        %v4335 = vunpack.c.l.b16 %v1034
        %v4336 = vunpack.c.h.b16 %v1034
        %v4337 = vunpack.c.l.b16 %v1035
        %v4338 = vunpack.c.h.b16 %v1035
        %v4339 = vunpack.c.l.b16 %v1036
        %v4340 = vunpack.c.h.b16 %v1036
        %v4341 = vunpack.c.l.b16 %v1037
        %v4342 = vunpack.c.h.b16 %v1037
        %v4343 = vunpack.c.l.b16 %v1038
        %v4344 = vunpack.c.h.b16 %v1038
        %v4345 = vunpack.c.l.b16 %v1039
        %v4346 = vunpack.c.h.b16 %v1039
        %v4347 = vunpack.c.l.b16 %v1040
        %v4348 = vunpack.c.h.b16 %v1040
        %v4349 = vunpack.c.l.b16 %v1041
        %v4350 = vunpack.c.h.b16 %v1041
        %v4351 = vunpack.c.l.b16 %v1042
        %v4352 = vunpack.c.h.b16 %v1042
        %v4353 = vunpack.c.l.b16 %v1043
        %v4354 = vunpack.c.h.b16 %v1043
        %v4355 = vunpack.c.l.b16 %v1044
        %v4356 = vunpack.c.h.b16 %v1044
        %v4357 = vunpack.c.l.b16 %v1045
        %v4358 = vunpack.c.h.b16 %v1045
        %v4359 = vunpack.c.l.b16 %v1046
        %v4360 = vunpack.c.h.b16 %v1046
        %v4361 = vunpack.c.l.b16 %v1047
        %v4362 = vunpack.c.h.b16 %v1047
        %v4363 = vunpack.c.l.b16 %v1048
        %v4364 = vunpack.c.h.b16 %v1048
        %v4365 = vunpack.c.l.b16 %v1049
        %v4366 = vunpack.c.h.b16 %v1049
        %v4367 = vunpack.c.l.b16 %v1050
        %v4368 = vunpack.c.h.b16 %v1050
        %v4369 = vunpack.c.l.b16 %v1051
        %v4370 = vunpack.c.h.b16 %v1051
        %v4371 = vunpack.c.l.b16 %v1052
        %v4372 = vunpack.c.h.b16 %v1052
        %v4373 = vunpack.c.l.b16 %v1053
        %v4374 = vunpack.c.h.b16 %v1053
        %v4375 = vunpack.c.l.b16 %v1054
        %v4376 = vunpack.c.h.b16 %v1054
        %v4377 = vunpack.c.l.b16 %v1055
        %v4378 = vunpack.c.h.b16 %v1055
        %v4379 = vunpack.c.l.b16 %v1056
        %v4380 = vunpack.c.h.b16 %v1056
        %v4381 = vunpack.c.l.b16 %v1057
        %v4382 = vunpack.c.h.b16 %v1057
        %v4383 = vunpack.c.l.b16 %v1058
        %v4384 = vunpack.c.h.b16 %v1058
        %v4385 = vunpack.c.l.b16 %v1059
        %v4386 = vunpack.c.h.b16 %v1059
        %v4387 = vunpack.c.l.b16 %v1060
        %v4388 = vunpack.c.h.b16 %v1060
        %v4389 = vunpack.c.l.b16 %v1061
        %v4390 = vunpack.c.h.b16 %v1061
        %v4391 = vunpack.c.l.b16 %v1062
        %v4392 = vunpack.c.h.b16 %v1062
        %v4393 = vunpack.c.l.b16 %v1063
        %v4394 = vunpack.c.h.b16 %v1063
        %v4395 = vunpack.c.l.b16 %v1064
        %v4396 = vunpack.c.h.b16 %v1064
        %v4397 = vunpack.c.l.b16 %v1065
        %v4398 = vunpack.c.h.b16 %v1065
        %v4399 = vunpack.c.l.b16 %v1066
        %v4400 = vunpack.c.h.b16 %v1066
        %v4401 = vunpack.c.l.b16 %v1067
        %v4402 = vunpack.c.h.b16 %v1067
        %v4403 = vunpack.c.l.b16 %v1068
        %v4404 = vunpack.c.h.b16 %v1068
        %v4405 = vunpack.c.l.b16 %v1069
        %v4406 = vunpack.c.h.b16 %v1069
        %v4407 = vunpack.c.l.b16 %v1070
        %v4408 = vunpack.c.h.b16 %v1070
        %v4409 = vunpack.c.l.b16 %v1071
        %v4410 = vunpack.c.h.b16 %v1071
        %v4411 = vunpack.c.l.b16 %v1072
        %v4412 = vunpack.c.h.b16 %v1072
        %v4413 = vunpack.c.l.b16 %v1073
        %v4414 = vunpack.c.h.b16 %v1073
        %v4415 = vunpack.c.l.b16 %v1074
        %v4416 = vunpack.c.h.b16 %v1074
        %v4417 = vunpack.c.l.b16 %v1075
        %v4418 = vunpack.c.h.b16 %v1075
        %v4419 = vunpack.c.l.b16 %v1076
        %v4420 = vunpack.c.h.b16 %v1076
        %v4421 = vunpack.c.l.b16 %v1077
        %v4422 = vunpack.c.h.b16 %v1077
        %v4423 = vunpack.c.l.b16 %v1078
        %v4424 = vunpack.c.h.b16 %v1078
        %v4425 = vunpack.c.l.b16 %v1079
        %v4426 = vunpack.c.h.b16 %v1079
        %v4427 = vunpack.c.l.b16 %v1080
        %v4428 = vunpack.c.h.b16 %v1080
        %v4429 = vunpack.c.l.b16 %v1081
        %v4430 = vunpack.c.h.b16 %v1081
        %v4431 = vunpack.c.l.b16 %v1082
        %v4432 = vunpack.c.h.b16 %v1082
        %v4433 = vunpack.c.l.b16 %v1083
        %v4434 = vunpack.c.h.b16 %v1083
        %v4435 = vunpack.c.l.b16 %v1084
        %v4436 = vunpack.c.h.b16 %v1084
        %v4437 = vunpack.c.l.b16 %v1085
        %v4438 = vunpack.c.h.b16 %v1085
        %v4439 = vunpack.c.l.b16 %v1086
        %v4440 = vunpack.c.h.b16 %v1086
        %v4441 = vunpack.c.l.b16 %v1087
        %v4442 = vunpack.c.h.b16 %v1087
        %v4443 = vunpack.c.l.b16 %v1088
        %v4444 = vunpack.c.h.b16 %v1088
        %v4445 = vunpack.c.l.b16 %v1089
        %v4446 = vunpack.c.h.b16 %v1089
        %v4447 = vunpack.c.l.b16 %v1090
        %v4448 = vunpack.c.h.b16 %v1090
        %v4449 = vunpack.c.l.b16 %v1091
        %v4450 = vunpack.c.h.b16 %v1091
        %v4451 = vunpack.c.l.b16 %v1092
        %v4452 = vunpack.c.h.b16 %v1092
        %v4453 = vunpack.c.l.b16 %v1093
        %v4454 = vunpack.c.h.b16 %v1093
        %v4455 = vunpack.c.l.b16 %v1094
        %v4456 = vunpack.c.h.b16 %v1094
        %v4457 = vunpack.c.l.b16 %v1095
        %v4458 = vunpack.c.h.b16 %v1095
        %v4459 = vunpack.c.l.b16 %v1096
        %v4460 = vunpack.c.h.b16 %v1096
        %v4461 = vunpack.c.l.b16 %v1097
        %v4462 = vunpack.c.h.b16 %v1097
        %v4463 = vunpack.c.l.b16 %v1098
        %v4464 = vunpack.c.h.b16 %v1098
        %v4465 = vunpack.c.l.b16 %v1099
        %v4466 = vunpack.c.h.b16 %v1099
        %v4467 = vunpack.c.l.b16 %v1100
        %v4468 = vunpack.c.h.b16 %v1100
        %v4469 = vunpack.c.l.b16 %v1101
        %v4470 = vunpack.c.h.b16 %v1101
        %v4471 = vunpack.c.l.b16 %v1102
        %v4472 = vunpack.c.h.b16 %v1102
        %v4473 = vunpack.c.l.b16 %v1103
        %v4474 = vunpack.c.h.b16 %v1103
        %v4475 = vunpack.c.l.b16 %v1104
        %v4476 = vunpack.c.h.b16 %v1104
        %v4477 = vunpack.c.l.b16 %v1105
        %v4478 = vunpack.c.h.b16 %v1105
        %v4479 = vunpack.c.l.b16 %v1106
        %v4480 = vunpack.c.h.b16 %v1106
        %v4481 = vunpack.c.l.b16 %v1107
        %v4482 = vunpack.c.h.b16 %v1107
        %v4483 = vunpack.c.l.b16 %v1108
        %v4484 = vunpack.c.h.b16 %v1108
        %v4485 = vunpack.c.l.b16 %v1109
        %v4486 = vunpack.c.h.b16 %v1109
        %v4487 = vunpack.c.l.b16 %v1110
        %v4488 = vunpack.c.h.b16 %v1110
        %v4489 = vunpack.c.l.b16 %v1111
        %v4490 = vunpack.c.h.b16 %v1111
        %v4491 = vunpack.c.l.b16 %v1112
        %v4492 = vunpack.c.h.b16 %v1112
        %v4493 = vunpack.c.l.b16 %v1113
        %v4494 = vunpack.c.h.b16 %v1113
        %v4495 = vunpack.c.l.b16 %v1114
        %v4496 = vunpack.c.h.b16 %v1114
        %v4497 = vunpack.c.l.b16 %v1115
        %v4498 = vunpack.c.h.b16 %v1115
        %v4499 = vunpack.c.l.b16 %v1116
        %v4500 = vunpack.c.h.b16 %v1116
        %v4501 = vunpack.c.l.b16 %v1117
        %v4502 = vunpack.c.h.b16 %v1117
        %v4503 = vunpack.c.l.b16 %v1118
        %v4504 = vunpack.c.h.b16 %v1118
        %v4505 = vunpack.c.l.b16 %v1119
        %v4506 = vunpack.c.h.b16 %v1119
        %v4507 = vunpack.c.l.b16 %v1120
        %v4508 = vunpack.c.h.b16 %v1120
        %v4509 = vunpack.c.l.b16 %v1121
        %v4510 = vunpack.c.h.b16 %v1121
        %v4511 = vunpack.c.l.b16 %v1122
        %v4512 = vunpack.c.h.b16 %v1122
        %v4513 = vunpack.c.l.b16 %v1123
        %v4514 = vunpack.c.h.b16 %v1123
        %v4515 = vunpack.c.l.b16 %v1124
        %v4516 = vunpack.c.h.b16 %v1124
        %v4517 = vunpack.c.l.b16 %v1125
        %v4518 = vunpack.c.h.b16 %v1125
        %v4519 = vunpack.c.l.b16 %v1126
        %v4520 = vunpack.c.h.b16 %v1126
        %v4521 = vunpack.c.l.b16 %v1127
        %v4522 = vunpack.c.h.b16 %v1127
        %v4523 = vunpack.c.l.b16 %v1128
        %v4524 = vunpack.c.h.b16 %v1128
        %v4525 = vunpack.c.l.b16 %v1129
        %v4526 = vunpack.c.h.b16 %v1129
        %v4527 = vunpack.c.l.b16 %v1130
        %v4528 = vunpack.c.h.b16 %v1130
        %v4529 = vunpack.c.l.b16 %v1131
        %v4530 = vunpack.c.h.b16 %v1131
        %v4531 = vunpack.c.l.b16 %v1132
        %v4532 = vunpack.c.h.b16 %v1132
        %v4533 = vunpack.c.l.b16 %v1133
        %v4534 = vunpack.c.h.b16 %v1133
        %v4535 = vunpack.c.l.b16 %v1134
        %v4536 = vunpack.c.h.b16 %v1134
        %v4537 = vunpack.c.l.b16 %v1135
        %v4538 = vunpack.c.h.b16 %v1135
        %v4539 = vunpack.c.l.b16 %v1136
        %v4540 = vunpack.c.h.b16 %v1136
        %v4541 = vunpack.c.l.b16 %v1137
        %v4542 = vunpack.c.h.b16 %v1137
        %v4543 = vunpack.c.l.b16 %v1138
        %v4544 = vunpack.c.h.b16 %v1138
        %v4545 = vunpack.c.l.b16 %v1139
        %v4546 = vunpack.c.h.b16 %v1139
        %v4547 = vunpack.c.l.b16 %v1140
        %v4548 = vunpack.c.h.b16 %v1140
        %v4549 = vunpack.c.l.b16 %v1141
        %v4550 = vunpack.c.h.b16 %v1141
        %v4551 = vunpack.c.l.b16 %v1142
        %v4552 = vunpack.c.h.b16 %v1142
        %v4553 = vunpack.c.l.b16 %v1143
        %v4554 = vunpack.c.h.b16 %v1143
        %v4555 = vunpack.c.l.b16 %v1144
        %v4556 = vunpack.c.h.b16 %v1144
        %v4557 = vunpack.c.l.b16 %v1145
        %v4558 = vunpack.c.h.b16 %v1145
        %v4559 = vunpack.c.l.b16 %v1146
        %v4560 = vunpack.c.h.b16 %v1146
        %v4561 = vunpack.c.l.b16 %v1147
        %v4562 = vunpack.c.h.b16 %v1147
        %v4563 = vunpack.c.l.b16 %v1148
        %v4564 = vunpack.c.h.b16 %v1148
        %v4565 = vunpack.c.l.b16 %v1149
        %v4566 = vunpack.c.h.b16 %v1149
        %v4567 = vunpack.c.l.b16 %v1150
        %v4568 = vunpack.c.h.b16 %v1150
        %v4569 = vunpack.c.l.b16 %v1151
        %v4570 = vunpack.c.h.b16 %v1151
        %v4571 = vunpack.c.l.b16 %v1152
        %v4572 = vunpack.c.h.b16 %v1152
        %v4573 = vunpack.c.l.b16 %v1153
        %v4574 = vunpack.c.h.b16 %v1153
        %v4575 = vunpack.c.l.b16 %v1154
        %v4576 = vunpack.c.h.b16 %v1154
        %v4577 = vunpack.c.l.b16 %v1155
        %v4578 = vunpack.c.h.b16 %v1155
        %v4579 = vunpack.c.l.b16 %v1156
        %v4580 = vunpack.c.h.b16 %v1156
        %v4581 = vunpack.c.l.b16 %v1157
        %v4582 = vunpack.c.h.b16 %v1157
        %v4583 = vunpack.c.l.b16 %v1158
        %v4584 = vunpack.c.h.b16 %v1158
        %v4585 = vunpack.c.l.b16 %v1159
        %v4586 = vunpack.c.h.b16 %v1159
        %v4587 = vunpack.c.l.b16 %v1160
        %v4588 = vunpack.c.h.b16 %v1160
        %v4589 = vunpack.c.l.b16 %v1161
        %v4590 = vunpack.c.h.b16 %v1161
        %v4591 = vunpack.c.l.b16 %v1162
        %v4592 = vunpack.c.h.b16 %v1162
        %v4593 = vunpack.c.l.b16 %v1163
        %v4594 = vunpack.c.h.b16 %v1163
        %v4595 = vunpack.c.l.b16 %v1164
        %v4596 = vunpack.c.h.b16 %v1164
        %v4597 = vunpack.c.l.b16 %v1165
        %v4598 = vunpack.c.h.b16 %v1165
        %v4599 = vunpack.c.l.b16 %v1166
        %v4600 = vunpack.c.h.b16 %v1166
        %v4601 = vunpack.c.l.b16 %v1167
        %v4602 = vunpack.c.h.b16 %v1167
        %v4603 = vunpack.c.l.b16 %v1168
        %v4604 = vunpack.c.h.b16 %v1168
        %v4605 = vunpack.c.l.b16 %v1169
        %v4606 = vunpack.c.h.b16 %v1169
        %v4607 = vunpack.c.l.b16 %v1170
        %v4608 = vunpack.c.h.b16 %v1170
        %v4609 = vunpack.c.l.b16 %v1171
        %v4610 = vunpack.c.h.b16 %v1171
        %v4611 = vunpack.c.l.b16 %v1172
        %v4612 = vunpack.c.h.b16 %v1172
        %v4613 = vunpack.c.l.b16 %v1173
        %v4614 = vunpack.c.h.b16 %v1173
        %v4615 = vunpack.c.l.b16 %v1174
        %v4616 = vunpack.c.h.b16 %v1174
        %v4617 = vunpack.c.l.b16 %v1175
        %v4618 = vunpack.c.h.b16 %v1175
        %v4619 = vunpack.c.l.b16 %v1176
        %v4620 = vunpack.c.h.b16 %v1176
        %v4621 = vunpack.c.l.b16 %v1177
        %v4622 = vunpack.c.h.b16 %v1177
        %v4623 = vunpack.c.l.b16 %v1178
        %v4624 = vunpack.c.h.b16 %v1178
        %v4625 = vunpack.c.l.b16 %v1179
        %v4626 = vunpack.c.h.b16 %v1179
        %v4627 = vunpack.c.l.b16 %v1180
        %v4628 = vunpack.c.h.b16 %v1180
        %v4629 = vunpack.c.l.b16 %v1181
        %v4630 = vunpack.c.h.b16 %v1181
        %v4631 = vunpack.c.l.b16 %v1182
        %v4632 = vunpack.c.h.b16 %v1182
        %v4633 = vunpack.c.l.b16 %v1183
        %v4634 = vunpack.c.h.b16 %v1183
        %v4635 = vunpack.c.l.b16 %v1184
        %v4636 = vunpack.c.h.b16 %v1184
        %v4637 = vunpack.c.l.b16 %v1185
        %v4638 = vunpack.c.h.b16 %v1185
        %v4639 = vunpack.c.l.b16 %v1186
        %v4640 = vunpack.c.h.b16 %v1186
        %v4641 = vunpack.c.l.b16 %v1187
        %v4642 = vunpack.c.h.b16 %v1187
        %v4643 = vunpack.c.l.b16 %v1188
        %v4644 = vunpack.c.h.b16 %v1188
        %v4645 = vunpack.c.l.b16 %v1189
        %v4646 = vunpack.c.h.b16 %v1189
        %v4647 = vunpack.c.l.b16 %v1190
        %v4648 = vunpack.c.h.b16 %v1190
        %v4649 = vunpack.c.l.b16 %v1191
        %v4650 = vunpack.c.h.b16 %v1191
        %v4651 = vunpack.c.l.b16 %v1192
        %v4652 = vunpack.c.h.b16 %v1192
        %v4653 = vunpack.c.l.b16 %v1193
        %v4654 = vunpack.c.h.b16 %v1193
        %v4655 = vunpack.c.l.b16 %v1194
        %v4656 = vunpack.c.h.b16 %v1194
        %v4657 = vunpack.c.l.b16 %v1195
        %v4658 = vunpack.c.h.b16 %v1195
        %v4659 = vunpack.c.l.b16 %v1196
        %v4660 = vunpack.c.h.b16 %v1196
        %v4661 = vunpack.c.l.b16 %v1197
        %v4662 = vunpack.c.h.b16 %v1197
        %v4663 = vunpack.c.l.b16 %v1198
        %v4664 = vunpack.c.h.b16 %v1198
        %v4665 = vunpack.c.l.b16 %v1199
        %v4666 = vunpack.c.h.b16 %v1199
        %v4667 = vunpack.c.l.b16 %v1200
        %v4668 = vunpack.c.h.b16 %v1200
        %v4669 = vunpack.c.l.b16 %v1201
        %v4670 = vunpack.c.h.b16 %v1201
        %v4671 = vunpack.c.l.b16 %v1202
        %v4672 = vunpack.c.h.b16 %v1202
        %v4673 = vunpack.c.l.b16 %v1203
        %v4674 = vunpack.c.h.b16 %v1203
        %v4675 = vunpack.c.l.b16 %v1204
        %v4676 = vunpack.c.h.b16 %v1204
        %v4677 = vunpack.c.l.b16 %v1205
        %v4678 = vunpack.c.h.b16 %v1205
        %v4679 = vunpack.c.l.b16 %v1206
        %v4680 = vunpack.c.h.b16 %v1206
        %v4681 = vunpack.c.l.b16 %v1207
        %v4682 = vunpack.c.h.b16 %v1207
        %v4683 = vunpack.c.l.b16 %v1208
        %v4684 = vunpack.c.h.b16 %v1208
        %v4685 = vunpack.c.l.b16 %v1209
        %v4686 = vunpack.c.h.b16 %v1209
        %v4687 = vunpack.c.l.b16 %v1210
        %v4688 = vunpack.c.h.b16 %v1210
        %v4689 = vunpack.c.l.b16 %v1211
        %v4690 = vunpack.c.h.b16 %v1211
        %v4691 = vunpack.c.l.b16 %v1212
        %v4692 = vunpack.c.h.b16 %v1212
        %v4693 = vunpack.c.l.b16 %v1213
        %v4694 = vunpack.c.h.b16 %v1213
        %v4695 = vunpack.c.l.b16 %v1214
        %v4696 = vunpack.c.h.b16 %v1214
        %v4697 = vunpack.c.l.b16 %v1215
        %v4698 = vunpack.c.h.b16 %v1215
        %v4699 = vunpack.c.l.b16 %v1216
        %v4700 = vunpack.c.h.b16 %v1216
        %v4701 = vunpack.c.l.b16 %v1217
        %v4702 = vunpack.c.h.b16 %v1217
        %v4703 = vunpack.c.l.b16 %v1218
        %v4704 = vunpack.c.h.b16 %v1218
        %v4705 = vunpack.c.l.b16 %v1219
        %v4706 = vunpack.c.h.b16 %v1219
        %v4707 = vunpack.c.l.b16 %v1220
        %v4708 = vunpack.c.h.b16 %v1220
        %v4709 = vunpack.c.l.b16 %v1221
        %v4710 = vunpack.c.h.b16 %v1221
        %v4711 = vunpack.c.l.b16 %v1222
        %v4712 = vunpack.c.h.b16 %v1222
        %v4713 = vunpack.c.l.b16 %v1223
        %v4714 = vunpack.c.h.b16 %v1223
        %v4715 = vunpack.c.l.b16 %v1224
        %v4716 = vunpack.c.h.b16 %v1224
        %v4717 = vunpack.c.l.b16 %v1225
        %v4718 = vunpack.c.h.b16 %v1225
        %v4719 = vunpack.c.l.b16 %v1226
        %v4720 = vunpack.c.h.b16 %v1226
        %v4721 = vunpack.c.l.b16 %v1227
        %v4722 = vunpack.c.h.b16 %v1227
        %v4723 = vunpack.c.l.b16 %v1228
        %v4724 = vunpack.c.h.b16 %v1228
        %v4725 = vunpack.c.l.b16 %v1229
        %v4726 = vunpack.c.h.b16 %v1229
        %v4727 = vunpack.c.l.b16 %v1230
        %v4728 = vunpack.c.h.b16 %v1230
        %v4729 = vunpack.c.l.b16 %v1231
        %v4730 = vunpack.c.h.b16 %v1231
        %v4731 = vunpack.c.l.b16 %v1232
        %v4732 = vunpack.c.h.b16 %v1232
        %v4733 = vunpack.c.l.b16 %v1233
        %v4734 = vunpack.c.h.b16 %v1233
        %v4735 = vunpack.c.l.b16 %v1234
        %v4736 = vunpack.c.h.b16 %v1234
        %v4737 = vunpack.c.l.b16 %v1235
        %v4738 = vunpack.c.h.b16 %v1235
        %v4739 = vunpack.c.l.b16 %v1236
        %v4740 = vunpack.c.h.b16 %v1236
        %v4741 = vunpack.c.l.b16 %v1237
        %v4742 = vunpack.c.h.b16 %v1237
        %v4743 = vunpack.c.l.b16 %v1238
        %v4744 = vunpack.c.h.b16 %v1238
        %v4745 = vunpack.c.l.b16 %v1239
        %v4746 = vunpack.c.h.b16 %v1239
        %v4747 = vunpack.c.l.b16 %v1240
        %v4748 = vunpack.c.h.b16 %v1240
        %v4749 = vunpack.c.l.b16 %v1241
        %v4750 = vunpack.c.h.b16 %v1241
        %v4751 = vunpack.c.l.b16 %v1242
        %v4752 = vunpack.c.h.b16 %v1242
        %v4753 = vunpack.c.l.b16 %v1243
        %v4754 = vunpack.c.h.b16 %v1243
        %v4755 = vunpack.c.l.b16 %v1244
        %v4756 = vunpack.c.h.b16 %v1244
        %v4757 = vunpack.c.l.b16 %v1245
        %v4758 = vunpack.c.h.b16 %v1245
        %v4759 = vunpack.c.l.b16 %v1246
        %v4760 = vunpack.c.h.b16 %v1246
        %v4761 = vunpack.c.l.b16 %v1247
        %v4762 = vunpack.c.h.b16 %v1247
        %v4763 = vunpack.c.l.b16 %v1248
        %v4764 = vunpack.c.h.b16 %v1248
        %v4765 = vunpack.c.l.b16 %v1249
        %v4766 = vunpack.c.h.b16 %v1249
        %v4767 = vunpack.c.l.b16 %v1250
        %v4768 = vunpack.c.h.b16 %v1250
        %v4769 = vunpack.c.l.b16 %v1251
        %v4770 = vunpack.c.h.b16 %v1251
        %v4771 = vunpack.c.l.b16 %v1252
        %v4772 = vunpack.c.h.b16 %v1252
        %v4773 = vunpack.c.l.b16 %v1253
        %v4774 = vunpack.c.h.b16 %v1253
        %v4775 = vunpack.c.l.b16 %v1254
        %v4776 = vunpack.c.h.b16 %v1254
        %v4777 = vunpack.c.l.b16 %v1255
        %v4778 = vunpack.c.h.b16 %v1255
        %v4779 = vunpack.c.l.b16 %v1256
        %v4780 = vunpack.c.h.b16 %v1256
        %v4781 = vunpack.c.l.b16 %v1257
        %v4782 = vunpack.c.h.b16 %v1257
        %v4783 = vunpack.c.l.b16 %v1258
        %v4784 = vunpack.c.h.b16 %v1258
        %v4785 = vunpack.c.l.b16 %v1259
        %v4786 = vunpack.c.h.b16 %v1259
        %v4787 = vunpack.c.l.b16 %v1260
        %v4788 = vunpack.c.h.b16 %v1260
        %v4789 = vunpack.c.l.b16 %v1261
        %v4790 = vunpack.c.h.b16 %v1261
        %v4791 = vunpack.c.l.b16 %v1262
        %v4792 = vunpack.c.h.b16 %v1262
        %v4793 = vunpack.c.l.b16 %v1263
        %v4794 = vunpack.c.h.b16 %v1263
        %v4795 = vunpack.c.l.b16 %v1264
        %v4796 = vunpack.c.h.b16 %v1264
        %v4797 = vunpack.c.l.b16 %v1265
        %v4798 = vunpack.c.h.b16 %v1265
        %v4799 = vunpack.c.l.b16 %v1266
        %v4800 = vunpack.c.h.b16 %v1266
        %v4801 = vunpack.c.l.b16 %v1267
        %v4802 = vunpack.c.h.b16 %v1267
        %v4803 = vunpack.c.l.b16 %v1268
        %v4804 = vunpack.c.h.b16 %v1268
        %v4805 = vpack.c.b16 %v2759, %v2757
        %v4806 = vpack.c.b16 %v2760, %v2758
        %v4807 = vpack.c.b16 %v2763, %v2761
        %v4808 = vpack.c.b16 %v2764, %v2762
        %v4809 = vpack.c.b16 %v2767, %v2765
        %v4810 = vpack.c.b16 %v2768, %v2766
        %v4811 = vpack.c.b16 %v2771, %v2769
        %v4812 = vpack.c.b16 %v2772, %v2770
        %v4813 = vpack.c.b16 %v2775, %v2773
        %v4814 = vpack.c.b16 %v2776, %v2774
        %v4815 = vpack.c.b16 %v2779, %v2777
        %v4816 = vpack.c.b16 %v2780, %v2778
        %v4817 = vpack.c.b16 %v2783, %v2781
        %v4818 = vpack.c.b16 %v2784, %v2782
        %v4819 = vpack.c.b16 %v2787, %v2785
        %v4820 = vpack.c.b16 %v2788, %v2786
        %v4821 = vpack.c.b16 %v2791, %v2789
        %v4822 = vpack.c.b16 %v2792, %v2790
        %v4823 = vpack.c.b16 %v2795, %v2793
        %v4824 = vpack.c.b16 %v2796, %v2794
        %v4825 = vpack.c.b16 %v2799, %v2797
        %v4826 = vpack.c.b16 %v2800, %v2798
        %v4827 = vpack.c.b16 %v2803, %v2801
        %v4828 = vpack.c.b16 %v2804, %v2802
        %v4829 = vpack.c.b16 %v2807, %v2805
        %v4830 = vpack.c.b16 %v2808, %v2806
        %v4831 = vpack.c.b16 %v2811, %v2809
        %v4832 = vpack.c.b16 %v2812, %v2810
        %v4833 = vpack.c.b16 %v2815, %v2813
        %v4834 = vpack.c.b16 %v2816, %v2814
        %v4835 = vpack.c.b16 %v2819, %v2817
        %v4836 = vpack.c.b16 %v2820, %v2818
        %v4837 = vpack.c.b16 %v2823, %v2821
        %v4838 = vpack.c.b16 %v2824, %v2822
        %v4839 = vpack.c.b16 %v2827, %v2825
        %v4840 = vpack.c.b16 %v2828, %v2826
        %v4841 = vpack.c.b16 %v2831, %v2829
        %v4842 = vpack.c.b16 %v2832, %v2830
        %v4843 = vpack.c.b16 %v2835, %v2833
        %v4844 = vpack.c.b16 %v2836, %v2834
        %v4845 = vpack.c.b16 %v2839, %v2837
        %v4846 = vpack.c.b16 %v2840, %v2838
        %v4847 = vpack.c.b16 %v2843, %v2841
        %v4848 = vpack.c.b16 %v2844, %v2842
        %v4849 = vpack.c.b16 %v2847, %v2845
        %v4850 = vpack.c.b16 %v2848, %v2846
        %v4851 = vpack.c.b16 %v2851, %v2849
        %v4852 = vpack.c.b16 %v2852, %v2850
        %v4853 = vpack.c.b16 %v2855, %v2853
        %v4854 = vpack.c.b16 %v2856, %v2854
        %v4855 = vpack.c.b16 %v2859, %v2857
        %v4856 = vpack.c.b16 %v2860, %v2858
        %v4857 = vpack.c.b16 %v2863, %v2861
        %v4858 = vpack.c.b16 %v2864, %v2862
        %v4859 = vpack.c.b16 %v2867, %v2865
        %v4860 = vpack.c.b16 %v2868, %v2866
        %v4861 = vpack.c.b16 %v2871, %v2869
        %v4862 = vpack.c.b16 %v2872, %v2870
        %v4863 = vpack.c.b16 %v2875, %v2873
        %v4864 = vpack.c.b16 %v2876, %v2874
        %v4865 = vpack.c.b16 %v2879, %v2877
        %v4866 = vpack.c.b16 %v2880, %v2878
        %v4867 = vpack.c.b16 %v2883, %v2881
        %v4868 = vpack.c.b16 %v2884, %v2882
        %v4869 = vpack.c.b16 %v2887, %v2885
        %v4870 = vpack.c.b16 %v2888, %v2886
        %v4871 = vpack.c.b16 %v2891, %v2889
        %v4872 = vpack.c.b16 %v2892, %v2890
        %v4873 = vpack.c.b16 %v2895, %v2893
        %v4874 = vpack.c.b16 %v2896, %v2894
        %v4875 = vpack.c.b16 %v2899, %v2897
        %v4876 = vpack.c.b16 %v2900, %v2898
        %v4877 = vpack.c.b16 %v2903, %v2901
        %v4878 = vpack.c.b16 %v2904, %v2902
        %v4879 = vpack.c.b16 %v2907, %v2905
        %v4880 = vpack.c.b16 %v2908, %v2906
        %v4881 = vpack.c.b16 %v2911, %v2909
        %v4882 = vpack.c.b16 %v2912, %v2910
        %v4883 = vpack.c.b16 %v2915, %v2913
        %v4884 = vpack.c.b16 %v2916, %v2914
        %v4885 = vpack.c.b16 %v2919, %v2917
        %v4886 = vpack.c.b16 %v2920, %v2918
        %v4887 = vpack.c.b16 %v2923, %v2921
        %v4888 = vpack.c.b16 %v2924, %v2922
        %v4889 = vpack.c.b16 %v2927, %v2925
        %v4890 = vpack.c.b16 %v2928, %v2926
        %v4891 = vpack.c.b16 %v2931, %v2929
        %v4892 = vpack.c.b16 %v2932, %v2930
        %v4893 = vpack.c.b16 %v2935, %v2933
        %v4894 = vpack.c.b16 %v2936, %v2934
        %v4895 = vpack.c.b16 %v2939, %v2937
        %v4896 = vpack.c.b16 %v2940, %v2938
        %v4897 = vpack.c.b16 %v2943, %v2941
        %v4898 = vpack.c.b16 %v2944, %v2942
        %v4899 = vpack.c.b16 %v2947, %v2945
        %v4900 = vpack.c.b16 %v2948, %v2946
        %v4901 = vpack.c.b16 %v2951, %v2949
        %v4902 = vpack.c.b16 %v2952, %v2950
        %v4903 = vpack.c.b16 %v2955, %v2953
        %v4904 = vpack.c.b16 %v2956, %v2954
        %v4905 = vpack.c.b16 %v2959, %v2957
        %v4906 = vpack.c.b16 %v2960, %v2958
        %v4907 = vpack.c.b16 %v2963, %v2961
        %v4908 = vpack.c.b16 %v2964, %v2962
        %v4909 = vpack.c.b16 %v2967, %v2965
        %v4910 = vpack.c.b16 %v2968, %v2966
        %v4911 = vpack.c.b16 %v2971, %v2969
        %v4912 = vpack.c.b16 %v2972, %v2970
        %v4913 = vpack.c.b16 %v2975, %v2973
        %v4914 = vpack.c.b16 %v2976, %v2974
        %v4915 = vpack.c.b16 %v2979, %v2977
        %v4916 = vpack.c.b16 %v2980, %v2978
        %v4917 = vpack.c.b16 %v2983, %v2981
        %v4918 = vpack.c.b16 %v2984, %v2982
        %v4919 = vpack.c.b16 %v2987, %v2985
        %v4920 = vpack.c.b16 %v2988, %v2986
        %v4921 = vpack.c.b16 %v2991, %v2989
        %v4922 = vpack.c.b16 %v2992, %v2990
        %v4923 = vpack.c.b16 %v2995, %v2993
        %v4924 = vpack.c.b16 %v2996, %v2994
        %v4925 = vpack.c.b16 %v2999, %v2997
        %v4926 = vpack.c.b16 %v3000, %v2998
        %v4927 = vpack.c.b16 %v3003, %v3001
        %v4928 = vpack.c.b16 %v3004, %v3002
        %v4929 = vpack.c.b16 %v3007, %v3005
        %v4930 = vpack.c.b16 %v3008, %v3006
        %v4931 = vpack.c.b16 %v3011, %v3009
        %v4932 = vpack.c.b16 %v3012, %v3010
        %v4933 = vpack.c.b16 %v3015, %v3013
        %v4934 = vpack.c.b16 %v3016, %v3014
        %v4935 = vpack.c.b16 %v3019, %v3017
        %v4936 = vpack.c.b16 %v3020, %v3018
        %v4937 = vpack.c.b16 %v3023, %v3021
        %v4938 = vpack.c.b16 %v3024, %v3022
        %v4939 = vpack.c.b16 %v3027, %v3025
        %v4940 = vpack.c.b16 %v3028, %v3026
        %v4941 = vpack.c.b16 %v3031, %v3029
        %v4942 = vpack.c.b16 %v3032, %v3030
        %v4943 = vpack.c.b16 %v3035, %v3033
        %v4944 = vpack.c.b16 %v3036, %v3034
        %v4945 = vpack.c.b16 %v3039, %v3037
        %v4946 = vpack.c.b16 %v3040, %v3038
        %v4947 = vpack.c.b16 %v3043, %v3041
        %v4948 = vpack.c.b16 %v3044, %v3042
        %v4949 = vpack.c.b16 %v3047, %v3045
        %v4950 = vpack.c.b16 %v3048, %v3046
        %v4951 = vpack.c.b16 %v3051, %v3049
        %v4952 = vpack.c.b16 %v3052, %v3050
        %v4953 = vpack.c.b16 %v3055, %v3053
        %v4954 = vpack.c.b16 %v3056, %v3054
        %v4955 = vpack.c.b16 %v3059, %v3057
        %v4956 = vpack.c.b16 %v3060, %v3058
        %v4957 = vpack.c.b16 %v3063, %v3061
        %v4958 = vpack.c.b16 %v3064, %v3062
        %v4959 = vpack.c.b16 %v3067, %v3065
        %v4960 = vpack.c.b16 %v3068, %v3066
        %v4961 = vpack.c.b16 %v3071, %v3069
        %v4962 = vpack.c.b16 %v3072, %v3070
        %v4963 = vpack.c.b16 %v3075, %v3073
        %v4964 = vpack.c.b16 %v3076, %v3074
        %v4965 = vpack.c.b16 %v3079, %v3077
        %v4966 = vpack.c.b16 %v3080, %v3078
        %v4967 = vpack.c.b16 %v3083, %v3081
        %v4968 = vpack.c.b16 %v3084, %v3082
        %v4969 = vpack.c.b16 %v3087, %v3085
        %v4970 = vpack.c.b16 %v3088, %v3086
        %v4971 = vpack.c.b16 %v3091, %v3089
        %v4972 = vpack.c.b16 %v3092, %v3090
        %v4973 = vpack.c.b16 %v3095, %v3093
        %v4974 = vpack.c.b16 %v3096, %v3094
        %v4975 = vpack.c.b16 %v3099, %v3097
        %v4976 = vpack.c.b16 %v3100, %v3098
        %v4977 = vpack.c.b16 %v3103, %v3101
        %v4978 = vpack.c.b16 %v3104, %v3102
        %v4979 = vpack.c.b16 %v3107, %v3105
        %v4980 = vpack.c.b16 %v3108, %v3106
        %v4981 = vpack.c.b16 %v3111, %v3109
        %v4982 = vpack.c.b16 %v3112, %v3110
        %v4983 = vpack.c.b16 %v3115, %v3113
        %v4984 = vpack.c.b16 %v3116, %v3114
        %v4985 = vpack.c.b16 %v3119, %v3117
        %v4986 = vpack.c.b16 %v3120, %v3118
        %v4987 = vpack.c.b16 %v3123, %v3121
        %v4988 = vpack.c.b16 %v3124, %v3122
        %v4989 = vpack.c.b16 %v3127, %v3125
        %v4990 = vpack.c.b16 %v3128, %v3126
        %v4991 = vpack.c.b16 %v3131, %v3129
        %v4992 = vpack.c.b16 %v3132, %v3130
        %v4993 = vpack.c.b16 %v3135, %v3133
        %v4994 = vpack.c.b16 %v3136, %v3134
        %v4995 = vpack.c.b16 %v3139, %v3137
        %v4996 = vpack.c.b16 %v3140, %v3138
        %v4997 = vpack.c.b16 %v3143, %v3141
        %v4998 = vpack.c.b16 %v3144, %v3142
        %v4999 = vpack.c.b16 %v3147, %v3145
        %v5000 = vpack.c.b16 %v3148, %v3146
        %v5001 = vpack.c.b16 %v3151, %v3149
        %v5002 = vpack.c.b16 %v3152, %v3150
        %v5003 = vpack.c.b16 %v3155, %v3153
        %v5004 = vpack.c.b16 %v3156, %v3154
        %v5005 = vpack.c.b16 %v3159, %v3157
        %v5006 = vpack.c.b16 %v3160, %v3158
        %v5007 = vpack.c.b16 %v3163, %v3161
        %v5008 = vpack.c.b16 %v3164, %v3162
        %v5009 = vpack.c.b16 %v3167, %v3165
        %v5010 = vpack.c.b16 %v3168, %v3166
        %v5011 = vpack.c.b16 %v3171, %v3169
        %v5012 = vpack.c.b16 %v3172, %v3170
        %v5013 = vpack.c.b16 %v3175, %v3173
        %v5014 = vpack.c.b16 %v3176, %v3174
        %v5015 = vpack.c.b16 %v3179, %v3177
        %v5016 = vpack.c.b16 %v3180, %v3178
        %v5017 = vpack.c.b16 %v3183, %v3181
        %v5018 = vpack.c.b16 %v3184, %v3182
        %v5019 = vpack.c.b16 %v3187, %v3185
        %v5020 = vpack.c.b16 %v3188, %v3186
        %v5021 = vpack.c.b16 %v3191, %v3189
        %v5022 = vpack.c.b16 %v3192, %v3190
        %v5023 = vpack.c.b16 %v3195, %v3193
        %v5024 = vpack.c.b16 %v3196, %v3194
        %v5025 = vpack.c.b16 %v3199, %v3197
        %v5026 = vpack.c.b16 %v3200, %v3198
        %v5027 = vpack.c.b16 %v3203, %v3201
        %v5028 = vpack.c.b16 %v3204, %v3202
        %v5029 = vpack.c.b16 %v3207, %v3205
        %v5030 = vpack.c.b16 %v3208, %v3206
        %v5031 = vpack.c.b16 %v3211, %v3209
        %v5032 = vpack.c.b16 %v3212, %v3210
        %v5033 = vpack.c.b16 %v3215, %v3213
        %v5034 = vpack.c.b16 %v3216, %v3214
        %v5035 = vpack.c.b16 %v3219, %v3217
        %v5036 = vpack.c.b16 %v3220, %v3218
        %v5037 = vpack.c.b16 %v3223, %v3221
        %v5038 = vpack.c.b16 %v3224, %v3222
        %v5039 = vpack.c.b16 %v3227, %v3225
        %v5040 = vpack.c.b16 %v3228, %v3226
        %v5041 = vpack.c.b16 %v3231, %v3229
        %v5042 = vpack.c.b16 %v3232, %v3230
        %v5043 = vpack.c.b16 %v3235, %v3233
        %v5044 = vpack.c.b16 %v3236, %v3234
        %v5045 = vpack.c.b16 %v3239, %v3237
        %v5046 = vpack.c.b16 %v3240, %v3238
        %v5047 = vpack.c.b16 %v3243, %v3241
        %v5048 = vpack.c.b16 %v3244, %v3242
        %v5049 = vpack.c.b16 %v3247, %v3245
        %v5050 = vpack.c.b16 %v3248, %v3246
        %v5051 = vpack.c.b16 %v3251, %v3249
        %v5052 = vpack.c.b16 %v3252, %v3250
        %v5053 = vpack.c.b16 %v3255, %v3253
        %v5054 = vpack.c.b16 %v3256, %v3254
        %v5055 = vpack.c.b16 %v3259, %v3257
        %v5056 = vpack.c.b16 %v3260, %v3258
        %v5057 = vpack.c.b16 %v3263, %v3261
        %v5058 = vpack.c.b16 %v3264, %v3262
        %v5059 = vpack.c.b16 %v3267, %v3265
        %v5060 = vpack.c.b16 %v3268, %v3266
        %v5061 = vpack.c.b16 %v3271, %v3269
        %v5062 = vpack.c.b16 %v3272, %v3270
        %v5063 = vpack.c.b16 %v3275, %v3273
        %v5064 = vpack.c.b16 %v3276, %v3274
        %v5065 = vpack.c.b16 %v3279, %v3277
        %v5066 = vpack.c.b16 %v3280, %v3278
        %v5067 = vpack.c.b16 %v3283, %v3281
        %v5068 = vpack.c.b16 %v3284, %v3282
        %v5069 = vpack.c.b16 %v3287, %v3285
        %v5070 = vpack.c.b16 %v3288, %v3286
        %v5071 = vpack.c.b16 %v3291, %v3289
        %v5072 = vpack.c.b16 %v3292, %v3290
        %v5073 = vpack.c.b16 %v3295, %v3293
        %v5074 = vpack.c.b16 %v3296, %v3294
        %v5075 = vpack.c.b16 %v3299, %v3297
        %v5076 = vpack.c.b16 %v3300, %v3298
        %v5077 = vpack.c.b16 %v3303, %v3301
        %v5078 = vpack.c.b16 %v3304, %v3302
        %v5079 = vpack.c.b16 %v3307, %v3305
        %v5080 = vpack.c.b16 %v3308, %v3306
        %v5081 = vpack.c.b16 %v3311, %v3309
        %v5082 = vpack.c.b16 %v3312, %v3310
        %v5083 = vpack.c.b16 %v3315, %v3313
        %v5084 = vpack.c.b16 %v3316, %v3314
        %v5085 = vpack.c.b16 %v3319, %v3317
        %v5086 = vpack.c.b16 %v3320, %v3318
        %v5087 = vpack.c.b16 %v3323, %v3321
        %v5088 = vpack.c.b16 %v3324, %v3322
        %v5089 = vpack.c.b16 %v3327, %v3325
        %v5090 = vpack.c.b16 %v3328, %v3326
        %v5091 = vpack.c.b16 %v3331, %v3329
        %v5092 = vpack.c.b16 %v3332, %v3330
        %v5093 = vpack.c.b16 %v3335, %v3333
        %v5094 = vpack.c.b16 %v3336, %v3334
        %v5095 = vpack.c.b16 %v3339, %v3337
        %v5096 = vpack.c.b16 %v3340, %v3338
        %v5097 = vpack.c.b16 %v3343, %v3341
        %v5098 = vpack.c.b16 %v3344, %v3342
        %v5099 = vpack.c.b16 %v3347, %v3345
        %v5100 = vpack.c.b16 %v3348, %v3346
        %v5101 = vpack.c.b16 %v3351, %v3349
        %v5102 = vpack.c.b16 %v3352, %v3350
        %v5103 = vpack.c.b16 %v3355, %v3353
        %v5104 = vpack.c.b16 %v3356, %v3354
        %v5105 = vpack.c.b16 %v3359, %v3357
        %v5106 = vpack.c.b16 %v3360, %v3358
        %v5107 = vpack.c.b16 %v3363, %v3361
        %v5108 = vpack.c.b16 %v3364, %v3362
        %v5109 = vpack.c.b16 %v3367, %v3365
        %v5110 = vpack.c.b16 %v3368, %v3366
        %v5111 = vpack.c.b16 %v3371, %v3369
        %v5112 = vpack.c.b16 %v3372, %v3370
        %v5113 = vpack.c.b16 %v3375, %v3373
        %v5114 = vpack.c.b16 %v3376, %v3374
        %v5115 = vpack.c.b16 %v3379, %v3377
        %v5116 = vpack.c.b16 %v3380, %v3378
        %v5117 = vpack.c.b16 %v3383, %v3381
        %v5118 = vpack.c.b16 %v3384, %v3382
        %v5119 = vpack.c.b16 %v3387, %v3385
        %v5120 = vpack.c.b16 %v3388, %v3386
        %v5121 = vpack.c.b16 %v3391, %v3389
        %v5122 = vpack.c.b16 %v3392, %v3390
        %v5123 = vpack.c.b16 %v3395, %v3393
        %v5124 = vpack.c.b16 %v3396, %v3394
        %v5125 = vpack.c.b16 %v3399, %v3397
        %v5126 = vpack.c.b16 %v3400, %v3398
        %v5127 = vpack.c.b16 %v3403, %v3401
        %v5128 = vpack.c.b16 %v3404, %v3402
        %v5129 = vpack.c.b16 %v3407, %v3405
        %v5130 = vpack.c.b16 %v3408, %v3406
        %v5131 = vpack.c.b16 %v3411, %v3409
        %v5132 = vpack.c.b16 %v3412, %v3410
        %v5133 = vpack.c.b16 %v3415, %v3413
        %v5134 = vpack.c.b16 %v3416, %v3414
        %v5135 = vpack.c.b16 %v3419, %v3417
        %v5136 = vpack.c.b16 %v3420, %v3418
        %v5137 = vpack.c.b16 %v3423, %v3421
        %v5138 = vpack.c.b16 %v3424, %v3422
        %v5139 = vpack.c.b16 %v3427, %v3425
        %v5140 = vpack.c.b16 %v3428, %v3426
        %v5141 = vpack.c.b16 %v3431, %v3429
        %v5142 = vpack.c.b16 %v3432, %v3430
        %v5143 = vpack.c.b16 %v3435, %v3433
        %v5144 = vpack.c.b16 %v3436, %v3434
        %v5145 = vpack.c.b16 %v3439, %v3437
        %v5146 = vpack.c.b16 %v3440, %v3438
        %v5147 = vpack.c.b16 %v3443, %v3441
        %v5148 = vpack.c.b16 %v3444, %v3442
        %v5149 = vpack.c.b16 %v3447, %v3445
        %v5150 = vpack.c.b16 %v3448, %v3446
        %v5151 = vpack.c.b16 %v3451, %v3449
        %v5152 = vpack.c.b16 %v3452, %v3450
        %v5153 = vpack.c.b16 %v3455, %v3453
        %v5154 = vpack.c.b16 %v3456, %v3454
        %v5155 = vpack.c.b16 %v3459, %v3457
        %v5156 = vpack.c.b16 %v3460, %v3458
        %v5157 = vpack.c.b16 %v3463, %v3461
        %v5158 = vpack.c.b16 %v3464, %v3462
        %v5159 = vpack.c.b16 %v3467, %v3465
        %v5160 = vpack.c.b16 %v3468, %v3466
        %v5161 = vpack.c.b16 %v3471, %v3469
        %v5162 = vpack.c.b16 %v3472, %v3470
        %v5163 = vpack.c.b16 %v3475, %v3473
        %v5164 = vpack.c.b16 %v3476, %v3474
        %v5165 = vpack.c.b16 %v3479, %v3477
        %v5166 = vpack.c.b16 %v3480, %v3478
        %v5167 = vpack.c.b16 %v3483, %v3481
        %v5168 = vpack.c.b16 %v3484, %v3482
        %v5169 = vpack.c.b16 %v3487, %v3485
        %v5170 = vpack.c.b16 %v3488, %v3486
        %v5171 = vpack.c.b16 %v3491, %v3489
        %v5172 = vpack.c.b16 %v3492, %v3490
        %v5173 = vpack.c.b16 %v3495, %v3493
        %v5174 = vpack.c.b16 %v3496, %v3494
        %v5175 = vpack.c.b16 %v3499, %v3497
        %v5176 = vpack.c.b16 %v3500, %v3498
        %v5177 = vpack.c.b16 %v3503, %v3501
        %v5178 = vpack.c.b16 %v3504, %v3502
        %v5179 = vpack.c.b16 %v3507, %v3505
        %v5180 = vpack.c.b16 %v3508, %v3506
        %v5181 = vpack.c.b16 %v3511, %v3509
        %v5182 = vpack.c.b16 %v3512, %v3510
        %v5183 = vpack.c.b16 %v3515, %v3513
        %v5184 = vpack.c.b16 %v3516, %v3514
        %v5185 = vpack.c.b16 %v3519, %v3517
        %v5186 = vpack.c.b16 %v3520, %v3518
        %v5187 = vpack.c.b16 %v3523, %v3521
        %v5188 = vpack.c.b16 %v3524, %v3522
        %v5189 = vpack.c.b16 %v3527, %v3525
        %v5190 = vpack.c.b16 %v3528, %v3526
        %v5191 = vpack.c.b16 %v3531, %v3529
        %v5192 = vpack.c.b16 %v3532, %v3530
        %v5193 = vpack.c.b16 %v3535, %v3533
        %v5194 = vpack.c.b16 %v3536, %v3534
        %v5195 = vpack.c.b16 %v3539, %v3537
        %v5196 = vpack.c.b16 %v3540, %v3538
        %v5197 = vpack.c.b16 %v3543, %v3541
        %v5198 = vpack.c.b16 %v3544, %v3542
        %v5199 = vpack.c.b16 %v3547, %v3545
        %v5200 = vpack.c.b16 %v3548, %v3546
        %v5201 = vpack.c.b16 %v3551, %v3549
        %v5202 = vpack.c.b16 %v3552, %v3550
        %v5203 = vpack.c.b16 %v3555, %v3553
        %v5204 = vpack.c.b16 %v3556, %v3554
        %v5205 = vpack.c.b16 %v3559, %v3557
        %v5206 = vpack.c.b16 %v3560, %v3558
        %v5207 = vpack.c.b16 %v3563, %v3561
        %v5208 = vpack.c.b16 %v3564, %v3562
        %v5209 = vpack.c.b16 %v3567, %v3565
        %v5210 = vpack.c.b16 %v3568, %v3566
        %v5211 = vpack.c.b16 %v3571, %v3569
        %v5212 = vpack.c.b16 %v3572, %v3570
        %v5213 = vpack.c.b16 %v3575, %v3573
        %v5214 = vpack.c.b16 %v3576, %v3574
        %v5215 = vpack.c.b16 %v3579, %v3577
        %v5216 = vpack.c.b16 %v3580, %v3578
        %v5217 = vpack.c.b16 %v3583, %v3581
        %v5218 = vpack.c.b16 %v3584, %v3582
        %v5219 = vpack.c.b16 %v3587, %v3585
        %v5220 = vpack.c.b16 %v3588, %v3586
        %v5221 = vpack.c.b16 %v3591, %v3589
        %v5222 = vpack.c.b16 %v3592, %v3590
        %v5223 = vpack.c.b16 %v3595, %v3593
        %v5224 = vpack.c.b16 %v3596, %v3594
        %v5225 = vpack.c.b16 %v3599, %v3597
        %v5226 = vpack.c.b16 %v3600, %v3598
        %v5227 = vpack.c.b16 %v3603, %v3601
        %v5228 = vpack.c.b16 %v3604, %v3602
        %v5229 = vpack.c.b16 %v3607, %v3605
        %v5230 = vpack.c.b16 %v3608, %v3606
        %v5231 = vpack.c.b16 %v3611, %v3609
        %v5232 = vpack.c.b16 %v3612, %v3610
        %v5233 = vpack.c.b16 %v3615, %v3613
        %v5234 = vpack.c.b16 %v3616, %v3614
        %v5235 = vpack.c.b16 %v3619, %v3617
        %v5236 = vpack.c.b16 %v3620, %v3618
        %v5237 = vpack.c.b16 %v3623, %v3621
        %v5238 = vpack.c.b16 %v3624, %v3622
        %v5239 = vpack.c.b16 %v3627, %v3625
        %v5240 = vpack.c.b16 %v3628, %v3626
        %v5241 = vpack.c.b16 %v3631, %v3629
        %v5242 = vpack.c.b16 %v3632, %v3630
        %v5243 = vpack.c.b16 %v3635, %v3633
        %v5244 = vpack.c.b16 %v3636, %v3634
        %v5245 = vpack.c.b16 %v3639, %v3637
        %v5246 = vpack.c.b16 %v3640, %v3638
        %v5247 = vpack.c.b16 %v3643, %v3641
        %v5248 = vpack.c.b16 %v3644, %v3642
        %v5249 = vpack.c.b16 %v3647, %v3645
        %v5250 = vpack.c.b16 %v3648, %v3646
        %v5251 = vpack.c.b16 %v3651, %v3649
        %v5252 = vpack.c.b16 %v3652, %v3650
        %v5253 = vpack.c.b16 %v3655, %v3653
        %v5254 = vpack.c.b16 %v3656, %v3654
        %v5255 = vpack.c.b16 %v3659, %v3657
        %v5256 = vpack.c.b16 %v3660, %v3658
        %v5257 = vpack.c.b16 %v3663, %v3661
        %v5258 = vpack.c.b16 %v3664, %v3662
        %v5259 = vpack.c.b16 %v3667, %v3665
        %v5260 = vpack.c.b16 %v3668, %v3666
        %v5261 = vpack.c.b16 %v3671, %v3669
        %v5262 = vpack.c.b16 %v3672, %v3670
        %v5263 = vpack.c.b16 %v3675, %v3673
        %v5264 = vpack.c.b16 %v3676, %v3674
        %v5265 = vpack.c.b16 %v3679, %v3677
        %v5266 = vpack.c.b16 %v3680, %v3678
        %v5267 = vpack.c.b16 %v3683, %v3681
        %v5268 = vpack.c.b16 %v3684, %v3682
        %v5269 = vpack.c.b16 %v3687, %v3685
        %v5270 = vpack.c.b16 %v3688, %v3686
        %v5271 = vpack.c.b16 %v3691, %v3689
        %v5272 = vpack.c.b16 %v3692, %v3690
        %v5273 = vpack.c.b16 %v3695, %v3693
        %v5274 = vpack.c.b16 %v3696, %v3694
        %v5275 = vpack.c.b16 %v3699, %v3697
        %v5276 = vpack.c.b16 %v3700, %v3698
        %v5277 = vpack.c.b16 %v3703, %v3701
        %v5278 = vpack.c.b16 %v3704, %v3702
        %v5279 = vpack.c.b16 %v3707, %v3705
        %v5280 = vpack.c.b16 %v3708, %v3706
        %v5281 = vpack.c.b16 %v3711, %v3709
        %v5282 = vpack.c.b16 %v3712, %v3710
        %v5283 = vpack.c.b16 %v3715, %v3713
        %v5284 = vpack.c.b16 %v3716, %v3714
        %v5285 = vpack.c.b16 %v3719, %v3717
        %v5286 = vpack.c.b16 %v3720, %v3718
        %v5287 = vpack.c.b16 %v3723, %v3721
        %v5288 = vpack.c.b16 %v3724, %v3722
        %v5289 = vpack.c.b16 %v3727, %v3725
        %v5290 = vpack.c.b16 %v3728, %v3726
        %v5291 = vpack.c.b16 %v3731, %v3729
        %v5292 = vpack.c.b16 %v3732, %v3730
        %v5293 = vpack.c.b16 %v3735, %v3733
        %v5294 = vpack.c.b16 %v3736, %v3734
        %v5295 = vpack.c.b16 %v3739, %v3737
        %v5296 = vpack.c.b16 %v3740, %v3738
        %v5297 = vpack.c.b16 %v3743, %v3741
        %v5298 = vpack.c.b16 %v3744, %v3742
        %v5299 = vpack.c.b16 %v3747, %v3745
        %v5300 = vpack.c.b16 %v3748, %v3746
        %v5301 = vpack.c.b16 %v3751, %v3749
        %v5302 = vpack.c.b16 %v3752, %v3750
        %v5303 = vpack.c.b16 %v3755, %v3753
        %v5304 = vpack.c.b16 %v3756, %v3754
        %v5305 = vpack.c.b16 %v3759, %v3757
        %v5306 = vpack.c.b16 %v3760, %v3758
        %v5307 = vpack.c.b16 %v3763, %v3761
        %v5308 = vpack.c.b16 %v3764, %v3762
        %v5309 = vpack.c.b16 %v3767, %v3765
        %v5310 = vpack.c.b16 %v3768, %v3766
        %v5311 = vpack.c.b16 %v3771, %v3769
        %v5312 = vpack.c.b16 %v3772, %v3770
        %v5313 = vpack.c.b16 %v3775, %v3773
        %v5314 = vpack.c.b16 %v3776, %v3774
        %v5315 = vpack.c.b16 %v3779, %v3777
        %v5316 = vpack.c.b16 %v3780, %v3778
        %v5317 = vpack.c.b16 %v3783, %v3781
        %v5318 = vpack.c.b16 %v3784, %v3782
        %v5319 = vpack.c.b16 %v3787, %v3785
        %v5320 = vpack.c.b16 %v3788, %v3786
        %v5321 = vpack.c.b16 %v3791, %v3789
        %v5322 = vpack.c.b16 %v3792, %v3790
        %v5323 = vpack.c.b16 %v3795, %v3793
        %v5324 = vpack.c.b16 %v3796, %v3794
        %v5325 = vpack.c.b16 %v3799, %v3797
        %v5326 = vpack.c.b16 %v3800, %v3798
        %v5327 = vpack.c.b16 %v3803, %v3801
        %v5328 = vpack.c.b16 %v3804, %v3802
        %v5329 = vpack.c.b16 %v3807, %v3805
        %v5330 = vpack.c.b16 %v3808, %v3806
        %v5331 = vpack.c.b16 %v3811, %v3809
        %v5332 = vpack.c.b16 %v3812, %v3810
        %v5333 = vpack.c.b16 %v3815, %v3813
        %v5334 = vpack.c.b16 %v3816, %v3814
        %v5335 = vpack.c.b16 %v3819, %v3817
        %v5336 = vpack.c.b16 %v3820, %v3818
        %v5337 = vpack.c.b16 %v3823, %v3821
        %v5338 = vpack.c.b16 %v3824, %v3822
        %v5339 = vpack.c.b16 %v3827, %v3825
        %v5340 = vpack.c.b16 %v3828, %v3826
        %v5341 = vpack.c.b16 %v3831, %v3829
        %v5342 = vpack.c.b16 %v3832, %v3830
        %v5343 = vpack.c.b16 %v3835, %v3833
        %v5344 = vpack.c.b16 %v3836, %v3834
        %v5345 = vpack.c.b16 %v3839, %v3837
        %v5346 = vpack.c.b16 %v3840, %v3838
        %v5347 = vpack.c.b16 %v3843, %v3841
        %v5348 = vpack.c.b16 %v3844, %v3842
        %v5349 = vpack.c.b16 %v3847, %v3845
        %v5350 = vpack.c.b16 %v3848, %v3846
        %v5351 = vpack.c.b16 %v3851, %v3849
        %v5352 = vpack.c.b16 %v3852, %v3850
        %v5353 = vpack.c.b16 %v3855, %v3853
        %v5354 = vpack.c.b16 %v3856, %v3854
        %v5355 = vpack.c.b16 %v3859, %v3857
        %v5356 = vpack.c.b16 %v3860, %v3858
        %v5357 = vpack.c.b16 %v3863, %v3861
        %v5358 = vpack.c.b16 %v3864, %v3862
        %v5359 = vpack.c.b16 %v3867, %v3865
        %v5360 = vpack.c.b16 %v3868, %v3866
        %v5361 = vpack.c.b16 %v3871, %v3869
        %v5362 = vpack.c.b16 %v3872, %v3870
        %v5363 = vpack.c.b16 %v3875, %v3873
        %v5364 = vpack.c.b16 %v3876, %v3874
        %v5365 = vpack.c.b16 %v3879, %v3877
        %v5366 = vpack.c.b16 %v3880, %v3878
        %v5367 = vpack.c.b16 %v3883, %v3881
        %v5368 = vpack.c.b16 %v3884, %v3882
        %v5369 = vpack.c.b16 %v3887, %v3885
        %v5370 = vpack.c.b16 %v3888, %v3886
        %v5371 = vpack.c.b16 %v3891, %v3889
        %v5372 = vpack.c.b16 %v3892, %v3890
        %v5373 = vpack.c.b16 %v3895, %v3893
        %v5374 = vpack.c.b16 %v3896, %v3894
        %v5375 = vpack.c.b16 %v3899, %v3897
        %v5376 = vpack.c.b16 %v3900, %v3898
        %v5377 = vpack.c.b16 %v3903, %v3901
        %v5378 = vpack.c.b16 %v3904, %v3902
        %v5379 = vpack.c.b16 %v3907, %v3905
        %v5380 = vpack.c.b16 %v3908, %v3906
        %v5381 = vpack.c.b16 %v3911, %v3909
        %v5382 = vpack.c.b16 %v3912, %v3910
        %v5383 = vpack.c.b16 %v3915, %v3913
        %v5384 = vpack.c.b16 %v3916, %v3914
        %v5385 = vpack.c.b16 %v3919, %v3917
        %v5386 = vpack.c.b16 %v3920, %v3918
        %v5387 = vpack.c.b16 %v3923, %v3921
        %v5388 = vpack.c.b16 %v3924, %v3922
        %v5389 = vpack.c.b16 %v3927, %v3925
        %v5390 = vpack.c.b16 %v3928, %v3926
        %v5391 = vpack.c.b16 %v3931, %v3929
        %v5392 = vpack.c.b16 %v3932, %v3930
        %v5393 = vpack.c.b16 %v3935, %v3933
        %v5394 = vpack.c.b16 %v3936, %v3934
        %v5395 = vpack.c.b16 %v3939, %v3937
        %v5396 = vpack.c.b16 %v3940, %v3938
        %v5397 = vpack.c.b16 %v3943, %v3941
        %v5398 = vpack.c.b16 %v3944, %v3942
        %v5399 = vpack.c.b16 %v3947, %v3945
        %v5400 = vpack.c.b16 %v3948, %v3946
        %v5401 = vpack.c.b16 %v3951, %v3949
        %v5402 = vpack.c.b16 %v3952, %v3950
        %v5403 = vpack.c.b16 %v3955, %v3953
        %v5404 = vpack.c.b16 %v3956, %v3954
        %v5405 = vpack.c.b16 %v3959, %v3957
        %v5406 = vpack.c.b16 %v3960, %v3958
        %v5407 = vpack.c.b16 %v3963, %v3961
        %v5408 = vpack.c.b16 %v3964, %v3962
        %v5409 = vpack.c.b16 %v3967, %v3965
        %v5410 = vpack.c.b16 %v3968, %v3966
        %v5411 = vpack.c.b16 %v3971, %v3969
        %v5412 = vpack.c.b16 %v3972, %v3970
        %v5413 = vpack.c.b16 %v3975, %v3973
        %v5414 = vpack.c.b16 %v3976, %v3974
        %v5415 = vpack.c.b16 %v3979, %v3977
        %v5416 = vpack.c.b16 %v3980, %v3978
        %v5417 = vpack.c.b16 %v3983, %v3981
        %v5418 = vpack.c.b16 %v3984, %v3982
        %v5419 = vpack.c.b16 %v3987, %v3985
        %v5420 = vpack.c.b16 %v3988, %v3986
        %v5421 = vpack.c.b16 %v3991, %v3989
        %v5422 = vpack.c.b16 %v3992, %v3990
        %v5423 = vpack.c.b16 %v3995, %v3993
        %v5424 = vpack.c.b16 %v3996, %v3994
        %v5425 = vpack.c.b16 %v3999, %v3997
        %v5426 = vpack.c.b16 %v4000, %v3998
        %v5427 = vpack.c.b16 %v4003, %v4001
        %v5428 = vpack.c.b16 %v4004, %v4002
        %v5429 = vpack.c.b16 %v4007, %v4005
        %v5430 = vpack.c.b16 %v4008, %v4006
        %v5431 = vpack.c.b16 %v4011, %v4009
        %v5432 = vpack.c.b16 %v4012, %v4010
        %v5433 = vpack.c.b16 %v4015, %v4013
        %v5434 = vpack.c.b16 %v4016, %v4014
        %v5435 = vpack.c.b16 %v4019, %v4017
        %v5436 = vpack.c.b16 %v4020, %v4018
        %v5437 = vpack.c.b16 %v4023, %v4021
        %v5438 = vpack.c.b16 %v4024, %v4022
        %v5439 = vpack.c.b16 %v4027, %v4025
        %v5440 = vpack.c.b16 %v4028, %v4026
        %v5441 = vpack.c.b16 %v4031, %v4029
        %v5442 = vpack.c.b16 %v4032, %v4030
        %v5443 = vpack.c.b16 %v4035, %v4033
        %v5444 = vpack.c.b16 %v4036, %v4034
        %v5445 = vpack.c.b16 %v4039, %v4037
        %v5446 = vpack.c.b16 %v4040, %v4038
        %v5447 = vpack.c.b16 %v4043, %v4041
        %v5448 = vpack.c.b16 %v4044, %v4042
        %v5449 = vpack.c.b16 %v4047, %v4045
        %v5450 = vpack.c.b16 %v4048, %v4046
        %v5451 = vpack.c.b16 %v4051, %v4049
        %v5452 = vpack.c.b16 %v4052, %v4050
        %v5453 = vpack.c.b16 %v4055, %v4053
        %v5454 = vpack.c.b16 %v4056, %v4054
        %v5455 = vpack.c.b16 %v4059, %v4057
        %v5456 = vpack.c.b16 %v4060, %v4058
        %v5457 = vpack.c.b16 %v4063, %v4061
        %v5458 = vpack.c.b16 %v4064, %v4062
        %v5459 = vpack.c.b16 %v4067, %v4065
        %v5460 = vpack.c.b16 %v4068, %v4066
        %v5461 = vpack.c.b16 %v4071, %v4069
        %v5462 = vpack.c.b16 %v4072, %v4070
        %v5463 = vpack.c.b16 %v4075, %v4073
        %v5464 = vpack.c.b16 %v4076, %v4074
        %v5465 = vpack.c.b16 %v4079, %v4077
        %v5466 = vpack.c.b16 %v4080, %v4078
        %v5467 = vpack.c.b16 %v4083, %v4081
        %v5468 = vpack.c.b16 %v4084, %v4082
        %v5469 = vpack.c.b16 %v4087, %v4085
        %v5470 = vpack.c.b16 %v4088, %v4086
        %v5471 = vpack.c.b16 %v4091, %v4089
        %v5472 = vpack.c.b16 %v4092, %v4090
        %v5473 = vpack.c.b16 %v4095, %v4093
        %v5474 = vpack.c.b16 %v4096, %v4094
        %v5475 = vpack.c.b16 %v4099, %v4097
        %v5476 = vpack.c.b16 %v4100, %v4098
        %v5477 = vpack.c.b16 %v4103, %v4101
        %v5478 = vpack.c.b16 %v4104, %v4102
        %v5479 = vpack.c.b16 %v4107, %v4105
        %v5480 = vpack.c.b16 %v4108, %v4106
        %v5481 = vpack.c.b16 %v4111, %v4109
        %v5482 = vpack.c.b16 %v4112, %v4110
        %v5483 = vpack.c.b16 %v4115, %v4113
        %v5484 = vpack.c.b16 %v4116, %v4114
        %v5485 = vpack.c.b16 %v4119, %v4117
        %v5486 = vpack.c.b16 %v4120, %v4118
        %v5487 = vpack.c.b16 %v4123, %v4121
        %v5488 = vpack.c.b16 %v4124, %v4122
        %v5489 = vpack.c.b16 %v4127, %v4125
        %v5490 = vpack.c.b16 %v4128, %v4126
        %v5491 = vpack.c.b16 %v4131, %v4129
        %v5492 = vpack.c.b16 %v4132, %v4130
        %v5493 = vpack.c.b16 %v4135, %v4133
        %v5494 = vpack.c.b16 %v4136, %v4134
        %v5495 = vpack.c.b16 %v4139, %v4137
        %v5496 = vpack.c.b16 %v4140, %v4138
        %v5497 = vpack.c.b16 %v4143, %v4141
        %v5498 = vpack.c.b16 %v4144, %v4142
        %v5499 = vpack.c.b16 %v4147, %v4145
        %v5500 = vpack.c.b16 %v4148, %v4146
        %v5501 = vpack.c.b16 %v4151, %v4149
        %v5502 = vpack.c.b16 %v4152, %v4150
        %v5503 = vpack.c.b16 %v4155, %v4153
        %v5504 = vpack.c.b16 %v4156, %v4154
        %v5505 = vpack.c.b16 %v4159, %v4157
        %v5506 = vpack.c.b16 %v4160, %v4158
        %v5507 = vpack.c.b16 %v4163, %v4161
        %v5508 = vpack.c.b16 %v4164, %v4162
        %v5509 = vpack.c.b16 %v4167, %v4165
        %v5510 = vpack.c.b16 %v4168, %v4166
        %v5511 = vpack.c.b16 %v4171, %v4169
        %v5512 = vpack.c.b16 %v4172, %v4170
        %v5513 = vpack.c.b16 %v4175, %v4173
        %v5514 = vpack.c.b16 %v4176, %v4174
        %v5515 = vpack.c.b16 %v4179, %v4177
        %v5516 = vpack.c.b16 %v4180, %v4178
        %v5517 = vpack.c.b16 %v4183, %v4181
        %v5518 = vpack.c.b16 %v4184, %v4182
        %v5519 = vpack.c.b16 %v4187, %v4185
        %v5520 = vpack.c.b16 %v4188, %v4186
        %v5521 = vpack.c.b16 %v4191, %v4189
        %v5522 = vpack.c.b16 %v4192, %v4190
        %v5523 = vpack.c.b16 %v4195, %v4193
        %v5524 = vpack.c.b16 %v4196, %v4194
        %v5525 = vpack.c.b16 %v4199, %v4197
        %v5526 = vpack.c.b16 %v4200, %v4198
        %v5527 = vpack.c.b16 %v4203, %v4201
        %v5528 = vpack.c.b16 %v4204, %v4202
        %v5529 = vpack.c.b16 %v4207, %v4205
        %v5530 = vpack.c.b16 %v4208, %v4206
        %v5531 = vpack.c.b16 %v4211, %v4209
        %v5532 = vpack.c.b16 %v4212, %v4210
        %v5533 = vpack.c.b16 %v4215, %v4213
        %v5534 = vpack.c.b16 %v4216, %v4214
        %v5535 = vpack.c.b16 %v4219, %v4217
        %v5536 = vpack.c.b16 %v4220, %v4218
        %v5537 = vpack.c.b16 %v4223, %v4221
        %v5538 = vpack.c.b16 %v4224, %v4222
        %v5539 = vpack.c.b16 %v4227, %v4225
        %v5540 = vpack.c.b16 %v4228, %v4226
        %v5541 = vpack.c.b16 %v4231, %v4229
        %v5542 = vpack.c.b16 %v4232, %v4230
        %v5543 = vpack.c.b16 %v4235, %v4233
        %v5544 = vpack.c.b16 %v4236, %v4234
        %v5545 = vpack.c.b16 %v4239, %v4237
        %v5546 = vpack.c.b16 %v4240, %v4238
        %v5547 = vpack.c.b16 %v4243, %v4241
        %v5548 = vpack.c.b16 %v4244, %v4242
        %v5549 = vpack.c.b16 %v4247, %v4245
        %v5550 = vpack.c.b16 %v4248, %v4246
        %v5551 = vpack.c.b16 %v4251, %v4249
        %v5552 = vpack.c.b16 %v4252, %v4250
        %v5553 = vpack.c.b16 %v4255, %v4253
        %v5554 = vpack.c.b16 %v4256, %v4254
        %v5555 = vpack.c.b16 %v4259, %v4257
        %v5556 = vpack.c.b16 %v4260, %v4258
        %v5557 = vpack.c.b16 %v4263, %v4261
        %v5558 = vpack.c.b16 %v4264, %v4262
        %v5559 = vpack.c.b16 %v4267, %v4265
        %v5560 = vpack.c.b16 %v4268, %v4266
        %v5561 = vpack.c.b16 %v4271, %v4269
        %v5562 = vpack.c.b16 %v4272, %v4270
        %v5563 = vpack.c.b16 %v4275, %v4273
        %v5564 = vpack.c.b16 %v4276, %v4274
        %v5565 = vpack.c.b16 %v4279, %v4277
        %v5566 = vpack.c.b16 %v4280, %v4278
        %v5567 = vpack.c.b16 %v4283, %v4281
        %v5568 = vpack.c.b16 %v4284, %v4282
        %v5569 = vpack.c.b16 %v4287, %v4285
        %v5570 = vpack.c.b16 %v4288, %v4286
        %v5571 = vpack.c.b16 %v4291, %v4289
        %v5572 = vpack.c.b16 %v4292, %v4290
        %v5573 = vpack.c.b16 %v4295, %v4293
        %v5574 = vpack.c.b16 %v4296, %v4294
        %v5575 = vpack.c.b16 %v4299, %v4297
        %v5576 = vpack.c.b16 %v4300, %v4298
        %v5577 = vpack.c.b16 %v4303, %v4301
        %v5578 = vpack.c.b16 %v4304, %v4302
        %v5579 = vpack.c.b16 %v4307, %v4305
        %v5580 = vpack.c.b16 %v4308, %v4306
        %v5581 = vpack.c.b16 %v4311, %v4309
        %v5582 = vpack.c.b16 %v4312, %v4310
        %v5583 = vpack.c.b16 %v4315, %v4313
        %v5584 = vpack.c.b16 %v4316, %v4314
        %v5585 = vpack.c.b16 %v4319, %v4317
        %v5586 = vpack.c.b16 %v4320, %v4318
        %v5587 = vpack.c.b16 %v4323, %v4321
        %v5588 = vpack.c.b16 %v4324, %v4322
        %v5589 = vpack.c.b16 %v4327, %v4325
        %v5590 = vpack.c.b16 %v4328, %v4326
        %v5591 = vpack.c.b16 %v4331, %v4329
        %v5592 = vpack.c.b16 %v4332, %v4330
        %v5593 = vpack.c.b16 %v4335, %v4333
        %v5594 = vpack.c.b16 %v4336, %v4334
        %v5595 = vpack.c.b16 %v4339, %v4337
        %v5596 = vpack.c.b16 %v4340, %v4338
        %v5597 = vpack.c.b16 %v4343, %v4341
        %v5598 = vpack.c.b16 %v4344, %v4342
        %v5599 = vpack.c.b16 %v4347, %v4345
        %v5600 = vpack.c.b16 %v4348, %v4346
        %v5601 = vpack.c.b16 %v4351, %v4349
        %v5602 = vpack.c.b16 %v4352, %v4350
        %v5603 = vpack.c.b16 %v4355, %v4353
        %v5604 = vpack.c.b16 %v4356, %v4354
        %v5605 = vpack.c.b16 %v4359, %v4357
        %v5606 = vpack.c.b16 %v4360, %v4358
        %v5607 = vpack.c.b16 %v4363, %v4361
        %v5608 = vpack.c.b16 %v4364, %v4362
        %v5609 = vpack.c.b16 %v4367, %v4365
        %v5610 = vpack.c.b16 %v4368, %v4366
        %v5611 = vpack.c.b16 %v4371, %v4369
        %v5612 = vpack.c.b16 %v4372, %v4370
        %v5613 = vpack.c.b16 %v4375, %v4373
        %v5614 = vpack.c.b16 %v4376, %v4374
        %v5615 = vpack.c.b16 %v4379, %v4377
        %v5616 = vpack.c.b16 %v4380, %v4378
        %v5617 = vpack.c.b16 %v4383, %v4381
        %v5618 = vpack.c.b16 %v4384, %v4382
        %v5619 = vpack.c.b16 %v4387, %v4385
        %v5620 = vpack.c.b16 %v4388, %v4386
        %v5621 = vpack.c.b16 %v4391, %v4389
        %v5622 = vpack.c.b16 %v4392, %v4390
        %v5623 = vpack.c.b16 %v4395, %v4393
        %v5624 = vpack.c.b16 %v4396, %v4394
        %v5625 = vpack.c.b16 %v4399, %v4397
        %v5626 = vpack.c.b16 %v4400, %v4398
        %v5627 = vpack.c.b16 %v4403, %v4401
        %v5628 = vpack.c.b16 %v4404, %v4402
        %v5629 = vpack.c.b16 %v4407, %v4405
        %v5630 = vpack.c.b16 %v4408, %v4406
        %v5631 = vpack.c.b16 %v4411, %v4409
        %v5632 = vpack.c.b16 %v4412, %v4410
        %v5633 = vpack.c.b16 %v4415, %v4413
        %v5634 = vpack.c.b16 %v4416, %v4414
        %v5635 = vpack.c.b16 %v4419, %v4417
        %v5636 = vpack.c.b16 %v4420, %v4418
        %v5637 = vpack.c.b16 %v4423, %v4421
        %v5638 = vpack.c.b16 %v4424, %v4422
        %v5639 = vpack.c.b16 %v4427, %v4425
        %v5640 = vpack.c.b16 %v4428, %v4426
        %v5641 = vpack.c.b16 %v4431, %v4429
        %v5642 = vpack.c.b16 %v4432, %v4430
        %v5643 = vpack.c.b16 %v4435, %v4433
        %v5644 = vpack.c.b16 %v4436, %v4434
        %v5645 = vpack.c.b16 %v4439, %v4437
        %v5646 = vpack.c.b16 %v4440, %v4438
        %v5647 = vpack.c.b16 %v4443, %v4441
        %v5648 = vpack.c.b16 %v4444, %v4442
        %v5649 = vpack.c.b16 %v4447, %v4445
        %v5650 = vpack.c.b16 %v4448, %v4446
        %v5651 = vpack.c.b16 %v4451, %v4449
        %v5652 = vpack.c.b16 %v4452, %v4450
        %v5653 = vpack.c.b16 %v4455, %v4453
        %v5654 = vpack.c.b16 %v4456, %v4454
        %v5655 = vpack.c.b16 %v4459, %v4457
        %v5656 = vpack.c.b16 %v4460, %v4458
        %v5657 = vpack.c.b16 %v4463, %v4461
        %v5658 = vpack.c.b16 %v4464, %v4462
        %v5659 = vpack.c.b16 %v4467, %v4465
        %v5660 = vpack.c.b16 %v4468, %v4466
        %v5661 = vpack.c.b16 %v4471, %v4469
        %v5662 = vpack.c.b16 %v4472, %v4470
        %v5663 = vpack.c.b16 %v4475, %v4473
        %v5664 = vpack.c.b16 %v4476, %v4474
        %v5665 = vpack.c.b16 %v4479, %v4477
        %v5666 = vpack.c.b16 %v4480, %v4478
        %v5667 = vpack.c.b16 %v4483, %v4481
        %v5668 = vpack.c.b16 %v4484, %v4482
        %v5669 = vpack.c.b16 %v4487, %v4485
        %v5670 = vpack.c.b16 %v4488, %v4486
        %v5671 = vpack.c.b16 %v4491, %v4489
        %v5672 = vpack.c.b16 %v4492, %v4490
        %v5673 = vpack.c.b16 %v4495, %v4493
        %v5674 = vpack.c.b16 %v4496, %v4494
        %v5675 = vpack.c.b16 %v4499, %v4497
        %v5676 = vpack.c.b16 %v4500, %v4498
        %v5677 = vpack.c.b16 %v4503, %v4501
        %v5678 = vpack.c.b16 %v4504, %v4502
        %v5679 = vpack.c.b16 %v4507, %v4505
        %v5680 = vpack.c.b16 %v4508, %v4506
        %v5681 = vpack.c.b16 %v4511, %v4509
        %v5682 = vpack.c.b16 %v4512, %v4510
        %v5683 = vpack.c.b16 %v4515, %v4513
        %v5684 = vpack.c.b16 %v4516, %v4514
        %v5685 = vpack.c.b16 %v4519, %v4517
        %v5686 = vpack.c.b16 %v4520, %v4518
        %v5687 = vpack.c.b16 %v4523, %v4521
        %v5688 = vpack.c.b16 %v4524, %v4522
        %v5689 = vpack.c.b16 %v4527, %v4525
        %v5690 = vpack.c.b16 %v4528, %v4526
        %v5691 = vpack.c.b16 %v4531, %v4529
        %v5692 = vpack.c.b16 %v4532, %v4530
        %v5693 = vpack.c.b16 %v4535, %v4533
        %v5694 = vpack.c.b16 %v4536, %v4534
        %v5695 = vpack.c.b16 %v4539, %v4537
        %v5696 = vpack.c.b16 %v4540, %v4538
        %v5697 = vpack.c.b16 %v4543, %v4541
        %v5698 = vpack.c.b16 %v4544, %v4542
        %v5699 = vpack.c.b16 %v4547, %v4545
        %v5700 = vpack.c.b16 %v4548, %v4546
        %v5701 = vpack.c.b16 %v4551, %v4549
        %v5702 = vpack.c.b16 %v4552, %v4550
        %v5703 = vpack.c.b16 %v4555, %v4553
        %v5704 = vpack.c.b16 %v4556, %v4554
        %v5705 = vpack.c.b16 %v4559, %v4557
        %v5706 = vpack.c.b16 %v4560, %v4558
        %v5707 = vpack.c.b16 %v4563, %v4561
        %v5708 = vpack.c.b16 %v4564, %v4562
        %v5709 = vpack.c.b16 %v4567, %v4565
        %v5710 = vpack.c.b16 %v4568, %v4566
        %v5711 = vpack.c.b16 %v4571, %v4569
        %v5712 = vpack.c.b16 %v4572, %v4570
        %v5713 = vpack.c.b16 %v4575, %v4573
        %v5714 = vpack.c.b16 %v4576, %v4574
        %v5715 = vpack.c.b16 %v4579, %v4577
        %v5716 = vpack.c.b16 %v4580, %v4578
        %v5717 = vpack.c.b16 %v4583, %v4581
        %v5718 = vpack.c.b16 %v4584, %v4582
        %v5719 = vpack.c.b16 %v4587, %v4585
        %v5720 = vpack.c.b16 %v4588, %v4586
        %v5721 = vpack.c.b16 %v4591, %v4589
        %v5722 = vpack.c.b16 %v4592, %v4590
        %v5723 = vpack.c.b16 %v4595, %v4593
        %v5724 = vpack.c.b16 %v4596, %v4594
        %v5725 = vpack.c.b16 %v4599, %v4597
        %v5726 = vpack.c.b16 %v4600, %v4598
        %v5727 = vpack.c.b16 %v4603, %v4601
        %v5728 = vpack.c.b16 %v4604, %v4602
        %v5729 = vpack.c.b16 %v4607, %v4605
        %v5730 = vpack.c.b16 %v4608, %v4606
        %v5731 = vpack.c.b16 %v4611, %v4609
        %v5732 = vpack.c.b16 %v4612, %v4610
        %v5733 = vpack.c.b16 %v4615, %v4613
        %v5734 = vpack.c.b16 %v4616, %v4614
        %v5735 = vpack.c.b16 %v4619, %v4617
        %v5736 = vpack.c.b16 %v4620, %v4618
        %v5737 = vpack.c.b16 %v4623, %v4621
        %v5738 = vpack.c.b16 %v4624, %v4622
        %v5739 = vpack.c.b16 %v4627, %v4625
        %v5740 = vpack.c.b16 %v4628, %v4626
        %v5741 = vpack.c.b16 %v4631, %v4629
        %v5742 = vpack.c.b16 %v4632, %v4630
        %v5743 = vpack.c.b16 %v4635, %v4633
        %v5744 = vpack.c.b16 %v4636, %v4634
        %v5745 = vpack.c.b16 %v4639, %v4637
        %v5746 = vpack.c.b16 %v4640, %v4638
        %v5747 = vpack.c.b16 %v4643, %v4641
        %v5748 = vpack.c.b16 %v4644, %v4642
        %v5749 = vpack.c.b16 %v4647, %v4645
        %v5750 = vpack.c.b16 %v4648, %v4646
        %v5751 = vpack.c.b16 %v4651, %v4649
        %v5752 = vpack.c.b16 %v4652, %v4650
        %v5753 = vpack.c.b16 %v4655, %v4653
        %v5754 = vpack.c.b16 %v4656, %v4654
        %v5755 = vpack.c.b16 %v4659, %v4657
        %v5756 = vpack.c.b16 %v4660, %v4658
        %v5757 = vpack.c.b16 %v4663, %v4661
        %v5758 = vpack.c.b16 %v4664, %v4662
        %v5759 = vpack.c.b16 %v4667, %v4665
        %v5760 = vpack.c.b16 %v4668, %v4666
        %v5761 = vpack.c.b16 %v4671, %v4669
        %v5762 = vpack.c.b16 %v4672, %v4670
        %v5763 = vpack.c.b16 %v4675, %v4673
        %v5764 = vpack.c.b16 %v4676, %v4674
        %v5765 = vpack.c.b16 %v4679, %v4677
        %v5766 = vpack.c.b16 %v4680, %v4678
        %v5767 = vpack.c.b16 %v4683, %v4681
        %v5768 = vpack.c.b16 %v4684, %v4682
        %v5769 = vpack.c.b16 %v4687, %v4685
        %v5770 = vpack.c.b16 %v4688, %v4686
        %v5771 = vpack.c.b16 %v4691, %v4689
        %v5772 = vpack.c.b16 %v4692, %v4690
        %v5773 = vpack.c.b16 %v4695, %v4693
        %v5774 = vpack.c.b16 %v4696, %v4694
        %v5775 = vpack.c.b16 %v4699, %v4697
        %v5776 = vpack.c.b16 %v4700, %v4698
        %v5777 = vpack.c.b16 %v4703, %v4701
        %v5778 = vpack.c.b16 %v4704, %v4702
        %v5779 = vpack.c.b16 %v4707, %v4705
        %v5780 = vpack.c.b16 %v4708, %v4706
        %v5781 = vpack.c.b16 %v4711, %v4709
        %v5782 = vpack.c.b16 %v4712, %v4710
        %v5783 = vpack.c.b16 %v4715, %v4713
        %v5784 = vpack.c.b16 %v4716, %v4714
        %v5785 = vpack.c.b16 %v4719, %v4717
        %v5786 = vpack.c.b16 %v4720, %v4718
        %v5787 = vpack.c.b16 %v4723, %v4721
        %v5788 = vpack.c.b16 %v4724, %v4722
        %v5789 = vpack.c.b16 %v4727, %v4725
        %v5790 = vpack.c.b16 %v4728, %v4726
        %v5791 = vpack.c.b16 %v4731, %v4729
        %v5792 = vpack.c.b16 %v4732, %v4730
        %v5793 = vpack.c.b16 %v4735, %v4733
        %v5794 = vpack.c.b16 %v4736, %v4734
        %v5795 = vpack.c.b16 %v4739, %v4737
        %v5796 = vpack.c.b16 %v4740, %v4738
        %v5797 = vpack.c.b16 %v4743, %v4741
        %v5798 = vpack.c.b16 %v4744, %v4742
        %v5799 = vpack.c.b16 %v4747, %v4745
        %v5800 = vpack.c.b16 %v4748, %v4746
        %v5801 = vpack.c.b16 %v4751, %v4749
        %v5802 = vpack.c.b16 %v4752, %v4750
        %v5803 = vpack.c.b16 %v4755, %v4753
        %v5804 = vpack.c.b16 %v4756, %v4754
        %v5805 = vpack.c.b16 %v4759, %v4757
        %v5806 = vpack.c.b16 %v4760, %v4758
        %v5807 = vpack.c.b16 %v4763, %v4761
        %v5808 = vpack.c.b16 %v4764, %v4762
        %v5809 = vpack.c.b16 %v4767, %v4765
        %v5810 = vpack.c.b16 %v4768, %v4766
        %v5811 = vpack.c.b16 %v4771, %v4769
        %v5812 = vpack.c.b16 %v4772, %v4770
        %v5813 = vpack.c.b16 %v4775, %v4773
        %v5814 = vpack.c.b16 %v4776, %v4774
        %v5815 = vpack.c.b16 %v4779, %v4777
        %v5816 = vpack.c.b16 %v4780, %v4778
        %v5817 = vpack.c.b16 %v4783, %v4781
        %v5818 = vpack.c.b16 %v4784, %v4782
        %v5819 = vpack.c.b16 %v4787, %v4785
        %v5820 = vpack.c.b16 %v4788, %v4786
        %v5821 = vpack.c.b16 %v4791, %v4789
        %v5822 = vpack.c.b16 %v4792, %v4790
        %v5823 = vpack.c.b16 %v4795, %v4793
        %v5824 = vpack.c.b16 %v4796, %v4794
        %v5825 = vpack.c.b16 %v4799, %v4797
        %v5826 = vpack.c.b16 %v4800, %v4798
        %v5827 = vpack.c.b16 %v4803, %v4801
        %v5828 = vpack.c.b16 %v4804, %v4802
        %6853 = vmatprep.subr.bf16.mxu0 %v4806
        %6854 = vmatpush1.bf16.msra.mxu0 %v4805
        %6855 = vmatprep.subr.bf16.mxu0 %v4808
        %6856 = vmatpush1.bf16.msra.mxu0 %v4807
        %6857 = vmatprep.subr.bf16.mxu0 %v4810
        %6858 = vmatpush1.bf16.msra.mxu0 %v4809
        %6859 = vmatprep.subr.bf16.mxu0 %v4812
        %6860 = vmatpush1.bf16.msra.mxu0 %v4811
        %6861 = vmatprep.subr.bf16.mxu0 %v4814
        %6862 = vmatpush1.bf16.msra.mxu0 %v4813
        %6863 = vmatprep.subr.bf16.mxu0 %v4816
        %6864 = vmatpush1.bf16.msra.mxu0 %v4815
        %6865 = vmatprep.subr.bf16.mxu0 %v4818
        %6866 = vmatpush1.bf16.msra.mxu0 %v4817
        %6867 = vmatprep.subr.bf16.mxu0 %v4820
        %6868 = vmatpush1.bf16.msra.mxu0 %v4819
        %6869 = vmatprep.subr.bf16.mxu0 %v4822
        %6870 = vmatpush1.bf16.msra.mxu0 %v4821
        %6871 = vmatprep.subr.bf16.mxu0 %v4824
        %6872 = vmatpush1.bf16.msra.mxu0 %v4823
        %6873 = vmatprep.subr.bf16.mxu0 %v4826
        %6874 = vmatpush1.bf16.msra.mxu0 %v4825
        %6875 = vmatprep.subr.bf16.mxu0 %v4828
        %6876 = vmatpush1.bf16.msra.mxu0 %v4827
        %6877 = vmatprep.subr.bf16.mxu0 %v4830
        %6878 = vmatpush1.bf16.msra.mxu0 %v4829
        %6879 = vmatprep.subr.bf16.mxu0 %v4832
        %6880 = vmatpush1.bf16.msra.mxu0 %v4831
        %6881 = vmatprep.subr.bf16.mxu0 %v4834
        %6882 = vmatpush1.bf16.msra.mxu0 %v4833
        %6883 = vmatprep.subr.bf16.mxu0 %v4836
        %6884 = vmatpush1.bf16.msra.mxu0 %v4835
        %6885 = vmatprep.mubr.bf16.mxu0 %v1314
        %6886 = vmatmul.mubr.bf16.gmra.mrb[0].mxu0 %v1300
        %v6887 = vpop.f32.mrb[0].mxu0
        %v6888 = vadd.f32 0.0, %v6887
        %v6889 = vpop.f32.mrb[0].mxu0
        %v6890 = vadd.f32 0.0, %v6889
        %v6891 = vpop.f32.mrb[0].mxu0
        %v6892 = vpop.f32.mrb[0].mxu0
        %6893 = vdwg.mxu0
        %6894 = vmatprep.subr.bf16.mxu0 %v4838
        %6895 = vmatpush1.bf16.msra.mxu0 %v4837
        %6896 = vmatprep.subr.bf16.mxu0 %v4840
        %6897 = vmatpush1.bf16.msra.mxu0 %v4839
        %6898 = vmatprep.subr.bf16.mxu0 %v4842
        %6899 = vmatpush1.bf16.msra.mxu0 %v4841
        %6900 = vmatprep.subr.bf16.mxu0 %v4844
        %6901 = vmatpush1.bf16.msra.mxu0 %v4843
        %6902 = vmatprep.subr.bf16.mxu0 %v4846
        %6903 = vmatpush1.bf16.msra.mxu0 %v4845
        %6904 = vmatprep.subr.bf16.mxu0 %v4848
        %6905 = vmatpush1.bf16.msra.mxu0 %v4847
        %6906 = vmatprep.subr.bf16.mxu0 %v4850
        %6907 = vmatpush1.bf16.msra.mxu0 %v4849
        %6908 = vmatprep.subr.bf16.mxu0 %v4852
        %6909 = vmatpush1.bf16.msra.mxu0 %v4851
        %6910 = vmatprep.subr.bf16.mxu0 %v4854
        %6911 = vmatpush1.bf16.msra.mxu0 %v4853
        %6912 = vmatprep.subr.bf16.mxu0 %v4856
        %6913 = vmatpush1.bf16.msra.mxu0 %v4855
        %6914 = vmatprep.subr.bf16.mxu0 %v4858
        %6915 = vmatpush1.bf16.msra.mxu0 %v4857
        %6916 = vmatprep.subr.bf16.mxu0 %v4860
        %6917 = vmatpush1.bf16.msra.mxu0 %v4859
        %6918 = vmatprep.subr.bf16.mxu0 %v4862
        %6919 = vmatpush1.bf16.msra.mxu0 %v4861
        %6920 = vmatprep.subr.bf16.mxu0 %v4864
        %6921 = vmatpush1.bf16.msra.mxu0 %v4863
        %6922 = vmatprep.subr.bf16.mxu0 %v4866
        %6923 = vmatpush1.bf16.msra.mxu0 %v4865
        %6924 = vmatprep.subr.bf16.mxu0 %v4868
        %6925 = vmatpush1.bf16.msra.mxu0 %v4867
        %6926 = vmatprep.mubr.bf16.mxu0 %v1324
        %6927 = vmatmul.mubr.bf16.gmra.mrb[0].mxu0 %v1322
        %v6928 = vpop.f32.mrb[0].mxu0
        %v6929 = vadd.f32 %v6888, %v6928
        %v6930 = vpop.f32.mrb[0].mxu0
        %v6931 = vadd.f32 %v6890, %v6930
        %v6932 = vpop.f32.mrb[0].mxu0
        %v6933 = vpop.f32.mrb[0].mxu0
        %6934 = vdwg.mxu0
        %6935 = vmatprep.subr.bf16.mxu0 %v4870
        %6936 = vmatpush1.bf16.msra.mxu0 %v4869
        %6937 = vmatprep.subr.bf16.mxu0 %v4872
        %6938 = vmatpush1.bf16.msra.mxu0 %v4871
        %6939 = vmatprep.subr.bf16.mxu0 %v4874
        %6940 = vmatpush1.bf16.msra.mxu0 %v4873
        %6941 = vmatprep.subr.bf16.mxu0 %v4876
        %6942 = vmatpush1.bf16.msra.mxu0 %v4875
        %6943 = vmatprep.subr.bf16.mxu0 %v4878
        %6944 = vmatpush1.bf16.msra.mxu0 %v4877
        %6945 = vmatprep.subr.bf16.mxu0 %v4880
        %6946 = vmatpush1.bf16.msra.mxu0 %v4879
        %6947 = vmatprep.subr.bf16.mxu0 %v4882
        %6948 = vmatpush1.bf16.msra.mxu0 %v4881
        %6949 = vmatprep.subr.bf16.mxu0 %v4884
        %6950 = vmatpush1.bf16.msra.mxu0 %v4883
        %6951 = vmatprep.subr.bf16.mxu0 %v4886
        %6952 = vmatpush1.bf16.msra.mxu0 %v4885
        %6953 = vmatprep.subr.bf16.mxu0 %v4888
        %6954 = vmatpush1.bf16.msra.mxu0 %v4887
        %6955 = vmatprep.subr.bf16.mxu0 %v4890
        %6956 = vmatpush1.bf16.msra.mxu0 %v4889
        %6957 = vmatprep.subr.bf16.mxu0 %v4892
        %6958 = vmatpush1.bf16.msra.mxu0 %v4891
        %6959 = vmatprep.subr.bf16.mxu0 %v4894
        %6960 = vmatpush1.bf16.msra.mxu0 %v4893
        %6961 = vmatprep.subr.bf16.mxu0 %v4896
        %6962 = vmatpush1.bf16.msra.mxu0 %v4895
        %6963 = vmatprep.subr.bf16.mxu0 %v4898
        %6964 = vmatpush1.bf16.msra.mxu0 %v4897
        %6965 = vmatprep.subr.bf16.mxu0 %v4900
        %6966 = vmatpush1.bf16.msra.mxu0 %v4899
        %6967 = vmatprep.mubr.bf16.mxu0 %v1321
        %6968 = vmatmul.mubr.bf16.gmra.mrb[0].mxu0 %v1307
        %v6969 = vpop.f32.mrb[0].mxu0
        %v6970 = vadd.f32 %v6929, %v6969
        %v6971 = vpop.f32.mrb[0].mxu0
        %v6972 = vadd.f32 %v6931, %v6971
        %v6973 = vpop.f32.mrb[0].mxu0
        %v6974 = vpop.f32.mrb[0].mxu0
        %6975 = vdwg.mxu0
        %6976 = vmatprep.subr.bf16.mxu0 %v4902
        %6977 = vmatpush1.bf16.msra.mxu0 %v4901
        %6978 = vmatprep.subr.bf16.mxu0 %v4904
        %6979 = vmatpush1.bf16.msra.mxu0 %v4903
        %6980 = vmatprep.subr.bf16.mxu0 %v4906
        %6981 = vmatpush1.bf16.msra.mxu0 %v4905
        %6982 = vmatprep.subr.bf16.mxu0 %v4908
        %6983 = vmatpush1.bf16.msra.mxu0 %v4907
        %6984 = vmatprep.subr.bf16.mxu0 %v4910
        %6985 = vmatpush1.bf16.msra.mxu0 %v4909
        %6986 = vmatprep.subr.bf16.mxu0 %v4912
        %6987 = vmatpush1.bf16.msra.mxu0 %v4911
        %6988 = vmatprep.subr.bf16.mxu0 %v4914
        %6989 = vmatpush1.bf16.msra.mxu0 %v4913
        %6990 = vmatprep.subr.bf16.mxu0 %v4916
        %6991 = vmatpush1.bf16.msra.mxu0 %v4915
        %6992 = vmatprep.subr.bf16.mxu0 %v4918
        %6993 = vmatpush1.bf16.msra.mxu0 %v4917
        %6994 = vmatprep.subr.bf16.mxu0 %v4920
        %6995 = vmatpush1.bf16.msra.mxu0 %v4919
        %6996 = vmatprep.subr.bf16.mxu0 %v4922
        %6997 = vmatpush1.bf16.msra.mxu0 %v4921
        %6998 = vmatprep.subr.bf16.mxu0 %v4924
        %6999 = vmatpush1.bf16.msra.mxu0 %v4923
        %7000 = vmatprep.subr.bf16.mxu0 %v4926
        %7001 = vmatpush1.bf16.msra.mxu0 %v4925
        %7002 = vmatprep.subr.bf16.mxu0 %v4928
        %7003 = vmatpush1.bf16.msra.mxu0 %v4927
        %7004 = vmatprep.subr.bf16.mxu0 %v4930
        %7005 = vmatpush1.bf16.msra.mxu0 %v4929
        %7006 = vmatprep.subr.bf16.mxu0 %v4932
        %7007 = vmatpush1.bf16.msra.mxu0 %v4931
        %7008 = vmatprep.mubr.bf16.mxu0 %v1325
        %7009 = vmatmul.mubr.bf16.gmra.mrb[0].mxu0 %v1323
        %v7010 = vpop.f32.mrb[0].mxu0
        %v7011 = vadd.f32 %v6970, %v7010
        %v7012 = vpop.f32.mrb[0].mxu0
        %v7013 = vadd.f32 %v6972, %v7012
        %v7014 = vpop.f32.mrb[0].mxu0
        %v7015 = vpop.f32.mrb[0].mxu0
        %7016 = vdwg.mxu0
        %7017 = vmatprep.subr.bf16.mxu0 %v4934
        %7018 = vmatpush1.bf16.msra.mxu0 %v4933
        %7019 = vmatprep.subr.bf16.mxu0 %v4936
        %7020 = vmatpush1.bf16.msra.mxu0 %v4935
        %7021 = vmatprep.subr.bf16.mxu0 %v4938
        %7022 = vmatpush1.bf16.msra.mxu0 %v4937
        %7023 = vmatprep.subr.bf16.mxu0 %v4940
        %7024 = vmatpush1.bf16.msra.mxu0 %v4939
        %7025 = vmatprep.subr.bf16.mxu0 %v4942
        %7026 = vmatpush1.bf16.msra.mxu0 %v4941
        %7027 = vmatprep.subr.bf16.mxu0 %v4944
        %7028 = vmatpush1.bf16.msra.mxu0 %v4943
        %7029 = vmatprep.subr.bf16.mxu0 %v4946
        %7030 = vmatpush1.bf16.msra.mxu0 %v4945
        %7031 = vmatprep.subr.bf16.mxu0 %v4948
        %7032 = vmatpush1.bf16.msra.mxu0 %v4947
        %7033 = vmatprep.subr.bf16.mxu0 %v4950
        %7034 = vmatpush1.bf16.msra.mxu0 %v4949
        %7035 = vmatprep.subr.bf16.mxu0 %v4952
        %7036 = vmatpush1.bf16.msra.mxu0 %v4951
        %7037 = vmatprep.subr.bf16.mxu0 %v4954
        %7038 = vmatpush1.bf16.msra.mxu0 %v4953
        %7039 = vmatprep.subr.bf16.mxu0 %v4956
        %7040 = vmatpush1.bf16.msra.mxu0 %v4955
        %7041 = vmatprep.subr.bf16.mxu0 %v4958
        %7042 = vmatpush1.bf16.msra.mxu0 %v4957
        %7043 = vmatprep.subr.bf16.mxu0 %v4960
        %7044 = vmatpush1.bf16.msra.mxu0 %v4959
        %7045 = vmatprep.subr.bf16.mxu0 %v4962
        %7046 = vmatpush1.bf16.msra.mxu0 %v4961
        %7047 = vmatprep.subr.bf16.mxu0 %v4964
        %7048 = vmatpush1.bf16.msra.mxu0 %v4963
        %7049 = vmatprep.mubr.bf16.mxu0 %v1363
        %7050 = vmatmul.mubr.bf16.gmra.mrb[0].mxu0 %v1349
        %v7051 = vpop.f32.mrb[0].mxu0
        %v7052 = vadd.f32 %v7011, %v7051
        %v7053 = vpop.f32.mrb[0].mxu0
        %v7054 = vadd.f32 %v7013, %v7053
        %v7055 = vpop.f32.mrb[0].mxu0
        %v7056 = vpop.f32.mrb[0].mxu0
        %7057 = vdwg.mxu0
        %7058 = vmatprep.subr.bf16.mxu0 %v4966
        %7059 = vmatpush1.bf16.msra.mxu0 %v4965
        %7060 = vmatprep.subr.bf16.mxu0 %v4968
        %7061 = vmatpush1.bf16.msra.mxu0 %v4967
        %7062 = vmatprep.subr.bf16.mxu0 %v4970
        %7063 = vmatpush1.bf16.msra.mxu0 %v4969
        %7064 = vmatprep.subr.bf16.mxu0 %v4972
        %7065 = vmatpush1.bf16.msra.mxu0 %v4971
        %7066 = vmatprep.subr.bf16.mxu0 %v4974
        %7067 = vmatpush1.bf16.msra.mxu0 %v4973
        %7068 = vmatprep.subr.bf16.mxu0 %v4976
        %7069 = vmatpush1.bf16.msra.mxu0 %v4975
        %7070 = vmatprep.subr.bf16.mxu0 %v4978
        %7071 = vmatpush1.bf16.msra.mxu0 %v4977
        %7072 = vmatprep.subr.bf16.mxu0 %v4980
        %7073 = vmatpush1.bf16.msra.mxu0 %v4979
        %7074 = vmatprep.subr.bf16.mxu0 %v4982
        %7075 = vmatpush1.bf16.msra.mxu0 %v4981
        %7076 = vmatprep.subr.bf16.mxu0 %v4984
        %7077 = vmatpush1.bf16.msra.mxu0 %v4983
        %7078 = vmatprep.subr.bf16.mxu0 %v4986
        %7079 = vmatpush1.bf16.msra.mxu0 %v4985
        %7080 = vmatprep.subr.bf16.mxu0 %v4988
        %7081 = vmatpush1.bf16.msra.mxu0 %v4987
        %7082 = vmatprep.subr.bf16.mxu0 %v4990
        %7083 = vmatpush1.bf16.msra.mxu0 %v4989
        %7084 = vmatprep.subr.bf16.mxu0 %v4992
        %7085 = vmatpush1.bf16.msra.mxu0 %v4991
        %7086 = vmatprep.subr.bf16.mxu0 %v4994
        %7087 = vmatpush1.bf16.msra.mxu0 %v4993
        %7088 = vmatprep.subr.bf16.mxu0 %v4996
        %7089 = vmatpush1.bf16.msra.mxu0 %v4995
        %7090 = vmatprep.mubr.bf16.mxu0 %v1373
        %7091 = vmatmul.mubr.bf16.gmra.mrb[0].mxu0 %v1371
        %v7092 = vpop.f32.mrb[0].mxu0
        %v7093 = vadd.f32 %v7052, %v7092
        %v7094 = vpop.f32.mrb[0].mxu0
        %v7095 = vadd.f32 %v7054, %v7094
        %v7096 = vpop.f32.mrb[0].mxu0
        %v7097 = vpop.f32.mrb[0].mxu0
        %7098 = vdwg.mxu0
        %7099 = vmatprep.subr.bf16.mxu0 %v4998
        %7100 = vmatpush1.bf16.msra.mxu0 %v4997
        %7101 = vmatprep.subr.bf16.mxu0 %v5000
        %7102 = vmatpush1.bf16.msra.mxu0 %v4999
        %7103 = vmatprep.subr.bf16.mxu0 %v5002
        %7104 = vmatpush1.bf16.msra.mxu0 %v5001
        %7105 = vmatprep.subr.bf16.mxu0 %v5004
        %7106 = vmatpush1.bf16.msra.mxu0 %v5003
        %7107 = vmatprep.subr.bf16.mxu0 %v5006
        %7108 = vmatpush1.bf16.msra.mxu0 %v5005
        %7109 = vmatprep.subr.bf16.mxu0 %v5008
        %7110 = vmatpush1.bf16.msra.mxu0 %v5007
        %7111 = vmatprep.subr.bf16.mxu0 %v5010
        %7112 = vmatpush1.bf16.msra.mxu0 %v5009
        %7113 = vmatprep.subr.bf16.mxu0 %v5012
        %7114 = vmatpush1.bf16.msra.mxu0 %v5011
        %7115 = vmatprep.subr.bf16.mxu0 %v5014
        %7116 = vmatpush1.bf16.msra.mxu0 %v5013
        %7117 = vmatprep.subr.bf16.mxu0 %v5016
        %7118 = vmatpush1.bf16.msra.mxu0 %v5015
        %7119 = vmatprep.subr.bf16.mxu0 %v5018
        %7120 = vmatpush1.bf16.msra.mxu0 %v5017
        %7121 = vmatprep.subr.bf16.mxu0 %v5020
        %7122 = vmatpush1.bf16.msra.mxu0 %v5019
        %7123 = vmatprep.subr.bf16.mxu0 %v5022
        %7124 = vmatpush1.bf16.msra.mxu0 %v5021
        %7125 = vmatprep.subr.bf16.mxu0 %v5024
        %7126 = vmatpush1.bf16.msra.mxu0 %v5023
        %7127 = vmatprep.subr.bf16.mxu0 %v5026
        %7128 = vmatpush1.bf16.msra.mxu0 %v5025
        %7129 = vmatprep.subr.bf16.mxu0 %v5028
        %7130 = vmatpush1.bf16.msra.mxu0 %v5027
        %7131 = vmatprep.mubr.bf16.mxu0 %v1370
        %7132 = vmatmul.mubr.bf16.gmra.mrb[0].mxu0 %v1356
        %v7133 = vpop.f32.mrb[0].mxu0
        %v7134 = vadd.f32 %v7093, %v7133
        %v7135 = vpop.f32.mrb[0].mxu0
        %v7136 = vadd.f32 %v7095, %v7135
        %v7137 = vpop.f32.mrb[0].mxu0
        %v7138 = vpop.f32.mrb[0].mxu0
        %7139 = vdwg.mxu0
        %7140 = vmatprep.subr.bf16.mxu0 %v5030
        %7141 = vmatpush1.bf16.msra.mxu0 %v5029
        %7142 = vmatprep.subr.bf16.mxu0 %v5032
        %7143 = vmatpush1.bf16.msra.mxu0 %v5031
        %7144 = vmatprep.subr.bf16.mxu0 %v5034
        %7145 = vmatpush1.bf16.msra.mxu0 %v5033
        %7146 = vmatprep.subr.bf16.mxu0 %v5036
        %7147 = vmatpush1.bf16.msra.mxu0 %v5035
        %7148 = vmatprep.subr.bf16.mxu0 %v5038
        %7149 = vmatpush1.bf16.msra.mxu0 %v5037
        %7150 = vmatprep.subr.bf16.mxu0 %v5040
        %7151 = vmatpush1.bf16.msra.mxu0 %v5039
        %7152 = vmatprep.subr.bf16.mxu0 %v5042
        %7153 = vmatpush1.bf16.msra.mxu0 %v5041
        %7154 = vmatprep.subr.bf16.mxu0 %v5044
        %7155 = vmatpush1.bf16.msra.mxu0 %v5043
        %7156 = vmatprep.subr.bf16.mxu0 %v5046
        %7157 = vmatpush1.bf16.msra.mxu0 %v5045
        %7158 = vmatprep.subr.bf16.mxu0 %v5048
        %7159 = vmatpush1.bf16.msra.mxu0 %v5047
        %7160 = vmatprep.subr.bf16.mxu0 %v5050
        %7161 = vmatpush1.bf16.msra.mxu0 %v5049
        %7162 = vmatprep.subr.bf16.mxu0 %v5052
        %7163 = vmatpush1.bf16.msra.mxu0 %v5051
        %7164 = vmatprep.subr.bf16.mxu0 %v5054
        %7165 = vmatpush1.bf16.msra.mxu0 %v5053
        %7166 = vmatprep.subr.bf16.mxu0 %v5056
        %7167 = vmatpush1.bf16.msra.mxu0 %v5055
        %7168 = vmatprep.subr.bf16.mxu0 %v5058
        %7169 = vmatpush1.bf16.msra.mxu0 %v5057
        %7170 = vmatprep.subr.bf16.mxu0 %v5060
        %7171 = vmatpush1.bf16.msra.mxu0 %v5059
        %7172 = vmatprep.mubr.bf16.mxu0 %v1374
        %7173 = vmatmul.mubr.bf16.gmra.mrb[0].mxu0 %v1372
        %v7174 = vpop.f32.mrb[0].mxu0
        %v7175 = vadd.f32 %v7134, %v7174
        %v7176 = vpop.f32.mrb[0].mxu0
        %v7177 = vadd.f32 %v7136, %v7176
        %v7178 = vpop.f32.mrb[0].mxu0
        %v7179 = vpop.f32.mrb[0].mxu0
        %7180 = vdwg.mxu0
        %7181 = vmatprep.subr.bf16.mxu0 %v5062
        %7182 = vmatpush1.bf16.msra.mxu0 %v5061
        %7183 = vmatprep.subr.bf16.mxu0 %v5064
        %7184 = vmatpush1.bf16.msra.mxu0 %v5063
        %7185 = vmatprep.subr.bf16.mxu0 %v5066
        %7186 = vmatpush1.bf16.msra.mxu0 %v5065
        %7187 = vmatprep.subr.bf16.mxu0 %v5068
        %7188 = vmatpush1.bf16.msra.mxu0 %v5067
        %7189 = vmatprep.subr.bf16.mxu0 %v5070
        %7190 = vmatpush1.bf16.msra.mxu0 %v5069
        %7191 = vmatprep.subr.bf16.mxu0 %v5072
        %7192 = vmatpush1.bf16.msra.mxu0 %v5071
        %7193 = vmatprep.subr.bf16.mxu0 %v5074
        %7194 = vmatpush1.bf16.msra.mxu0 %v5073
        %7195 = vmatprep.subr.bf16.mxu0 %v5076
        %7196 = vmatpush1.bf16.msra.mxu0 %v5075
        %7197 = vmatprep.subr.bf16.mxu0 %v5078
        %7198 = vmatpush1.bf16.msra.mxu0 %v5077
        %7199 = vmatprep.subr.bf16.mxu0 %v5080
        %7200 = vmatpush1.bf16.msra.mxu0 %v5079
        %7201 = vmatprep.subr.bf16.mxu0 %v5082
        %7202 = vmatpush1.bf16.msra.mxu0 %v5081
        %7203 = vmatprep.subr.bf16.mxu0 %v5084
        %7204 = vmatpush1.bf16.msra.mxu0 %v5083
        %7205 = vmatprep.subr.bf16.mxu0 %v5086
        %7206 = vmatpush1.bf16.msra.mxu0 %v5085
        %7207 = vmatprep.subr.bf16.mxu0 %v5088
        %7208 = vmatpush1.bf16.msra.mxu0 %v5087
        %7209 = vmatprep.subr.bf16.mxu0 %v5090
        %7210 = vmatpush1.bf16.msra.mxu0 %v5089
        %7211 = vmatprep.subr.bf16.mxu0 %v5092
        %7212 = vmatpush1.bf16.msra.mxu0 %v5091
        %7213 = vmatprep.mubr.bf16.mxu0 %v1412
        %7214 = vmatmul.mubr.bf16.gmra.mrb[0].mxu0 %v1398
        %v7215 = vpop.f32.mrb[0].mxu0
        %v7216 = vadd.f32 %v7175, %v7215
        %v7217 = vpop.f32.mrb[0].mxu0
        %v7218 = vadd.f32 %v7177, %v7217
        %v7219 = vpop.f32.mrb[0].mxu0
        %v7220 = vpop.f32.mrb[0].mxu0
        %7221 = vdwg.mxu0
        %7222 = vmatprep.subr.bf16.mxu0 %v5094
        %7223 = vmatpush1.bf16.msra.mxu0 %v5093
        %7224 = vmatprep.subr.bf16.mxu0 %v5096
        %7225 = vmatpush1.bf16.msra.mxu0 %v5095
        %7226 = vmatprep.subr.bf16.mxu0 %v5098
        %7227 = vmatpush1.bf16.msra.mxu0 %v5097
        %7228 = vmatprep.subr.bf16.mxu0 %v5100
        %7229 = vmatpush1.bf16.msra.mxu0 %v5099
        %7230 = vmatprep.subr.bf16.mxu0 %v5102
        %7231 = vmatpush1.bf16.msra.mxu0 %v5101
        %7232 = vmatprep.subr.bf16.mxu0 %v5104
        %7233 = vmatpush1.bf16.msra.mxu0 %v5103
        %7234 = vmatprep.subr.bf16.mxu0 %v5106
        %7235 = vmatpush1.bf16.msra.mxu0 %v5105
        %7236 = vmatprep.subr.bf16.mxu0 %v5108
        %7237 = vmatpush1.bf16.msra.mxu0 %v5107
        %7238 = vmatprep.subr.bf16.mxu0 %v5110
        %7239 = vmatpush1.bf16.msra.mxu0 %v5109
        %7240 = vmatprep.subr.bf16.mxu0 %v5112
        %7241 = vmatpush1.bf16.msra.mxu0 %v5111
        %7242 = vmatprep.subr.bf16.mxu0 %v5114
        %7243 = vmatpush1.bf16.msra.mxu0 %v5113
        %7244 = vmatprep.subr.bf16.mxu0 %v5116
        %7245 = vmatpush1.bf16.msra.mxu0 %v5115
        %7246 = vmatprep.subr.bf16.mxu0 %v5118
        %7247 = vmatpush1.bf16.msra.mxu0 %v5117
        %7248 = vmatprep.subr.bf16.mxu0 %v5120
        %7249 = vmatpush1.bf16.msra.mxu0 %v5119
        %7250 = vmatprep.subr.bf16.mxu0 %v5122
        %7251 = vmatpush1.bf16.msra.mxu0 %v5121
        %7252 = vmatprep.subr.bf16.mxu0 %v5124
        %7253 = vmatpush1.bf16.msra.mxu0 %v5123
        %7254 = vmatprep.mubr.bf16.mxu0 %v1422
        %7255 = vmatmul.mubr.bf16.gmra.mrb[0].mxu0 %v1420
        %v7256 = vpop.f32.mrb[0].mxu0
        %v7257 = vadd.f32 %v7216, %v7256
        %v7258 = vpop.f32.mrb[0].mxu0
        %v7259 = vadd.f32 %v7218, %v7258
        %v7260 = vpop.f32.mrb[0].mxu0
        %v7261 = vpop.f32.mrb[0].mxu0
        %7262 = vdwg.mxu0
        %7263 = vmatprep.subr.bf16.mxu0 %v5126
        %7264 = vmatpush1.bf16.msra.mxu0 %v5125
        %7265 = vmatprep.subr.bf16.mxu0 %v5128
        %7266 = vmatpush1.bf16.msra.mxu0 %v5127
        %7267 = vmatprep.subr.bf16.mxu0 %v5130
        %7268 = vmatpush1.bf16.msra.mxu0 %v5129
        %7269 = vmatprep.subr.bf16.mxu0 %v5132
        %7270 = vmatpush1.bf16.msra.mxu0 %v5131
        %7271 = vmatprep.subr.bf16.mxu0 %v5134
        %7272 = vmatpush1.bf16.msra.mxu0 %v5133
        %7273 = vmatprep.subr.bf16.mxu0 %v5136
        %7274 = vmatpush1.bf16.msra.mxu0 %v5135
        %7275 = vmatprep.subr.bf16.mxu0 %v5138
        %7276 = vmatpush1.bf16.msra.mxu0 %v5137
        %7277 = vmatprep.subr.bf16.mxu0 %v5140
        %7278 = vmatpush1.bf16.msra.mxu0 %v5139
        %7279 = vmatprep.subr.bf16.mxu0 %v5142
        %7280 = vmatpush1.bf16.msra.mxu0 %v5141
        %7281 = vmatprep.subr.bf16.mxu0 %v5144
        %7282 = vmatpush1.bf16.msra.mxu0 %v5143
        %7283 = vmatprep.subr.bf16.mxu0 %v5146
        %7284 = vmatpush1.bf16.msra.mxu0 %v5145
        %7285 = vmatprep.subr.bf16.mxu0 %v5148
        %7286 = vmatpush1.bf16.msra.mxu0 %v5147
        %7287 = vmatprep.subr.bf16.mxu0 %v5150
        %7288 = vmatpush1.bf16.msra.mxu0 %v5149
        %7289 = vmatprep.subr.bf16.mxu0 %v5152
        %7290 = vmatpush1.bf16.msra.mxu0 %v5151
        %7291 = vmatprep.subr.bf16.mxu0 %v5154
        %7292 = vmatpush1.bf16.msra.mxu0 %v5153
        %7293 = vmatprep.subr.bf16.mxu0 %v5156
        %7294 = vmatpush1.bf16.msra.mxu0 %v5155
        %7295 = vmatprep.mubr.bf16.mxu0 %v1419
        %7296 = vmatmul.mubr.bf16.gmra.mrb[0].mxu0 %v1405
        %v7297 = vpop.f32.mrb[0].mxu0
        %v7298 = vadd.f32 %v7257, %v7297
        %v7299 = vpop.f32.mrb[0].mxu0
        %v7300 = vadd.f32 %v7259, %v7299
        %v7301 = vpop.f32.mrb[0].mxu0
        %v7302 = vpop.f32.mrb[0].mxu0
        %7303 = vdwg.mxu0
        %7304 = vmatprep.subr.bf16.mxu0 %v5158
        %7305 = vmatpush1.bf16.msra.mxu0 %v5157
        %7306 = vmatprep.subr.bf16.mxu0 %v5160
        %7307 = vmatpush1.bf16.msra.mxu0 %v5159
        %7308 = vmatprep.subr.bf16.mxu0 %v5162
        %7309 = vmatpush1.bf16.msra.mxu0 %v5161
        %7310 = vmatprep.subr.bf16.mxu0 %v5164
        %7311 = vmatpush1.bf16.msra.mxu0 %v5163
        %7312 = vmatprep.subr.bf16.mxu0 %v5166
        %7313 = vmatpush1.bf16.msra.mxu0 %v5165
        %7314 = vmatprep.subr.bf16.mxu0 %v5168
        %7315 = vmatpush1.bf16.msra.mxu0 %v5167
        %7316 = vmatprep.subr.bf16.mxu0 %v5170
        %7317 = vmatpush1.bf16.msra.mxu0 %v5169
        %7318 = vmatprep.subr.bf16.mxu0 %v5172
        %7319 = vmatpush1.bf16.msra.mxu0 %v5171
        %7320 = vmatprep.subr.bf16.mxu0 %v5174
        %7321 = vmatpush1.bf16.msra.mxu0 %v5173
        %7322 = vmatprep.subr.bf16.mxu0 %v5176
        %7323 = vmatpush1.bf16.msra.mxu0 %v5175
        %7324 = vmatprep.subr.bf16.mxu0 %v5178
        %7325 = vmatpush1.bf16.msra.mxu0 %v5177
        %7326 = vmatprep.subr.bf16.mxu0 %v5180
        %7327 = vmatpush1.bf16.msra.mxu0 %v5179
        %7328 = vmatprep.subr.bf16.mxu0 %v5182
        %7329 = vmatpush1.bf16.msra.mxu0 %v5181
        %7330 = vmatprep.subr.bf16.mxu0 %v5184
        %7331 = vmatpush1.bf16.msra.mxu0 %v5183
        %7332 = vmatprep.subr.bf16.mxu0 %v5186
        %7333 = vmatpush1.bf16.msra.mxu0 %v5185
        %7334 = vmatprep.subr.bf16.mxu0 %v5188
        %7335 = vmatpush1.bf16.msra.mxu0 %v5187
        %7336 = vmatprep.mubr.bf16.mxu0 %v1423
        %7337 = vmatmul.mubr.bf16.gmra.mrb[0].mxu0 %v1421
        %v7338 = vpop.f32.mrb[0].mxu0
        %v7339 = vadd.f32 %v7298, %v7338
        %v7340 = vpop.f32.mrb[0].mxu0
        %v7341 = vadd.f32 %v7300, %v7340
        %v7342 = vpop.f32.mrb[0].mxu0
        %v7343 = vpop.f32.mrb[0].mxu0
        %7344 = vdwg.mxu0
        %7345 = vmatprep.subr.bf16.mxu0 %v5190
        %7346 = vmatpush1.bf16.msra.mxu0 %v5189
        %7347 = vmatprep.subr.bf16.mxu0 %v5192
        %7348 = vmatpush1.bf16.msra.mxu0 %v5191
        %7349 = vmatprep.subr.bf16.mxu0 %v5194
        %7350 = vmatpush1.bf16.msra.mxu0 %v5193
        %7351 = vmatprep.subr.bf16.mxu0 %v5196
        %7352 = vmatpush1.bf16.msra.mxu0 %v5195
        %7353 = vmatprep.subr.bf16.mxu0 %v5198
        %7354 = vmatpush1.bf16.msra.mxu0 %v5197
        %7355 = vmatprep.subr.bf16.mxu0 %v5200
        %7356 = vmatpush1.bf16.msra.mxu0 %v5199
        %7357 = vmatprep.subr.bf16.mxu0 %v5202
        %7358 = vmatpush1.bf16.msra.mxu0 %v5201
        %7359 = vmatprep.subr.bf16.mxu0 %v5204
        %7360 = vmatpush1.bf16.msra.mxu0 %v5203
        %7361 = vmatprep.subr.bf16.mxu0 %v5206
        %7362 = vmatpush1.bf16.msra.mxu0 %v5205
        %7363 = vmatprep.subr.bf16.mxu0 %v5208
        %7364 = vmatpush1.bf16.msra.mxu0 %v5207
        %7365 = vmatprep.subr.bf16.mxu0 %v5210
        %7366 = vmatpush1.bf16.msra.mxu0 %v5209
        %7367 = vmatprep.subr.bf16.mxu0 %v5212
        %7368 = vmatpush1.bf16.msra.mxu0 %v5211
        %7369 = vmatprep.subr.bf16.mxu0 %v5214
        %7370 = vmatpush1.bf16.msra.mxu0 %v5213
        %7371 = vmatprep.subr.bf16.mxu0 %v5216
        %7372 = vmatpush1.bf16.msra.mxu0 %v5215
        %7373 = vmatprep.subr.bf16.mxu0 %v5218
        %7374 = vmatpush1.bf16.msra.mxu0 %v5217
        %7375 = vmatprep.subr.bf16.mxu0 %v5220
        %7376 = vmatpush1.bf16.msra.mxu0 %v5219
        %7377 = vmatprep.mubr.bf16.mxu0 %v1461
        %7378 = vmatmul.mubr.bf16.gmra.mrb[0].mxu0 %v1447
        %v7379 = vpop.f32.mrb[0].mxu0
        %v7380 = vadd.f32 %v7339, %v7379
        %v7381 = vpop.f32.mrb[0].mxu0
        %v7382 = vadd.f32 %v7341, %v7381
        %v7383 = vpop.f32.mrb[0].mxu0
        %v7384 = vpop.f32.mrb[0].mxu0
        %7385 = vdwg.mxu0
        %7386 = vmatprep.subr.bf16.mxu0 %v5222
        %7387 = vmatpush1.bf16.msra.mxu0 %v5221
        %7388 = vmatprep.subr.bf16.mxu0 %v5224
        %7389 = vmatpush1.bf16.msra.mxu0 %v5223
        %7390 = vmatprep.subr.bf16.mxu0 %v5226
        %7391 = vmatpush1.bf16.msra.mxu0 %v5225
        %7392 = vmatprep.subr.bf16.mxu0 %v5228
        %7393 = vmatpush1.bf16.msra.mxu0 %v5227
        %7394 = vmatprep.subr.bf16.mxu0 %v5230
        %7395 = vmatpush1.bf16.msra.mxu0 %v5229
        %7396 = vmatprep.subr.bf16.mxu0 %v5232
        %7397 = vmatpush1.bf16.msra.mxu0 %v5231
        %7398 = vmatprep.subr.bf16.mxu0 %v5234
        %7399 = vmatpush1.bf16.msra.mxu0 %v5233
        %7400 = vmatprep.subr.bf16.mxu0 %v5236
        %7401 = vmatpush1.bf16.msra.mxu0 %v5235
        %7402 = vmatprep.subr.bf16.mxu0 %v5238
        %7403 = vmatpush1.bf16.msra.mxu0 %v5237
        %7404 = vmatprep.subr.bf16.mxu0 %v5240
        %7405 = vmatpush1.bf16.msra.mxu0 %v5239
        %7406 = vmatprep.subr.bf16.mxu0 %v5242
        %7407 = vmatpush1.bf16.msra.mxu0 %v5241
        %7408 = vmatprep.subr.bf16.mxu0 %v5244
        %7409 = vmatpush1.bf16.msra.mxu0 %v5243
        %7410 = vmatprep.subr.bf16.mxu0 %v5246
        %7411 = vmatpush1.bf16.msra.mxu0 %v5245
        %7412 = vmatprep.subr.bf16.mxu0 %v5248
        %7413 = vmatpush1.bf16.msra.mxu0 %v5247
        %7414 = vmatprep.subr.bf16.mxu0 %v5250
        %7415 = vmatpush1.bf16.msra.mxu0 %v5249
        %7416 = vmatprep.subr.bf16.mxu0 %v5252
        %7417 = vmatpush1.bf16.msra.mxu0 %v5251
        %7418 = vmatprep.mubr.bf16.mxu0 %v1471
        %7419 = vmatmul.mubr.bf16.gmra.mrb[0].mxu0 %v1469
        %v7420 = vpop.f32.mrb[0].mxu0
        %v7421 = vadd.f32 %v7380, %v7420
        %v7422 = vpop.f32.mrb[0].mxu0
        %v7423 = vadd.f32 %v7382, %v7422
        %v7424 = vpop.f32.mrb[0].mxu0
        %v7425 = vpop.f32.mrb[0].mxu0
        %7426 = vdwg.mxu0
        %7427 = vmatprep.subr.bf16.mxu0 %v5254
        %7428 = vmatpush1.bf16.msra.mxu0 %v5253
        %7429 = vmatprep.subr.bf16.mxu0 %v5256
        %7430 = vmatpush1.bf16.msra.mxu0 %v5255
        %7431 = vmatprep.subr.bf16.mxu0 %v5258
        %7432 = vmatpush1.bf16.msra.mxu0 %v5257
        %7433 = vmatprep.subr.bf16.mxu0 %v5260
        %7434 = vmatpush1.bf16.msra.mxu0 %v5259
        %7435 = vmatprep.subr.bf16.mxu0 %v5262
        %7436 = vmatpush1.bf16.msra.mxu0 %v5261
        %7437 = vmatprep.subr.bf16.mxu0 %v5264
        %7438 = vmatpush1.bf16.msra.mxu0 %v5263
        %7439 = vmatprep.subr.bf16.mxu0 %v5266
        %7440 = vmatpush1.bf16.msra.mxu0 %v5265
        %7441 = vmatprep.subr.bf16.mxu0 %v5268
        %7442 = vmatpush1.bf16.msra.mxu0 %v5267
        %7443 = vmatprep.subr.bf16.mxu0 %v5270
        %7444 = vmatpush1.bf16.msra.mxu0 %v5269
        %7445 = vmatprep.subr.bf16.mxu0 %v5272
        %7446 = vmatpush1.bf16.msra.mxu0 %v5271
        %7447 = vmatprep.subr.bf16.mxu0 %v5274
        %7448 = vmatpush1.bf16.msra.mxu0 %v5273
        %7449 = vmatprep.subr.bf16.mxu0 %v5276
        %7450 = vmatpush1.bf16.msra.mxu0 %v5275
        %7451 = vmatprep.subr.bf16.mxu0 %v5278
        %7452 = vmatpush1.bf16.msra.mxu0 %v5277
        %7453 = vmatprep.subr.bf16.mxu0 %v5280
        %7454 = vmatpush1.bf16.msra.mxu0 %v5279
        %7455 = vmatprep.subr.bf16.mxu0 %v5282
        %7456 = vmatpush1.bf16.msra.mxu0 %v5281
        %7457 = vmatprep.subr.bf16.mxu0 %v5284
        %7458 = vmatpush1.bf16.msra.mxu0 %v5283
        %7459 = vmatprep.mubr.bf16.mxu0 %v1468
        %7460 = vmatmul.mubr.bf16.gmra.mrb[0].mxu0 %v1454
        %v7461 = vpop.f32.mrb[0].mxu0
        %v7462 = vadd.f32 %v7421, %v7461
        %v7463 = vpop.f32.mrb[0].mxu0
        %v7464 = vadd.f32 %v7423, %v7463
        %v7465 = vpop.f32.mrb[0].mxu0
        %v7466 = vpop.f32.mrb[0].mxu0
        %7467 = vdwg.mxu0
        %7468 = vmatprep.subr.bf16.mxu0 %v5286
        %7469 = vmatpush1.bf16.msra.mxu0 %v5285
        %7470 = vmatprep.subr.bf16.mxu0 %v5288
        %7471 = vmatpush1.bf16.msra.mxu0 %v5287
        %7472 = vmatprep.subr.bf16.mxu0 %v5290
        %7473 = vmatpush1.bf16.msra.mxu0 %v5289
        %7474 = vmatprep.subr.bf16.mxu0 %v5292
        %7475 = vmatpush1.bf16.msra.mxu0 %v5291
        %7476 = vmatprep.subr.bf16.mxu0 %v5294
        %7477 = vmatpush1.bf16.msra.mxu0 %v5293
        %7478 = vmatprep.subr.bf16.mxu0 %v5296
        %7479 = vmatpush1.bf16.msra.mxu0 %v5295
        %7480 = vmatprep.subr.bf16.mxu0 %v5298
        %7481 = vmatpush1.bf16.msra.mxu0 %v5297
        %7482 = vmatprep.subr.bf16.mxu0 %v5300
        %7483 = vmatpush1.bf16.msra.mxu0 %v5299
        %7484 = vmatprep.subr.bf16.mxu0 %v5302
        %7485 = vmatpush1.bf16.msra.mxu0 %v5301
        %7486 = vmatprep.subr.bf16.mxu0 %v5304
        %7487 = vmatpush1.bf16.msra.mxu0 %v5303
        %7488 = vmatprep.subr.bf16.mxu0 %v5306
        %7489 = vmatpush1.bf16.msra.mxu0 %v5305
        %7490 = vmatprep.subr.bf16.mxu0 %v5308
        %7491 = vmatpush1.bf16.msra.mxu0 %v5307
        %7492 = vmatprep.subr.bf16.mxu0 %v5310
        %7493 = vmatpush1.bf16.msra.mxu0 %v5309
        %7494 = vmatprep.subr.bf16.mxu0 %v5312
        %7495 = vmatpush1.bf16.msra.mxu0 %v5311
        %7496 = vmatprep.subr.bf16.mxu0 %v5314
        %7497 = vmatpush1.bf16.msra.mxu0 %v5313
        %7498 = vmatprep.subr.bf16.mxu0 %v5316
        %7499 = vmatpush1.bf16.msra.mxu0 %v5315
        %7500 = vmatprep.mubr.bf16.mxu0 %v1472
        %7501 = vmatmul.mubr.bf16.gmra.mrb[0].mxu0 %v1470
        %v7502 = vpop.f32.mrb[0].mxu0
        %v7503 = vadd.f32 %v7462, %v7502
        %v7504 = vpop.f32.mrb[0].mxu0
        %v7505 = vadd.f32 %v7464, %v7504
        %v7506 = vpop.f32.mrb[0].mxu0
        %v7507 = vpop.f32.mrb[0].mxu0
        %7508 = vdwg.mxu0
        %7509 = vmatprep.subr.bf16.mxu0 %v5318
        %7510 = vmatpush1.bf16.msra.mxu0 %v5317
        %7511 = vmatprep.subr.bf16.mxu0 %v5320
        %7512 = vmatpush1.bf16.msra.mxu0 %v5319
        %7513 = vmatprep.subr.bf16.mxu0 %v5322
        %7514 = vmatpush1.bf16.msra.mxu0 %v5321
        %7515 = vmatprep.subr.bf16.mxu0 %v5324
        %7516 = vmatpush1.bf16.msra.mxu0 %v5323
        %7517 = vmatprep.subr.bf16.mxu0 %v5326
        %7518 = vmatpush1.bf16.msra.mxu0 %v5325
        %7519 = vmatprep.subr.bf16.mxu0 %v5328
        %7520 = vmatpush1.bf16.msra.mxu0 %v5327
        %7521 = vmatprep.subr.bf16.mxu0 %v5330
        %7522 = vmatpush1.bf16.msra.mxu0 %v5329
        %7523 = vmatprep.subr.bf16.mxu0 %v5332
        %7524 = vmatpush1.bf16.msra.mxu0 %v5331
        %7525 = vmatprep.subr.bf16.mxu0 %v5334
        %7526 = vmatpush1.bf16.msra.mxu0 %v5333
        %7527 = vmatprep.subr.bf16.mxu0 %v5336
        %7528 = vmatpush1.bf16.msra.mxu0 %v5335
        %7529 = vmatprep.subr.bf16.mxu0 %v5338
        %7530 = vmatpush1.bf16.msra.mxu0 %v5337
        %7531 = vmatprep.subr.bf16.mxu0 %v5340
        %7532 = vmatpush1.bf16.msra.mxu0 %v5339
        %7533 = vmatprep.subr.bf16.mxu0 %v5342
        %7534 = vmatpush1.bf16.msra.mxu0 %v5341
        %7535 = vmatprep.subr.bf16.mxu0 %v5344
        %7536 = vmatpush1.bf16.msra.mxu0 %v5343
        %7537 = vmatprep.subr.bf16.mxu0 %v5346
        %7538 = vmatpush1.bf16.msra.mxu0 %v5345
        %7539 = vmatprep.subr.bf16.mxu0 %v5348
        %7540 = vmatpush1.bf16.msra.mxu0 %v5347
        %7541 = vmatprep.mubr.bf16.mxu0 %v1510
        %7542 = vmatmul.mubr.bf16.gmra.mrb[0].mxu0 %v1496
        %v7543 = vpop.f32.mrb[0].mxu0
        %v7544 = vadd.f32 %v7503, %v7543
        %v7545 = vpop.f32.mrb[0].mxu0
        %v7546 = vadd.f32 %v7505, %v7545
        %v7547 = vpop.f32.mrb[0].mxu0
        %v7548 = vpop.f32.mrb[0].mxu0
        %7549 = vdwg.mxu0
        %7550 = vmatprep.subr.bf16.mxu0 %v5350
        %7551 = vmatpush1.bf16.msra.mxu0 %v5349
        %7552 = vmatprep.subr.bf16.mxu0 %v5352
        %7553 = vmatpush1.bf16.msra.mxu0 %v5351
        %7554 = vmatprep.subr.bf16.mxu0 %v5354
        %7555 = vmatpush1.bf16.msra.mxu0 %v5353
        %7556 = vmatprep.subr.bf16.mxu0 %v5356
        %7557 = vmatpush1.bf16.msra.mxu0 %v5355
        %7558 = vmatprep.subr.bf16.mxu0 %v5358
        %7559 = vmatpush1.bf16.msra.mxu0 %v5357
        %7560 = vmatprep.subr.bf16.mxu0 %v5360
        %7561 = vmatpush1.bf16.msra.mxu0 %v5359
        %7562 = vmatprep.subr.bf16.mxu0 %v5362
        %7563 = vmatpush1.bf16.msra.mxu0 %v5361
        %7564 = vmatprep.subr.bf16.mxu0 %v5364
        %7565 = vmatpush1.bf16.msra.mxu0 %v5363
        %7566 = vmatprep.subr.bf16.mxu0 %v5366
        %7567 = vmatpush1.bf16.msra.mxu0 %v5365
        %7568 = vmatprep.subr.bf16.mxu0 %v5368
        %7569 = vmatpush1.bf16.msra.mxu0 %v5367
        %7570 = vmatprep.subr.bf16.mxu0 %v5370
        %7571 = vmatpush1.bf16.msra.mxu0 %v5369
        %7572 = vmatprep.subr.bf16.mxu0 %v5372
        %7573 = vmatpush1.bf16.msra.mxu0 %v5371
        %7574 = vmatprep.subr.bf16.mxu0 %v5374
        %7575 = vmatpush1.bf16.msra.mxu0 %v5373
        %7576 = vmatprep.subr.bf16.mxu0 %v5376
        %7577 = vmatpush1.bf16.msra.mxu0 %v5375
        %7578 = vmatprep.subr.bf16.mxu0 %v5378
        %7579 = vmatpush1.bf16.msra.mxu0 %v5377
        %7580 = vmatprep.subr.bf16.mxu0 %v5380
        %7581 = vmatpush1.bf16.msra.mxu0 %v5379
        %7582 = vmatprep.mubr.bf16.mxu0 %v1520
        %7583 = vmatmul.mubr.bf16.gmra.mrb[0].mxu0 %v1518
        %v7584 = vpop.f32.mrb[0].mxu0
        %v7585 = vadd.f32 %v7544, %v7584
        %v7586 = vpop.f32.mrb[0].mxu0
        %v7587 = vadd.f32 %v7546, %v7586
        %v7588 = vpop.f32.mrb[0].mxu0
        %v7589 = vpop.f32.mrb[0].mxu0
        %7590 = vdwg.mxu0
        %7591 = vmatprep.subr.bf16.mxu0 %v5382
        %7592 = vmatpush1.bf16.msra.mxu0 %v5381
        %7593 = vmatprep.subr.bf16.mxu0 %v5384
        %7594 = vmatpush1.bf16.msra.mxu0 %v5383
        %7595 = vmatprep.subr.bf16.mxu0 %v5386
        %7596 = vmatpush1.bf16.msra.mxu0 %v5385
        %7597 = vmatprep.subr.bf16.mxu0 %v5388
        %7598 = vmatpush1.bf16.msra.mxu0 %v5387
        %7599 = vmatprep.subr.bf16.mxu0 %v5390
        %7600 = vmatpush1.bf16.msra.mxu0 %v5389
        %7601 = vmatprep.subr.bf16.mxu0 %v5392
        %7602 = vmatpush1.bf16.msra.mxu0 %v5391
        %7603 = vmatprep.subr.bf16.mxu0 %v5394
        %7604 = vmatpush1.bf16.msra.mxu0 %v5393
        %7605 = vmatprep.subr.bf16.mxu0 %v5396
        %7606 = vmatpush1.bf16.msra.mxu0 %v5395
        %7607 = vmatprep.subr.bf16.mxu0 %v5398
        %7608 = vmatpush1.bf16.msra.mxu0 %v5397
        %7609 = vmatprep.subr.bf16.mxu0 %v5400
        %7610 = vmatpush1.bf16.msra.mxu0 %v5399
        %7611 = vmatprep.subr.bf16.mxu0 %v5402
        %7612 = vmatpush1.bf16.msra.mxu0 %v5401
        %7613 = vmatprep.subr.bf16.mxu0 %v5404
        %7614 = vmatpush1.bf16.msra.mxu0 %v5403
        %7615 = vmatprep.subr.bf16.mxu0 %v5406
        %7616 = vmatpush1.bf16.msra.mxu0 %v5405
        %7617 = vmatprep.subr.bf16.mxu0 %v5408
        %7618 = vmatpush1.bf16.msra.mxu0 %v5407
        %7619 = vmatprep.subr.bf16.mxu0 %v5410
        %7620 = vmatpush1.bf16.msra.mxu0 %v5409
        %7621 = vmatprep.subr.bf16.mxu0 %v5412
        %7622 = vmatpush1.bf16.msra.mxu0 %v5411
        %7623 = vmatprep.mubr.bf16.mxu0 %v1517
        %7624 = vmatmul.mubr.bf16.gmra.mrb[0].mxu0 %v1503
        %v7625 = vpop.f32.mrb[0].mxu0
        %v7626 = vadd.f32 %v7585, %v7625
        %v7627 = vpop.f32.mrb[0].mxu0
        %v7628 = vadd.f32 %v7587, %v7627
        %v7629 = vpop.f32.mrb[0].mxu0
        %v7630 = vpop.f32.mrb[0].mxu0
        %7631 = vdwg.mxu0
        %7632 = vmatprep.subr.bf16.mxu0 %v5414
        %7633 = vmatpush1.bf16.msra.mxu0 %v5413
        %7634 = vmatprep.subr.bf16.mxu0 %v5416
        %7635 = vmatpush1.bf16.msra.mxu0 %v5415
        %7636 = vmatprep.subr.bf16.mxu0 %v5418
        %7637 = vmatpush1.bf16.msra.mxu0 %v5417
        %7638 = vmatprep.subr.bf16.mxu0 %v5420
        %7639 = vmatpush1.bf16.msra.mxu0 %v5419
        %7640 = vmatprep.subr.bf16.mxu0 %v5422
        %7641 = vmatpush1.bf16.msra.mxu0 %v5421
        %7642 = vmatprep.subr.bf16.mxu0 %v5424
        %7643 = vmatpush1.bf16.msra.mxu0 %v5423
        %7644 = vmatprep.subr.bf16.mxu0 %v5426
        %7645 = vmatpush1.bf16.msra.mxu0 %v5425
        %7646 = vmatprep.subr.bf16.mxu0 %v5428
        %7647 = vmatpush1.bf16.msra.mxu0 %v5427
        %7648 = vmatprep.subr.bf16.mxu0 %v5430
        %7649 = vmatpush1.bf16.msra.mxu0 %v5429
        %7650 = vmatprep.subr.bf16.mxu0 %v5432
        %7651 = vmatpush1.bf16.msra.mxu0 %v5431
        %7652 = vmatprep.subr.bf16.mxu0 %v5434
        %7653 = vmatpush1.bf16.msra.mxu0 %v5433
        %7654 = vmatprep.subr.bf16.mxu0 %v5436
        %7655 = vmatpush1.bf16.msra.mxu0 %v5435
        %7656 = vmatprep.subr.bf16.mxu0 %v5438
        %7657 = vmatpush1.bf16.msra.mxu0 %v5437
        %7658 = vmatprep.subr.bf16.mxu0 %v5440
        %7659 = vmatpush1.bf16.msra.mxu0 %v5439
        %7660 = vmatprep.subr.bf16.mxu0 %v5442
        %7661 = vmatpush1.bf16.msra.mxu0 %v5441
        %7662 = vmatprep.subr.bf16.mxu0 %v5444
        %7663 = vmatpush1.bf16.msra.mxu0 %v5443
        %7664 = vmatprep.mubr.bf16.mxu0 %v1521
        %7665 = vmatmul.mubr.bf16.gmra.mrb[0].mxu0 %v1519
        %v7666 = vpop.f32.mrb[0].mxu0
        %v7667 = vadd.f32 %v7626, %v7666
        %v7668 = vpop.f32.mrb[0].mxu0
        %v7669 = vadd.f32 %v7628, %v7668
        %v7670 = vpop.f32.mrb[0].mxu0
        %v7671 = vpop.f32.mrb[0].mxu0
        %7672 = vdwg.mxu0
        %7673 = vmatprep.subr.bf16.mxu0 %v5446
        %7674 = vmatpush1.bf16.msra.mxu0 %v5445
        %7675 = vmatprep.subr.bf16.mxu0 %v5448
        %7676 = vmatpush1.bf16.msra.mxu0 %v5447
        %7677 = vmatprep.subr.bf16.mxu0 %v5450
        %7678 = vmatpush1.bf16.msra.mxu0 %v5449
        %7679 = vmatprep.subr.bf16.mxu0 %v5452
        %7680 = vmatpush1.bf16.msra.mxu0 %v5451
        %7681 = vmatprep.subr.bf16.mxu0 %v5454
        %7682 = vmatpush1.bf16.msra.mxu0 %v5453
        %7683 = vmatprep.subr.bf16.mxu0 %v5456
        %7684 = vmatpush1.bf16.msra.mxu0 %v5455
        %7685 = vmatprep.subr.bf16.mxu0 %v5458
        %7686 = vmatpush1.bf16.msra.mxu0 %v5457
        %7687 = vmatprep.subr.bf16.mxu0 %v5460
        %7688 = vmatpush1.bf16.msra.mxu0 %v5459
        %7689 = vmatprep.subr.bf16.mxu0 %v5462
        %7690 = vmatpush1.bf16.msra.mxu0 %v5461
        %7691 = vmatprep.subr.bf16.mxu0 %v5464
        %7692 = vmatpush1.bf16.msra.mxu0 %v5463
        %7693 = vmatprep.subr.bf16.mxu0 %v5466
        %7694 = vmatpush1.bf16.msra.mxu0 %v5465
        %7695 = vmatprep.subr.bf16.mxu0 %v5468
        %7696 = vmatpush1.bf16.msra.mxu0 %v5467
        %7697 = vmatprep.subr.bf16.mxu0 %v5470
        %7698 = vmatpush1.bf16.msra.mxu0 %v5469
        %7699 = vmatprep.subr.bf16.mxu0 %v5472
        %7700 = vmatpush1.bf16.msra.mxu0 %v5471
        %7701 = vmatprep.subr.bf16.mxu0 %v5474
        %7702 = vmatpush1.bf16.msra.mxu0 %v5473
        %7703 = vmatprep.subr.bf16.mxu0 %v5476
        %7704 = vmatpush1.bf16.msra.mxu0 %v5475
        %7705 = vmatprep.mubr.bf16.mxu0 %v1559
        %7706 = vmatmul.mubr.bf16.gmra.mrb[0].mxu0 %v1545
        %v7707 = vpop.f32.mrb[0].mxu0
        %v7708 = vadd.f32 %v7667, %v7707
        %v7709 = vpop.f32.mrb[0].mxu0
        %v7710 = vadd.f32 %v7669, %v7709
        %v7711 = vpop.f32.mrb[0].mxu0
        %v7712 = vpop.f32.mrb[0].mxu0
        %7713 = vdwg.mxu0
        %7714 = vmatprep.subr.bf16.mxu0 %v5478
        %7715 = vmatpush1.bf16.msra.mxu0 %v5477
        %7716 = vmatprep.subr.bf16.mxu0 %v5480
        %7717 = vmatpush1.bf16.msra.mxu0 %v5479
        %7718 = vmatprep.subr.bf16.mxu0 %v5482
        %7719 = vmatpush1.bf16.msra.mxu0 %v5481
        %7720 = vmatprep.subr.bf16.mxu0 %v5484
        %7721 = vmatpush1.bf16.msra.mxu0 %v5483
        %7722 = vmatprep.subr.bf16.mxu0 %v5486
        %7723 = vmatpush1.bf16.msra.mxu0 %v5485
        %7724 = vmatprep.subr.bf16.mxu0 %v5488
        %7725 = vmatpush1.bf16.msra.mxu0 %v5487
        %7726 = vmatprep.subr.bf16.mxu0 %v5490
        %7727 = vmatpush1.bf16.msra.mxu0 %v5489
        %7728 = vmatprep.subr.bf16.mxu0 %v5492
        %7729 = vmatpush1.bf16.msra.mxu0 %v5491
        %7730 = vmatprep.subr.bf16.mxu0 %v5494
        %7731 = vmatpush1.bf16.msra.mxu0 %v5493
        %7732 = vmatprep.subr.bf16.mxu0 %v5496
        %7733 = vmatpush1.bf16.msra.mxu0 %v5495
        %7734 = vmatprep.subr.bf16.mxu0 %v5498
        %7735 = vmatpush1.bf16.msra.mxu0 %v5497
        %7736 = vmatprep.subr.bf16.mxu0 %v5500
        %7737 = vmatpush1.bf16.msra.mxu0 %v5499
        %7738 = vmatprep.subr.bf16.mxu0 %v5502
        %7739 = vmatpush1.bf16.msra.mxu0 %v5501
        %7740 = vmatprep.subr.bf16.mxu0 %v5504
        %7741 = vmatpush1.bf16.msra.mxu0 %v5503
        %7742 = vmatprep.subr.bf16.mxu0 %v5506
        %7743 = vmatpush1.bf16.msra.mxu0 %v5505
        %7744 = vmatprep.subr.bf16.mxu0 %v5508
        %7745 = vmatpush1.bf16.msra.mxu0 %v5507
        %7746 = vmatprep.mubr.bf16.mxu0 %v1569
        %7747 = vmatmul.mubr.bf16.gmra.mrb[0].mxu0 %v1567
        %v7748 = vpop.f32.mrb[0].mxu0
        %v7749 = vadd.f32 %v7708, %v7748
        %v7750 = vpop.f32.mrb[0].mxu0
        %v7751 = vadd.f32 %v7710, %v7750
        %v7752 = vpop.f32.mrb[0].mxu0
        %v7753 = vpop.f32.mrb[0].mxu0
        %7754 = vdwg.mxu0
        %7755 = vmatprep.subr.bf16.mxu0 %v5510
        %7756 = vmatpush1.bf16.msra.mxu0 %v5509
        %7757 = vmatprep.subr.bf16.mxu0 %v5512
        %7758 = vmatpush1.bf16.msra.mxu0 %v5511
        %7759 = vmatprep.subr.bf16.mxu0 %v5514
        %7760 = vmatpush1.bf16.msra.mxu0 %v5513
        %7761 = vmatprep.subr.bf16.mxu0 %v5516
        %7762 = vmatpush1.bf16.msra.mxu0 %v5515
        %7763 = vmatprep.subr.bf16.mxu0 %v5518
        %7764 = vmatpush1.bf16.msra.mxu0 %v5517
        %7765 = vmatprep.subr.bf16.mxu0 %v5520
        %7766 = vmatpush1.bf16.msra.mxu0 %v5519
        %7767 = vmatprep.subr.bf16.mxu0 %v5522
        %7768 = vmatpush1.bf16.msra.mxu0 %v5521
        %7769 = vmatprep.subr.bf16.mxu0 %v5524
        %7770 = vmatpush1.bf16.msra.mxu0 %v5523
        %7771 = vmatprep.subr.bf16.mxu0 %v5526
        %7772 = vmatpush1.bf16.msra.mxu0 %v5525
        %7773 = vmatprep.subr.bf16.mxu0 %v5528
        %7774 = vmatpush1.bf16.msra.mxu0 %v5527
        %7775 = vmatprep.subr.bf16.mxu0 %v5530
        %7776 = vmatpush1.bf16.msra.mxu0 %v5529
        %7777 = vmatprep.subr.bf16.mxu0 %v5532
        %7778 = vmatpush1.bf16.msra.mxu0 %v5531
        %7779 = vmatprep.subr.bf16.mxu0 %v5534
        %7780 = vmatpush1.bf16.msra.mxu0 %v5533
        %7781 = vmatprep.subr.bf16.mxu0 %v5536
        %7782 = vmatpush1.bf16.msra.mxu0 %v5535
        %7783 = vmatprep.subr.bf16.mxu0 %v5538
        %7784 = vmatpush1.bf16.msra.mxu0 %v5537
        %7785 = vmatprep.subr.bf16.mxu0 %v5540
        %7786 = vmatpush1.bf16.msra.mxu0 %v5539
        %7787 = vmatprep.mubr.bf16.mxu0 %v1566
        %7788 = vmatmul.mubr.bf16.gmra.mrb[0].mxu0 %v1552
        %v7789 = vpop.f32.mrb[0].mxu0
        %v7790 = vadd.f32 %v7749, %v7789
        %v7791 = vpop.f32.mrb[0].mxu0
        %v7792 = vadd.f32 %v7751, %v7791
        %v7793 = vpop.f32.mrb[0].mxu0
        %v7794 = vpop.f32.mrb[0].mxu0
        %7795 = vdwg.mxu0
        %7796 = vmatprep.subr.bf16.mxu0 %v5542
        %7797 = vmatpush1.bf16.msra.mxu0 %v5541
        %7798 = vmatprep.subr.bf16.mxu0 %v5544
        %7799 = vmatpush1.bf16.msra.mxu0 %v5543
        %7800 = vmatprep.subr.bf16.mxu0 %v5546
        %7801 = vmatpush1.bf16.msra.mxu0 %v5545
        %7802 = vmatprep.subr.bf16.mxu0 %v5548
        %7803 = vmatpush1.bf16.msra.mxu0 %v5547
        %7804 = vmatprep.subr.bf16.mxu0 %v5550
        %7805 = vmatpush1.bf16.msra.mxu0 %v5549
        %7806 = vmatprep.subr.bf16.mxu0 %v5552
        %7807 = vmatpush1.bf16.msra.mxu0 %v5551
        %7808 = vmatprep.subr.bf16.mxu0 %v5554
        %7809 = vmatpush1.bf16.msra.mxu0 %v5553
        %7810 = vmatprep.subr.bf16.mxu0 %v5556
        %7811 = vmatpush1.bf16.msra.mxu0 %v5555
        %7812 = vmatprep.subr.bf16.mxu0 %v5558
        %7813 = vmatpush1.bf16.msra.mxu0 %v5557
        %7814 = vmatprep.subr.bf16.mxu0 %v5560
        %7815 = vmatpush1.bf16.msra.mxu0 %v5559
        %7816 = vmatprep.subr.bf16.mxu0 %v5562
        %7817 = vmatpush1.bf16.msra.mxu0 %v5561
        %7818 = vmatprep.subr.bf16.mxu0 %v5564
        %7819 = vmatpush1.bf16.msra.mxu0 %v5563
        %7820 = vmatprep.subr.bf16.mxu0 %v5566
        %7821 = vmatpush1.bf16.msra.mxu0 %v5565
        %7822 = vmatprep.subr.bf16.mxu0 %v5568
        %7823 = vmatpush1.bf16.msra.mxu0 %v5567
        %7824 = vmatprep.subr.bf16.mxu0 %v5570
        %7825 = vmatpush1.bf16.msra.mxu0 %v5569
        %7826 = vmatprep.subr.bf16.mxu0 %v5572
        %7827 = vmatpush1.bf16.msra.mxu0 %v5571
        %7828 = vmatprep.mubr.bf16.mxu0 %v1570
        %7829 = vmatmul.mubr.bf16.gmra.mrb[0].mxu0 %v1568
        %v7830 = vpop.f32.mrb[0].mxu0
        %v7831 = vadd.f32 %v7790, %v7830
        %v7832 = vpop.f32.mrb[0].mxu0
        %v7833 = vadd.f32 %v7792, %v7832
        %v7834 = vpop.f32.mrb[0].mxu0
        %v7835 = vpop.f32.mrb[0].mxu0
        %7836 = vdwg.mxu0
        %7837 = vmatprep.subr.bf16.mxu0 %v5574
        %7838 = vmatpush1.bf16.msra.mxu0 %v5573
        %7839 = vmatprep.subr.bf16.mxu0 %v5576
        %7840 = vmatpush1.bf16.msra.mxu0 %v5575
        %7841 = vmatprep.subr.bf16.mxu0 %v5578
        %7842 = vmatpush1.bf16.msra.mxu0 %v5577
        %7843 = vmatprep.subr.bf16.mxu0 %v5580
        %7844 = vmatpush1.bf16.msra.mxu0 %v5579
        %7845 = vmatprep.subr.bf16.mxu0 %v5582
        %7846 = vmatpush1.bf16.msra.mxu0 %v5581
        %7847 = vmatprep.subr.bf16.mxu0 %v5584
        %7848 = vmatpush1.bf16.msra.mxu0 %v5583
        %7849 = vmatprep.subr.bf16.mxu0 %v5586
        %7850 = vmatpush1.bf16.msra.mxu0 %v5585
        %7851 = vmatprep.subr.bf16.mxu0 %v5588
        %7852 = vmatpush1.bf16.msra.mxu0 %v5587
        %7853 = vmatprep.subr.bf16.mxu0 %v5590
        %7854 = vmatpush1.bf16.msra.mxu0 %v5589
        %7855 = vmatprep.subr.bf16.mxu0 %v5592
        %7856 = vmatpush1.bf16.msra.mxu0 %v5591
        %7857 = vmatprep.subr.bf16.mxu0 %v5594
        %7858 = vmatpush1.bf16.msra.mxu0 %v5593
        %7859 = vmatprep.subr.bf16.mxu0 %v5596
        %7860 = vmatpush1.bf16.msra.mxu0 %v5595
        %7861 = vmatprep.subr.bf16.mxu0 %v5598
        %7862 = vmatpush1.bf16.msra.mxu0 %v5597
        %7863 = vmatprep.subr.bf16.mxu0 %v5600
        %7864 = vmatpush1.bf16.msra.mxu0 %v5599
        %7865 = vmatprep.subr.bf16.mxu0 %v5602
        %7866 = vmatpush1.bf16.msra.mxu0 %v5601
        %7867 = vmatprep.subr.bf16.mxu0 %v5604
        %7868 = vmatpush1.bf16.msra.mxu0 %v5603
        %7869 = vmatprep.mubr.bf16.mxu0 %v1608
        %7870 = vmatmul.mubr.bf16.gmra.mrb[0].mxu0 %v1594
        %v7871 = vpop.f32.mrb[0].mxu0
        %v7872 = vadd.f32 %v7831, %v7871
        %v7873 = vpop.f32.mrb[0].mxu0
        %v7874 = vadd.f32 %v7833, %v7873
        %v7875 = vpop.f32.mrb[0].mxu0
        %v7876 = vpop.f32.mrb[0].mxu0
        %7877 = vdwg.mxu0
        %7878 = vmatprep.subr.bf16.mxu0 %v5606
        %7879 = vmatpush1.bf16.msra.mxu0 %v5605
        %7880 = vmatprep.subr.bf16.mxu0 %v5608
        %7881 = vmatpush1.bf16.msra.mxu0 %v5607
        %7882 = vmatprep.subr.bf16.mxu0 %v5610
        %7883 = vmatpush1.bf16.msra.mxu0 %v5609
        %7884 = vmatprep.subr.bf16.mxu0 %v5612
        %7885 = vmatpush1.bf16.msra.mxu0 %v5611
        %7886 = vmatprep.subr.bf16.mxu0 %v5614
        %7887 = vmatpush1.bf16.msra.mxu0 %v5613
        %7888 = vmatprep.subr.bf16.mxu0 %v5616
        %7889 = vmatpush1.bf16.msra.mxu0 %v5615
        %7890 = vmatprep.subr.bf16.mxu0 %v5618
        %7891 = vmatpush1.bf16.msra.mxu0 %v5617
        %7892 = vmatprep.subr.bf16.mxu0 %v5620
        %7893 = vmatpush1.bf16.msra.mxu0 %v5619
        %7894 = vmatprep.subr.bf16.mxu0 %v5622
        %7895 = vmatpush1.bf16.msra.mxu0 %v5621
        %7896 = vmatprep.subr.bf16.mxu0 %v5624
        %7897 = vmatpush1.bf16.msra.mxu0 %v5623
        %7898 = vmatprep.subr.bf16.mxu0 %v5626
        %7899 = vmatpush1.bf16.msra.mxu0 %v5625
        %7900 = vmatprep.subr.bf16.mxu0 %v5628
        %7901 = vmatpush1.bf16.msra.mxu0 %v5627
        %7902 = vmatprep.subr.bf16.mxu0 %v5630
        %7903 = vmatpush1.bf16.msra.mxu0 %v5629
        %7904 = vmatprep.subr.bf16.mxu0 %v5632
        %7905 = vmatpush1.bf16.msra.mxu0 %v5631
        %7906 = vmatprep.subr.bf16.mxu0 %v5634
        %7907 = vmatpush1.bf16.msra.mxu0 %v5633
        %7908 = vmatprep.subr.bf16.mxu0 %v5636
        %7909 = vmatpush1.bf16.msra.mxu0 %v5635
        %7910 = vmatprep.mubr.bf16.mxu0 %v1618
        %7911 = vmatmul.mubr.bf16.gmra.mrb[0].mxu0 %v1616
        %v7912 = vpop.f32.mrb[0].mxu0
        %v7913 = vadd.f32 %v7872, %v7912
        %v7914 = vpop.f32.mrb[0].mxu0
        %v7915 = vadd.f32 %v7874, %v7914
        %v7916 = vpop.f32.mrb[0].mxu0
        %v7917 = vpop.f32.mrb[0].mxu0
        %7918 = vdwg.mxu0
        %7919 = vmatprep.subr.bf16.mxu0 %v5638
        %7920 = vmatpush1.bf16.msra.mxu0 %v5637
        %7921 = vmatprep.subr.bf16.mxu0 %v5640
        %7922 = vmatpush1.bf16.msra.mxu0 %v5639
        %7923 = vmatprep.subr.bf16.mxu0 %v5642
        %7924 = vmatpush1.bf16.msra.mxu0 %v5641
        %7925 = vmatprep.subr.bf16.mxu0 %v5644
        %7926 = vmatpush1.bf16.msra.mxu0 %v5643
        %7927 = vmatprep.subr.bf16.mxu0 %v5646
        %7928 = vmatpush1.bf16.msra.mxu0 %v5645
        %7929 = vmatprep.subr.bf16.mxu0 %v5648
        %7930 = vmatpush1.bf16.msra.mxu0 %v5647
        %7931 = vmatprep.subr.bf16.mxu0 %v5650
        %7932 = vmatpush1.bf16.msra.mxu0 %v5649
        %7933 = vmatprep.subr.bf16.mxu0 %v5652
        %7934 = vmatpush1.bf16.msra.mxu0 %v5651
        %7935 = vmatprep.subr.bf16.mxu0 %v5654
        %7936 = vmatpush1.bf16.msra.mxu0 %v5653
        %7937 = vmatprep.subr.bf16.mxu0 %v5656
        %7938 = vmatpush1.bf16.msra.mxu0 %v5655
        %7939 = vmatprep.subr.bf16.mxu0 %v5658
        %7940 = vmatpush1.bf16.msra.mxu0 %v5657
        %7941 = vmatprep.subr.bf16.mxu0 %v5660
        %7942 = vmatpush1.bf16.msra.mxu0 %v5659
        %7943 = vmatprep.subr.bf16.mxu0 %v5662
        %7944 = vmatpush1.bf16.msra.mxu0 %v5661
        %7945 = vmatprep.subr.bf16.mxu0 %v5664
        %7946 = vmatpush1.bf16.msra.mxu0 %v5663
        %7947 = vmatprep.subr.bf16.mxu0 %v5666
        %7948 = vmatpush1.bf16.msra.mxu0 %v5665
        %7949 = vmatprep.subr.bf16.mxu0 %v5668
        %7950 = vmatpush1.bf16.msra.mxu0 %v5667
        %7951 = vmatprep.mubr.bf16.mxu0 %v1615
        %7952 = vmatmul.mubr.bf16.gmra.mrb[0].mxu0 %v1601
        %v7953 = vpop.f32.mrb[0].mxu0
        %v7954 = vadd.f32 %v7913, %v7953
        %v7955 = vpop.f32.mrb[0].mxu0
        %v7956 = vadd.f32 %v7915, %v7955
        %v7957 = vpop.f32.mrb[0].mxu0
        %v7958 = vpop.f32.mrb[0].mxu0
        %7959 = vdwg.mxu0
        %7960 = vmatprep.subr.bf16.mxu0 %v5670
        %7961 = vmatpush1.bf16.msra.mxu0 %v5669
        %7962 = vmatprep.subr.bf16.mxu0 %v5672
        %7963 = vmatpush1.bf16.msra.mxu0 %v5671
        %7964 = vmatprep.subr.bf16.mxu0 %v5674
        %7965 = vmatpush1.bf16.msra.mxu0 %v5673
        %7966 = vmatprep.subr.bf16.mxu0 %v5676
        %7967 = vmatpush1.bf16.msra.mxu0 %v5675
        %7968 = vmatprep.subr.bf16.mxu0 %v5678
        %7969 = vmatpush1.bf16.msra.mxu0 %v5677
        %7970 = vmatprep.subr.bf16.mxu0 %v5680
        %7971 = vmatpush1.bf16.msra.mxu0 %v5679
        %7972 = vmatprep.subr.bf16.mxu0 %v5682
        %7973 = vmatpush1.bf16.msra.mxu0 %v5681
        %7974 = vmatprep.subr.bf16.mxu0 %v5684
        %7975 = vmatpush1.bf16.msra.mxu0 %v5683
        %7976 = vmatprep.subr.bf16.mxu0 %v5686
        %7977 = vmatpush1.bf16.msra.mxu0 %v5685
        %7978 = vmatprep.subr.bf16.mxu0 %v5688
        %7979 = vmatpush1.bf16.msra.mxu0 %v5687
        %7980 = vmatprep.subr.bf16.mxu0 %v5690
        %7981 = vmatpush1.bf16.msra.mxu0 %v5689
        %7982 = vmatprep.subr.bf16.mxu0 %v5692
        %7983 = vmatpush1.bf16.msra.mxu0 %v5691
        %7984 = vmatprep.subr.bf16.mxu0 %v5694
        %7985 = vmatpush1.bf16.msra.mxu0 %v5693
        %7986 = vmatprep.subr.bf16.mxu0 %v5696
        %7987 = vmatpush1.bf16.msra.mxu0 %v5695
        %7988 = vmatprep.subr.bf16.mxu0 %v5698
        %7989 = vmatpush1.bf16.msra.mxu0 %v5697
        %7990 = vmatprep.subr.bf16.mxu0 %v5700
        %7991 = vmatpush1.bf16.msra.mxu0 %v5699
        %7992 = vmatprep.mubr.bf16.mxu0 %v1619
        %7993 = vmatmul.mubr.bf16.gmra.mrb[0].mxu0 %v1617
        %v7994 = vpop.f32.mrb[0].mxu0
        %v7995 = vadd.f32 %v7954, %v7994
        %v7996 = vpop.f32.mrb[0].mxu0
        %v7997 = vadd.f32 %v7956, %v7996
        %v7998 = vpop.f32.mrb[0].mxu0
        %v7999 = vpop.f32.mrb[0].mxu0
        %8000 = vdwg.mxu0
        %8001 = vmatprep.subr.bf16.mxu0 %v5702
        %8002 = vmatpush1.bf16.msra.mxu0 %v5701
        %8003 = vmatprep.subr.bf16.mxu0 %v5704
        %8004 = vmatpush1.bf16.msra.mxu0 %v5703
        %8005 = vmatprep.subr.bf16.mxu0 %v5706
        %8006 = vmatpush1.bf16.msra.mxu0 %v5705
        %8007 = vmatprep.subr.bf16.mxu0 %v5708
        %8008 = vmatpush1.bf16.msra.mxu0 %v5707
        %8009 = vmatprep.subr.bf16.mxu0 %v5710
        %8010 = vmatpush1.bf16.msra.mxu0 %v5709
        %8011 = vmatprep.subr.bf16.mxu0 %v5712
        %8012 = vmatpush1.bf16.msra.mxu0 %v5711
        %8013 = vmatprep.subr.bf16.mxu0 %v5714
        %8014 = vmatpush1.bf16.msra.mxu0 %v5713
        %8015 = vmatprep.subr.bf16.mxu0 %v5716
        %8016 = vmatpush1.bf16.msra.mxu0 %v5715
        %8017 = vmatprep.subr.bf16.mxu0 %v5718
        %8018 = vmatpush1.bf16.msra.mxu0 %v5717
        %8019 = vmatprep.subr.bf16.mxu0 %v5720
        %8020 = vmatpush1.bf16.msra.mxu0 %v5719
        %8021 = vmatprep.subr.bf16.mxu0 %v5722
        %8022 = vmatpush1.bf16.msra.mxu0 %v5721
        %8023 = vmatprep.subr.bf16.mxu0 %v5724
        %8024 = vmatpush1.bf16.msra.mxu0 %v5723
        %8025 = vmatprep.subr.bf16.mxu0 %v5726
        %8026 = vmatpush1.bf16.msra.mxu0 %v5725
        %8027 = vmatprep.subr.bf16.mxu0 %v5728
        %8028 = vmatpush1.bf16.msra.mxu0 %v5727
        %8029 = vmatprep.subr.bf16.mxu0 %v5730
        %8030 = vmatpush1.bf16.msra.mxu0 %v5729
        %8031 = vmatprep.subr.bf16.mxu0 %v5732
        %8032 = vmatpush1.bf16.msra.mxu0 %v5731
        %8033 = vmatprep.mubr.bf16.mxu0 %v1657
        %8034 = vmatmul.mubr.bf16.gmra.mrb[0].mxu0 %v1643
        %v8035 = vpop.f32.mrb[0].mxu0
        %v8036 = vadd.f32 %v7995, %v8035
        %v8037 = vpop.f32.mrb[0].mxu0
        %v8038 = vadd.f32 %v7997, %v8037
        %v8039 = vpop.f32.mrb[0].mxu0
        %v8040 = vpop.f32.mrb[0].mxu0
        %8041 = vdwg.mxu0
        %8042 = vmatprep.subr.bf16.mxu0 %v5734
        %8043 = vmatpush1.bf16.msra.mxu0 %v5733
        %8044 = vmatprep.subr.bf16.mxu0 %v5736
        %8045 = vmatpush1.bf16.msra.mxu0 %v5735
        %8046 = vmatprep.subr.bf16.mxu0 %v5738
        %8047 = vmatpush1.bf16.msra.mxu0 %v5737
        %8048 = vmatprep.subr.bf16.mxu0 %v5740
        %8049 = vmatpush1.bf16.msra.mxu0 %v5739
        %8050 = vmatprep.subr.bf16.mxu0 %v5742
        %8051 = vmatpush1.bf16.msra.mxu0 %v5741
        %8052 = vmatprep.subr.bf16.mxu0 %v5744
        %8053 = vmatpush1.bf16.msra.mxu0 %v5743
        %8054 = vmatprep.subr.bf16.mxu0 %v5746
        %8055 = vmatpush1.bf16.msra.mxu0 %v5745
        %8056 = vmatprep.subr.bf16.mxu0 %v5748
        %8057 = vmatpush1.bf16.msra.mxu0 %v5747
        %8058 = vmatprep.subr.bf16.mxu0 %v5750
        %8059 = vmatpush1.bf16.msra.mxu0 %v5749
        %8060 = vmatprep.subr.bf16.mxu0 %v5752
        %8061 = vmatpush1.bf16.msra.mxu0 %v5751
        %8062 = vmatprep.subr.bf16.mxu0 %v5754
        %8063 = vmatpush1.bf16.msra.mxu0 %v5753
        %8064 = vmatprep.subr.bf16.mxu0 %v5756
        %8065 = vmatpush1.bf16.msra.mxu0 %v5755
        %8066 = vmatprep.subr.bf16.mxu0 %v5758
        %8067 = vmatpush1.bf16.msra.mxu0 %v5757
        %8068 = vmatprep.subr.bf16.mxu0 %v5760
        %8069 = vmatpush1.bf16.msra.mxu0 %v5759
        %8070 = vmatprep.subr.bf16.mxu0 %v5762
        %8071 = vmatpush1.bf16.msra.mxu0 %v5761
        %8072 = vmatprep.subr.bf16.mxu0 %v5764
        %8073 = vmatpush1.bf16.msra.mxu0 %v5763
        %8074 = vmatprep.mubr.bf16.mxu0 %v1667
        %8075 = vmatmul.mubr.bf16.gmra.mrb[0].mxu0 %v1665
        %v8076 = vpop.f32.mrb[0].mxu0
        %v8077 = vadd.f32 %v8036, %v8076
        %v8078 = vpop.f32.mrb[0].mxu0
        %v8079 = vadd.f32 %v8038, %v8078
        %v8080 = vpop.f32.mrb[0].mxu0
        %v8081 = vpop.f32.mrb[0].mxu0
        %8082 = vdwg.mxu0
        %8083 = vmatprep.subr.bf16.mxu0 %v5766
        %8084 = vmatpush1.bf16.msra.mxu0 %v5765
        %8085 = vmatprep.subr.bf16.mxu0 %v5768
        %8086 = vmatpush1.bf16.msra.mxu0 %v5767
        %8087 = vmatprep.subr.bf16.mxu0 %v5770
        %8088 = vmatpush1.bf16.msra.mxu0 %v5769
        %8089 = vmatprep.subr.bf16.mxu0 %v5772
        %8090 = vmatpush1.bf16.msra.mxu0 %v5771
        %8091 = vmatprep.subr.bf16.mxu0 %v5774
        %8092 = vmatpush1.bf16.msra.mxu0 %v5773
        %8093 = vmatprep.subr.bf16.mxu0 %v5776
        %8094 = vmatpush1.bf16.msra.mxu0 %v5775
        %8095 = vmatprep.subr.bf16.mxu0 %v5778
        %8096 = vmatpush1.bf16.msra.mxu0 %v5777
        %8097 = vmatprep.subr.bf16.mxu0 %v5780
        %8098 = vmatpush1.bf16.msra.mxu0 %v5779
        %8099 = vmatprep.subr.bf16.mxu0 %v5782
        %8100 = vmatpush1.bf16.msra.mxu0 %v5781
        %8101 = vmatprep.subr.bf16.mxu0 %v5784
        %8102 = vmatpush1.bf16.msra.mxu0 %v5783
        %8103 = vmatprep.subr.bf16.mxu0 %v5786
        %8104 = vmatpush1.bf16.msra.mxu0 %v5785
        %8105 = vmatprep.subr.bf16.mxu0 %v5788
        %8106 = vmatpush1.bf16.msra.mxu0 %v5787
        %8107 = vmatprep.subr.bf16.mxu0 %v5790
        %8108 = vmatpush1.bf16.msra.mxu0 %v5789
        %8109 = vmatprep.subr.bf16.mxu0 %v5792
        %8110 = vmatpush1.bf16.msra.mxu0 %v5791
        %8111 = vmatprep.subr.bf16.mxu0 %v5794
        %8112 = vmatpush1.bf16.msra.mxu0 %v5793
        %8113 = vmatprep.subr.bf16.mxu0 %v5796
        %8114 = vmatpush1.bf16.msra.mxu0 %v5795
        %8115 = vmatprep.mubr.bf16.mxu0 %v1664
        %8116 = vmatmul.mubr.bf16.gmra.mrb[0].mxu0 %v1650
        %v8117 = vpop.f32.mrb[0].mxu0
        %v8118 = vadd.f32 %v8077, %v8117
        %v8119 = vpop.f32.mrb[0].mxu0
        %v8120 = vadd.f32 %v8079, %v8119
        %v8121 = vpop.f32.mrb[0].mxu0
        %v8122 = vpop.f32.mrb[0].mxu0
        %8123 = vdwg.mxu0
        %8124 = vmatprep.subr.bf16.mxu0 %v5798
        %8125 = vmatpush1.bf16.msra.mxu0 %v5797
        %8126 = vmatprep.subr.bf16.mxu0 %v5800
        %8127 = vmatpush1.bf16.msra.mxu0 %v5799
        %8128 = vmatprep.subr.bf16.mxu0 %v5802
        %8129 = vmatpush1.bf16.msra.mxu0 %v5801
        %8130 = vmatprep.subr.bf16.mxu0 %v5804
        %8131 = vmatpush1.bf16.msra.mxu0 %v5803
        %8132 = vmatprep.subr.bf16.mxu0 %v5806
        %8133 = vmatpush1.bf16.msra.mxu0 %v5805
        %8134 = vmatprep.subr.bf16.mxu0 %v5808
        %8135 = vmatpush1.bf16.msra.mxu0 %v5807
        %8136 = vmatprep.subr.bf16.mxu0 %v5810
        %8137 = vmatpush1.bf16.msra.mxu0 %v5809
        %8138 = vmatprep.subr.bf16.mxu0 %v5812
        %8139 = vmatpush1.bf16.msra.mxu0 %v5811
        %8140 = vmatprep.subr.bf16.mxu0 %v5814
        %8141 = vmatpush1.bf16.msra.mxu0 %v5813
        %8142 = vmatprep.subr.bf16.mxu0 %v5816
        %8143 = vmatpush1.bf16.msra.mxu0 %v5815
        %8144 = vmatprep.subr.bf16.mxu0 %v5818
        %8145 = vmatpush1.bf16.msra.mxu0 %v5817
        %8146 = vmatprep.subr.bf16.mxu0 %v5820
        %8147 = vmatpush1.bf16.msra.mxu0 %v5819
        %8148 = vmatprep.subr.bf16.mxu0 %v5822
        %8149 = vmatpush1.bf16.msra.mxu0 %v5821
        %8150 = vmatprep.subr.bf16.mxu0 %v5824
        %8151 = vmatpush1.bf16.msra.mxu0 %v5823
        %8152 = vmatprep.subr.bf16.mxu0 %v5826
        %8153 = vmatpush1.bf16.msra.mxu0 %v5825
        %8154 = vmatprep.subr.bf16.mxu0 %v5828
        %8155 = vmatpush1.bf16.msra.mxu0 %v5827
        %8156 = vmatprep.mubr.bf16.mxu0 %v1668
        %8157 = vmatmul.mubr.bf16.gmra.mrb[0].mxu0 %v1666
        %v8158 = vpop.f32.mrb[0].mxu0
        %v8159 = vadd.f32 %v8118, %v8158
        %v8160 = vpop.f32.mrb[0].mxu0
        %v8161 = vadd.f32 %v8120, %v8160
        %v8162 = vpop.f32.mrb[0].mxu0
        %v8163 = vpop.f32.mrb[0].mxu0
        %8164 = vdwg.mxu0
        %v8167 = vcombine.low %v8159, %v8161
        %v8169 = vunpack.c.l.s4 1983009808
        %v8170 = vunpack.c.0.s8 %v8169
        %v8171 = vlaneseq
        %v8172 = vshrl.u32 %v8171, 7
        %v8173 = vsub.s32 %v8170, %v8172
        %v8174 = vrot.slane %v8167, %v8173
        %v8176 = vadd.f32 %v236, %v8174
        %8177 = vst [vmem:[#allocation2] sm:$0xf] %v8176
        %p8178 = scmp.eq.s32.totalorder %s27, 3
        // Predicated region
        $region41: #{tpu_custom_call.1} parent=27 // pred_check
          %p8179 = pneg %p8178
        $region42: #{tpu_custom_call.1} parent=27 // pred_check_branch
          %8181 = sbr.rel (%p8179) target = $region44
        $region43: #{tpu_custom_call.1} parent=27 // pred_region
          %v8182 = vld [vmem:[#allocation2] sm:$0xf]
          %8183 = vst [vmem:[%s224] sm:$0xf] %v8182
        $region44: #{tpu_custom_call.1} parent=27 // pred_fallthru
          _
        %s8184 = sand.u32 %s102, 1
        %s8185 = scalar_lea.sflag [#allocation5], %s8184
        %s8186 = sand.u32 %s102, 1
        %s8187 = smul.addr %s8186, 4
        %s8188 = scalar_lea.vmem [#allocation8], %s8187
        // Predicated region
        $region45: #{tpu_custom_call.1} parent=27 // pred_check
          %p8189 = pneg %p112
        $region46: #{tpu_custom_call.1} parent=27 // pred_check_branch
          %8191 = sbr.rel (%p8189) target = $region48
        $region47: #{tpu_custom_call.1} parent=27 // pred_region
          %s8193 = ssub.s32 64, 64
          %8194 = vsyncadd %s8185, %s8193
          %s8195 = smul.addr %s26, 2
          %s8196 = smul.addr %s8195, 32
          %s8197 = scalar_lea.hbm %s2, %s8196
          %s8199 = sshll.u32 %s8188, 4
          %s8200 = int_to_ptr.vmem [resolvable:$true] %s8199
          %8202 = dma.vmem_to_hbm [thread:$0]  %s8200, 64, %s8197, %s8185
        $region48: #{tpu_custom_call.1} parent=27 // pred_fallthru
          _
      $region28: #{tpu_custom_call.1} parent=5 // pred_fallthru
        _
      %p8203 = scmp.le.s32.totalorder 2, %s17
      // Predicated region
      $region49: #{tpu_custom_call.1} parent=5 // pred_check
        %p8204 = pneg %p8203
      $region50: #{tpu_custom_call.1} parent=5 // pred_check_branch
        %8206 = sbr.rel (%p8204) target = $region52
      $region51: #{tpu_custom_call.1} parent=5 // pred_region
        %s8207 = ssub.s32 %s17, 2
        // Predicated region
        $region53: #{tpu_custom_call.1} parent=51 // pred_check
          %p8208 = pneg %p118
        $region54: #{tpu_custom_call.1} parent=51 // pred_check_branch
          %8210 = sbr.rel (%p8208) target = $region56
        $region55: #{tpu_custom_call.1} parent=51 // pred_region
          %s8211 = sand.u32 %s103, 1
          %s8212 = scalar_lea.sflag [#allocation5], %s8211
          %s8213 = sand.u32 %s103, 1
          %s8214 = smul.addr %s8213, 4
          %s8215 = scalar_lea.vmem [#allocation8], %s8214
          %8216 = dma.done %s8212, 64
        $region56: #{tpu_custom_call.1} parent=51 // pred_fallthru
          _
      $region52: #{tpu_custom_call.1} parent=5 // pred_fallthru
        _
    $region6: #{tpu_custom_call.1} parent=1 // loop_footer
      %s21 = sadd.s32 1, %s17
    $region7: #{tpu_custom_call.1} parent=1 // loop_footer_branch
      %16 = sbr.rel target = $region3
    $region8: #{tpu_custom_call.1} parent=1 // loop_exit
      _
    %8217 = vsyncpa [#allocation4], 1
    %s8218 = scalar_lea.sflag [#allocation4], 1
    %8219 = vsyncpa %s8218, 1
    %8220 = vsyncpa [#allocation7], 1
    %s8221 = scalar_lea.sflag [#allocation7], 1
    %8222 = vsyncpa %s8221, 1
    %8223 = vsyncpa [#allocation5], 1
    %s8224 = scalar_lea.sflag [#allocation5], 1
    %8225 = vsyncpa %s8224, 1

</llo_original>
